<compile_context>
chip_gen: v7x
topology: tpu7x:2x2x1
jax: 0.10.0
libtpu: 0.0.40
codegen_flags: <defaults>
</compile_context>

<pallas_src>
import numpy as np
import jax
import jax.numpy as jnp
from jax.experimental import pallas as pl
from jax.experimental.pallas import tpu as pltpu

BN_EPS = 1e-5
STRIDES = (4, 2, 1)  # static architecture constants


# --------------------------------------------------------------------------
# In-kernel helpers (operate on values, not refs; all loops are static)
# --------------------------------------------------------------------------
def _bn_relu_batch(zs, gamma, beta, out_dtype):
    """Training-mode BatchNorm2d + ReLU over a list of per-image (M_b, C) tiles.

    Batch statistics (mean, biased var) are accumulated across the list in a
    single pass (sum / sum-of-squares), then applied as one fused
    multiply-add per element: y = relu(z * scale + shift).
    """
    m_total = sum(z.shape[0] for z in zs)
    inv_m = 1.0 / m_total
    s = zs[0].sum(axis=0, keepdims=True)
    ss = (zs[0] * zs[0]).sum(axis=0, keepdims=True)
    for z in zs[1:]:
        s = s + z.sum(axis=0, keepdims=True)
        ss = ss + (z * z).sum(axis=0, keepdims=True)
    mean = s * inv_m
    var = jnp.maximum(ss * inv_m - mean * mean, 0.0)
    scale = jax.lax.rsqrt(var + BN_EPS) * gamma
    shift = beta - mean * scale
    return [jnp.maximum(z * scale + shift, 0.0).astype(out_dtype) for z in zs]


def _conv_via_selection(a_bf16, sel_ref, w_ref):
    """out = sum_t (sel[t] @ a) @ w[t]  -- all plain 2-D MXU matmuls.

    sel_ref: (KH*KW, M_out, M_in) per-image one-hot row selectors (bf16, exact).
    w_ref:   (KH*KW, C_in, C_out) per-offset conv weight (bf16).
    """
    acc = None
    for t in range(sel_ref.shape[0]):  # static unroll (<= 16 offsets)
        rows = jnp.dot(sel_ref[t], a_bf16,
                       preferred_element_type=jnp.float32).astype(jnp.bfloat16)
        contrib = jnp.dot(rows, w_ref[t], preferred_element_type=jnp.float32)
        acc = contrib if acc is None else acc + contrib
    return acc


# --------------------------------------------------------------------------
# Fused kernel
# --------------------------------------------------------------------------
def fused_convnet_kernel(p1_ref, w1_ref, g1_ref, b1_ref,
                         sel2_ref, w2_ref, g2_ref, b2_ref,
                         sel3_ref, w3_ref, g3_ref, b3_ref,
                         o_ref):
    n = p1_ref.shape[0]  # static batch size

    # Layer 1: im2col matmul (M1, K1) @ (K1, 32) per image, then BN + ReLU
    # with batch statistics accumulated over all images.
    z1 = [jnp.dot(p1_ref[b], w1_ref[...], preferred_element_type=jnp.float32)
          for b in range(n)]
    a1 = _bn_relu_batch(z1, g1_ref[...], b1_ref[...], jnp.bfloat16)

    # Layer 2: in-kernel patch gather via per-image one-hot selection matmuls.
    z2 = [_conv_via_selection(a1[b], sel2_ref, w2_ref) for b in range(n)]
    a2 = _bn_relu_batch(z2, g2_ref[...], b2_ref[...], jnp.bfloat16)

    # Layer 3.
    z3 = [_conv_via_selection(a2[b], sel3_ref, w3_ref) for b in range(n)]
    a3 = _bn_relu_batch(z3, g3_ref[...], b3_ref[...], jnp.float32)

    for b in range(n):
        o_ref[b] = a3[b]


# --------------------------------------------------------------------------
# Host-side helpers (all shapes/strides are static Python ints)
# --------------------------------------------------------------------------
def _im2col_khkwc(x_nhwc, kh, kw, stride):
    """(N,H,W,C) -> (N, OH*OW, KH*KW*C) patches in (kh, kw, c) column order.

    Kernel offsets are stacked just above the channel axis, so no minor-dim
    transpose of the activation is required; the conv weight is permuted to
    match instead.
    """
    N, H, W, C = x_nhwc.shape
    OH = (H - kh) // stride + 1
    OW = (W - kw) // stride + 1
    cols = []
    for i in range(kh):
        for j in range(kw):
            cols.append(x_nhwc[:, i:i + stride * (OH - 1) + 1:stride,
                               j:j + stride * (OW - 1) + 1:stride, :])
    p = jnp.stack(cols, axis=3)                      # (N, OH, OW, KH*KW, C)
    return p.reshape(N, OH * OW, kh * kw * C), OH, OW


def _selection_matrices(ih, iw, kh, kw, stride):
    """Per-image one-hot selectors: sel[t=i*kw+j, oh*ow + ..., s*oh+i, ...] = 1.

    Independent of the batch size (the kernel loops over images), so the
    constant footprint and the gather FLOPs scale O(N) instead of O(N^2).
    """
    oh = (ih - kh) // stride + 1
    ow = (iw - kw) // stride + 1
    sel = np.zeros((kh * kw, oh * ow, ih * iw), np.float32)
    rr, cc = np.meshgrid(np.arange(oh), np.arange(ow), indexing="ij")
    out_idx = (rr * ow + cc).ravel()
    for i in range(kh):
        for j in range(kw):
            in_idx = ((stride * rr + i) * iw + (stride * cc + j)).ravel()
            sel[i * kw + j, out_idx, in_idx] = 1.0
    # One-hot values are exactly representable in bf16.
    return jnp.asarray(sel, dtype=jnp.bfloat16), oh, ow


def init_params(key, input_channels=4, output_channels=64):
    """Deterministic synthetic parameters (shapes match ConvNet.__init__)."""
    specs = [
        (32, input_channels, 8, 8),
        (64, 32, 4, 4),
        (output_channels, 64, 3, 3),
    ]
    params = []
    for (oc, ic, kh, kw) in specs:
        key, kw_, kb_, kg_, kbe_ = jax.random.split(key, 5)
        fan_in = ic * kh * kw
        w = jax.random.normal(kw_, (oc, ic, kh, kw), jnp.float32) / jnp.sqrt(fan_in)
        b = 0.01 * jax.random.normal(kb_, (oc,), jnp.float32)
        gamma = 1.0 + 0.1 * jax.random.normal(kg_, (oc,), jnp.float32)
        beta = 0.1 * jax.random.normal(kbe_, (oc,), jnp.float32)
        # NOTE: the conv bias `b` is kept for parameter-shape faithfulness but
        # is NOT applied in the kernel: training-mode BN's mean subtraction
        # cancels a per-channel bias exactly.
        params.append(dict(w=w, b=b, gamma=gamma, beta=beta))
    return params


@jax.jit
def convnet_forward(x_nchw, params):
    """ConvNet forward. Input and output are NCHW, matching PyTorch."""
    x = jnp.transpose(x_nchw, (0, 2, 3, 1)).astype(jnp.float32)  # -> NHWC
    N = x.shape[0]
    s1, s2, s3 = STRIDES
    w1, w2, w3 = (p["w"] for p in params)
    oc1, ic1, k1h, k1w = w1.shape
    oc2, _, k2h, k2w = w2.shape
    oc3, _, k3h, k3w = w3.shape

    # Layer-1 patches (host side, (kh, kw, c) order), per image.
    p1, oh1, ow1 = _im2col_khkwc(x, k1h, k1w, s1)
    # Constant per-image one-hot selection matrices for in-kernel gathering.
    sel2, oh2, ow2 = _selection_matrices(oh1, ow1, k2h, k2w, s2)
    sel3, oh3, ow3 = _selection_matrices(oh2, ow2, k3h, k3w, s3)

    # PyTorch weights (OC, IC, KH, KW) -> (kh, kw, ic, oc) layouts.
    w1m = jnp.transpose(w1, (2, 3, 1, 0)).reshape(k1h * k1w * ic1, oc1)
    w2m = jnp.transpose(w2, (2, 3, 1, 0)).reshape(k2h * k2w, oc1, oc2)
    w3m = jnp.transpose(w3, (2, 3, 1, 0)).reshape(k3h * k3w, oc2, oc3)

    def bn_vecs(p, oc):
        return (p["gamma"].reshape(1, oc).astype(jnp.float32),
                p["beta"].reshape(1, oc).astype(jnp.float32))

    g1, b1 = bn_vecs(params[0], oc1)
    g2, b2 = bn_vecs(params[1], oc2)
    g3, b3 = bn_vecs(params[2], oc3)

    out = pl.pallas_call(
        fused_convnet_kernel,
        out_shape=jax.ShapeDtypeStruct((N, oh3 * ow3, oc3), jnp.float32),
        compiler_params=pltpu.CompilerParams(vmem_limit_bytes=32 * 1024 * 1024),
    )(p1.astype(jnp.bfloat16), w1m.astype(jnp.bfloat16), g1, b1,
      sel2, w2m.astype(jnp.bfloat16), g2, b2,
      sel3, w3m.astype(jnp.bfloat16), g3, b3)

    # (N, OH3*OW3, OC3) -> NCHW.
    return jnp.transpose(out.reshape(N, oh3, ow3, oc3), (0, 3, 1, 2))
    # TODO(synk): PyTorch training-mode BN also updates running_mean/var as a
    # side effect; that state mutation does not affect the forward output and
    # is not modeled here.


if __name__ == "__main__":
    key = jax.random.PRNGKey(0)
    k_in, k_par = jax.random.split(key)
    # Smallest convenient spatial size that survives the conv chain:
    # 52 -> 12 -> 5 -> 3.
    x = jax.random.normal(k_in, (2, 4, 52, 52), jnp.float32)
    params = init_params(k_par, input_channels=4, output_channels=64)

    y = convnet_forward(x, params)
    jax.block_until_ready(y)
    assert y.shape == (2, 64, 3, 3), y.shape
    assert bool(jnp.all(jnp.isfinite(y))), "non-finite output"
    print("KERNEL_OK")
</pallas_src>

<mosaic_0001>
module attributes {stable_mosaic.version = 11 : i64} {
  func.func @fused_convnet_kernel(%arg0: memref<2x144x256xbf16, #tpu.memory_space<vmem>>, %arg1: memref<256x32xbf16, #tpu.memory_space<vmem>>, %arg2: memref<1x32xf32, #tpu.memory_space<vmem>>, %arg3: memref<1x32xf32, #tpu.memory_space<vmem>>, %arg4: memref<16x25x144xbf16, #tpu.memory_space<vmem>>, %arg5: memref<16x32x64xbf16, #tpu.memory_space<vmem>>, %arg6: memref<1x64xf32, #tpu.memory_space<vmem>>, %arg7: memref<1x64xf32, #tpu.memory_space<vmem>>, %arg8: memref<9x9x25xbf16, #tpu.memory_space<vmem>>, %arg9: memref<9x64x64xbf16, #tpu.memory_space<vmem>>, %arg10: memref<1x64xf32, #tpu.memory_space<vmem>>, %arg11: memref<1x64xf32, #tpu.memory_space<vmem>>, %arg12: memref<2x9x64xf32, #tpu.memory_space<vmem>>) attributes {dimension_semantics = [], scalar_prefetch = 0 : i64, scratch_operands = 0 : i64, tpu.core_type = #tpu.core_type<tc>} {
    %c0 = arith.constant 0 : index
    %c0_0 = arith.constant 0 : index
    %c0_1 = arith.constant 0 : index
    %0 = vector.load %arg0[%c0, %c0_0, %c0_1] : memref<2x144x256xbf16, #tpu.memory_space<vmem>>, vector<1x144x256xbf16>
    %1 = vector.shape_cast %0 : vector<1x144x256xbf16> to vector<144x256xbf16>
    %c0_2 = arith.constant 0 : index
    %c0_3 = arith.constant 0 : index
    %2 = vector.load %arg1[%c0_2, %c0_3] : memref<256x32xbf16, #tpu.memory_space<vmem>>, vector<256x32xbf16>
    %cst = arith.constant dense<0.000000e+00> : vector<144x32xf32>
    %3 = tpu.matmul %1, %2, %cst {dimension_numbers = #tpu.dot_dimension_numbers<[1], [0], [0], [1], [0, 0, 1, 1], [], []>} : vector<144x256xbf16>, vector<256x32xbf16>, vector<144x32xf32> -> vector<144x32xf32>
    %c1 = arith.constant 1 : index
    %c0_4 = arith.constant 0 : index
    %c0_5 = arith.constant 0 : index
    %4 = vector.load %arg0[%c1, %c0_4, %c0_5] : memref<2x144x256xbf16, #tpu.memory_space<vmem>>, vector<1x144x256xbf16>
    %5 = vector.shape_cast %4 : vector<1x144x256xbf16> to vector<144x256xbf16>
    %c0_6 = arith.constant 0 : index
    %c0_7 = arith.constant 0 : index
    %6 = vector.load %arg1[%c0_6, %c0_7] : memref<256x32xbf16, #tpu.memory_space<vmem>>, vector<256x32xbf16>
    %cst_8 = arith.constant dense<0.000000e+00> : vector<144x32xf32>
    %7 = tpu.matmul %5, %6, %cst_8 {dimension_numbers = #tpu.dot_dimension_numbers<[1], [0], [0], [1], [0, 0, 1, 1], [], []>} : vector<144x256xbf16>, vector<256x32xbf16>, vector<144x32xf32> -> vector<144x32xf32>
    %c0_9 = arith.constant 0 : index
    %c0_10 = arith.constant 0 : index
    %8 = vector.load %arg2[%c0_9, %c0_10] : memref<1x32xf32, #tpu.memory_space<vmem>>, vector<1x32xf32>
    %c0_11 = arith.constant 0 : index
    %c0_12 = arith.constant 0 : index
    %9 = vector.load %arg3[%c0_11, %c0_12] : memref<1x32xf32, #tpu.memory_space<vmem>>, vector<1x32xf32>
    %cst_13 = arith.constant dense<0.000000e+00> : vector<32xf32>
    %10 = vector.multi_reduction <add>, %3, %cst_13 [0] : vector<144x32xf32> to vector<32xf32>
    %11 = vector.shape_cast %10 : vector<32xf32> to vector<1x32xf32>
    %12 = arith.mulf %3, %3 : vector<144x32xf32>
    %cst_14 = arith.constant dense<0.000000e+00> : vector<32xf32>
    %13 = vector.multi_reduction <add>, %12, %cst_14 [0] : vector<144x32xf32> to vector<32xf32>
    %14 = vector.shape_cast %13 : vector<32xf32> to vector<1x32xf32>
    %cst_15 = arith.constant dense<0.000000e+00> : vector<32xf32>
    %15 = vector.multi_reduction <add>, %7, %cst_15 [0] : vector<144x32xf32> to vector<32xf32>
    %16 = vector.shape_cast %15 : vector<32xf32> to vector<1x32xf32>
    %17 = arith.addf %11, %16 : vector<1x32xf32>
    %18 = arith.mulf %7, %7 : vector<144x32xf32>
    %cst_16 = arith.constant dense<0.000000e+00> : vector<32xf32>
    %19 = vector.multi_reduction <add>, %18, %cst_16 [0] : vector<144x32xf32> to vector<32xf32>
    %20 = vector.shape_cast %19 : vector<32xf32> to vector<1x32xf32>
    %21 = arith.addf %14, %20 : vector<1x32xf32>
    %cst_17 = arith.constant 0.00347222225 : f32
    %22 = vector.broadcast %cst_17 : f32 to vector<1x32xf32>
    %23 = arith.mulf %17, %22 : vector<1x32xf32>
    %cst_18 = arith.constant 0.00347222225 : f32
    %24 = vector.broadcast %cst_18 : f32 to vector<1x32xf32>
    %25 = arith.mulf %21, %24 : vector<1x32xf32>
    %26 = arith.mulf %23, %23 : vector<1x32xf32>
    %27 = arith.subf %25, %26 : vector<1x32xf32>
    %cst_19 = arith.constant 0.000000e+00 : f32
    %28 = vector.broadcast %cst_19 : f32 to vector<1x32xf32>
    %29 = arith.maximumf %27, %28 : vector<1x32xf32>
    %cst_20 = arith.constant 9.99999974E-6 : f32
    %30 = vector.broadcast %cst_20 : f32 to vector<1x32xf32>
    %31 = arith.addf %29, %30 : vector<1x32xf32>
    %32 = math.rsqrt %31 : vector<1x32xf32>
    %33 = arith.mulf %32, %8 : vector<1x32xf32>
    %34 = arith.mulf %23, %33 : vector<1x32xf32>
    %35 = arith.subf %9, %34 : vector<1x32xf32>
    %36 = vector.broadcast %33 : vector<1x32xf32> to vector<144x32xf32>
    %37 = arith.mulf %3, %36 : vector<144x32xf32>
    %38 = vector.broadcast %35 : vector<1x32xf32> to vector<144x32xf32>
    %39 = arith.addf %37, %38 : vector<144x32xf32>
    %cst_21 = arith.constant 0.000000e+00 : f32
    %40 = vector.broadcast %cst_21 : f32 to vector<144x32xf32>
    %41 = arith.maximumf %39, %40 : vector<144x32xf32>
    %42 = arith.truncf %41 : vector<144x32xf32> to vector<144x32xbf16>
    %43 = vector.broadcast %33 : vector<1x32xf32> to vector<144x32xf32>
    %44 = arith.mulf %7, %43 : vector<144x32xf32>
    %45 = vector.broadcast %35 : vector<1x32xf32> to vector<144x32xf32>
    %46 = arith.addf %44, %45 : vector<144x32xf32>
    %cst_22 = arith.constant 0.000000e+00 : f32
    %47 = vector.broadcast %cst_22 : f32 to vector<144x32xf32>
    %48 = arith.maximumf %46, %47 : vector<144x32xf32>
    %49 = arith.truncf %48 : vector<144x32xf32> to vector<144x32xbf16>
    %c0_23 = arith.constant 0 : index
    %c0_24 = arith.constant 0 : index
    %c0_25 = arith.constant 0 : index
    %50 = vector.load %arg4[%c0_23, %c0_24, %c0_25] : memref<16x25x144xbf16, #tpu.memory_space<vmem>>, vector<1x25x144xbf16>
    %51 = vector.shape_cast %50 : vector<1x25x144xbf16> to vector<25x144xbf16>
    %cst_26 = arith.constant dense<0.000000e+00> : vector<25x32xf32>
    %52 = tpu.matmul %51, %42, %cst_26 {dimension_numbers = #tpu.dot_dimension_numbers<[1], [0], [0], [1], [0, 0, 1, 1], [], []>} : vector<25x144xbf16>, vector<144x32xbf16>, vector<25x32xf32> -> vector<25x32xf32>
    %53 = arith.truncf %52 : vector<25x32xf32> to vector<25x32xbf16>
    %c0_27 = arith.constant 0 : index
    %c0_28 = arith.constant 0 : index
    %c0_29 = arith.constant 0 : index
    %54 = vector.load %arg5[%c0_27, %c0_28, %c0_29] : memref<16x32x64xbf16, #tpu.memory_space<vmem>>, vector<1x32x64xbf16>
    %55 = vector.shape_cast %54 : vector<1x32x64xbf16> to vector<32x64xbf16>
    %cst_30 = arith.constant dense<0.000000e+00> : vector<25x64xf32>
    %56 = tpu.matmul %53, %55, %cst_30 {dimension_numbers = #tpu.dot_dimension_numbers<[1], [0], [0], [1], [0, 0, 1, 1], [], []>} : vector<25x32xbf16>, vector<32x64xbf16>, vector<25x64xf32> -> vector<25x64xf32>
    %c1_31 = arith.constant 1 : index
    %c0_32 = arith.constant 0 : index
    %c0_33 = arith.constant 0 : index
    %57 = vector.load %arg4[%c1_31, %c0_32, %c0_33] : memref<16x25x144xbf16, #tpu.memory_space<vmem>>, vector<1x25x144xbf16>
    %58 = vector.shape_cast %57 : vector<1x25x144xbf16> to vector<25x144xbf16>
    %cst_34 = arith.constant dense<0.000000e+00> : vector<25x32xf32>
    %59 = tpu.matmul %58, %42, %cst_34 {dimension_numbers = #tpu.dot_dimension_numbers<[1], [0], [0], [1], [0, 0, 1, 1], [], []>} : vector<25x144xbf16>, vector<144x32xbf16>, vector<25x32xf32> -> vector<25x32xf32>
    %60 = arith.truncf %59 : vector<25x32xf32> to vector<25x32xbf16>
    %c1_35 = arith.constant 1 : index
    %c0_36 = arith.constant 0 : index
    %c0_37 = arith.constant 0 : index
    %61 = vector.load %arg5[%c1_35, %c0_36, %c0_37] : memref<16x32x64xbf16, #tpu.memory_space<vmem>>, vector<1x32x64xbf16>
    %62 = vector.shape_cast %61 : vector<1x32x64xbf16> to vector<32x64xbf16>
    %cst_38 = arith.constant dense<0.000000e+00> : vector<25x64xf32>
    %63 = tpu.matmul %60, %62, %cst_38 {dimension_numbers = #tpu.dot_dimension_numbers<[1], [0], [0], [1], [0, 0, 1, 1], [], []>} : vector<25x32xbf16>, vector<32x64xbf16>, vector<25x64xf32> -> vector<25x64xf32>
    %64 = arith.addf %56, %63 : vector<25x64xf32>
    %c2 = arith.constant 2 : index
    %c0_39 = arith.constant 0 : index
    %c0_40 = arith.constant 0 : index
    %65 = vector.load %arg4[%c2, %c0_39, %c0_40] : memref<16x25x144xbf16, #tpu.memory_space<vmem>>, vector<1x25x144xbf16>
    %66 = vector.shape_cast %65 : vector<1x25x144xbf16> to vector<25x144xbf16>
    %cst_41 = arith.constant dense<0.000000e+00> : vector<25x32xf32>
    %67 = tpu.matmul %66, %42, %cst_41 {dimension_numbers = #tpu.dot_dimension_numbers<[1], [0], [0], [1], [0, 0, 1, 1], [], []>} : vector<25x144xbf16>, vector<144x32xbf16>, vector<25x32xf32> -> vector<25x32xf32>
    %68 = arith.truncf %67 : vector<25x32xf32> to vector<25x32xbf16>
    %c2_42 = arith.constant 2 : index
    %c0_43 = arith.constant 0 : index
    %c0_44 = arith.constant 0 : index
    %69 = vector.load %arg5[%c2_42, %c0_43, %c0_44] : memref<16x32x64xbf16, #tpu.memory_space<vmem>>, vector<1x32x64xbf16>
    %70 = vector.shape_cast %69 : vector<1x32x64xbf16> to vector<32x64xbf16>
    %cst_45 = arith.constant dense<0.000000e+00> : vector<25x64xf32>
    %71 = tpu.matmul %68, %70, %cst_45 {dimension_numbers = #tpu.dot_dimension_numbers<[1], [0], [0], [1], [0, 0, 1, 1], [], []>} : vector<25x32xbf16>, vector<32x64xbf16>, vector<25x64xf32> -> vector<25x64xf32>
    %72 = arith.addf %64, %71 : vector<25x64xf32>
    %c3 = arith.constant 3 : index
    %c0_46 = arith.constant 0 : index
    %c0_47 = arith.constant 0 : index
    %73 = vector.load %arg4[%c3, %c0_46, %c0_47] : memref<16x25x144xbf16, #tpu.memory_space<vmem>>, vector<1x25x144xbf16>
    %74 = vector.shape_cast %73 : vector<1x25x144xbf16> to vector<25x144xbf16>
    %cst_48 = arith.constant dense<0.000000e+00> : vector<25x32xf32>
    %75 = tpu.matmul %74, %42, %cst_48 {dimension_numbers = #tpu.dot_dimension_numbers<[1], [0], [0], [1], [0, 0, 1, 1], [], []>} : vector<25x144xbf16>, vector<144x32xbf16>, vector<25x32xf32> -> vector<25x32xf32>
    %76 = arith.truncf %75 : vector<25x32xf32> to vector<25x32xbf16>
    %c3_49 = arith.constant 3 : index
    %c0_50 = arith.constant 0 : index
    %c0_51 = arith.constant 0 : index
    %77 = vector.load %arg5[%c3_49, %c0_50, %c0_51] : memref<16x32x64xbf16, #tpu.memory_space<vmem>>, vector<1x32x64xbf16>
    %78 = vector.shape_cast %77 : vector<1x32x64xbf16> to vector<32x64xbf16>
    %cst_52 = arith.constant dense<0.000000e+00> : vector<25x64xf32>
    %79 = tpu.matmul %76, %78, %cst_52 {dimension_numbers = #tpu.dot_dimension_numbers<[1], [0], [0], [1], [0, 0, 1, 1], [], []>} : vector<25x32xbf16>, vector<32x64xbf16>, vector<25x64xf32> -> vector<25x64xf32>
    %80 = arith.addf %72, %79 : vector<25x64xf32>
    %c4 = arith.constant 4 : index
    %c0_53 = arith.constant 0 : index
    %c0_54 = arith.constant 0 : index
    %81 = vector.load %arg4[%c4, %c0_53, %c0_54] : memref<16x25x144xbf16, #tpu.memory_space<vmem>>, vector<1x25x144xbf16>
    %82 = vector.shape_cast %81 : vector<1x25x144xbf16> to vector<25x144xbf16>
    %cst_55 = arith.constant dense<0.000000e+00> : vector<25x32xf32>
    %83 = tpu.matmul %82, %42, %cst_55 {dimension_numbers = #tpu.dot_dimension_numbers<[1], [0], [0], [1], [0, 0, 1, 1], [], []>} : vector<25x144xbf16>, vector<144x32xbf16>, vector<25x32xf32> -> vector<25x32xf32>
    %84 = arith.truncf %83 : vector<25x32xf32> to vector<25x32xbf16>
    %c4_56 = arith.constant 4 : index
    %c0_57 = arith.constant 0 : index
    %c0_58 = arith.constant 0 : index
    %85 = vector.load %arg5[%c4_56, %c0_57, %c0_58] : memref<16x32x64xbf16, #tpu.memory_space<vmem>>, vector<1x32x64xbf16>
    %86 = vector.shape_cast %85 : vector<1x32x64xbf16> to vector<32x64xbf16>
    %cst_59 = arith.constant dense<0.000000e+00> : vector<25x64xf32>
    %87 = tpu.matmul %84, %86, %cst_59 {dimension_numbers = #tpu.dot_dimension_numbers<[1], [0], [0], [1], [0, 0, 1, 1], [], []>} : vector<25x32xbf16>, vector<32x64xbf16>, vector<25x64xf32> -> vector<25x64xf32>
    %88 = arith.addf %80, %87 : vector<25x64xf32>
    %c5 = arith.constant 5 : index
    %c0_60 = arith.constant 0 : index
    %c0_61 = arith.constant 0 : index
    %89 = vector.load %arg4[%c5, %c0_60, %c0_61] : memref<16x25x144xbf16, #tpu.memory_space<vmem>>, vector<1x25x144xbf16>
    %90 = vector.shape_cast %89 : vector<1x25x144xbf16> to vector<25x144xbf16>
    %cst_62 = arith.constant dense<0.000000e+00> : vector<25x32xf32>
    %91 = tpu.matmul %90, %42, %cst_62 {dimension_numbers = #tpu.dot_dimension_numbers<[1], [0], [0], [1], [0, 0, 1, 1], [], []>} : vector<25x144xbf16>, vector<144x32xbf16>, vector<25x32xf32> -> vector<25x32xf32>
    %92 = arith.truncf %91 : vector<25x32xf32> to vector<25x32xbf16>
    %c5_63 = arith.constant 5 : index
    %c0_64 = arith.constant 0 : index
    %c0_65 = arith.constant 0 : index
    %93 = vector.load %arg5[%c5_63, %c0_64, %c0_65] : memref<16x32x64xbf16, #tpu.memory_space<vmem>>, vector<1x32x64xbf16>
    %94 = vector.shape_cast %93 : vector<1x32x64xbf16> to vector<32x64xbf16>
    %cst_66 = arith.constant dense<0.000000e+00> : vector<25x64xf32>
    %95 = tpu.matmul %92, %94, %cst_66 {dimension_numbers = #tpu.dot_dimension_numbers<[1], [0], [0], [1], [0, 0, 1, 1], [], []>} : vector<25x32xbf16>, vector<32x64xbf16>, vector<25x64xf32> -> vector<25x64xf32>
    %96 = arith.addf %88, %95 : vector<25x64xf32>
    %c6 = arith.constant 6 : index
    %c0_67 = arith.constant 0 : index
    %c0_68 = arith.constant 0 : index
    %97 = vector.load %arg4[%c6, %c0_67, %c0_68] : memref<16x25x144xbf16, #tpu.memory_space<vmem>>, vector<1x25x144xbf16>
    %98 = vector.shape_cast %97 : vector<1x25x144xbf16> to vector<25x144xbf16>
    %cst_69 = arith.constant dense<0.000000e+00> : vector<25x32xf32>
    %99 = tpu.matmul %98, %42, %cst_69 {dimension_numbers = #tpu.dot_dimension_numbers<[1], [0], [0], [1], [0, 0, 1, 1], [], []>} : vector<25x144xbf16>, vector<144x32xbf16>, vector<25x32xf32> -> vector<25x32xf32>
    %100 = arith.truncf %99 : vector<25x32xf32> to vector<25x32xbf16>
    %c6_70 = arith.constant 6 : index
    %c0_71 = arith.constant 0 : index
    %c0_72 = arith.constant 0 : index
    %101 = vector.load %arg5[%c6_70, %c0_71, %c0_72] : memref<16x32x64xbf16, #tpu.memory_space<vmem>>, vector<1x32x64xbf16>
    %102 = vector.shape_cast %101 : vector<1x32x64xbf16> to vector<32x64xbf16>
    %cst_73 = arith.constant dense<0.000000e+00> : vector<25x64xf32>
    %103 = tpu.matmul %100, %102, %cst_73 {dimension_numbers = #tpu.dot_dimension_numbers<[1], [0], [0], [1], [0, 0, 1, 1], [], []>} : vector<25x32xbf16>, vector<32x64xbf16>, vector<25x64xf32> -> vector<25x64xf32>
    %104 = arith.addf %96, %103 : vector<25x64xf32>
    %c7 = arith.constant 7 : index
    %c0_74 = arith.constant 0 : index
    %c0_75 = arith.constant 0 : index
    %105 = vector.load %arg4[%c7, %c0_74, %c0_75] : memref<16x25x144xbf16, #tpu.memory_space<vmem>>, vector<1x25x144xbf16>
    %106 = vector.shape_cast %105 : vector<1x25x144xbf16> to vector<25x144xbf16>
    %cst_76 = arith.constant dense<0.000000e+00> : vector<25x32xf32>
    %107 = tpu.matmul %106, %42, %cst_76 {dimension_numbers = #tpu.dot_dimension_numbers<[1], [0], [0], [1], [0, 0, 1, 1], [], []>} : vector<25x144xbf16>, vector<144x32xbf16>, vector<25x32xf32> -> vector<25x32xf32>
    %108 = arith.truncf %107 : vector<25x32xf32> to vector<25x32xbf16>
    %c7_77 = arith.constant 7 : index
    %c0_78 = arith.constant 0 : index
    %c0_79 = arith.constant 0 : index
    %109 = vector.load %arg5[%c7_77, %c0_78, %c0_79] : memref<16x32x64xbf16, #tpu.memory_space<vmem>>, vector<1x32x64xbf16>
    %110 = vector.shape_cast %109 : vector<1x32x64xbf16> to vector<32x64xbf16>
    %cst_80 = arith.constant dense<0.000000e+00> : vector<25x64xf32>
    %111 = tpu.matmul %108, %110, %cst_80 {dimension_numbers = #tpu.dot_dimension_numbers<[1], [0], [0], [1], [0, 0, 1, 1], [], []>} : vector<25x32xbf16>, vector<32x64xbf16>, vector<25x64xf32> -> vector<25x64xf32>
    %112 = arith.addf %104, %111 : vector<25x64xf32>
    %c8 = arith.constant 8 : index
    %c0_81 = arith.constant 0 : index
    %c0_82 = arith.constant 0 : index
    %113 = vector.load %arg4[%c8, %c0_81, %c0_82] : memref<16x25x144xbf16, #tpu.memory_space<vmem>>, vector<1x25x144xbf16>
    %114 = vector.shape_cast %113 : vector<1x25x144xbf16> to vector<25x144xbf16>
    %cst_83 = arith.constant dense<0.000000e+00> : vector<25x32xf32>
    %115 = tpu.matmul %114, %42, %cst_83 {dimension_numbers = #tpu.dot_dimension_numbers<[1], [0], [0], [1], [0, 0, 1, 1], [], []>} : vector<25x144xbf16>, vector<144x32xbf16>, vector<25x32xf32> -> vector<25x32xf32>
    %116 = arith.truncf %115 : vector<25x32xf32> to vector<25x32xbf16>
    %c8_84 = arith.constant 8 : index
    %c0_85 = arith.constant 0 : index
    %c0_86 = arith.constant 0 : index
    %117 = vector.load %arg5[%c8_84, %c0_85, %c0_86] : memref<16x32x64xbf16, #tpu.memory_space<vmem>>, vector<1x32x64xbf16>
    %118 = vector.shape_cast %117 : vector<1x32x64xbf16> to vector<32x64xbf16>
    %cst_87 = arith.constant dense<0.000000e+00> : vector<25x64xf32>
    %119 = tpu.matmul %116, %118, %cst_87 {dimension_numbers = #tpu.dot_dimension_numbers<[1], [0], [0], [1], [0, 0, 1, 1], [], []>} : vector<25x32xbf16>, vector<32x64xbf16>, vector<25x64xf32> -> vector<25x64xf32>
    %120 = arith.addf %112, %119 : vector<25x64xf32>
    %c9 = arith.constant 9 : index
    %c0_88 = arith.constant 0 : index
    %c0_89 = arith.constant 0 : index
    %121 = vector.load %arg4[%c9, %c0_88, %c0_89] : memref<16x25x144xbf16, #tpu.memory_space<vmem>>, vector<1x25x144xbf16>
    %122 = vector.shape_cast %121 : vector<1x25x144xbf16> to vector<25x144xbf16>
    %cst_90 = arith.constant dense<0.000000e+00> : vector<25x32xf32>
    %123 = tpu.matmul %122, %42, %cst_90 {dimension_numbers = #tpu.dot_dimension_numbers<[1], [0], [0], [1], [0, 0, 1, 1], [], []>} : vector<25x144xbf16>, vector<144x32xbf16>, vector<25x32xf32> -> vector<25x32xf32>
    %124 = arith.truncf %123 : vector<25x32xf32> to vector<25x32xbf16>
    %c9_91 = arith.constant 9 : index
    %c0_92 = arith.constant 0 : index
    %c0_93 = arith.constant 0 : index
    %125 = vector.load %arg5[%c9_91, %c0_92, %c0_93] : memref<16x32x64xbf16, #tpu.memory_space<vmem>>, vector<1x32x64xbf16>
    %126 = vector.shape_cast %125 : vector<1x32x64xbf16> to vector<32x64xbf16>
    %cst_94 = arith.constant dense<0.000000e+00> : vector<25x64xf32>
    %127 = tpu.matmul %124, %126, %cst_94 {dimension_numbers = #tpu.dot_dimension_numbers<[1], [0], [0], [1], [0, 0, 1, 1], [], []>} : vector<25x32xbf16>, vector<32x64xbf16>, vector<25x64xf32> -> vector<25x64xf32>
    %128 = arith.addf %120, %127 : vector<25x64xf32>
    %c10 = arith.constant 10 : index
    %c0_95 = arith.constant 0 : index
    %c0_96 = arith.constant 0 : index
    %129 = vector.load %arg4[%c10, %c0_95, %c0_96] : memref<16x25x144xbf16, #tpu.memory_space<vmem>>, vector<1x25x144xbf16>
    %130 = vector.shape_cast %129 : vector<1x25x144xbf16> to vector<25x144xbf16>
    %cst_97 = arith.constant dense<0.000000e+00> : vector<25x32xf32>
    %131 = tpu.matmul %130, %42, %cst_97 {dimension_numbers = #tpu.dot_dimension_numbers<[1], [0], [0], [1], [0, 0, 1, 1], [], []>} : vector<25x144xbf16>, vector<144x32xbf16>, vector<25x32xf32> -> vector<25x32xf32>
    %132 = arith.truncf %131 : vector<25x32xf32> to vector<25x32xbf16>
    %c10_98 = arith.constant 10 : index
    %c0_99 = arith.constant 0 : index
    %c0_100 = arith.constant 0 : index
    %133 = vector.load %arg5[%c10_98, %c0_99, %c0_100] : memref<16x32x64xbf16, #tpu.memory_space<vmem>>, vector<1x32x64xbf16>
    %134 = vector.shape_cast %133 : vector<1x32x64xbf16> to vector<32x64xbf16>
    %cst_101 = arith.constant dense<0.000000e+00> : vector<25x64xf32>
    %135 = tpu.matmul %132, %134, %cst_101 {dimension_numbers = #tpu.dot_dimension_numbers<[1], [0], [0], [1], [0, 0, 1, 1], [], []>} : vector<25x32xbf16>, vector<32x64xbf16>, vector<25x64xf32> -> vector<25x64xf32>
    %136 = arith.addf %128, %135 : vector<25x64xf32>
    %c11 = arith.constant 11 : index
    %c0_102 = arith.constant 0 : index
    %c0_103 = arith.constant 0 : index
    %137 = vector.load %arg4[%c11, %c0_102, %c0_103] : memref<16x25x144xbf16, #tpu.memory_space<vmem>>, vector<1x25x144xbf16>
    %138 = vector.shape_cast %137 : vector<1x25x144xbf16> to vector<25x144xbf16>
    %cst_104 = arith.constant dense<0.000000e+00> : vector<25x32xf32>
    %139 = tpu.matmul %138, %42, %cst_104 {dimension_numbers = #tpu.dot_dimension_numbers<[1], [0], [0], [1], [0, 0, 1, 1], [], []>} : vector<25x144xbf16>, vector<144x32xbf16>, vector<25x32xf32> -> vector<25x32xf32>
    %140 = arith.truncf %139 : vector<25x32xf32> to vector<25x32xbf16>
    %c11_105 = arith.constant 11 : index
    %c0_106 = arith.constant 0 : index
    %c0_107 = arith.constant 0 : index
    %141 = vector.load %arg5[%c11_105, %c0_106, %c0_107] : memref<16x32x64xbf16, #tpu.memory_space<vmem>>, vector<1x32x64xbf16>
    %142 = vector.shape_cast %141 : vector<1x32x64xbf16> to vector<32x64xbf16>
    %cst_108 = arith.constant dense<0.000000e+00> : vector<25x64xf32>
    %143 = tpu.matmul %140, %142, %cst_108 {dimension_numbers = #tpu.dot_dimension_numbers<[1], [0], [0], [1], [0, 0, 1, 1], [], []>} : vector<25x32xbf16>, vector<32x64xbf16>, vector<25x64xf32> -> vector<25x64xf32>
    %144 = arith.addf %136, %143 : vector<25x64xf32>
    %c12 = arith.constant 12 : index
    %c0_109 = arith.constant 0 : index
    %c0_110 = arith.constant 0 : index
    %145 = vector.load %arg4[%c12, %c0_109, %c0_110] : memref<16x25x144xbf16, #tpu.memory_space<vmem>>, vector<1x25x144xbf16>
    %146 = vector.shape_cast %145 : vector<1x25x144xbf16> to vector<25x144xbf16>
    %cst_111 = arith.constant dense<0.000000e+00> : vector<25x32xf32>
    %147 = tpu.matmul %146, %42, %cst_111 {dimension_numbers = #tpu.dot_dimension_numbers<[1], [0], [0], [1], [0, 0, 1, 1], [], []>} : vector<25x144xbf16>, vector<144x32xbf16>, vector<25x32xf32> -> vector<25x32xf32>
    %148 = arith.truncf %147 : vector<25x32xf32> to vector<25x32xbf16>
    %c12_112 = arith.constant 12 : index
    %c0_113 = arith.constant 0 : index
    %c0_114 = arith.constant 0 : index
    %149 = vector.load %arg5[%c12_112, %c0_113, %c0_114] : memref<16x32x64xbf16, #tpu.memory_space<vmem>>, vector<1x32x64xbf16>
    %150 = vector.shape_cast %149 : vector<1x32x64xbf16> to vector<32x64xbf16>
    %cst_115 = arith.constant dense<0.000000e+00> : vector<25x64xf32>
    %151 = tpu.matmul %148, %150, %cst_115 {dimension_numbers = #tpu.dot_dimension_numbers<[1], [0], [0], [1], [0, 0, 1, 1], [], []>} : vector<25x32xbf16>, vector<32x64xbf16>, vector<25x64xf32> -> vector<25x64xf32>
    %152 = arith.addf %144, %151 : vector<25x64xf32>
    %c13 = arith.constant 13 : index
    %c0_116 = arith.constant 0 : index
    %c0_117 = arith.constant 0 : index
    %153 = vector.load %arg4[%c13, %c0_116, %c0_117] : memref<16x25x144xbf16, #tpu.memory_space<vmem>>, vector<1x25x144xbf16>
    %154 = vector.shape_cast %153 : vector<1x25x144xbf16> to vector<25x144xbf16>
    %cst_118 = arith.constant dense<0.000000e+00> : vector<25x32xf32>
    %155 = tpu.matmul %154, %42, %cst_118 {dimension_numbers = #tpu.dot_dimension_numbers<[1], [0], [0], [1], [0, 0, 1, 1], [], []>} : vector<25x144xbf16>, vector<144x32xbf16>, vector<25x32xf32> -> vector<25x32xf32>
    %156 = arith.truncf %155 : vector<25x32xf32> to vector<25x32xbf16>
    %c13_119 = arith.constant 13 : index
    %c0_120 = arith.constant 0 : index
    %c0_121 = arith.constant 0 : index
    %157 = vector.load %arg5[%c13_119, %c0_120, %c0_121] : memref<16x32x64xbf16, #tpu.memory_space<vmem>>, vector<1x32x64xbf16>
    %158 = vector.shape_cast %157 : vector<1x32x64xbf16> to vector<32x64xbf16>
    %cst_122 = arith.constant dense<0.000000e+00> : vector<25x64xf32>
    %159 = tpu.matmul %156, %158, %cst_122 {dimension_numbers = #tpu.dot_dimension_numbers<[1], [0], [0], [1], [0, 0, 1, 1], [], []>} : vector<25x32xbf16>, vector<32x64xbf16>, vector<25x64xf32> -> vector<25x64xf32>
    %160 = arith.addf %152, %159 : vector<25x64xf32>
    %c14 = arith.constant 14 : index
    %c0_123 = arith.constant 0 : index
    %c0_124 = arith.constant 0 : index
    %161 = vector.load %arg4[%c14, %c0_123, %c0_124] : memref<16x25x144xbf16, #tpu.memory_space<vmem>>, vector<1x25x144xbf16>
    %162 = vector.shape_cast %161 : vector<1x25x144xbf16> to vector<25x144xbf16>
    %cst_125 = arith.constant dense<0.000000e+00> : vector<25x32xf32>
    %163 = tpu.matmul %162, %42, %cst_125 {dimension_numbers = #tpu.dot_dimension_numbers<[1], [0], [0], [1], [0, 0, 1, 1], [], []>} : vector<25x144xbf16>, vector<144x32xbf16>, vector<25x32xf32> -> vector<25x32xf32>
    %164 = arith.truncf %163 : vector<25x32xf32> to vector<25x32xbf16>
    %c14_126 = arith.constant 14 : index
    %c0_127 = arith.constant 0 : index
    %c0_128 = arith.constant 0 : index
    %165 = vector.load %arg5[%c14_126, %c0_127, %c0_128] : memref<16x32x64xbf16, #tpu.memory_space<vmem>>, vector<1x32x64xbf16>
    %166 = vector.shape_cast %165 : vector<1x32x64xbf16> to vector<32x64xbf16>
    %cst_129 = arith.constant dense<0.000000e+00> : vector<25x64xf32>
    %167 = tpu.matmul %164, %166, %cst_129 {dimension_numbers = #tpu.dot_dimension_numbers<[1], [0], [0], [1], [0, 0, 1, 1], [], []>} : vector<25x32xbf16>, vector<32x64xbf16>, vector<25x64xf32> -> vector<25x64xf32>
    %168 = arith.addf %160, %167 : vector<25x64xf32>
    %c15 = arith.constant 15 : index
    %c0_130 = arith.constant 0 : index
    %c0_131 = arith.constant 0 : index
    %169 = vector.load %arg4[%c15, %c0_130, %c0_131] : memref<16x25x144xbf16, #tpu.memory_space<vmem>>, vector<1x25x144xbf16>
    %170 = vector.shape_cast %169 : vector<1x25x144xbf16> to vector<25x144xbf16>
    %cst_132 = arith.constant dense<0.000000e+00> : vector<25x32xf32>
    %171 = tpu.matmul %170, %42, %cst_132 {dimension_numbers = #tpu.dot_dimension_numbers<[1], [0], [0], [1], [0, 0, 1, 1], [], []>} : vector<25x144xbf16>, vector<144x32xbf16>, vector<25x32xf32> -> vector<25x32xf32>
    %172 = arith.truncf %171 : vector<25x32xf32> to vector<25x32xbf16>
    %c15_133 = arith.constant 15 : index
    %c0_134 = arith.constant 0 : index
    %c0_135 = arith.constant 0 : index
    %173 = vector.load %arg5[%c15_133, %c0_134, %c0_135] : memref<16x32x64xbf16, #tpu.memory_space<vmem>>, vector<1x32x64xbf16>
    %174 = vector.shape_cast %173 : vector<1x32x64xbf16> to vector<32x64xbf16>
    %cst_136 = arith.constant dense<0.000000e+00> : vector<25x64xf32>
    %175 = tpu.matmul %172, %174, %cst_136 {dimension_numbers = #tpu.dot_dimension_numbers<[1], [0], [0], [1], [0, 0, 1, 1], [], []>} : vector<25x32xbf16>, vector<32x64xbf16>, vector<25x64xf32> -> vector<25x64xf32>
    %176 = arith.addf %168, %175 : vector<25x64xf32>
    %c0_137 = arith.constant 0 : index
    %c0_138 = arith.constant 0 : index
    %c0_139 = arith.constant 0 : index
    %177 = vector.load %arg4[%c0_137, %c0_138, %c0_139] : memref<16x25x144xbf16, #tpu.memory_space<vmem>>, vector<1x25x144xbf16>
    %178 = vector.shape_cast %177 : vector<1x25x144xbf16> to vector<25x144xbf16>
    %cst_140 = arith.constant dense<0.000000e+00> : vector<25x32xf32>
    %179 = tpu.matmul %178, %49, %cst_140 {dimension_numbers = #tpu.dot_dimension_numbers<[1], [0], [0], [1], [0, 0, 1, 1], [], []>} : vector<25x144xbf16>, vector<144x32xbf16>, vector<25x32xf32> -> vector<25x32xf32>
    %180 = arith.truncf %179 : vector<25x32xf32> to vector<25x32xbf16>
    %c0_141 = arith.constant 0 : index
    %c0_142 = arith.constant 0 : index
    %c0_143 = arith.constant 0 : index
    %181 = vector.load %arg5[%c0_141, %c0_142, %c0_143] : memref<16x32x64xbf16, #tpu.memory_space<vmem>>, vector<1x32x64xbf16>
    %182 = vector.shape_cast %181 : vector<1x32x64xbf16> to vector<32x64xbf16>
    %cst_144 = arith.constant dense<0.000000e+00> : vector<25x64xf32>
    %183 = tpu.matmul %180, %182, %cst_144 {dimension_numbers = #tpu.dot_dimension_numbers<[1], [0], [0], [1], [0, 0, 1, 1], [], []>} : vector<25x32xbf16>, vector<32x64xbf16>, vector<25x64xf32> -> vector<25x64xf32>
    %c1_145 = arith.constant 1 : index
    %c0_146 = arith.constant 0 : index
    %c0_147 = arith.constant 0 : index
    %184 = vector.load %arg4[%c1_145, %c0_146, %c0_147] : memref<16x25x144xbf16, #tpu.memory_space<vmem>>, vector<1x25x144xbf16>
    %185 = vector.shape_cast %184 : vector<1x25x144xbf16> to vector<25x144xbf16>
    %cst_148 = arith.constant dense<0.000000e+00> : vector<25x32xf32>
    %186 = tpu.matmul %185, %49, %cst_148 {dimension_numbers = #tpu.dot_dimension_numbers<[1], [0], [0], [1], [0, 0, 1, 1], [], []>} : vector<25x144xbf16>, vector<144x32xbf16>, vector<25x32xf32> -> vector<25x32xf32>
    %187 = arith.truncf %186 : vector<25x32xf32> to vector<25x32xbf16>
    %c1_149 = arith.constant 1 : index
    %c0_150 = arith.constant 0 : index
    %c0_151 = arith.constant 0 : index
    %188 = vector.load %arg5[%c1_149, %c0_150, %c0_151] : memref<16x32x64xbf16, #tpu.memory_space<vmem>>, vector<1x32x64xbf16>
    %189 = vector.shape_cast %188 : vector<1x32x64xbf16> to vector<32x64xbf16>
    %cst_152 = arith.constant dense<0.000000e+00> : vector<25x64xf32>
    %190 = tpu.matmul %187, %189, %cst_152 {dimension_numbers = #tpu.dot_dimension_numbers<[1], [0], [0], [1], [0, 0, 1, 1], [], []>} : vector<25x32xbf16>, vector<32x64xbf16>, vector<25x64xf32> -> vector<25x64xf32>
    %191 = arith.addf %183, %190 : vector<25x64xf32>
    %c2_153 = arith.constant 2 : index
    %c0_154 = arith.constant 0 : index
    %c0_155 = arith.constant 0 : index
    %192 = vector.load %arg4[%c2_153, %c0_154, %c0_155] : memref<16x25x144xbf16, #tpu.memory_space<vmem>>, vector<1x25x144xbf16>
    %193 = vector.shape_cast %192 : vector<1x25x144xbf16> to vector<25x144xbf16>
    %cst_156 = arith.constant dense<0.000000e+00> : vector<25x32xf32>
    %194 = tpu.matmul %193, %49, %cst_156 {dimension_numbers = #tpu.dot_dimension_numbers<[1], [0], [0], [1], [0, 0, 1, 1], [], []>} : vector<25x144xbf16>, vector<144x32xbf16>, vector<25x32xf32> -> vector<25x32xf32>
    %195 = arith.truncf %194 : vector<25x32xf32> to vector<25x32xbf16>
    %c2_157 = arith.constant 2 : index
    %c0_158 = arith.constant 0 : index
    %c0_159 = arith.constant 0 : index
    %196 = vector.load %arg5[%c2_157, %c0_158, %c0_159] : memref<16x32x64xbf16, #tpu.memory_space<vmem>>, vector<1x32x64xbf16>
    %197 = vector.shape_cast %196 : vector<1x32x64xbf16> to vector<32x64xbf16>
    %cst_160 = arith.constant dense<0.000000e+00> : vector<25x64xf32>
    %198 = tpu.matmul %195, %197, %cst_160 {dimension_numbers = #tpu.dot_dimension_numbers<[1], [0], [0], [1], [0, 0, 1, 1], [], []>} : vector<25x32xbf16>, vector<32x64xbf16>, vector<25x64xf32> -> vector<25x64xf32>
    %199 = arith.addf %191, %198 : vector<25x64xf32>
    %c3_161 = arith.constant 3 : index
    %c0_162 = arith.constant 0 : index
    %c0_163 = arith.constant 0 : index
    %200 = vector.load %arg4[%c3_161, %c0_162, %c0_163] : memref<16x25x144xbf16, #tpu.memory_space<vmem>>, vector<1x25x144xbf16>
    %201 = vector.shape_cast %200 : vector<1x25x144xbf16> to vector<25x144xbf16>
    %cst_164 = arith.constant dense<0.000000e+00> : vector<25x32xf32>
    %202 = tpu.matmul %201, %49, %cst_164 {dimension_numbers = #tpu.dot_dimension_numbers<[1], [0], [0], [1], [0, 0, 1, 1], [], []>} : vector<25x144xbf16>, vector<144x32xbf16>, vector<25x32xf32> -> vector<25x32xf32>
    %203 = arith.truncf %202 : vector<25x32xf32> to vector<25x32xbf16>
    %c3_165 = arith.constant 3 : index
    %c0_166 = arith.constant 0 : index
    %c0_167 = arith.constant 0 : index
    %204 = vector.load %arg5[%c3_165, %c0_166, %c0_167] : memref<16x32x64xbf16, #tpu.memory_space<vmem>>, vector<1x32x64xbf16>
    %205 = vector.shape_cast %204 : vector<1x32x64xbf16> to vector<32x64xbf16>
    %cst_168 = arith.constant dense<0.000000e+00> : vector<25x64xf32>
    %206 = tpu.matmul %203, %205, %cst_168 {dimension_numbers = #tpu.dot_dimension_numbers<[1], [0], [0], [1], [0, 0, 1, 1], [], []>} : vector<25x32xbf16>, vector<32x64xbf16>, vector<25x64xf32> -> vector<25x64xf32>
    %207 = arith.addf %199, %206 : vector<25x64xf32>
    %c4_169 = arith.constant 4 : index
    %c0_170 = arith.constant 0 : index
    %c0_171 = arith.constant 0 : index
    %208 = vector.load %arg4[%c4_169, %c0_170, %c0_171] : memref<16x25x144xbf16, #tpu.memory_space<vmem>>, vector<1x25x144xbf16>
    %209 = vector.shape_cast %208 : vector<1x25x144xbf16> to vector<25x144xbf16>
    %cst_172 = arith.constant dense<0.000000e+00> : vector<25x32xf32>
    %210 = tpu.matmul %209, %49, %cst_172 {dimension_numbers = #tpu.dot_dimension_numbers<[1], [0], [0], [1], [0, 0, 1, 1], [], []>} : vector<25x144xbf16>, vector<144x32xbf16>, vector<25x32xf32> -> vector<25x32xf32>
    %211 = arith.truncf %210 : vector<25x32xf32> to vector<25x32xbf16>
    %c4_173 = arith.constant 4 : index
    %c0_174 = arith.constant 0 : index
    %c0_175 = arith.constant 0 : index
    %212 = vector.load %arg5[%c4_173, %c0_174, %c0_175] : memref<16x32x64xbf16, #tpu.memory_space<vmem>>, vector<1x32x64xbf16>
    %213 = vector.shape_cast %212 : vector<1x32x64xbf16> to vector<32x64xbf16>
    %cst_176 = arith.constant dense<0.000000e+00> : vector<25x64xf32>
    %214 = tpu.matmul %211, %213, %cst_176 {dimension_numbers = #tpu.dot_dimension_numbers<[1], [0], [0], [1], [0, 0, 1, 1], [], []>} : vector<25x32xbf16>, vector<32x64xbf16>, vector<25x64xf32> -> vector<25x64xf32>
    %215 = arith.addf %207, %214 : vector<25x64xf32>
    %c5_177 = arith.constant 5 : index
    %c0_178 = arith.constant 0 : index
    %c0_179 = arith.constant 0 : index
    %216 = vector.load %arg4[%c5_177, %c0_178, %c0_179] : memref<16x25x144xbf16, #tpu.memory_space<vmem>>, vector<1x25x144xbf16>
    %217 = vector.shape_cast %216 : vector<1x25x144xbf16> to vector<25x144xbf16>
    %cst_180 = arith.constant dense<0.000000e+00> : vector<25x32xf32>
    %218 = tpu.matmul %217, %49, %cst_180 {dimension_numbers = #tpu.dot_dimension_numbers<[1], [0], [0], [1], [0, 0, 1, 1], [], []>} : vector<25x144xbf16>, vector<144x32xbf16>, vector<25x32xf32> -> vector<25x32xf32>
    %219 = arith.truncf %218 : vector<25x32xf32> to vector<25x32xbf16>
    %c5_181 = arith.constant 5 : index
    %c0_182 = arith.constant 0 : index
    %c0_183 = arith.constant 0 : index
    %220 = vector.load %arg5[%c5_181, %c0_182, %c0_183] : memref<16x32x64xbf16, #tpu.memory_space<vmem>>, vector<1x32x64xbf16>
    %221 = vector.shape_cast %220 : vector<1x32x64xbf16> to vector<32x64xbf16>
    %cst_184 = arith.constant dense<0.000000e+00> : vector<25x64xf32>
    %222 = tpu.matmul %219, %221, %cst_184 {dimension_numbers = #tpu.dot_dimension_numbers<[1], [0], [0], [1], [0, 0, 1, 1], [], []>} : vector<25x32xbf16>, vector<32x64xbf16>, vector<25x64xf32> -> vector<25x64xf32>
    %223 = arith.addf %215, %222 : vector<25x64xf32>
    %c6_185 = arith.constant 6 : index
    %c0_186 = arith.constant 0 : index
    %c0_187 = arith.constant 0 : index
    %224 = vector.load %arg4[%c6_185, %c0_186, %c0_187] : memref<16x25x144xbf16, #tpu.memory_space<vmem>>, vector<1x25x144xbf16>
    %225 = vector.shape_cast %224 : vector<1x25x144xbf16> to vector<25x144xbf16>
    %cst_188 = arith.constant dense<0.000000e+00> : vector<25x32xf32>
    %226 = tpu.matmul %225, %49, %cst_188 {dimension_numbers = #tpu.dot_dimension_numbers<[1], [0], [0], [1], [0, 0, 1, 1], [], []>} : vector<25x144xbf16>, vector<144x32xbf16>, vector<25x32xf32> -> vector<25x32xf32>
    %227 = arith.truncf %226 : vector<25x32xf32> to vector<25x32xbf16>
    %c6_189 = arith.constant 6 : index
    %c0_190 = arith.constant 0 : index
    %c0_191 = arith.constant 0 : index
    %228 = vector.load %arg5[%c6_189, %c0_190, %c0_191] : memref<16x32x64xbf16, #tpu.memory_space<vmem>>, vector<1x32x64xbf16>
    %229 = vector.shape_cast %228 : vector<1x32x64xbf16> to vector<32x64xbf16>
    %cst_192 = arith.constant dense<0.000000e+00> : vector<25x64xf32>
    %230 = tpu.matmul %227, %229, %cst_192 {dimension_numbers = #tpu.dot_dimension_numbers<[1], [0], [0], [1], [0, 0, 1, 1], [], []>} : vector<25x32xbf16>, vector<32x64xbf16>, vector<25x64xf32> -> vector<25x64xf32>
    %231 = arith.addf %223, %230 : vector<25x64xf32>
    %c7_193 = arith.constant 7 : index
    %c0_194 = arith.constant 0 : index
    %c0_195 = arith.constant 0 : index
    %232 = vector.load %arg4[%c7_193, %c0_194, %c0_195] : memref<16x25x144xbf16, #tpu.memory_space<vmem>>, vector<1x25x144xbf16>
    %233 = vector.shape_cast %232 : vector<1x25x144xbf16> to vector<25x144xbf16>
    %cst_196 = arith.constant dense<0.000000e+00> : vector<25x32xf32>
    %234 = tpu.matmul %233, %49, %cst_196 {dimension_numbers = #tpu.dot_dimension_numbers<[1], [0], [0], [1], [0, 0, 1, 1], [], []>} : vector<25x144xbf16>, vector<144x32xbf16>, vector<25x32xf32> -> vector<25x32xf32>
    %235 = arith.truncf %234 : vector<25x32xf32> to vector<25x32xbf16>
    %c7_197 = arith.constant 7 : index
    %c0_198 = arith.constant 0 : index
    %c0_199 = arith.constant 0 : index
    %236 = vector.load %arg5[%c7_197, %c0_198, %c0_199] : memref<16x32x64xbf16, #tpu.memory_space<vmem>>, vector<1x32x64xbf16>
    %237 = vector.shape_cast %236 : vector<1x32x64xbf16> to vector<32x64xbf16>
    %cst_200 = arith.constant dense<0.000000e+00> : vector<25x64xf32>
    %238 = tpu.matmul %235, %237, %cst_200 {dimension_numbers = #tpu.dot_dimension_numbers<[1], [0], [0], [1], [0, 0, 1, 1], [], []>} : vector<25x32xbf16>, vector<32x64xbf16>, vector<25x64xf32> -> vector<25x64xf32>
    %239 = arith.addf %231, %238 : vector<25x64xf32>
    %c8_201 = arith.constant 8 : index
    %c0_202 = arith.constant 0 : index
    %c0_203 = arith.constant 0 : index
    %240 = vector.load %arg4[%c8_201, %c0_202, %c0_203] : memref<16x25x144xbf16, #tpu.memory_space<vmem>>, vector<1x25x144xbf16>
    %241 = vector.shape_cast %240 : vector<1x25x144xbf16> to vector<25x144xbf16>
    %cst_204 = arith.constant dense<0.000000e+00> : vector<25x32xf32>
    %242 = tpu.matmul %241, %49, %cst_204 {dimension_numbers = #tpu.dot_dimension_numbers<[1], [0], [0], [1], [0, 0, 1, 1], [], []>} : vector<25x144xbf16>, vector<144x32xbf16>, vector<25x32xf32> -> vector<25x32xf32>
    %243 = arith.truncf %242 : vector<25x32xf32> to vector<25x32xbf16>
    %c8_205 = arith.constant 8 : index
    %c0_206 = arith.constant 0 : index
    %c0_207 = arith.constant 0 : index
    %244 = vector.load %arg5[%c8_205, %c0_206, %c0_207] : memref<16x32x64xbf16, #tpu.memory_space<vmem>>, vector<1x32x64xbf16>
    %245 = vector.shape_cast %244 : vector<1x32x64xbf16> to vector<32x64xbf16>
    %cst_208 = arith.constant dense<0.000000e+00> : vector<25x64xf32>
    %246 = tpu.matmul %243, %245, %cst_208 {dimension_numbers = #tpu.dot_dimension_numbers<[1], [0], [0], [1], [0, 0, 1, 1], [], []>} : vector<25x32xbf16>, vector<32x64xbf16>, vector<25x64xf32> -> vector<25x64xf32>
    %247 = arith.addf %239, %246 : vector<25x64xf32>
    %c9_209 = arith.constant 9 : index
    %c0_210 = arith.constant 0 : index
    %c0_211 = arith.constant 0 : index
    %248 = vector.load %arg4[%c9_209, %c0_210, %c0_211] : memref<16x25x144xbf16, #tpu.memory_space<vmem>>, vector<1x25x144xbf16>
    %249 = vector.shape_cast %248 : vector<1x25x144xbf16> to vector<25x144xbf16>
    %cst_212 = arith.constant dense<0.000000e+00> : vector<25x32xf32>
    %250 = tpu.matmul %249, %49, %cst_212 {dimension_numbers = #tpu.dot_dimension_numbers<[1], [0], [0], [1], [0, 0, 1, 1], [], []>} : vector<25x144xbf16>, vector<144x32xbf16>, vector<25x32xf32> -> vector<25x32xf32>
    %251 = arith.truncf %250 : vector<25x32xf32> to vector<25x32xbf16>
    %c9_213 = arith.constant 9 : index
    %c0_214 = arith.constant 0 : index
    %c0_215 = arith.constant 0 : index
    %252 = vector.load %arg5[%c9_213, %c0_214, %c0_215] : memref<16x32x64xbf16, #tpu.memory_space<vmem>>, vector<1x32x64xbf16>
    %253 = vector.shape_cast %252 : vector<1x32x64xbf16> to vector<32x64xbf16>
    %cst_216 = arith.constant dense<0.000000e+00> : vector<25x64xf32>
    %254 = tpu.matmul %251, %253, %cst_216 {dimension_numbers = #tpu.dot_dimension_numbers<[1], [0], [0], [1], [0, 0, 1, 1], [], []>} : vector<25x32xbf16>, vector<32x64xbf16>, vector<25x64xf32> -> vector<25x64xf32>
    %255 = arith.addf %247, %254 : vector<25x64xf32>
    %c10_217 = arith.constant 10 : index
    %c0_218 = arith.constant 0 : index
    %c0_219 = arith.constant 0 : index
    %256 = vector.load %arg4[%c10_217, %c0_218, %c0_219] : memref<16x25x144xbf16, #tpu.memory_space<vmem>>, vector<1x25x144xbf16>
    %257 = vector.shape_cast %256 : vector<1x25x144xbf16> to vector<25x144xbf16>
    %cst_220 = arith.constant dense<0.000000e+00> : vector<25x32xf32>
    %258 = tpu.matmul %257, %49, %cst_220 {dimension_numbers = #tpu.dot_dimension_numbers<[1], [0], [0], [1], [0, 0, 1, 1], [], []>} : vector<25x144xbf16>, vector<144x32xbf16>, vector<25x32xf32> -> vector<25x32xf32>
    %259 = arith.truncf %258 : vector<25x32xf32> to vector<25x32xbf16>
    %c10_221 = arith.constant 10 : index
    %c0_222 = arith.constant 0 : index
    %c0_223 = arith.constant 0 : index
    %260 = vector.load %arg5[%c10_221, %c0_222, %c0_223] : memref<16x32x64xbf16, #tpu.memory_space<vmem>>, vector<1x32x64xbf16>
    %261 = vector.shape_cast %260 : vector<1x32x64xbf16> to vector<32x64xbf16>
    %cst_224 = arith.constant dense<0.000000e+00> : vector<25x64xf32>
    %262 = tpu.matmul %259, %261, %cst_224 {dimension_numbers = #tpu.dot_dimension_numbers<[1], [0], [0], [1], [0, 0, 1, 1], [], []>} : vector<25x32xbf16>, vector<32x64xbf16>, vector<25x64xf32> -> vector<25x64xf32>
    %263 = arith.addf %255, %262 : vector<25x64xf32>
    %c11_225 = arith.constant 11 : index
    %c0_226 = arith.constant 0 : index
    %c0_227 = arith.constant 0 : index
    %264 = vector.load %arg4[%c11_225, %c0_226, %c0_227] : memref<16x25x144xbf16, #tpu.memory_space<vmem>>, vector<1x25x144xbf16>
    %265 = vector.shape_cast %264 : vector<1x25x144xbf16> to vector<25x144xbf16>
    %cst_228 = arith.constant dense<0.000000e+00> : vector<25x32xf32>
    %266 = tpu.matmul %265, %49, %cst_228 {dimension_numbers = #tpu.dot_dimension_numbers<[1], [0], [0], [1], [0, 0, 1, 1], [], []>} : vector<25x144xbf16>, vector<144x32xbf16>, vector<25x32xf32> -> vector<25x32xf32>
    %267 = arith.truncf %266 : vector<25x32xf32> to vector<25x32xbf16>
    %c11_229 = arith.constant 11 : index
    %c0_230 = arith.constant 0 : index
    %c0_231 = arith.constant 0 : index
    %268 = vector.load %arg5[%c11_229, %c0_230, %c0_231] : memref<16x32x64xbf16, #tpu.memory_space<vmem>>, vector<1x32x64xbf16>
    %269 = vector.shape_cast %268 : vector<1x32x64xbf16> to vector<32x64xbf16>
    %cst_232 = arith.constant dense<0.000000e+00> : vector<25x64xf32>
    %270 = tpu.matmul %267, %269, %cst_232 {dimension_numbers = #tpu.dot_dimension_numbers<[1], [0], [0], [1], [0, 0, 1, 1], [], []>} : vector<25x32xbf16>, vector<32x64xbf16>, vector<25x64xf32> -> vector<25x64xf32>
    %271 = arith.addf %263, %270 : vector<25x64xf32>
    %c12_233 = arith.constant 12 : index
    %c0_234 = arith.constant 0 : index
    %c0_235 = arith.constant 0 : index
    %272 = vector.load %arg4[%c12_233, %c0_234, %c0_235] : memref<16x25x144xbf16, #tpu.memory_space<vmem>>, vector<1x25x144xbf16>
    %273 = vector.shape_cast %272 : vector<1x25x144xbf16> to vector<25x144xbf16>
    %cst_236 = arith.constant dense<0.000000e+00> : vector<25x32xf32>
    %274 = tpu.matmul %273, %49, %cst_236 {dimension_numbers = #tpu.dot_dimension_numbers<[1], [0], [0], [1], [0, 0, 1, 1], [], []>} : vector<25x144xbf16>, vector<144x32xbf16>, vector<25x32xf32> -> vector<25x32xf32>
    %275 = arith.truncf %274 : vector<25x32xf32> to vector<25x32xbf16>
    %c12_237 = arith.constant 12 : index
    %c0_238 = arith.constant 0 : index
    %c0_239 = arith.constant 0 : index
    %276 = vector.load %arg5[%c12_237, %c0_238, %c0_239] : memref<16x32x64xbf16, #tpu.memory_space<vmem>>, vector<1x32x64xbf16>
    %277 = vector.shape_cast %276 : vector<1x32x64xbf16> to vector<32x64xbf16>
    %cst_240 = arith.constant dense<0.000000e+00> : vector<25x64xf32>
    %278 = tpu.matmul %275, %277, %cst_240 {dimension_numbers = #tpu.dot_dimension_numbers<[1], [0], [0], [1], [0, 0, 1, 1], [], []>} : vector<25x32xbf16>, vector<32x64xbf16>, vector<25x64xf32> -> vector<25x64xf32>
    %279 = arith.addf %271, %278 : vector<25x64xf32>
    %c13_241 = arith.constant 13 : index
    %c0_242 = arith.constant 0 : index
    %c0_243 = arith.constant 0 : index
    %280 = vector.load %arg4[%c13_241, %c0_242, %c0_243] : memref<16x25x144xbf16, #tpu.memory_space<vmem>>, vector<1x25x144xbf16>
    %281 = vector.shape_cast %280 : vector<1x25x144xbf16> to vector<25x144xbf16>
    %cst_244 = arith.constant dense<0.000000e+00> : vector<25x32xf32>
    %282 = tpu.matmul %281, %49, %cst_244 {dimension_numbers = #tpu.dot_dimension_numbers<[1], [0], [0], [1], [0, 0, 1, 1], [], []>} : vector<25x144xbf16>, vector<144x32xbf16>, vector<25x32xf32> -> vector<25x32xf32>
    %283 = arith.truncf %282 : vector<25x32xf32> to vector<25x32xbf16>
    %c13_245 = arith.constant 13 : index
    %c0_246 = arith.constant 0 : index
    %c0_247 = arith.constant 0 : index
    %284 = vector.load %arg5[%c13_245, %c0_246, %c0_247] : memref<16x32x64xbf16, #tpu.memory_space<vmem>>, vector<1x32x64xbf16>
    %285 = vector.shape_cast %284 : vector<1x32x64xbf16> to vector<32x64xbf16>
    %cst_248 = arith.constant dense<0.000000e+00> : vector<25x64xf32>
    %286 = tpu.matmul %283, %285, %cst_248 {dimension_numbers = #tpu.dot_dimension_numbers<[1], [0], [0], [1], [0, 0, 1, 1], [], []>} : vector<25x32xbf16>, vector<32x64xbf16>, vector<25x64xf32> -> vector<25x64xf32>
    %287 = arith.addf %279, %286 : vector<25x64xf32>
    %c14_249 = arith.constant 14 : index
    %c0_250 = arith.constant 0 : index
    %c0_251 = arith.constant 0 : index
    %288 = vector.load %arg4[%c14_249, %c0_250, %c0_251] : memref<16x25x144xbf16, #tpu.memory_space<vmem>>, vector<1x25x144xbf16>
    %289 = vector.shape_cast %288 : vector<1x25x144xbf16> to vector<25x144xbf16>
    %cst_252 = arith.constant dense<0.000000e+00> : vector<25x32xf32>
    %290 = tpu.matmul %289, %49, %cst_252 {dimension_numbers = #tpu.dot_dimension_numbers<[1], [0], [0], [1], [0, 0, 1, 1], [], []>} : vector<25x144xbf16>, vector<144x32xbf16>, vector<25x32xf32> -> vector<25x32xf32>
    %291 = arith.truncf %290 : vector<25x32xf32> to vector<25x32xbf16>
    %c14_253 = arith.constant 14 : index
    %c0_254 = arith.constant 0 : index
    %c0_255 = arith.constant 0 : index
    %292 = vector.load %arg5[%c14_253, %c0_254, %c0_255] : memref<16x32x64xbf16, #tpu.memory_space<vmem>>, vector<1x32x64xbf16>
    %293 = vector.shape_cast %292 : vector<1x32x64xbf16> to vector<32x64xbf16>
    %cst_256 = arith.constant dense<0.000000e+00> : vector<25x64xf32>
    %294 = tpu.matmul %291, %293, %cst_256 {dimension_numbers = #tpu.dot_dimension_numbers<[1], [0], [0], [1], [0, 0, 1, 1], [], []>} : vector<25x32xbf16>, vector<32x64xbf16>, vector<25x64xf32> -> vector<25x64xf32>
    %295 = arith.addf %287, %294 : vector<25x64xf32>
    %c15_257 = arith.constant 15 : index
    %c0_258 = arith.constant 0 : index
    %c0_259 = arith.constant 0 : index
    %296 = vector.load %arg4[%c15_257, %c0_258, %c0_259] : memref<16x25x144xbf16, #tpu.memory_space<vmem>>, vector<1x25x144xbf16>
    %297 = vector.shape_cast %296 : vector<1x25x144xbf16> to vector<25x144xbf16>
    %cst_260 = arith.constant dense<0.000000e+00> : vector<25x32xf32>
    %298 = tpu.matmul %297, %49, %cst_260 {dimension_numbers = #tpu.dot_dimension_numbers<[1], [0], [0], [1], [0, 0, 1, 1], [], []>} : vector<25x144xbf16>, vector<144x32xbf16>, vector<25x32xf32> -> vector<25x32xf32>
    %299 = arith.truncf %298 : vector<25x32xf32> to vector<25x32xbf16>
    %c15_261 = arith.constant 15 : index
    %c0_262 = arith.constant 0 : index
    %c0_263 = arith.constant 0 : index
    %300 = vector.load %arg5[%c15_261, %c0_262, %c0_263] : memref<16x32x64xbf16, #tpu.memory_space<vmem>>, vector<1x32x64xbf16>
    %301 = vector.shape_cast %300 : vector<1x32x64xbf16> to vector<32x64xbf16>
    %cst_264 = arith.constant dense<0.000000e+00> : vector<25x64xf32>
    %302 = tpu.matmul %299, %301, %cst_264 {dimension_numbers = #tpu.dot_dimension_numbers<[1], [0], [0], [1], [0, 0, 1, 1], [], []>} : vector<25x32xbf16>, vector<32x64xbf16>, vector<25x64xf32> -> vector<25x64xf32>
    %303 = arith.addf %295, %302 : vector<25x64xf32>
    %c0_265 = arith.constant 0 : index
    %c0_266 = arith.constant 0 : index
    %304 = vector.load %arg6[%c0_265, %c0_266] : memref<1x64xf32, #tpu.memory_space<vmem>>, vector<1x64xf32>
    %c0_267 = arith.constant 0 : index
    %c0_268 = arith.constant 0 : index
    %305 = vector.load %arg7[%c0_267, %c0_268] : memref<1x64xf32, #tpu.memory_space<vmem>>, vector<1x64xf32>
    %cst_269 = arith.constant dense<0.000000e+00> : vector<64xf32>
    %306 = vector.multi_reduction <add>, %176, %cst_269 [0] : vector<25x64xf32> to vector<64xf32>
    %307 = vector.shape_cast %306 : vector<64xf32> to vector<1x64xf32>
    %308 = arith.mulf %176, %176 : vector<25x64xf32>
    %cst_270 = arith.constant dense<0.000000e+00> : vector<64xf32>
    %309 = vector.multi_reduction <add>, %308, %cst_270 [0] : vector<25x64xf32> to vector<64xf32>
    %310 = vector.shape_cast %309 : vector<64xf32> to vector<1x64xf32>
    %cst_271 = arith.constant dense<0.000000e+00> : vector<64xf32>
    %311 = vector.multi_reduction <add>, %303, %cst_271 [0] : vector<25x64xf32> to vector<64xf32>
    %312 = vector.shape_cast %311 : vector<64xf32> to vector<1x64xf32>
    %313 = arith.addf %307, %312 : vector<1x64xf32>
    %314 = arith.mulf %303, %303 : vector<25x64xf32>
    %cst_272 = arith.constant dense<0.000000e+00> : vector<64xf32>
    %315 = vector.multi_reduction <add>, %314, %cst_272 [0] : vector<25x64xf32> to vector<64xf32>
    %316 = vector.shape_cast %315 : vector<64xf32> to vector<1x64xf32>
    %317 = arith.addf %310, %316 : vector<1x64xf32>
    %cst_273 = arith.constant 2.000000e-02 : f32
    %318 = vector.broadcast %cst_273 : f32 to vector<1x64xf32>
    %319 = arith.mulf %313, %318 : vector<1x64xf32>
    %cst_274 = arith.constant 2.000000e-02 : f32
    %320 = vector.broadcast %cst_274 : f32 to vector<1x64xf32>
    %321 = arith.mulf %317, %320 : vector<1x64xf32>
    %322 = arith.mulf %319, %319 : vector<1x64xf32>
    %323 = arith.subf %321, %322 : vector<1x64xf32>
    %cst_275 = arith.constant 0.000000e+00 : f32
    %324 = vector.broadcast %cst_275 : f32 to vector<1x64xf32>
    %325 = arith.maximumf %323, %324 : vector<1x64xf32>
    %cst_276 = arith.constant 9.99999974E-6 : f32
    %326 = vector.broadcast %cst_276 : f32 to vector<1x64xf32>
    %327 = arith.addf %325, %326 : vector<1x64xf32>
    %328 = math.rsqrt %327 : vector<1x64xf32>
    %329 = arith.mulf %328, %304 : vector<1x64xf32>
    %330 = arith.mulf %319, %329 : vector<1x64xf32>
    %331 = arith.subf %305, %330 : vector<1x64xf32>
    %332 = vector.broadcast %329 : vector<1x64xf32> to vector<25x64xf32>
    %333 = arith.mulf %176, %332 : vector<25x64xf32>
    %334 = vector.broadcast %331 : vector<1x64xf32> to vector<25x64xf32>
    %335 = arith.addf %333, %334 : vector<25x64xf32>
    %cst_277 = arith.constant 0.000000e+00 : f32
    %336 = vector.broadcast %cst_277 : f32 to vector<25x64xf32>
    %337 = arith.maximumf %335, %336 : vector<25x64xf32>
    %338 = arith.truncf %337 : vector<25x64xf32> to vector<25x64xbf16>
    %339 = vector.broadcast %329 : vector<1x64xf32> to vector<25x64xf32>
    %340 = arith.mulf %303, %339 : vector<25x64xf32>
    %341 = vector.broadcast %331 : vector<1x64xf32> to vector<25x64xf32>
    %342 = arith.addf %340, %341 : vector<25x64xf32>
    %cst_278 = arith.constant 0.000000e+00 : f32
    %343 = vector.broadcast %cst_278 : f32 to vector<25x64xf32>
    %344 = arith.maximumf %342, %343 : vector<25x64xf32>
    %345 = arith.truncf %344 : vector<25x64xf32> to vector<25x64xbf16>
    %c0_279 = arith.constant 0 : index
    %c0_280 = arith.constant 0 : index
    %c0_281 = arith.constant 0 : index
    %346 = vector.load %arg8[%c0_279, %c0_280, %c0_281] : memref<9x9x25xbf16, #tpu.memory_space<vmem>>, vector<1x9x25xbf16>
    %347 = vector.shape_cast %346 : vector<1x9x25xbf16> to vector<9x25xbf16>
    %cst_282 = arith.constant dense<0.000000e+00> : vector<9x64xf32>
    %348 = tpu.matmul %347, %338, %cst_282 {dimension_numbers = #tpu.dot_dimension_numbers<[1], [0], [0], [1], [0, 0, 1, 1], [], []>} : vector<9x25xbf16>, vector<25x64xbf16>, vector<9x64xf32> -> vector<9x64xf32>
    %349 = arith.truncf %348 : vector<9x64xf32> to vector<9x64xbf16>
    %c0_283 = arith.constant 0 : index
    %c0_284 = arith.constant 0 : index
    %c0_285 = arith.constant 0 : index
    %350 = vector.load %arg9[%c0_283, %c0_284, %c0_285] : memref<9x64x64xbf16, #tpu.memory_space<vmem>>, vector<1x64x64xbf16>
    %351 = vector.shape_cast %350 : vector<1x64x64xbf16> to vector<64x64xbf16>
    %cst_286 = arith.constant dense<0.000000e+00> : vector<9x64xf32>
    %352 = tpu.matmul %349, %351, %cst_286 {dimension_numbers = #tpu.dot_dimension_numbers<[1], [0], [0], [1], [0, 0, 1, 1], [], []>} : vector<9x64xbf16>, vector<64x64xbf16>, vector<9x64xf32> -> vector<9x64xf32>
    %c1_287 = arith.constant 1 : index
    %c0_288 = arith.constant 0 : index
    %c0_289 = arith.constant 0 : index
    %353 = vector.load %arg8[%c1_287, %c0_288, %c0_289] : memref<9x9x25xbf16, #tpu.memory_space<vmem>>, vector<1x9x25xbf16>
    %354 = vector.shape_cast %353 : vector<1x9x25xbf16> to vector<9x25xbf16>
    %cst_290 = arith.constant dense<0.000000e+00> : vector<9x64xf32>
    %355 = tpu.matmul %354, %338, %cst_290 {dimension_numbers = #tpu.dot_dimension_numbers<[1], [0], [0], [1], [0, 0, 1, 1], [], []>} : vector<9x25xbf16>, vector<25x64xbf16>, vector<9x64xf32> -> vector<9x64xf32>
    %356 = arith.truncf %355 : vector<9x64xf32> to vector<9x64xbf16>
    %c1_291 = arith.constant 1 : index
    %c0_292 = arith.constant 0 : index
    %c0_293 = arith.constant 0 : index
    %357 = vector.load %arg9[%c1_291, %c0_292, %c0_293] : memref<9x64x64xbf16, #tpu.memory_space<vmem>>, vector<1x64x64xbf16>
    %358 = vector.shape_cast %357 : vector<1x64x64xbf16> to vector<64x64xbf16>
    %cst_294 = arith.constant dense<0.000000e+00> : vector<9x64xf32>
    %359 = tpu.matmul %356, %358, %cst_294 {dimension_numbers = #tpu.dot_dimension_numbers<[1], [0], [0], [1], [0, 0, 1, 1], [], []>} : vector<9x64xbf16>, vector<64x64xbf16>, vector<9x64xf32> -> vector<9x64xf32>
    %360 = arith.addf %352, %359 : vector<9x64xf32>
    %c2_295 = arith.constant 2 : index
    %c0_296 = arith.constant 0 : index
    %c0_297 = arith.constant 0 : index
    %361 = vector.load %arg8[%c2_295, %c0_296, %c0_297] : memref<9x9x25xbf16, #tpu.memory_space<vmem>>, vector<1x9x25xbf16>
    %362 = vector.shape_cast %361 : vector<1x9x25xbf16> to vector<9x25xbf16>
    %cst_298 = arith.constant dense<0.000000e+00> : vector<9x64xf32>
    %363 = tpu.matmul %362, %338, %cst_298 {dimension_numbers = #tpu.dot_dimension_numbers<[1], [0], [0], [1], [0, 0, 1, 1], [], []>} : vector<9x25xbf16>, vector<25x64xbf16>, vector<9x64xf32> -> vector<9x64xf32>
    %364 = arith.truncf %363 : vector<9x64xf32> to vector<9x64xbf16>
    %c2_299 = arith.constant 2 : index
    %c0_300 = arith.constant 0 : index
    %c0_301 = arith.constant 0 : index
    %365 = vector.load %arg9[%c2_299, %c0_300, %c0_301] : memref<9x64x64xbf16, #tpu.memory_space<vmem>>, vector<1x64x64xbf16>
    %366 = vector.shape_cast %365 : vector<1x64x64xbf16> to vector<64x64xbf16>
    %cst_302 = arith.constant dense<0.000000e+00> : vector<9x64xf32>
    %367 = tpu.matmul %364, %366, %cst_302 {dimension_numbers = #tpu.dot_dimension_numbers<[1], [0], [0], [1], [0, 0, 1, 1], [], []>} : vector<9x64xbf16>, vector<64x64xbf16>, vector<9x64xf32> -> vector<9x64xf32>
    %368 = arith.addf %360, %367 : vector<9x64xf32>
    %c3_303 = arith.constant 3 : index
    %c0_304 = arith.constant 0 : index
    %c0_305 = arith.constant 0 : index
    %369 = vector.load %arg8[%c3_303, %c0_304, %c0_305] : memref<9x9x25xbf16, #tpu.memory_space<vmem>>, vector<1x9x25xbf16>
    %370 = vector.shape_cast %369 : vector<1x9x25xbf16> to vector<9x25xbf16>
    %cst_306 = arith.constant dense<0.000000e+00> : vector<9x64xf32>
    %371 = tpu.matmul %370, %338, %cst_306 {dimension_numbers = #tpu.dot_dimension_numbers<[1], [0], [0], [1], [0, 0, 1, 1], [], []>} : vector<9x25xbf16>, vector<25x64xbf16>, vector<9x64xf32> -> vector<9x64xf32>
    %372 = arith.truncf %371 : vector<9x64xf32> to vector<9x64xbf16>
    %c3_307 = arith.constant 3 : index
    %c0_308 = arith.constant 0 : index
    %c0_309 = arith.constant 0 : index
    %373 = vector.load %arg9[%c3_307, %c0_308, %c0_309] : memref<9x64x64xbf16, #tpu.memory_space<vmem>>, vector<1x64x64xbf16>
    %374 = vector.shape_cast %373 : vector<1x64x64xbf16> to vector<64x64xbf16>
    %cst_310 = arith.constant dense<0.000000e+00> : vector<9x64xf32>
    %375 = tpu.matmul %372, %374, %cst_310 {dimension_numbers = #tpu.dot_dimension_numbers<[1], [0], [0], [1], [0, 0, 1, 1], [], []>} : vector<9x64xbf16>, vector<64x64xbf16>, vector<9x64xf32> -> vector<9x64xf32>
    %376 = arith.addf %368, %375 : vector<9x64xf32>
    %c4_311 = arith.constant 4 : index
    %c0_312 = arith.constant 0 : index
    %c0_313 = arith.constant 0 : index
    %377 = vector.load %arg8[%c4_311, %c0_312, %c0_313] : memref<9x9x25xbf16, #tpu.memory_space<vmem>>, vector<1x9x25xbf16>
    %378 = vector.shape_cast %377 : vector<1x9x25xbf16> to vector<9x25xbf16>
    %cst_314 = arith.constant dense<0.000000e+00> : vector<9x64xf32>
    %379 = tpu.matmul %378, %338, %cst_314 {dimension_numbers = #tpu.dot_dimension_numbers<[1], [0], [0], [1], [0, 0, 1, 1], [], []>} : vector<9x25xbf16>, vector<25x64xbf16>, vector<9x64xf32> -> vector<9x64xf32>
    %380 = arith.truncf %379 : vector<9x64xf32> to vector<9x64xbf16>
    %c4_315 = arith.constant 4 : index
    %c0_316 = arith.constant 0 : index
    %c0_317 = arith.constant 0 : index
    %381 = vector.load %arg9[%c4_315, %c0_316, %c0_317] : memref<9x64x64xbf16, #tpu.memory_space<vmem>>, vector<1x64x64xbf16>
    %382 = vector.shape_cast %381 : vector<1x64x64xbf16> to vector<64x64xbf16>
    %cst_318 = arith.constant dense<0.000000e+00> : vector<9x64xf32>
    %383 = tpu.matmul %380, %382, %cst_318 {dimension_numbers = #tpu.dot_dimension_numbers<[1], [0], [0], [1], [0, 0, 1, 1], [], []>} : vector<9x64xbf16>, vector<64x64xbf16>, vector<9x64xf32> -> vector<9x64xf32>
    %384 = arith.addf %376, %383 : vector<9x64xf32>
    %c5_319 = arith.constant 5 : index
    %c0_320 = arith.constant 0 : index
    %c0_321 = arith.constant 0 : index
    %385 = vector.load %arg8[%c5_319, %c0_320, %c0_321] : memref<9x9x25xbf16, #tpu.memory_space<vmem>>, vector<1x9x25xbf16>
    %386 = vector.shape_cast %385 : vector<1x9x25xbf16> to vector<9x25xbf16>
    %cst_322 = arith.constant dense<0.000000e+00> : vector<9x64xf32>
    %387 = tpu.matmul %386, %338, %cst_322 {dimension_numbers = #tpu.dot_dimension_numbers<[1], [0], [0], [1], [0, 0, 1, 1], [], []>} : vector<9x25xbf16>, vector<25x64xbf16>, vector<9x64xf32> -> vector<9x64xf32>
    %388 = arith.truncf %387 : vector<9x64xf32> to vector<9x64xbf16>
    %c5_323 = arith.constant 5 : index
    %c0_324 = arith.constant 0 : index
    %c0_325 = arith.constant 0 : index
    %389 = vector.load %arg9[%c5_323, %c0_324, %c0_325] : memref<9x64x64xbf16, #tpu.memory_space<vmem>>, vector<1x64x64xbf16>
    %390 = vector.shape_cast %389 : vector<1x64x64xbf16> to vector<64x64xbf16>
    %cst_326 = arith.constant dense<0.000000e+00> : vector<9x64xf32>
    %391 = tpu.matmul %388, %390, %cst_326 {dimension_numbers = #tpu.dot_dimension_numbers<[1], [0], [0], [1], [0, 0, 1, 1], [], []>} : vector<9x64xbf16>, vector<64x64xbf16>, vector<9x64xf32> -> vector<9x64xf32>
    %392 = arith.addf %384, %391 : vector<9x64xf32>
    %c6_327 = arith.constant 6 : index
    %c0_328 = arith.constant 0 : index
    %c0_329 = arith.constant 0 : index
    %393 = vector.load %arg8[%c6_327, %c0_328, %c0_329] : memref<9x9x25xbf16, #tpu.memory_space<vmem>>, vector<1x9x25xbf16>
    %394 = vector.shape_cast %393 : vector<1x9x25xbf16> to vector<9x25xbf16>
    %cst_330 = arith.constant dense<0.000000e+00> : vector<9x64xf32>
    %395 = tpu.matmul %394, %338, %cst_330 {dimension_numbers = #tpu.dot_dimension_numbers<[1], [0], [0], [1], [0, 0, 1, 1], [], []>} : vector<9x25xbf16>, vector<25x64xbf16>, vector<9x64xf32> -> vector<9x64xf32>
    %396 = arith.truncf %395 : vector<9x64xf32> to vector<9x64xbf16>
    %c6_331 = arith.constant 6 : index
    %c0_332 = arith.constant 0 : index
    %c0_333 = arith.constant 0 : index
    %397 = vector.load %arg9[%c6_331, %c0_332, %c0_333] : memref<9x64x64xbf16, #tpu.memory_space<vmem>>, vector<1x64x64xbf16>
    %398 = vector.shape_cast %397 : vector<1x64x64xbf16> to vector<64x64xbf16>
    %cst_334 = arith.constant dense<0.000000e+00> : vector<9x64xf32>
    %399 = tpu.matmul %396, %398, %cst_334 {dimension_numbers = #tpu.dot_dimension_numbers<[1], [0], [0], [1], [0, 0, 1, 1], [], []>} : vector<9x64xbf16>, vector<64x64xbf16>, vector<9x64xf32> -> vector<9x64xf32>
    %400 = arith.addf %392, %399 : vector<9x64xf32>
    %c7_335 = arith.constant 7 : index
    %c0_336 = arith.constant 0 : index
    %c0_337 = arith.constant 0 : index
    %401 = vector.load %arg8[%c7_335, %c0_336, %c0_337] : memref<9x9x25xbf16, #tpu.memory_space<vmem>>, vector<1x9x25xbf16>
    %402 = vector.shape_cast %401 : vector<1x9x25xbf16> to vector<9x25xbf16>
    %cst_338 = arith.constant dense<0.000000e+00> : vector<9x64xf32>
    %403 = tpu.matmul %402, %338, %cst_338 {dimension_numbers = #tpu.dot_dimension_numbers<[1], [0], [0], [1], [0, 0, 1, 1], [], []>} : vector<9x25xbf16>, vector<25x64xbf16>, vector<9x64xf32> -> vector<9x64xf32>
    %404 = arith.truncf %403 : vector<9x64xf32> to vector<9x64xbf16>
    %c7_339 = arith.constant 7 : index
    %c0_340 = arith.constant 0 : index
    %c0_341 = arith.constant 0 : index
    %405 = vector.load %arg9[%c7_339, %c0_340, %c0_341] : memref<9x64x64xbf16, #tpu.memory_space<vmem>>, vector<1x64x64xbf16>
    %406 = vector.shape_cast %405 : vector<1x64x64xbf16> to vector<64x64xbf16>
    %cst_342 = arith.constant dense<0.000000e+00> : vector<9x64xf32>
    %407 = tpu.matmul %404, %406, %cst_342 {dimension_numbers = #tpu.dot_dimension_numbers<[1], [0], [0], [1], [0, 0, 1, 1], [], []>} : vector<9x64xbf16>, vector<64x64xbf16>, vector<9x64xf32> -> vector<9x64xf32>
    %408 = arith.addf %400, %407 : vector<9x64xf32>
    %c8_343 = arith.constant 8 : index
    %c0_344 = arith.constant 0 : index
    %c0_345 = arith.constant 0 : index
    %409 = vector.load %arg8[%c8_343, %c0_344, %c0_345] : memref<9x9x25xbf16, #tpu.memory_space<vmem>>, vector<1x9x25xbf16>
    %410 = vector.shape_cast %409 : vector<1x9x25xbf16> to vector<9x25xbf16>
    %cst_346 = arith.constant dense<0.000000e+00> : vector<9x64xf32>
    %411 = tpu.matmul %410, %338, %cst_346 {dimension_numbers = #tpu.dot_dimension_numbers<[1], [0], [0], [1], [0, 0, 1, 1], [], []>} : vector<9x25xbf16>, vector<25x64xbf16>, vector<9x64xf32> -> vector<9x64xf32>
    %412 = arith.truncf %411 : vector<9x64xf32> to vector<9x64xbf16>
    %c8_347 = arith.constant 8 : index
    %c0_348 = arith.constant 0 : index
    %c0_349 = arith.constant 0 : index
    %413 = vector.load %arg9[%c8_347, %c0_348, %c0_349] : memref<9x64x64xbf16, #tpu.memory_space<vmem>>, vector<1x64x64xbf16>
    %414 = vector.shape_cast %413 : vector<1x64x64xbf16> to vector<64x64xbf16>
    %cst_350 = arith.constant dense<0.000000e+00> : vector<9x64xf32>
    %415 = tpu.matmul %412, %414, %cst_350 {dimension_numbers = #tpu.dot_dimension_numbers<[1], [0], [0], [1], [0, 0, 1, 1], [], []>} : vector<9x64xbf16>, vector<64x64xbf16>, vector<9x64xf32> -> vector<9x64xf32>
    %416 = arith.addf %408, %415 : vector<9x64xf32>
    %c0_351 = arith.constant 0 : index
    %c0_352 = arith.constant 0 : index
    %c0_353 = arith.constant 0 : index
    %417 = vector.load %arg8[%c0_351, %c0_352, %c0_353] : memref<9x9x25xbf16, #tpu.memory_space<vmem>>, vector<1x9x25xbf16>
    %418 = vector.shape_cast %417 : vector<1x9x25xbf16> to vector<9x25xbf16>
    %cst_354 = arith.constant dense<0.000000e+00> : vector<9x64xf32>
    %419 = tpu.matmul %418, %345, %cst_354 {dimension_numbers = #tpu.dot_dimension_numbers<[1], [0], [0], [1], [0, 0, 1, 1], [], []>} : vector<9x25xbf16>, vector<25x64xbf16>, vector<9x64xf32> -> vector<9x64xf32>
    %420 = arith.truncf %419 : vector<9x64xf32> to vector<9x64xbf16>
    %c0_355 = arith.constant 0 : index
    %c0_356 = arith.constant 0 : index
    %c0_357 = arith.constant 0 : index
    %421 = vector.load %arg9[%c0_355, %c0_356, %c0_357] : memref<9x64x64xbf16, #tpu.memory_space<vmem>>, vector<1x64x64xbf16>
    %422 = vector.shape_cast %421 : vector<1x64x64xbf16> to vector<64x64xbf16>
    %cst_358 = arith.constant dense<0.000000e+00> : vector<9x64xf32>
    %423 = tpu.matmul %420, %422, %cst_358 {dimension_numbers = #tpu.dot_dimension_numbers<[1], [0], [0], [1], [0, 0, 1, 1], [], []>} : vector<9x64xbf16>, vector<64x64xbf16>, vector<9x64xf32> -> vector<9x64xf32>
    %c1_359 = arith.constant 1 : index
    %c0_360 = arith.constant 0 : index
    %c0_361 = arith.constant 0 : index
    %424 = vector.load %arg8[%c1_359, %c0_360, %c0_361] : memref<9x9x25xbf16, #tpu.memory_space<vmem>>, vector<1x9x25xbf16>
    %425 = vector.shape_cast %424 : vector<1x9x25xbf16> to vector<9x25xbf16>
    %cst_362 = arith.constant dense<0.000000e+00> : vector<9x64xf32>
    %426 = tpu.matmul %425, %345, %cst_362 {dimension_numbers = #tpu.dot_dimension_numbers<[1], [0], [0], [1], [0, 0, 1, 1], [], []>} : vector<9x25xbf16>, vector<25x64xbf16>, vector<9x64xf32> -> vector<9x64xf32>
    %427 = arith.truncf %426 : vector<9x64xf32> to vector<9x64xbf16>
    %c1_363 = arith.constant 1 : index
    %c0_364 = arith.constant 0 : index
    %c0_365 = arith.constant 0 : index
    %428 = vector.load %arg9[%c1_363, %c0_364, %c0_365] : memref<9x64x64xbf16, #tpu.memory_space<vmem>>, vector<1x64x64xbf16>
    %429 = vector.shape_cast %428 : vector<1x64x64xbf16> to vector<64x64xbf16>
    %cst_366 = arith.constant dense<0.000000e+00> : vector<9x64xf32>
    %430 = tpu.matmul %427, %429, %cst_366 {dimension_numbers = #tpu.dot_dimension_numbers<[1], [0], [0], [1], [0, 0, 1, 1], [], []>} : vector<9x64xbf16>, vector<64x64xbf16>, vector<9x64xf32> -> vector<9x64xf32>
    %431 = arith.addf %423, %430 : vector<9x64xf32>
    %c2_367 = arith.constant 2 : index
    %c0_368 = arith.constant 0 : index
    %c0_369 = arith.constant 0 : index
    %432 = vector.load %arg8[%c2_367, %c0_368, %c0_369] : memref<9x9x25xbf16, #tpu.memory_space<vmem>>, vector<1x9x25xbf16>
    %433 = vector.shape_cast %432 : vector<1x9x25xbf16> to vector<9x25xbf16>
    %cst_370 = arith.constant dense<0.000000e+00> : vector<9x64xf32>
    %434 = tpu.matmul %433, %345, %cst_370 {dimension_numbers = #tpu.dot_dimension_numbers<[1], [0], [0], [1], [0, 0, 1, 1], [], []>} : vector<9x25xbf16>, vector<25x64xbf16>, vector<9x64xf32> -> vector<9x64xf32>
    %435 = arith.truncf %434 : vector<9x64xf32> to vector<9x64xbf16>
    %c2_371 = arith.constant 2 : index
    %c0_372 = arith.constant 0 : index
    %c0_373 = arith.constant 0 : index
    %436 = vector.load %arg9[%c2_371, %c0_372, %c0_373] : memref<9x64x64xbf16, #tpu.memory_space<vmem>>, vector<1x64x64xbf16>
    %437 = vector.shape_cast %436 : vector<1x64x64xbf16> to vector<64x64xbf16>
    %cst_374 = arith.constant dense<0.000000e+00> : vector<9x64xf32>
    %438 = tpu.matmul %435, %437, %cst_374 {dimension_numbers = #tpu.dot_dimension_numbers<[1], [0], [0], [1], [0, 0, 1, 1], [], []>} : vector<9x64xbf16>, vector<64x64xbf16>, vector<9x64xf32> -> vector<9x64xf32>
    %439 = arith.addf %431, %438 : vector<9x64xf32>
    %c3_375 = arith.constant 3 : index
    %c0_376 = arith.constant 0 : index
    %c0_377 = arith.constant 0 : index
    %440 = vector.load %arg8[%c3_375, %c0_376, %c0_377] : memref<9x9x25xbf16, #tpu.memory_space<vmem>>, vector<1x9x25xbf16>
    %441 = vector.shape_cast %440 : vector<1x9x25xbf16> to vector<9x25xbf16>
    %cst_378 = arith.constant dense<0.000000e+00> : vector<9x64xf32>
    %442 = tpu.matmul %441, %345, %cst_378 {dimension_numbers = #tpu.dot_dimension_numbers<[1], [0], [0], [1], [0, 0, 1, 1], [], []>} : vector<9x25xbf16>, vector<25x64xbf16>, vector<9x64xf32> -> vector<9x64xf32>
    %443 = arith.truncf %442 : vector<9x64xf32> to vector<9x64xbf16>
    %c3_379 = arith.constant 3 : index
    %c0_380 = arith.constant 0 : index
    %c0_381 = arith.constant 0 : index
    %444 = vector.load %arg9[%c3_379, %c0_380, %c0_381] : memref<9x64x64xbf16, #tpu.memory_space<vmem>>, vector<1x64x64xbf16>
    %445 = vector.shape_cast %444 : vector<1x64x64xbf16> to vector<64x64xbf16>
    %cst_382 = arith.constant dense<0.000000e+00> : vector<9x64xf32>
    %446 = tpu.matmul %443, %445, %cst_382 {dimension_numbers = #tpu.dot_dimension_numbers<[1], [0], [0], [1], [0, 0, 1, 1], [], []>} : vector<9x64xbf16>, vector<64x64xbf16>, vector<9x64xf32> -> vector<9x64xf32>
    %447 = arith.addf %439, %446 : vector<9x64xf32>
    %c4_383 = arith.constant 4 : index
    %c0_384 = arith.constant 0 : index
    %c0_385 = arith.constant 0 : index
    %448 = vector.load %arg8[%c4_383, %c0_384, %c0_385] : memref<9x9x25xbf16, #tpu.memory_space<vmem>>, vector<1x9x25xbf16>
    %449 = vector.shape_cast %448 : vector<1x9x25xbf16> to vector<9x25xbf16>
    %cst_386 = arith.constant dense<0.000000e+00> : vector<9x64xf32>
    %450 = tpu.matmul %449, %345, %cst_386 {dimension_numbers = #tpu.dot_dimension_numbers<[1], [0], [0], [1], [0, 0, 1, 1], [], []>} : vector<9x25xbf16>, vector<25x64xbf16>, vector<9x64xf32> -> vector<9x64xf32>
    %451 = arith.truncf %450 : vector<9x64xf32> to vector<9x64xbf16>
    %c4_387 = arith.constant 4 : index
    %c0_388 = arith.constant 0 : index
    %c0_389 = arith.constant 0 : index
    %452 = vector.load %arg9[%c4_387, %c0_388, %c0_389] : memref<9x64x64xbf16, #tpu.memory_space<vmem>>, vector<1x64x64xbf16>
    %453 = vector.shape_cast %452 : vector<1x64x64xbf16> to vector<64x64xbf16>
    %cst_390 = arith.constant dense<0.000000e+00> : vector<9x64xf32>
    %454 = tpu.matmul %451, %453, %cst_390 {dimension_numbers = #tpu.dot_dimension_numbers<[1], [0], [0], [1], [0, 0, 1, 1], [], []>} : vector<9x64xbf16>, vector<64x64xbf16>, vector<9x64xf32> -> vector<9x64xf32>
    %455 = arith.addf %447, %454 : vector<9x64xf32>
    %c5_391 = arith.constant 5 : index
    %c0_392 = arith.constant 0 : index
    %c0_393 = arith.constant 0 : index
    %456 = vector.load %arg8[%c5_391, %c0_392, %c0_393] : memref<9x9x25xbf16, #tpu.memory_space<vmem>>, vector<1x9x25xbf16>
    %457 = vector.shape_cast %456 : vector<1x9x25xbf16> to vector<9x25xbf16>
    %cst_394 = arith.constant dense<0.000000e+00> : vector<9x64xf32>
    %458 = tpu.matmul %457, %345, %cst_394 {dimension_numbers = #tpu.dot_dimension_numbers<[1], [0], [0], [1], [0, 0, 1, 1], [], []>} : vector<9x25xbf16>, vector<25x64xbf16>, vector<9x64xf32> -> vector<9x64xf32>
    %459 = arith.truncf %458 : vector<9x64xf32> to vector<9x64xbf16>
    %c5_395 = arith.constant 5 : index
    %c0_396 = arith.constant 0 : index
    %c0_397 = arith.constant 0 : index
    %460 = vector.load %arg9[%c5_395, %c0_396, %c0_397] : memref<9x64x64xbf16, #tpu.memory_space<vmem>>, vector<1x64x64xbf16>
    %461 = vector.shape_cast %460 : vector<1x64x64xbf16> to vector<64x64xbf16>
    %cst_398 = arith.constant dense<0.000000e+00> : vector<9x64xf32>
    %462 = tpu.matmul %459, %461, %cst_398 {dimension_numbers = #tpu.dot_dimension_numbers<[1], [0], [0], [1], [0, 0, 1, 1], [], []>} : vector<9x64xbf16>, vector<64x64xbf16>, vector<9x64xf32> -> vector<9x64xf32>
    %463 = arith.addf %455, %462 : vector<9x64xf32>
    %c6_399 = arith.constant 6 : index
    %c0_400 = arith.constant 0 : index
    %c0_401 = arith.constant 0 : index
    %464 = vector.load %arg8[%c6_399, %c0_400, %c0_401] : memref<9x9x25xbf16, #tpu.memory_space<vmem>>, vector<1x9x25xbf16>
    %465 = vector.shape_cast %464 : vector<1x9x25xbf16> to vector<9x25xbf16>
    %cst_402 = arith.constant dense<0.000000e+00> : vector<9x64xf32>
    %466 = tpu.matmul %465, %345, %cst_402 {dimension_numbers = #tpu.dot_dimension_numbers<[1], [0], [0], [1], [0, 0, 1, 1], [], []>} : vector<9x25xbf16>, vector<25x64xbf16>, vector<9x64xf32> -> vector<9x64xf32>
    %467 = arith.truncf %466 : vector<9x64xf32> to vector<9x64xbf16>
    %c6_403 = arith.constant 6 : index
    %c0_404 = arith.constant 0 : index
    %c0_405 = arith.constant 0 : index
    %468 = vector.load %arg9[%c6_403, %c0_404, %c0_405] : memref<9x64x64xbf16, #tpu.memory_space<vmem>>, vector<1x64x64xbf16>
    %469 = vector.shape_cast %468 : vector<1x64x64xbf16> to vector<64x64xbf16>
    %cst_406 = arith.constant dense<0.000000e+00> : vector<9x64xf32>
    %470 = tpu.matmul %467, %469, %cst_406 {dimension_numbers = #tpu.dot_dimension_numbers<[1], [0], [0], [1], [0, 0, 1, 1], [], []>} : vector<9x64xbf16>, vector<64x64xbf16>, vector<9x64xf32> -> vector<9x64xf32>
    %471 = arith.addf %463, %470 : vector<9x64xf32>
    %c7_407 = arith.constant 7 : index
    %c0_408 = arith.constant 0 : index
    %c0_409 = arith.constant 0 : index
    %472 = vector.load %arg8[%c7_407, %c0_408, %c0_409] : memref<9x9x25xbf16, #tpu.memory_space<vmem>>, vector<1x9x25xbf16>
    %473 = vector.shape_cast %472 : vector<1x9x25xbf16> to vector<9x25xbf16>
    %cst_410 = arith.constant dense<0.000000e+00> : vector<9x64xf32>
    %474 = tpu.matmul %473, %345, %cst_410 {dimension_numbers = #tpu.dot_dimension_numbers<[1], [0], [0], [1], [0, 0, 1, 1], [], []>} : vector<9x25xbf16>, vector<25x64xbf16>, vector<9x64xf32> -> vector<9x64xf32>
    %475 = arith.truncf %474 : vector<9x64xf32> to vector<9x64xbf16>
    %c7_411 = arith.constant 7 : index
    %c0_412 = arith.constant 0 : index
    %c0_413 = arith.constant 0 : index
    %476 = vector.load %arg9[%c7_411, %c0_412, %c0_413] : memref<9x64x64xbf16, #tpu.memory_space<vmem>>, vector<1x64x64xbf16>
    %477 = vector.shape_cast %476 : vector<1x64x64xbf16> to vector<64x64xbf16>
    %cst_414 = arith.constant dense<0.000000e+00> : vector<9x64xf32>
    %478 = tpu.matmul %475, %477, %cst_414 {dimension_numbers = #tpu.dot_dimension_numbers<[1], [0], [0], [1], [0, 0, 1, 1], [], []>} : vector<9x64xbf16>, vector<64x64xbf16>, vector<9x64xf32> -> vector<9x64xf32>
    %479 = arith.addf %471, %478 : vector<9x64xf32>
    %c8_415 = arith.constant 8 : index
    %c0_416 = arith.constant 0 : index
    %c0_417 = arith.constant 0 : index
    %480 = vector.load %arg8[%c8_415, %c0_416, %c0_417] : memref<9x9x25xbf16, #tpu.memory_space<vmem>>, vector<1x9x25xbf16>
    %481 = vector.shape_cast %480 : vector<1x9x25xbf16> to vector<9x25xbf16>
    %cst_418 = arith.constant dense<0.000000e+00> : vector<9x64xf32>
    %482 = tpu.matmul %481, %345, %cst_418 {dimension_numbers = #tpu.dot_dimension_numbers<[1], [0], [0], [1], [0, 0, 1, 1], [], []>} : vector<9x25xbf16>, vector<25x64xbf16>, vector<9x64xf32> -> vector<9x64xf32>
    %483 = arith.truncf %482 : vector<9x64xf32> to vector<9x64xbf16>
    %c8_419 = arith.constant 8 : index
    %c0_420 = arith.constant 0 : index
    %c0_421 = arith.constant 0 : index
    %484 = vector.load %arg9[%c8_419, %c0_420, %c0_421] : memref<9x64x64xbf16, #tpu.memory_space<vmem>>, vector<1x64x64xbf16>
    %485 = vector.shape_cast %484 : vector<1x64x64xbf16> to vector<64x64xbf16>
    %cst_422 = arith.constant dense<0.000000e+00> : vector<9x64xf32>
    %486 = tpu.matmul %483, %485, %cst_422 {dimension_numbers = #tpu.dot_dimension_numbers<[1], [0], [0], [1], [0, 0, 1, 1], [], []>} : vector<9x64xbf16>, vector<64x64xbf16>, vector<9x64xf32> -> vector<9x64xf32>
    %487 = arith.addf %479, %486 : vector<9x64xf32>
    %c0_423 = arith.constant 0 : index
    %c0_424 = arith.constant 0 : index
    %488 = vector.load %arg10[%c0_423, %c0_424] : memref<1x64xf32, #tpu.memory_space<vmem>>, vector<1x64xf32>
    %c0_425 = arith.constant 0 : index
    %c0_426 = arith.constant 0 : index
    %489 = vector.load %arg11[%c0_425, %c0_426] : memref<1x64xf32, #tpu.memory_space<vmem>>, vector<1x64xf32>
    %cst_427 = arith.constant dense<0.000000e+00> : vector<64xf32>
    %490 = vector.multi_reduction <add>, %416, %cst_427 [0] : vector<9x64xf32> to vector<64xf32>
    %491 = vector.shape_cast %490 : vector<64xf32> to vector<1x64xf32>
    %492 = arith.mulf %416, %416 : vector<9x64xf32>
    %cst_428 = arith.constant dense<0.000000e+00> : vector<64xf32>
    %493 = vector.multi_reduction <add>, %492, %cst_428 [0] : vector<9x64xf32> to vector<64xf32>
    %494 = vector.shape_cast %493 : vector<64xf32> to vector<1x64xf32>
    %cst_429 = arith.constant dense<0.000000e+00> : vector<64xf32>
    %495 = vector.multi_reduction <add>, %487, %cst_429 [0] : vector<9x64xf32> to vector<64xf32>
    %496 = vector.shape_cast %495 : vector<64xf32> to vector<1x64xf32>
    %497 = arith.addf %491, %496 : vector<1x64xf32>
    %498 = arith.mulf %487, %487 : vector<9x64xf32>
    %cst_430 = arith.constant dense<0.000000e+00> : vector<64xf32>
    %499 = vector.multi_reduction <add>, %498, %cst_430 [0] : vector<9x64xf32> to vector<64xf32>
    %500 = vector.shape_cast %499 : vector<64xf32> to vector<1x64xf32>
    %501 = arith.addf %494, %500 : vector<1x64xf32>
    %cst_431 = arith.constant 0.055555556 : f32
    %502 = vector.broadcast %cst_431 : f32 to vector<1x64xf32>
    %503 = arith.mulf %497, %502 : vector<1x64xf32>
    %cst_432 = arith.constant 0.055555556 : f32
    %504 = vector.broadcast %cst_432 : f32 to vector<1x64xf32>
    %505 = arith.mulf %501, %504 : vector<1x64xf32>
    %506 = arith.mulf %503, %503 : vector<1x64xf32>
    %507 = arith.subf %505, %506 : vector<1x64xf32>
    %cst_433 = arith.constant 0.000000e+00 : f32
    %508 = vector.broadcast %cst_433 : f32 to vector<1x64xf32>
    %509 = arith.maximumf %507, %508 : vector<1x64xf32>
    %cst_434 = arith.constant 9.99999974E-6 : f32
    %510 = vector.broadcast %cst_434 : f32 to vector<1x64xf32>
    %511 = arith.addf %509, %510 : vector<1x64xf32>
    %512 = math.rsqrt %511 : vector<1x64xf32>
    %513 = arith.mulf %512, %488 : vector<1x64xf32>
    %514 = arith.mulf %503, %513 : vector<1x64xf32>
    %515 = arith.subf %489, %514 : vector<1x64xf32>
    %516 = vector.broadcast %513 : vector<1x64xf32> to vector<9x64xf32>
    %517 = arith.mulf %416, %516 : vector<9x64xf32>
    %518 = vector.broadcast %515 : vector<1x64xf32> to vector<9x64xf32>
    %519 = arith.addf %517, %518 : vector<9x64xf32>
    %cst_435 = arith.constant 0.000000e+00 : f32
    %520 = vector.broadcast %cst_435 : f32 to vector<9x64xf32>
    %521 = arith.maximumf %519, %520 : vector<9x64xf32>
    %522 = vector.broadcast %513 : vector<1x64xf32> to vector<9x64xf32>
    %523 = arith.mulf %487, %522 : vector<9x64xf32>
    %524 = vector.broadcast %515 : vector<1x64xf32> to vector<9x64xf32>
    %525 = arith.addf %523, %524 : vector<9x64xf32>
    %cst_436 = arith.constant 0.000000e+00 : f32
    %526 = vector.broadcast %cst_436 : f32 to vector<9x64xf32>
    %527 = arith.maximumf %525, %526 : vector<9x64xf32>
    %c0_437 = arith.constant 0 : index
    %c0_438 = arith.constant 0 : index
    %c0_439 = arith.constant 0 : index
    %528 = vector.load %arg12[%c0_437, %c0_438, %c0_439] : memref<2x9x64xf32, #tpu.memory_space<vmem>>, vector<1x9x64xf32>
    %529 = vector.shape_cast %528 : vector<1x9x64xf32> to vector<9x64xf32>
    %530 = vector.shape_cast %521 : vector<9x64xf32> to vector<1x9x64xf32>
    tpu.vector_store %arg12[%c0_437, %c0_438, %c0_439], %530 {strides = array<i32>} : memref<2x9x64xf32, #tpu.memory_space<vmem>>, vector<1x9x64xf32>,
    %c1_440 = arith.constant 1 : index
    %c0_441 = arith.constant 0 : index
    %c0_442 = arith.constant 0 : index
    %531 = vector.load %arg12[%c1_440, %c0_441, %c0_442] : memref<2x9x64xf32, #tpu.memory_space<vmem>>, vector<1x9x64xf32>
    %532 = vector.shape_cast %531 : vector<1x9x64xf32> to vector<9x64xf32>
    %533 = vector.shape_cast %527 : vector<9x64xf32> to vector<1x9x64xf32>
    tpu.vector_store %arg12[%c1_440, %c0_441, %c0_442], %533 {strides = array<i32>} : memref<2x9x64xf32, #tpu.memory_space<vmem>>, vector<1x9x64xf32>,
    return
  }
}

</mosaic_0001>

<llo_original>
// kernel: convnet_forward.1
$region0: #{convnet_forward.1}
  #allocation0 [shape = 'u32[]', space=smem, size = 0x4, offset = 0x4, fixed_abs, tag = 'smem constant byte address 0x4 - core index']
  #allocation1 [shape = 'u32[144,128]{1,0:T(1,128)}', space=vmem, size = 0x12000, scoped, tag = 'internal scratch']
  %s0 = inlined_call_operand.vmem [shape: bf16[2,144,256], index: 0, kind: input, shape index: {}]
  %s1 = inlined_call_operand.vmem [shape: bf16[256,32], index: 1, kind: input, shape index: {}]
  %s2 = inlined_call_operand.vmem [shape: f32[1,32], index: 2, kind: input, shape index: {}]
  %s3 = inlined_call_operand.vmem [shape: f32[1,32], index: 3, kind: input, shape index: {}]
  %s4 = inlined_call_operand.vmem [shape: bf16[16,25,144], index: 4, kind: input, shape index: {}]
  %s5 = inlined_call_operand.vmem [shape: bf16[16,32,64], index: 5, kind: input, shape index: {}]
  %s6 = inlined_call_operand.vmem [shape: f32[1,64], index: 6, kind: input, shape index: {}]
  %s7 = inlined_call_operand.vmem [shape: f32[1,64], index: 7, kind: input, shape index: {}]
  %s8 = inlined_call_operand.vmem [shape: bf16[9,9,25], index: 8, kind: input, shape index: {}]
  %s9 = inlined_call_operand.vmem [shape: bf16[9,64,64], index: 9, kind: input, shape index: {}]
  %s10 = inlined_call_operand.vmem [shape: f32[1,64], index: 10, kind: input, shape index: {}]
  %s11 = inlined_call_operand.vmem [shape: f32[1,64], index: 11, kind: input, shape index: {}]
  %s12 = inlined_call_operand.vmem [shape: f32[2,9,64], index: 12, kind: output, shape index: {}]
  %s13 = sld [smem:[#allocation0]]
  $region58: #{convnet_forward.1} parent=0
    _
  %s15 = ssub.s32 1, %s13
  %s16 = scalar_select 0, %s15, %s13
  // Predicated region
  $region2: #{convnet_forward.1} parent=0 // pred_check
    _
  $region3: #{convnet_forward.1} parent=0 // pred_check_branch
    %18 = sbr.rel (0) target = $region5
  $region4: #{convnet_forward.1} parent=0 // pred_region
    _
  $region5: #{convnet_forward.1} parent=0 // pred_fallthru
    _
  // Predicated region
  $region6: #{convnet_forward.1} parent=0 // pred_check
    _
  $region7: #{convnet_forward.1} parent=0 // pred_check_branch
    %20 = sbr.rel (0) target = $region9
  $region8: #{convnet_forward.1} parent=0 // pred_region
    _
  $region9: #{convnet_forward.1} parent=0 // pred_fallthru
    _
  // Predicated region
  $region10: #{convnet_forward.1} parent=0 // pred_check
    _
  $region11: #{convnet_forward.1} parent=0 // pred_check_branch
    %22 = sbr.rel (0) target = $region13
  $region12: #{convnet_forward.1} parent=0 // pred_region
    _
  $region13: #{convnet_forward.1} parent=0 // pred_fallthru
    _
  // Predicated region
  $region14: #{convnet_forward.1} parent=0 // pred_check
    _
  $region15: #{convnet_forward.1} parent=0 // pred_check_branch
    %24 = sbr.rel (0) target = $region17
  $region16: #{convnet_forward.1} parent=0 // pred_region
    _
  $region17: #{convnet_forward.1} parent=0 // pred_fallthru
    _
  // Predicated region
  $region18: #{convnet_forward.1} parent=0 // pred_check
    _
  $region19: #{convnet_forward.1} parent=0 // pred_check_branch
    %26 = sbr.rel (0) target = $region21
  $region20: #{convnet_forward.1} parent=0 // pred_region
    _
  $region21: #{convnet_forward.1} parent=0 // pred_fallthru
    _
  // Predicated region
  $region22: #{convnet_forward.1} parent=0 // pred_check
    _
  $region23: #{convnet_forward.1} parent=0 // pred_check_branch
    %28 = sbr.rel (0) target = $region25
  $region24: #{convnet_forward.1} parent=0 // pred_region
    _
  $region25: #{convnet_forward.1} parent=0 // pred_fallthru
    _
  // Predicated region
  $region26: #{convnet_forward.1} parent=0 // pred_check
    _
  $region27: #{convnet_forward.1} parent=0 // pred_check_branch
    %30 = sbr.rel (0) target = $region29
  $region28: #{convnet_forward.1} parent=0 // pred_region
    _
  $region29: #{convnet_forward.1} parent=0 // pred_fallthru
    _
  // Predicated region
  $region30: #{convnet_forward.1} parent=0 // pred_check
    _
  $region31: #{convnet_forward.1} parent=0 // pred_check_branch
    %32 = sbr.rel (0) target = $region33
  $region32: #{convnet_forward.1} parent=0 // pred_region
    _
  $region33: #{convnet_forward.1} parent=0 // pred_fallthru
    _
  // Predicated region
  $region34: #{convnet_forward.1} parent=0 // pred_check
    _
  $region35: #{convnet_forward.1} parent=0 // pred_check_branch
    %34 = sbr.rel (0) target = $region37
  $region36: #{convnet_forward.1} parent=0 // pred_region
    _
  $region37: #{convnet_forward.1} parent=0 // pred_fallthru
    _
  // Predicated region
  $region38: #{convnet_forward.1} parent=0 // pred_check
    _
  $region39: #{convnet_forward.1} parent=0 // pred_check_branch
    %36 = sbr.rel (0) target = $region41
  $region40: #{convnet_forward.1} parent=0 // pred_region
    _
  $region41: #{convnet_forward.1} parent=0 // pred_fallthru
    _
  // Predicated region
  $region42: #{convnet_forward.1} parent=0 // pred_check
    _
  $region43: #{convnet_forward.1} parent=0 // pred_check_branch
    %38 = sbr.rel (0) target = $region45
  $region44: #{convnet_forward.1} parent=0 // pred_region
    _
  $region45: #{convnet_forward.1} parent=0 // pred_fallthru
    _
  // Predicated region
  $region46: #{convnet_forward.1} parent=0 // pred_check
    _
  $region47: #{convnet_forward.1} parent=0 // pred_check_branch
    %40 = sbr.rel (0) target = $region49
  $region48: #{convnet_forward.1} parent=0 // pred_region
    _
  $region49: #{convnet_forward.1} parent=0 // pred_fallthru
    _
  %v42 = vld [vmem:[%s0] sm:$0xff]
  %v43 = vld [vmem:[%s0 + $0x8] sm:$0xff]
  %v44 = vld [vmem:[%s0 + $0x10] sm:$0xff]
  %v45 = vld [vmem:[%s0 + $0x18] sm:$0xff]
  %v46 = vld [vmem:[%s0 + $0x20] sm:$0xff]
  %v47 = vld [vmem:[%s0 + $0x28] sm:$0xff]
  %v48 = vld [vmem:[%s0 + $0x30] sm:$0xff]
  %v49 = vld [vmem:[%s0 + $0x38] sm:$0xff]
  %v50 = vld [vmem:[%s0 + $0x40] sm:$0xff]
  %v51 = vld [vmem:[%s0 + $0x48] sm:$0xff]
  %v52 = vld [vmem:[%s0 + $0x50] sm:$0xff]
  %v53 = vld [vmem:[%s0 + $0x58] sm:$0xff]
  %v54 = vld [vmem:[%s0 + $0x60] sm:$0xff]
  %v55 = vld [vmem:[%s0 + $0x68] sm:$0xff]
  %v56 = vld [vmem:[%s0 + $0x70] sm:$0xff]
  %v57 = vld [vmem:[%s0 + $0x78] sm:$0xff]
  %v58 = vld [vmem:[%s0 + $0x80] sm:$0xff]
  %v59 = vld [vmem:[%s0 + $0x88] sm:$0xff]
  %v60 = vld [vmem:[%s1] sm:$0xf]
  %v61 = vld [vmem:[%s1 + $0x4] sm:$0xf]
  %v62 = vld [vmem:[%s1 + $0x8] sm:$0xf]
  %v63 = vld [vmem:[%s1 + $0xc] sm:$0xf]
  %v64 = vld [vmem:[%s1 + $0x10] sm:$0xf]
  %v65 = vld [vmem:[%s1 + $0x14] sm:$0xf]
  %v66 = vld [vmem:[%s1 + $0x18] sm:$0xf]
  %v67 = vld [vmem:[%s1 + $0x1c] sm:$0xf]
  %v68 = vld [vmem:[%s1 + $0x20] sm:$0xf]
  %v69 = vld [vmem:[%s1 + $0x24] sm:$0xf]
  %v70 = vld [vmem:[%s1 + $0x28] sm:$0xf]
  %v71 = vld [vmem:[%s1 + $0x2c] sm:$0xf]
  %v72 = vld [vmem:[%s1 + $0x30] sm:$0xf]
  %v73 = vld [vmem:[%s1 + $0x34] sm:$0xf]
  %v74 = vld [vmem:[%s1 + $0x38] sm:$0xf]
  %v75 = vld [vmem:[%s1 + $0x3c] sm:$0xf]
  %v76 = vld [vmem:[%s1 + $0x40] sm:$0xf]
  %v77 = vld [vmem:[%s1 + $0x44] sm:$0xf]
  %v78 = vld [vmem:[%s1 + $0x48] sm:$0xf]
  %v79 = vld [vmem:[%s1 + $0x4c] sm:$0xf]
  %v80 = vld [vmem:[%s1 + $0x50] sm:$0xf]
  %v81 = vld [vmem:[%s1 + $0x54] sm:$0xf]
  %v82 = vld [vmem:[%s1 + $0x58] sm:$0xf]
  %v83 = vld [vmem:[%s1 + $0x5c] sm:$0xf]
  %v84 = vld [vmem:[%s1 + $0x60] sm:$0xf]
  %v85 = vld [vmem:[%s1 + $0x64] sm:$0xf]
  %v86 = vld [vmem:[%s1 + $0x68] sm:$0xf]
  %v87 = vld [vmem:[%s1 + $0x6c] sm:$0xf]
  %v88 = vld [vmem:[%s1 + $0x70] sm:$0xf]
  %v89 = vld [vmem:[%s1 + $0x74] sm:$0xf]
  %v90 = vld [vmem:[%s1 + $0x78] sm:$0xf]
  %v91 = vld [vmem:[%s1 + $0x7c] sm:$0xf]
  %v110 = vunpack.c.l.b16 %v42
  %v111 = vunpack.c.h.b16 %v42
  %v112 = vunpack.c.l.b16 %v43
  %v113 = vunpack.c.h.b16 %v43
  %v114 = vunpack.c.l.b16 %v44
  %v115 = vunpack.c.h.b16 %v44
  %v116 = vunpack.c.l.b16 %v45
  %v117 = vunpack.c.h.b16 %v45
  %v118 = vunpack.c.l.b16 %v46
  %v119 = vunpack.c.h.b16 %v46
  %v120 = vunpack.c.l.b16 %v47
  %v121 = vunpack.c.h.b16 %v47
  %v122 = vunpack.c.l.b16 %v48
  %v123 = vunpack.c.h.b16 %v48
  %v124 = vunpack.c.l.b16 %v49
  %v125 = vunpack.c.h.b16 %v49
  %v126 = vunpack.c.l.b16 %v50
  %v127 = vunpack.c.h.b16 %v50
  %v128 = vunpack.c.l.b16 %v51
  %v129 = vunpack.c.h.b16 %v51
  %v130 = vunpack.c.l.b16 %v52
  %v131 = vunpack.c.h.b16 %v52
  %v132 = vunpack.c.l.b16 %v53
  %v133 = vunpack.c.h.b16 %v53
  %v134 = vunpack.c.l.b16 %v54
  %v135 = vunpack.c.h.b16 %v54
  %v136 = vunpack.c.l.b16 %v55
  %v137 = vunpack.c.h.b16 %v55
  %v138 = vunpack.c.l.b16 %v56
  %v139 = vunpack.c.h.b16 %v56
  %v140 = vunpack.c.l.b16 %v57
  %v141 = vunpack.c.h.b16 %v57
  %v142 = vunpack.c.l.b16 %v58
  %v143 = vunpack.c.h.b16 %v58
  %v144 = vunpack.c.l.b16 %v59
  %v145 = vunpack.c.h.b16 %v59
  %v146 = vpack.c.b16 %v112, %v110
  %v147 = vpack.c.b16 %v113, %v111
  %v148 = vpack.c.b16 %v116, %v114
  %v149 = vpack.c.b16 %v117, %v115
  %v150 = vpack.c.b16 %v120, %v118
  %v151 = vpack.c.b16 %v121, %v119
  %v152 = vpack.c.b16 %v124, %v122
  %v153 = vpack.c.b16 %v125, %v123
  %v154 = vpack.c.b16 %v128, %v126
  %v155 = vpack.c.b16 %v129, %v127
  %v156 = vpack.c.b16 %v132, %v130
  %v157 = vpack.c.b16 %v133, %v131
  %v158 = vpack.c.b16 %v136, %v134
  %v159 = vpack.c.b16 %v137, %v135
  %v160 = vpack.c.b16 %v140, %v138
  %v161 = vpack.c.b16 %v141, %v139
  %v162 = vpack.c.b16 %v144, %v142
  %v163 = vpack.c.b16 %v145, %v143
  %v214 = vunpack.c.l.b16 %v60
  %v215 = vunpack.c.l.b16 %v61
  %v216 = vunpack.c.l.b16 %v62
  %v217 = vunpack.c.l.b16 %v63
  %v218 = vunpack.c.l.b16 %v64
  %v219 = vunpack.c.l.b16 %v65
  %v220 = vunpack.c.l.b16 %v66
  %v221 = vunpack.c.l.b16 %v67
  %v222 = vunpack.c.l.b16 %v68
  %v223 = vunpack.c.l.b16 %v69
  %v224 = vunpack.c.l.b16 %v70
  %v225 = vunpack.c.l.b16 %v71
  %v226 = vunpack.c.l.b16 %v72
  %v227 = vunpack.c.l.b16 %v73
  %v228 = vunpack.c.l.b16 %v74
  %v229 = vunpack.c.l.b16 %v75
  %v230 = vunpack.c.l.b16 %v76
  %v231 = vunpack.c.l.b16 %v77
  %v232 = vunpack.c.l.b16 %v78
  %v233 = vunpack.c.l.b16 %v79
  %v234 = vunpack.c.l.b16 %v80
  %v235 = vunpack.c.l.b16 %v81
  %v236 = vunpack.c.l.b16 %v82
  %v237 = vunpack.c.l.b16 %v83
  %v238 = vunpack.c.l.b16 %v84
  %v239 = vunpack.c.l.b16 %v85
  %v240 = vunpack.c.l.b16 %v86
  %v241 = vunpack.c.l.b16 %v87
  %v242 = vunpack.c.l.b16 %v88
  %v243 = vunpack.c.l.b16 %v89
  %v244 = vunpack.c.l.b16 %v90
  %v245 = vunpack.c.l.b16 %v91
  %v246 = vpack.c.b16 %v215, %v214
  %v247 = vpack.c.b16 %v217, %v216
  %v248 = vpack.c.b16 %v219, %v218
  %v249 = vpack.c.b16 %v221, %v220
  %v250 = vpack.c.b16 %v223, %v222
  %v251 = vpack.c.b16 %v225, %v224
  %v252 = vpack.c.b16 %v227, %v226
  %v253 = vpack.c.b16 %v229, %v228
  %v254 = vpack.c.b16 %v231, %v230
  %v255 = vpack.c.b16 %v233, %v232
  %v256 = vpack.c.b16 %v235, %v234
  %v257 = vpack.c.b16 %v237, %v236
  %v258 = vpack.c.b16 %v239, %v238
  %v259 = vpack.c.b16 %v241, %v240
  %v260 = vpack.c.b16 %v243, %v242
  %v261 = vpack.c.b16 %v245, %v244
  %278 = vmatprep.subr.bf16.mxu0 0
  %279 = vmatpush1.bf16.msra.mxu0 %v246
  %280 = vmatprep.subr.bf16.mxu0 0
  %281 = vmatpush1.bf16.msra.mxu0 %v247
  %282 = vmatprep.subr.bf16.mxu0 0
  %283 = vmatpush1.bf16.msra.mxu0 %v248
  %284 = vmatprep.subr.bf16.mxu0 0
  %285 = vmatpush1.bf16.msra.mxu0 %v249
  %286 = vmatprep.subr.bf16.mxu0 0
  %287 = vmatpush1.bf16.msra.mxu0 %v250
  %288 = vmatprep.subr.bf16.mxu0 0
  %289 = vmatpush1.bf16.msra.mxu0 %v251
  %290 = vmatprep.subr.bf16.mxu0 0
  %291 = vmatpush1.bf16.msra.mxu0 %v252
  %292 = vmatprep.subr.bf16.mxu0 0
  %293 = vmatpush1.bf16.msra.mxu0 %v253
  %294 = vmatprep.subr.bf16.mxu0 0
  %295 = vmatpush1.bf16.msra.mxu0 %v254
  %296 = vmatprep.subr.bf16.mxu0 0
  %297 = vmatpush1.bf16.msra.mxu0 %v255
  %298 = vmatprep.subr.bf16.mxu0 0
  %299 = vmatpush1.bf16.msra.mxu0 %v256
  %300 = vmatprep.subr.bf16.mxu0 0
  %301 = vmatpush1.bf16.msra.mxu0 %v257
  %302 = vmatprep.subr.bf16.mxu0 0
  %303 = vmatpush1.bf16.msra.mxu0 %v258
  %304 = vmatprep.subr.bf16.mxu0 0
  %305 = vmatpush1.bf16.msra.mxu0 %v259
  %306 = vmatprep.subr.bf16.mxu0 0
  %307 = vmatpush1.bf16.msra.mxu0 %v260
  %308 = vmatprep.subr.bf16.mxu0 0
  %309 = vmatpush1.bf16.msra.mxu0 %v261
  %310 = vmatprep.mubr.bf16.mxu0 %v147
  %311 = vmatmul.mubr.bf16.gmra.mrb[0].mxu0 %v146
  %v312 = vpop.f32.mrb[0].mxu0
  %v313 = vadd.f32 0.0, %v312
  %v314 = vpop.f32.mrb[0].mxu0
  %v315 = vpop.f32.mrb[0].mxu0
  %v316 = vadd.f32 0.0, %v315
  %v317 = vpop.f32.mrb[0].mxu0
  %318 = vmatprep.mubr.bf16.mxu0 %v149
  %319 = vmatmul.mubr.bf16.gmra.mrb[0].mxu0 %v148
  %v320 = vpop.f32.mrb[0].mxu0
  %v321 = vadd.f32 0.0, %v320
  %v322 = vpop.f32.mrb[0].mxu0
  %v323 = vpop.f32.mrb[0].mxu0
  %v324 = vadd.f32 0.0, %v323
  %v325 = vpop.f32.mrb[0].mxu0
  %326 = vmatprep.mubr.bf16.mxu0 %v151
  %327 = vmatmul.mubr.bf16.gmra.mrb[0].mxu0 %v150
  %v328 = vpop.f32.mrb[0].mxu0
  %v329 = vadd.f32 0.0, %v328
  %v330 = vpop.f32.mrb[0].mxu0
  %v331 = vpop.f32.mrb[0].mxu0
  %v332 = vadd.f32 0.0, %v331
  %v333 = vpop.f32.mrb[0].mxu0
  %334 = vmatprep.mubr.bf16.mxu0 %v153
  %335 = vmatmul.mubr.bf16.gmra.mrb[0].mxu0 %v152
  %v336 = vpop.f32.mrb[0].mxu0
  %v337 = vadd.f32 0.0, %v336
  %v338 = vpop.f32.mrb[0].mxu0
  %v339 = vpop.f32.mrb[0].mxu0
  %v340 = vadd.f32 0.0, %v339
  %v341 = vpop.f32.mrb[0].mxu0
  %342 = vmatprep.mubr.bf16.mxu0 %v155
  %343 = vmatmul.mubr.bf16.gmra.mrb[0].mxu0 %v154
  %v344 = vpop.f32.mrb[0].mxu0
  %v345 = vadd.f32 0.0, %v344
  %v346 = vpop.f32.mrb[0].mxu0
  %v347 = vpop.f32.mrb[0].mxu0
  %v348 = vadd.f32 0.0, %v347
  %v349 = vpop.f32.mrb[0].mxu0
  %350 = vmatprep.mubr.bf16.mxu0 %v157
  %351 = vmatmul.mubr.bf16.gmra.mrb[0].mxu0 %v156
  %v352 = vpop.f32.mrb[0].mxu0
  %v353 = vadd.f32 0.0, %v352
  %v354 = vpop.f32.mrb[0].mxu0
  %v355 = vpop.f32.mrb[0].mxu0
  %v356 = vadd.f32 0.0, %v355
  %v357 = vpop.f32.mrb[0].mxu0
  %358 = vmatprep.mubr.bf16.mxu0 %v159
  %359 = vmatmul.mubr.bf16.gmra.mrb[0].mxu0 %v158
  %v360 = vpop.f32.mrb[0].mxu0
  %v361 = vadd.f32 0.0, %v360
  %v362 = vpop.f32.mrb[0].mxu0
  %v363 = vpop.f32.mrb[0].mxu0
  %v364 = vadd.f32 0.0, %v363
  %v365 = vpop.f32.mrb[0].mxu0
  %366 = vmatprep.mubr.bf16.mxu0 %v161
  %367 = vmatmul.mubr.bf16.gmra.mrb[0].mxu0 %v160
  %v368 = vpop.f32.mrb[0].mxu0
  %v369 = vadd.f32 0.0, %v368
  %v370 = vpop.f32.mrb[0].mxu0
  %v371 = vpop.f32.mrb[0].mxu0
  %v372 = vadd.f32 0.0, %v371
  %v373 = vpop.f32.mrb[0].mxu0
  %374 = vmatprep.mubr.bf16.mxu0 %v163
  %375 = vmatmul.mubr.bf16.gmra.mrb[0].mxu0 %v162
  %v376 = vpop.f32.mrb[0].mxu0
  %v377 = vadd.f32 0.0, %v376
  %v378 = vpop.f32.mrb[0].mxu0
  %v379 = vpop.f32.mrb[0].mxu0
  %v380 = vadd.f32 0.0, %v379
  %v381 = vpop.f32.mrb[0].mxu0
  %382 = vdwg.mxu0
  %s383 = scalar_lea.vmem %s0, 144
  %v384 = vld [vmem:[%s383] sm:$0xff]
  %v385 = vld [vmem:[%s383 + $0x8] sm:$0xff]
  %v386 = vld [vmem:[%s383 + $0x10] sm:$0xff]
  %v387 = vld [vmem:[%s383 + $0x18] sm:$0xff]
  %v388 = vld [vmem:[%s383 + $0x20] sm:$0xff]
  %v389 = vld [vmem:[%s383 + $0x28] sm:$0xff]
  %v390 = vld [vmem:[%s383 + $0x30] sm:$0xff]
  %v391 = vld [vmem:[%s383 + $0x38] sm:$0xff]
  %v392 = vld [vmem:[%s383 + $0x40] sm:$0xff]
  %v393 = vld [vmem:[%s383 + $0x48] sm:$0xff]
  %v394 = vld [vmem:[%s383 + $0x50] sm:$0xff]
  %v395 = vld [vmem:[%s383 + $0x58] sm:$0xff]
  %v396 = vld [vmem:[%s383 + $0x60] sm:$0xff]
  %v397 = vld [vmem:[%s383 + $0x68] sm:$0xff]
  %v398 = vld [vmem:[%s383 + $0x70] sm:$0xff]
  %v399 = vld [vmem:[%s383 + $0x78] sm:$0xff]
  %v400 = vld [vmem:[%s383 + $0x80] sm:$0xff]
  %v401 = vld [vmem:[%s383 + $0x88] sm:$0xff]
  %v420 = vunpack.c.l.b16 %v384
  %v421 = vunpack.c.h.b16 %v384
  %v422 = vunpack.c.l.b16 %v385
  %v423 = vunpack.c.h.b16 %v385
  %v424 = vunpack.c.l.b16 %v386
  %v425 = vunpack.c.h.b16 %v386
  %v426 = vunpack.c.l.b16 %v387
  %v427 = vunpack.c.h.b16 %v387
  %v428 = vunpack.c.l.b16 %v388
  %v429 = vunpack.c.h.b16 %v388
  %v430 = vunpack.c.l.b16 %v389
  %v431 = vunpack.c.h.b16 %v389
  %v432 = vunpack.c.l.b16 %v390
  %v433 = vunpack.c.h.b16 %v390
  %v434 = vunpack.c.l.b16 %v391
  %v435 = vunpack.c.h.b16 %v391
  %v436 = vunpack.c.l.b16 %v392
  %v437 = vunpack.c.h.b16 %v392
  %v438 = vunpack.c.l.b16 %v393
  %v439 = vunpack.c.h.b16 %v393
  %v440 = vunpack.c.l.b16 %v394
  %v441 = vunpack.c.h.b16 %v394
  %v442 = vunpack.c.l.b16 %v395
  %v443 = vunpack.c.h.b16 %v395
  %v444 = vunpack.c.l.b16 %v396
  %v445 = vunpack.c.h.b16 %v396
  %v446 = vunpack.c.l.b16 %v397
  %v447 = vunpack.c.h.b16 %v397
  %v448 = vunpack.c.l.b16 %v398
  %v449 = vunpack.c.h.b16 %v398
  %v450 = vunpack.c.l.b16 %v399
  %v451 = vunpack.c.h.b16 %v399
  %v452 = vunpack.c.l.b16 %v400
  %v453 = vunpack.c.h.b16 %v400
  %v454 = vunpack.c.l.b16 %v401
  %v455 = vunpack.c.h.b16 %v401
  %v456 = vpack.c.b16 %v422, %v420
  %v457 = vpack.c.b16 %v423, %v421
  %v458 = vpack.c.b16 %v426, %v424
  %v459 = vpack.c.b16 %v427, %v425
  %v460 = vpack.c.b16 %v430, %v428
  %v461 = vpack.c.b16 %v431, %v429
  %v462 = vpack.c.b16 %v434, %v432
  %v463 = vpack.c.b16 %v435, %v433
  %v464 = vpack.c.b16 %v438, %v436
  %v465 = vpack.c.b16 %v439, %v437
  %v466 = vpack.c.b16 %v442, %v440
  %v467 = vpack.c.b16 %v443, %v441
  %v468 = vpack.c.b16 %v446, %v444
  %v469 = vpack.c.b16 %v447, %v445
  %v470 = vpack.c.b16 %v450, %v448
  %v471 = vpack.c.b16 %v451, %v449
  %v472 = vpack.c.b16 %v454, %v452
  %v473 = vpack.c.b16 %v455, %v453
  %492 = vmatprep.subr.bf16.mxu0 0
  %493 = vmatpush1.bf16.msra.mxu0 %v246
  %494 = vmatprep.subr.bf16.mxu0 0
  %495 = vmatpush1.bf16.msra.mxu0 %v247
  %496 = vmatprep.subr.bf16.mxu0 0
  %497 = vmatpush1.bf16.msra.mxu0 %v248
  %498 = vmatprep.subr.bf16.mxu0 0
  %499 = vmatpush1.bf16.msra.mxu0 %v249
  %500 = vmatprep.subr.bf16.mxu0 0
  %501 = vmatpush1.bf16.msra.mxu0 %v250
  %502 = vmatprep.subr.bf16.mxu0 0
  %503 = vmatpush1.bf16.msra.mxu0 %v251
  %504 = vmatprep.subr.bf16.mxu0 0
  %505 = vmatpush1.bf16.msra.mxu0 %v252
  %506 = vmatprep.subr.bf16.mxu0 0
  %507 = vmatpush1.bf16.msra.mxu0 %v253
  %508 = vmatprep.subr.bf16.mxu0 0
  %509 = vmatpush1.bf16.msra.mxu0 %v254
  %510 = vmatprep.subr.bf16.mxu0 0
  %511 = vmatpush1.bf16.msra.mxu0 %v255
  %512 = vmatprep.subr.bf16.mxu0 0
  %513 = vmatpush1.bf16.msra.mxu0 %v256
  %514 = vmatprep.subr.bf16.mxu0 0
  %515 = vmatpush1.bf16.msra.mxu0 %v257
  %516 = vmatprep.subr.bf16.mxu0 0
  %517 = vmatpush1.bf16.msra.mxu0 %v258
  %518 = vmatprep.subr.bf16.mxu0 0
  %519 = vmatpush1.bf16.msra.mxu0 %v259
  %520 = vmatprep.subr.bf16.mxu0 0
  %521 = vmatpush1.bf16.msra.mxu0 %v260
  %522 = vmatprep.subr.bf16.mxu0 0
  %523 = vmatpush1.bf16.msra.mxu0 %v261
  %524 = vmatprep.mubr.bf16.mxu0 %v457
  %525 = vmatmul.mubr.bf16.gmra.mrb[0].mxu0 %v456
  %v526 = vpop.f32.mrb[0].mxu0
  %v527 = vadd.f32 0.0, %v526
  %v528 = vpop.f32.mrb[0].mxu0
  %v529 = vpop.f32.mrb[0].mxu0
  %v530 = vadd.f32 0.0, %v529
  %v531 = vpop.f32.mrb[0].mxu0
  %532 = vmatprep.mubr.bf16.mxu0 %v459
  %533 = vmatmul.mubr.bf16.gmra.mrb[0].mxu0 %v458
  %v534 = vpop.f32.mrb[0].mxu0
  %v535 = vadd.f32 0.0, %v534
  %v536 = vpop.f32.mrb[0].mxu0
  %v537 = vpop.f32.mrb[0].mxu0
  %v538 = vadd.f32 0.0, %v537
  %v539 = vpop.f32.mrb[0].mxu0
  %540 = vmatprep.mubr.bf16.mxu0 %v461
  %541 = vmatmul.mubr.bf16.gmra.mrb[0].mxu0 %v460
  %v542 = vpop.f32.mrb[0].mxu0
  %v543 = vadd.f32 0.0, %v542
  %v544 = vpop.f32.mrb[0].mxu0
  %v545 = vpop.f32.mrb[0].mxu0
  %v546 = vadd.f32 0.0, %v545
  %v547 = vpop.f32.mrb[0].mxu0
  %548 = vmatprep.mubr.bf16.mxu0 %v463
  %549 = vmatmul.mubr.bf16.gmra.mrb[0].mxu0 %v462
  %v550 = vpop.f32.mrb[0].mxu0
  %v551 = vadd.f32 0.0, %v550
  %v552 = vpop.f32.mrb[0].mxu0
  %v553 = vpop.f32.mrb[0].mxu0
  %v554 = vadd.f32 0.0, %v553
  %v555 = vpop.f32.mrb[0].mxu0
  %556 = vmatprep.mubr.bf16.mxu0 %v465
  %557 = vmatmul.mubr.bf16.gmra.mrb[0].mxu0 %v464
  %v558 = vpop.f32.mrb[0].mxu0
  %v559 = vadd.f32 0.0, %v558
  %v560 = vpop.f32.mrb[0].mxu0
  %v561 = vpop.f32.mrb[0].mxu0
  %v562 = vadd.f32 0.0, %v561
  %v563 = vpop.f32.mrb[0].mxu0
  %564 = vmatprep.mubr.bf16.mxu0 %v467
  %565 = vmatmul.mubr.bf16.gmra.mrb[0].mxu0 %v466
  %v566 = vpop.f32.mrb[0].mxu0
  %v567 = vadd.f32 0.0, %v566
  %v568 = vpop.f32.mrb[0].mxu0
  %v569 = vpop.f32.mrb[0].mxu0
  %v570 = vadd.f32 0.0, %v569
  %v571 = vpop.f32.mrb[0].mxu0
  %572 = vmatprep.mubr.bf16.mxu0 %v469
  %573 = vmatmul.mubr.bf16.gmra.mrb[0].mxu0 %v468
  %v574 = vpop.f32.mrb[0].mxu0
  %v575 = vadd.f32 0.0, %v574
  %v576 = vpop.f32.mrb[0].mxu0
  %v577 = vpop.f32.mrb[0].mxu0
  %v578 = vadd.f32 0.0, %v577
  %v579 = vpop.f32.mrb[0].mxu0
  %580 = vmatprep.mubr.bf16.mxu0 %v471
  %581 = vmatmul.mubr.bf16.gmra.mrb[0].mxu0 %v470
  %v582 = vpop.f32.mrb[0].mxu0
  %v583 = vadd.f32 0.0, %v582
  %v584 = vpop.f32.mrb[0].mxu0
  %v585 = vpop.f32.mrb[0].mxu0
  %v586 = vadd.f32 0.0, %v585
  %v587 = vpop.f32.mrb[0].mxu0
  %588 = vmatprep.mubr.bf16.mxu0 %v473
  %589 = vmatmul.mubr.bf16.gmra.mrb[0].mxu0 %v472
  %v590 = vpop.f32.mrb[0].mxu0
  %v591 = vadd.f32 0.0, %v590
  %v592 = vpop.f32.mrb[0].mxu0
  %v593 = vpop.f32.mrb[0].mxu0
  %v594 = vadd.f32 0.0, %v593
  %v595 = vpop.f32.mrb[0].mxu0
  %596 = vdwg.mxu0
  %v597 = vld [vmem:[%s2] sm:$0x1]
  %v598 = vld [vmem:[%s3] sm:$0x1]
  %vm599 = vcmask 261120
  %v600 = vsel %vm599, %v313, 0.0
  %v601 = vsel %vm599, %v316, 0.0
  %v602 = vadd.f32 %v600, %v601
  %v603 = vsel %vm599, %v321, 0.0
  %v604 = vadd.f32 %v602, %v603
  %v605 = vsel %vm599, %v324, 0.0
  %v606 = vadd.f32 %v604, %v605
  %v607 = vsel %vm599, %v329, 0.0
  %v608 = vadd.f32 %v606, %v607
  %v609 = vsel %vm599, %v332, 0.0
  %v610 = vadd.f32 %v608, %v609
  %v611 = vsel %vm599, %v337, 0.0
  %v612 = vadd.f32 %v610, %v611
  %v613 = vsel %vm599, %v340, 0.0
  %v614 = vadd.f32 %v612, %v613
  %v615 = vsel %vm599, %v345, 0.0
  %v616 = vadd.f32 %v614, %v615
  %v617 = vsel %vm599, %v348, 0.0
  %v618 = vadd.f32 %v616, %v617
  %v619 = vsel %vm599, %v353, 0.0
  %v620 = vadd.f32 %v618, %v619
  %v621 = vsel %vm599, %v356, 0.0
  %v622 = vadd.f32 %v620, %v621
  %v623 = vsel %vm599, %v361, 0.0
  %v624 = vadd.f32 %v622, %v623
  %v625 = vsel %vm599, %v364, 0.0
  %v626 = vadd.f32 %v624, %v625
  %v627 = vsel %vm599, %v369, 0.0
  %v628 = vadd.f32 %v626, %v627
  %v629 = vsel %vm599, %v372, 0.0
  %v630 = vadd.f32 %v628, %v629
  %v631 = vsel %vm599, %v377, 0.0
  %v632 = vadd.f32 %v630, %v631
  %v633 = vsel %vm599, %v380, 0.0
  %v634 = vadd.f32 %v632, %v633
  %v635 = vrot.slane %v634, 4
  %v636 = vadd.f32 %v634, %v635
  %v637 = vrot.slane %v636, 2
  %v638 = vadd.f32 %v636, %v637
  %v639 = vrot.slane %v638, 1
  %v640 = vadd.f32 %v638, %v639
  %v641 = vmul.f32 %v313, %v313
  %v642 = vmul.f32 %v316, %v316
  %v643 = vmul.f32 %v321, %v321
  %v644 = vmul.f32 %v324, %v324
  %v645 = vmul.f32 %v329, %v329
  %v646 = vmul.f32 %v332, %v332
  %v647 = vmul.f32 %v337, %v337
  %v648 = vmul.f32 %v340, %v340
  %v649 = vmul.f32 %v345, %v345
  %v650 = vmul.f32 %v348, %v348
  %v651 = vmul.f32 %v353, %v353
  %v652 = vmul.f32 %v356, %v356
  %v653 = vmul.f32 %v361, %v361
  %v654 = vmul.f32 %v364, %v364
  %v655 = vmul.f32 %v369, %v369
  %v656 = vmul.f32 %v372, %v372
  %v657 = vmul.f32 %v377, %v377
  %v658 = vmul.f32 %v380, %v380
  %v659 = vsel %vm599, %v641, 0.0
  %v660 = vsel %vm599, %v642, 0.0
  %v661 = vadd.f32 %v659, %v660
  %v662 = vsel %vm599, %v643, 0.0
  %v663 = vadd.f32 %v661, %v662
  %v664 = vsel %vm599, %v644, 0.0
  %v665 = vadd.f32 %v663, %v664
  %v666 = vsel %vm599, %v645, 0.0
  %v667 = vadd.f32 %v665, %v666
  %v668 = vsel %vm599, %v646, 0.0
  %v669 = vadd.f32 %v667, %v668
  %v670 = vsel %vm599, %v647, 0.0
  %v671 = vadd.f32 %v669, %v670
  %v672 = vsel %vm599, %v648, 0.0
  %v673 = vadd.f32 %v671, %v672
  %v674 = vsel %vm599, %v649, 0.0
  %v675 = vadd.f32 %v673, %v674
  %v676 = vsel %vm599, %v650, 0.0
  %v677 = vadd.f32 %v675, %v676
  %v678 = vsel %vm599, %v651, 0.0
  %v679 = vadd.f32 %v677, %v678
  %v680 = vsel %vm599, %v652, 0.0
  %v681 = vadd.f32 %v679, %v680
  %v682 = vsel %vm599, %v653, 0.0
  %v683 = vadd.f32 %v681, %v682
  %v684 = vsel %vm599, %v654, 0.0
  %v685 = vadd.f32 %v683, %v684
  %v686 = vsel %vm599, %v655, 0.0
  %v687 = vadd.f32 %v685, %v686
  %v688 = vsel %vm599, %v656, 0.0
  %v689 = vadd.f32 %v687, %v688
  %v690 = vsel %vm599, %v657, 0.0
  %v691 = vadd.f32 %v689, %v690
  %v692 = vsel %vm599, %v658, 0.0
  %v693 = vadd.f32 %v691, %v692
  %v694 = vrot.slane %v693, 4
  %v695 = vadd.f32 %v693, %v694
  %v696 = vrot.slane %v695, 2
  %v697 = vadd.f32 %v695, %v696
  %v698 = vrot.slane %v697, 1
  %v699 = vadd.f32 %v697, %v698
  %v700 = vsel %vm599, %v527, 0.0
  %v701 = vsel %vm599, %v530, 0.0
  %v702 = vadd.f32 %v700, %v701
  %v703 = vsel %vm599, %v535, 0.0
  %v704 = vadd.f32 %v702, %v703
  %v705 = vsel %vm599, %v538, 0.0
  %v706 = vadd.f32 %v704, %v705
  %v707 = vsel %vm599, %v543, 0.0
  %v708 = vadd.f32 %v706, %v707
  %v709 = vsel %vm599, %v546, 0.0
  %v710 = vadd.f32 %v708, %v709
  %v711 = vsel %vm599, %v551, 0.0
  %v712 = vadd.f32 %v710, %v711
  %v713 = vsel %vm599, %v554, 0.0
  %v714 = vadd.f32 %v712, %v713
  %v715 = vsel %vm599, %v559, 0.0
  %v716 = vadd.f32 %v714, %v715
  %v717 = vsel %vm599, %v562, 0.0
  %v718 = vadd.f32 %v716, %v717
  %v719 = vsel %vm599, %v567, 0.0
  %v720 = vadd.f32 %v718, %v719
  %v721 = vsel %vm599, %v570, 0.0
  %v722 = vadd.f32 %v720, %v721
  %v723 = vsel %vm599, %v575, 0.0
  %v724 = vadd.f32 %v722, %v723
  %v725 = vsel %vm599, %v578, 0.0
  %v726 = vadd.f32 %v724, %v725
  %v727 = vsel %vm599, %v583, 0.0
  %v728 = vadd.f32 %v726, %v727
  %v729 = vsel %vm599, %v586, 0.0
  %v730 = vadd.f32 %v728, %v729
  %v731 = vsel %vm599, %v591, 0.0
  %v732 = vadd.f32 %v730, %v731
  %v733 = vsel %vm599, %v594, 0.0
  %v734 = vadd.f32 %v732, %v733
  %v735 = vrot.slane %v734, 4
  %v736 = vadd.f32 %v734, %v735
  %v737 = vrot.slane %v736, 2
  %v738 = vadd.f32 %v736, %v737
  %v739 = vrot.slane %v738, 1
  %v740 = vadd.f32 %v738, %v739
  %v741 = vadd.f32 %v640, %v740
  %v742 = vmul.f32 %v527, %v527
  %v743 = vmul.f32 %v530, %v530
  %v744 = vmul.f32 %v535, %v535
  %v745 = vmul.f32 %v538, %v538
  %v746 = vmul.f32 %v543, %v543
  %v747 = vmul.f32 %v546, %v546
  %v748 = vmul.f32 %v551, %v551
  %v749 = vmul.f32 %v554, %v554
  %v750 = vmul.f32 %v559, %v559
  %v751 = vmul.f32 %v562, %v562
  %v752 = vmul.f32 %v567, %v567
  %v753 = vmul.f32 %v570, %v570
  %v754 = vmul.f32 %v575, %v575
  %v755 = vmul.f32 %v578, %v578
  %v756 = vmul.f32 %v583, %v583
  %v757 = vmul.f32 %v586, %v586
  %v758 = vmul.f32 %v591, %v591
  %v759 = vmul.f32 %v594, %v594
  %v760 = vsel %vm599, %v742, 0.0
  %v761 = vsel %vm599, %v743, 0.0
  %v762 = vadd.f32 %v760, %v761
  %v763 = vsel %vm599, %v744, 0.0
  %v764 = vadd.f32 %v762, %v763
  %v765 = vsel %vm599, %v745, 0.0
  %v766 = vadd.f32 %v764, %v765
  %v767 = vsel %vm599, %v746, 0.0
  %v768 = vadd.f32 %v766, %v767
  %v769 = vsel %vm599, %v747, 0.0
  %v770 = vadd.f32 %v768, %v769
  %v771 = vsel %vm599, %v748, 0.0
  %v772 = vadd.f32 %v770, %v771
  %v773 = vsel %vm599, %v749, 0.0
  %v774 = vadd.f32 %v772, %v773
  %v775 = vsel %vm599, %v750, 0.0
  %v776 = vadd.f32 %v774, %v775
  %v777 = vsel %vm599, %v751, 0.0
  %v778 = vadd.f32 %v776, %v777
  %v779 = vsel %vm599, %v752, 0.0
  %v780 = vadd.f32 %v778, %v779
  %v781 = vsel %vm599, %v753, 0.0
  %v782 = vadd.f32 %v780, %v781
  %v783 = vsel %vm599, %v754, 0.0
  %v784 = vadd.f32 %v782, %v783
  %v785 = vsel %vm599, %v755, 0.0
  %v786 = vadd.f32 %v784, %v785
  %v787 = vsel %vm599, %v756, 0.0
  %v788 = vadd.f32 %v786, %v787
  %v789 = vsel %vm599, %v757, 0.0
  %v790 = vadd.f32 %v788, %v789
  %v791 = vsel %vm599, %v758, 0.0
  %v792 = vadd.f32 %v790, %v791
  %v793 = vsel %vm599, %v759, 0.0
  %v794 = vadd.f32 %v792, %v793
  %v795 = vrot.slane %v794, 4
  %v796 = vadd.f32 %v794, %v795
  %v797 = vrot.slane %v796, 2
  %v798 = vadd.f32 %v796, %v797
  %v799 = vrot.slane %v798, 1
  %v800 = vadd.f32 %v798, %v799
  %v801 = vadd.f32 %v699, %v800
  %v802 = vmul.f32 %v741, 0.0034722222
  %v803 = vmul.f32 %v801, 0.0034722222
  %v804 = vmul.f32 %v802, %v802
  %v805 = vsub.f32 %v803, %v804
  %v806 = vmax.f32 %v805, 0.0
  %v807 = vadd.f32 %v806, 1e-05
  %v808 = vrsqrt.pop %v807
  %v809 = vmul.f32 %v808, %v597
  %v810 = vmul.f32 %v802, %v809
  %v811 = vsub.f32 %v598, %v810
  %v812 = vlaneseq
  %v813 = vshrl.u32 %v812, 7
  %v814 = vsub.s32 0, %v813
  %v815 = vrot.slane %v809, %v814
  %v816 = vmul.f32 %v313, %v815
  %v817 = vmul.f32 %v316, %v815
  %v818 = vmul.f32 %v321, %v815
  %v819 = vmul.f32 %v324, %v815
  %v820 = vmul.f32 %v329, %v815
  %v821 = vmul.f32 %v332, %v815
  %v822 = vmul.f32 %v337, %v815
  %v823 = vmul.f32 %v340, %v815
  %v824 = vmul.f32 %v345, %v815
  %v825 = vmul.f32 %v348, %v815
  %v826 = vmul.f32 %v353, %v815
  %v827 = vmul.f32 %v356, %v815
  %v828 = vmul.f32 %v361, %v815
  %v829 = vmul.f32 %v364, %v815
  %v830 = vmul.f32 %v369, %v815
  %v831 = vmul.f32 %v372, %v815
  %v832 = vmul.f32 %v377, %v815
  %v833 = vmul.f32 %v380, %v815
  %v835 = vlaneseq
  %v836 = vshrl.u32 %v835, 7
  %v837 = vsub.s32 0, %v836
  %v838 = vrot.slane %v811, %v837
  %v840 = vadd.f32 %v816, %v838
  %v841 = vadd.f32 %v817, %v838
  %v842 = vadd.f32 %v818, %v838
  %v843 = vadd.f32 %v819, %v838
  %v844 = vadd.f32 %v820, %v838
  %v845 = vadd.f32 %v821, %v838
  %v846 = vadd.f32 %v822, %v838
  %v847 = vadd.f32 %v823, %v838
  %v848 = vadd.f32 %v824, %v838
  %v849 = vadd.f32 %v825, %v838
  %v850 = vadd.f32 %v826, %v838
  %v851 = vadd.f32 %v827, %v838
  %v852 = vadd.f32 %v828, %v838
  %v853 = vadd.f32 %v829, %v838
  %v854 = vadd.f32 %v830, %v838
  %v855 = vadd.f32 %v831, %v838
  %v856 = vadd.f32 %v832, %v838
  %v857 = vadd.f32 %v833, %v838
  %v858 = vmax.f32 %v840, 0.0
  %v859 = vmax.f32 %v841, 0.0
  %v860 = vmax.f32 %v842, 0.0
  %v861 = vmax.f32 %v843, 0.0
  %v862 = vmax.f32 %v844, 0.0
  %v863 = vmax.f32 %v845, 0.0
  %v864 = vmax.f32 %v846, 0.0
  %v865 = vmax.f32 %v847, 0.0
  %v866 = vmax.f32 %v848, 0.0
  %v867 = vmax.f32 %v849, 0.0
  %v868 = vmax.f32 %v850, 0.0
  %v869 = vmax.f32 %v851, 0.0
  %v870 = vmax.f32 %v852, 0.0
  %v871 = vmax.f32 %v853, 0.0
  %v872 = vmax.f32 %v854, 0.0
  %v873 = vmax.f32 %v855, 0.0
  %v874 = vmax.f32 %v856, 0.0
  %v875 = vmax.f32 %v857, 0.0
  %v876 = vpack.c.bf16 %v859, %v858
  %v877 = vpack.c.bf16 %v861, %v860
  %v878 = vpack.c.bf16 %v863, %v862
  %v879 = vpack.c.bf16 %v865, %v864
  %v880 = vpack.c.bf16 %v867, %v866
  %v881 = vpack.c.bf16 %v869, %v868
  %v882 = vpack.c.bf16 %v871, %v870
  %v883 = vpack.c.bf16 %v873, %v872
  %v884 = vpack.c.bf16 %v875, %v874
  %v885 = vmul.f32 %v527, %v815
  %v886 = vmul.f32 %v530, %v815
  %v887 = vmul.f32 %v535, %v815
  %v888 = vmul.f32 %v538, %v815
  %v889 = vmul.f32 %v543, %v815
  %v890 = vmul.f32 %v546, %v815
  %v891 = vmul.f32 %v551, %v815
  %v892 = vmul.f32 %v554, %v815
  %v893 = vmul.f32 %v559, %v815
  %v894 = vmul.f32 %v562, %v815
  %v895 = vmul.f32 %v567, %v815
  %v896 = vmul.f32 %v570, %v815
  %v897 = vmul.f32 %v575, %v815
  %v898 = vmul.f32 %v578, %v815
  %v899 = vmul.f32 %v583, %v815
  %v900 = vmul.f32 %v586, %v815
  %v901 = vmul.f32 %v591, %v815
  %v902 = vmul.f32 %v594, %v815
  %v903 = vadd.f32 %v885, %v838
  %v904 = vadd.f32 %v886, %v838
  %v905 = vadd.f32 %v887, %v838
  %v906 = vadd.f32 %v888, %v838
  %v907 = vadd.f32 %v889, %v838
  %v908 = vadd.f32 %v890, %v838
  %v909 = vadd.f32 %v891, %v838
  %v910 = vadd.f32 %v892, %v838
  %v911 = vadd.f32 %v893, %v838
  %v912 = vadd.f32 %v894, %v838
  %v913 = vadd.f32 %v895, %v838
  %v914 = vadd.f32 %v896, %v838
  %v915 = vadd.f32 %v897, %v838
  %v916 = vadd.f32 %v898, %v838
  %v917 = vadd.f32 %v899, %v838
  %v918 = vadd.f32 %v900, %v838
  %v919 = vadd.f32 %v901, %v838
  %v920 = vadd.f32 %v902, %v838
  %v921 = vmax.f32 %v903, 0.0
  %v922 = vmax.f32 %v904, 0.0
  %v923 = vmax.f32 %v905, 0.0
  %v924 = vmax.f32 %v906, 0.0
  %v925 = vmax.f32 %v907, 0.0
  %v926 = vmax.f32 %v908, 0.0
  %v927 = vmax.f32 %v909, 0.0
  %v928 = vmax.f32 %v910, 0.0
  %v929 = vmax.f32 %v911, 0.0
  %v930 = vmax.f32 %v912, 0.0
  %v931 = vmax.f32 %v913, 0.0
  %v932 = vmax.f32 %v914, 0.0
  %v933 = vmax.f32 %v915, 0.0
  %v934 = vmax.f32 %v916, 0.0
  %v935 = vmax.f32 %v917, 0.0
  %v936 = vmax.f32 %v918, 0.0
  %v937 = vmax.f32 %v919, 0.0
  %v938 = vmax.f32 %v920, 0.0
  %v939 = vpack.c.bf16 %v922, %v921
  %v940 = vpack.c.bf16 %v924, %v923
  %v941 = vpack.c.bf16 %v926, %v925
  %v942 = vpack.c.bf16 %v928, %v927
  %v943 = vpack.c.bf16 %v930, %v929
  %v944 = vpack.c.bf16 %v932, %v931
  %v945 = vpack.c.bf16 %v934, %v933
  %v946 = vpack.c.bf16 %v936, %v935
  %v947 = vpack.c.bf16 %v938, %v937
  %v948 = vld [vmem:[%s4] sm:$0xff]
  %v949 = vld [vmem:[%s4 + $0x8] sm:$0xff]
  %v950 = vld [vmem:[%s4 + $0x10] sm:$0xff]
  %v951 = vld [vmem:[%s4 + $0x18] sm:$0x11]
  %v956 = vunpack.c.l.b16 %v948
  %v957 = vunpack.c.h.b16 %v948
  %v958 = vunpack.c.l.b16 %v949
  %v959 = vunpack.c.h.b16 %v949
  %v960 = vunpack.c.l.b16 %v950
  %v961 = vunpack.c.h.b16 %v950
  %v962 = vunpack.c.l.b16 %v951
  %v963 = vunpack.c.h.b16 %v951
  %v964 = vpack.c.b16 %v958, %v956
  %v965 = vpack.c.b16 %v959, %v957
  %v966 = vpack.c.b16 %v962, %v960
  %v967 = vpack.c.b16 %v963, %v961
  %vm970 = vcmask 130048
  %v972 = vsel %vm970, %v965, 0
  %v975 = vsel %vm970, %v967, 0
  %977 = vmatprep.subr.bf16.mxu0 0
  %978 = vmatpush1.bf16.msra.mxu0 %v876
  %979 = vmatprep.subr.bf16.mxu0 0
  %980 = vmatpush1.bf16.msra.mxu0 %v877
  %981 = vmatprep.subr.bf16.mxu0 0
  %982 = vmatpush1.bf16.msra.mxu0 %v878
  %983 = vmatprep.subr.bf16.mxu0 0
  %984 = vmatpush1.bf16.msra.mxu0 %v879
  %985 = vmatprep.subr.bf16.mxu0 0
  %986 = vmatpush1.bf16.msra.mxu0 %v880
  %987 = vmatprep.subr.bf16.mxu0 0
  %988 = vmatpush1.bf16.msra.mxu0 %v881
  %989 = vmatprep.subr.bf16.mxu0 0
  %990 = vmatpush1.bf16.msra.mxu0 %v882
  %991 = vmatprep.subr.bf16.mxu0 0
  %992 = vmatpush1.bf16.msra.mxu0 %v883
  %993 = vmatprep.subr.bf16.mxu0 0
  %994 = vmatpush1.bf16.msra.mxu0 %v884
  %995 = vmatprep.subr.bf16.mxu0 0
  %996 = vmatpush1.bf16.msra.mxu0 0
  %997 = vmatprep.subr.bf16.mxu0 0
  %998 = vmatpush1.bf16.msra.mxu0 0
  %999 = vmatprep.subr.bf16.mxu0 0
  %1000 = vmatpush1.bf16.msra.mxu0 0
  %1001 = vmatprep.subr.bf16.mxu0 0
  %1002 = vmatpush1.bf16.msra.mxu0 0
  %1003 = vmatprep.subr.bf16.mxu0 0
  %1004 = vmatpush1.bf16.msra.mxu0 0
  %1005 = vmatprep.subr.bf16.mxu0 0
  %1006 = vmatpush1.bf16.msra.mxu0 0
  %1007 = vmatprep.subr.bf16.mxu0 0
  %1008 = vmatpush1.bf16.msra.mxu0 0
  %1009 = vmatprep.mubr.bf16.mxu0 %v972
  %1010 = vmatmul.mubr.bf16.gmra.mrb[0].mxu0 %v964
  %v1011 = vpop.f32.mrb[0].mxu0
  %v1012 = vadd.f32 0.0, %v1011
  %v1013 = vpop.f32.mrb[0].mxu0
  %v1014 = vpop.f32.mrb[0].mxu0
  %v1015 = vadd.f32 0.0, %v1014
  %v1016 = vpop.f32.mrb[0].mxu0
  %1017 = vmatprep.mubr.bf16.mxu0 %v975
  %1018 = vmatmul.mubr.bf16.gmra.mrb[0].mxu0 %v966
  %v1019 = vpop.f32.mrb[0].mxu0
  %v1020 = vadd.f32 0.0, %v1019
  %v1021 = vpop.f32.mrb[0].mxu0
  %v1022 = vpop.f32.mrb[0].mxu0
  %v1023 = vadd.f32 0.0, %v1022
  %v1024 = vpop.f32.mrb[0].mxu0
  %1025 = vdwg.mxu0
  %v1026 = vpack.c.bf16 %v1015, %v1012
  %v1027 = vpack.c.bf16 %v1023, %v1020
  %v1028 = vld [vmem:[%s5] sm:$0xf]
  %v1029 = vld [vmem:[%s5 + $0x4] sm:$0xf]
  %v1030 = vld [vmem:[%s5 + $0x8] sm:$0xf]
  %v1031 = vld [vmem:[%s5 + $0xc] sm:$0xf]
  %s1032 = scalar_lea.vmem %s4, 32
  %v1033 = vld [vmem:[%s1032] sm:$0xff]
  %v1034 = vld [vmem:[%s1032 + $0x8] sm:$0xff]
  %v1035 = vld [vmem:[%s1032 + $0x10] sm:$0xff]
  %v1036 = vld [vmem:[%s1032 + $0x18] sm:$0x11]
  %v1041 = vunpack.c.l.b16 %v1033
  %v1042 = vunpack.c.h.b16 %v1033
  %v1043 = vunpack.c.l.b16 %v1034
  %v1044 = vunpack.c.h.b16 %v1034
  %v1045 = vunpack.c.l.b16 %v1035
  %v1046 = vunpack.c.h.b16 %v1035
  %v1047 = vunpack.c.l.b16 %v1036
  %v1048 = vunpack.c.h.b16 %v1036
  %v1049 = vpack.c.b16 %v1043, %v1041
  %v1050 = vpack.c.b16 %v1044, %v1042
  %v1051 = vpack.c.b16 %v1047, %v1045
  %v1052 = vpack.c.b16 %v1048, %v1046
  %v1056 = vsel %vm970, %v1050, 0
  %v1059 = vsel %vm970, %v1052, 0
  %1061 = vmatprep.subr.bf16.mxu0 0
  %1062 = vmatpush1.bf16.msra.mxu0 %v876
  %1063 = vmatprep.subr.bf16.mxu0 0
  %1064 = vmatpush1.bf16.msra.mxu0 %v877
  %1065 = vmatprep.subr.bf16.mxu0 0
  %1066 = vmatpush1.bf16.msra.mxu0 %v878
  %1067 = vmatprep.subr.bf16.mxu0 0
  %1068 = vmatpush1.bf16.msra.mxu0 %v879
  %1069 = vmatprep.subr.bf16.mxu0 0
  %1070 = vmatpush1.bf16.msra.mxu0 %v880
  %1071 = vmatprep.subr.bf16.mxu0 0
  %1072 = vmatpush1.bf16.msra.mxu0 %v881
  %1073 = vmatprep.subr.bf16.mxu0 0
  %1074 = vmatpush1.bf16.msra.mxu0 %v882
  %1075 = vmatprep.subr.bf16.mxu0 0
  %1076 = vmatpush1.bf16.msra.mxu0 %v883
  %1077 = vmatprep.subr.bf16.mxu0 0
  %1078 = vmatpush1.bf16.msra.mxu0 %v884
  %1079 = vmatprep.subr.bf16.mxu0 0
  %1080 = vmatpush1.bf16.msra.mxu0 0
  %1081 = vmatprep.subr.bf16.mxu0 0
  %1082 = vmatpush1.bf16.msra.mxu0 0
  %1083 = vmatprep.subr.bf16.mxu0 0
  %1084 = vmatpush1.bf16.msra.mxu0 0
  %1085 = vmatprep.subr.bf16.mxu0 0
  %1086 = vmatpush1.bf16.msra.mxu0 0
  %1087 = vmatprep.subr.bf16.mxu0 0
  %1088 = vmatpush1.bf16.msra.mxu0 0
  %1089 = vmatprep.subr.bf16.mxu0 0
  %1090 = vmatpush1.bf16.msra.mxu0 0
  %1091 = vmatprep.subr.bf16.mxu0 0
  %1092 = vmatpush1.bf16.msra.mxu0 0
  %1093 = vmatprep.mubr.bf16.mxu0 %v1056
  %1094 = vmatmul.mubr.bf16.gmra.mrb[0].mxu0 %v1049
  %v1095 = vpop.f32.mrb[0].mxu0
  %v1096 = vadd.f32 0.0, %v1095
  %v1097 = vpop.f32.mrb[0].mxu0
  %v1098 = vpop.f32.mrb[0].mxu0
  %v1099 = vadd.f32 0.0, %v1098
  %v1100 = vpop.f32.mrb[0].mxu0
  %1101 = vmatprep.mubr.bf16.mxu0 %v1059
  %1102 = vmatmul.mubr.bf16.gmra.mrb[0].mxu0 %v1051
  %v1103 = vpop.f32.mrb[0].mxu0
  %v1104 = vadd.f32 0.0, %v1103
  %v1105 = vpop.f32.mrb[0].mxu0
  %v1106 = vpop.f32.mrb[0].mxu0
  %v1107 = vadd.f32 0.0, %v1106
  %v1108 = vpop.f32.mrb[0].mxu0
  %1109 = vdwg.mxu0
  %v1110 = vpack.c.bf16 %v1099, %v1096
  %v1111 = vpack.c.bf16 %v1107, %v1104
  %s1112 = scalar_lea.vmem %s5, 16
  %v1113 = vld [vmem:[%s1112] sm:$0xf]
  %v1114 = vld [vmem:[%s1112 + $0x4] sm:$0xf]
  %v1115 = vld [vmem:[%s1112 + $0x8] sm:$0xf]
  %v1116 = vld [vmem:[%s1112 + $0xc] sm:$0xf]
  %v1121 = vunpack.c.l.b16 %v1113
  %v1122 = vunpack.c.l.b16 %v1114
  %v1123 = vunpack.c.l.b16 %v1115
  %v1124 = vunpack.c.l.b16 %v1116
  %v1125 = vpack.c.b16 %v1122, %v1121
  %v1126 = vpack.c.b16 %v1124, %v1123
  %v1130 = vsel %vm599, %v1110, 0
  %v1133 = vsel %vm599, %v1111, 0
  %1135 = vmatprep.subr.bf16.mxu0 0
  %1136 = vmatpush1.bf16.msra.mxu0 %v1125
  %1137 = vmatprep.subr.bf16.mxu0 0
  %1138 = vmatpush1.bf16.msra.mxu0 %v1126
  %1139 = vmatprep.subr.bf16.mxu0 0
  %1140 = vmatpush1.bf16.msra.mxu0 0
  %1141 = vmatprep.subr.bf16.mxu0 0
  %1142 = vmatpush1.bf16.msra.mxu0 0
  %1143 = vmatprep.subr.bf16.mxu0 0
  %1144 = vmatpush1.bf16.msra.mxu0 0
  %1145 = vmatprep.subr.bf16.mxu0 0
  %1146 = vmatpush1.bf16.msra.mxu0 0
  %1147 = vmatprep.subr.bf16.mxu0 0
  %1148 = vmatpush1.bf16.msra.mxu0 0
  %1149 = vmatprep.subr.bf16.mxu0 0
  %1150 = vmatpush1.bf16.msra.mxu0 0
  %1151 = vmatprep.subr.bf16.mxu0 0
  %1152 = vmatpush1.bf16.msra.mxu0 0
  %1153 = vmatprep.subr.bf16.mxu0 0
  %1154 = vmatpush1.bf16.msra.mxu0 0
  %1155 = vmatprep.subr.bf16.mxu0 0
  %1156 = vmatpush1.bf16.msra.mxu0 0
  %1157 = vmatprep.subr.bf16.mxu0 0
  %1158 = vmatpush1.bf16.msra.mxu0 0
  %1159 = vmatprep.subr.bf16.mxu0 0
  %1160 = vmatpush1.bf16.msra.mxu0 0
  %1161 = vmatprep.subr.bf16.mxu0 0
  %1162 = vmatpush1.bf16.msra.mxu0 0
  %1163 = vmatprep.subr.bf16.mxu0 0
  %1164 = vmatpush1.bf16.msra.mxu0 0
  %1165 = vmatprep.subr.bf16.mxu0 0
  %1166 = vmatpush1.bf16.msra.mxu0 0
  %1167 = vmatprep.mubr.bf16.mxu0 0
  %1168 = vmatmul.mubr.bf16.gmra.mrb[0].mxu0 %v1130
  %v1169 = vpop.f32.mrb[0].mxu0
  %v1170 = vadd.f32 0.0, %v1169
  %v1171 = vpop.f32.mrb[0].mxu0
  %v1172 = vpop.f32.mrb[0].mxu0
  %v1173 = vadd.f32 0.0, %v1172
  %v1174 = vpop.f32.mrb[0].mxu0
  %1175 = vmatprep.mubr.bf16.mxu0 0
  %1176 = vmatmul.mubr.bf16.gmra.mrb[0].mxu0 %v1133
  %v1177 = vpop.f32.mrb[0].mxu0
  %v1178 = vadd.f32 0.0, %v1177
  %v1179 = vpop.f32.mrb[0].mxu0
  %v1180 = vpop.f32.mrb[0].mxu0
  %v1181 = vadd.f32 0.0, %v1180
  %v1182 = vpop.f32.mrb[0].mxu0
  %1183 = vdwg.mxu0
  %v1188 = vunpack.c.l.b16 %v1028
  %v1189 = vunpack.c.l.b16 %v1029
  %v1190 = vunpack.c.l.b16 %v1030
  %v1191 = vunpack.c.l.b16 %v1031
  %v1192 = vpack.c.b16 %v1189, %v1188
  %v1193 = vpack.c.b16 %v1191, %v1190
  %v1197 = vsel %vm599, %v1026, 0
  %v1200 = vsel %vm599, %v1027, 0
  %1202 = vmatprep.subr.bf16.mxu0 0
  %1203 = vmatpush1.bf16.msra.mxu0 %v1192
  %1204 = vmatprep.subr.bf16.mxu0 0
  %1205 = vmatpush1.bf16.msra.mxu0 %v1193
  %1206 = vmatprep.subr.bf16.mxu0 0
  %1207 = vmatpush1.bf16.msra.mxu0 0
  %1208 = vmatprep.subr.bf16.mxu0 0
  %1209 = vmatpush1.bf16.msra.mxu0 0
  %1210 = vmatprep.subr.bf16.mxu0 0
  %1211 = vmatpush1.bf16.msra.mxu0 0
  %1212 = vmatprep.subr.bf16.mxu0 0
  %1213 = vmatpush1.bf16.msra.mxu0 0
  %1214 = vmatprep.subr.bf16.mxu0 0
  %1215 = vmatpush1.bf16.msra.mxu0 0
  %1216 = vmatprep.subr.bf16.mxu0 0
  %1217 = vmatpush1.bf16.msra.mxu0 0
  %1218 = vmatprep.subr.bf16.mxu0 0
  %1219 = vmatpush1.bf16.msra.mxu0 0
  %1220 = vmatprep.subr.bf16.mxu0 0
  %1221 = vmatpush1.bf16.msra.mxu0 0
  %1222 = vmatprep.subr.bf16.mxu0 0
  %1223 = vmatpush1.bf16.msra.mxu0 0
  %1224 = vmatprep.subr.bf16.mxu0 0
  %1225 = vmatpush1.bf16.msra.mxu0 0
  %1226 = vmatprep.subr.bf16.mxu0 0
  %1227 = vmatpush1.bf16.msra.mxu0 0
  %1228 = vmatprep.subr.bf16.mxu0 0
  %1229 = vmatpush1.bf16.msra.mxu0 0
  %1230 = vmatprep.subr.bf16.mxu0 0
  %1231 = vmatpush1.bf16.msra.mxu0 0
  %1232 = vmatprep.subr.bf16.mxu0 0
  %1233 = vmatpush1.bf16.msra.mxu0 0
  %1234 = vmatprep.mubr.bf16.mxu0 0
  %1235 = vmatmul.mubr.bf16.gmra.mrb[0].mxu0 %v1197
  %v1236 = vpop.f32.mrb[0].mxu0
  %v1237 = vadd.f32 %v1170, %v1236
  %v1238 = vpop.f32.mrb[0].mxu0
  %v1239 = vpop.f32.mrb[0].mxu0
  %v1240 = vadd.f32 %v1173, %v1239
  %v1241 = vpop.f32.mrb[0].mxu0
  %1242 = vmatprep.mubr.bf16.mxu0 0
  %1243 = vmatmul.mubr.bf16.gmra.mrb[0].mxu0 %v1200
  %v1244 = vpop.f32.mrb[0].mxu0
  %v1245 = vadd.f32 %v1178, %v1244
  %v1246 = vpop.f32.mrb[0].mxu0
  %v1247 = vpop.f32.mrb[0].mxu0
  %v1248 = vadd.f32 %v1181, %v1247
  %v1249 = vpop.f32.mrb[0].mxu0
  %1250 = vdwg.mxu0
  %s1251 = scalar_lea.vmem %s4, 64
  %v1252 = vld [vmem:[%s1251] sm:$0xff]
  %v1253 = vld [vmem:[%s1251 + $0x8] sm:$0xff]
  %v1254 = vld [vmem:[%s1251 + $0x10] sm:$0xff]
  %v1255 = vld [vmem:[%s1251 + $0x18] sm:$0x11]
  %v1260 = vunpack.c.l.b16 %v1252
  %v1261 = vunpack.c.h.b16 %v1252
  %v1262 = vunpack.c.l.b16 %v1253
  %v1263 = vunpack.c.h.b16 %v1253
  %v1264 = vunpack.c.l.b16 %v1254
  %v1265 = vunpack.c.h.b16 %v1254
  %v1266 = vunpack.c.l.b16 %v1255
  %v1267 = vunpack.c.h.b16 %v1255
  %v1268 = vpack.c.b16 %v1262, %v1260
  %v1269 = vpack.c.b16 %v1263, %v1261
  %v1270 = vpack.c.b16 %v1266, %v1264
  %v1271 = vpack.c.b16 %v1267, %v1265
  %v1275 = vsel %vm970, %v1269, 0
  %v1278 = vsel %vm970, %v1271, 0
  %1280 = vmatprep.subr.bf16.mxu0 0
  %1281 = vmatpush1.bf16.msra.mxu0 %v876
  %1282 = vmatprep.subr.bf16.mxu0 0
  %1283 = vmatpush1.bf16.msra.mxu0 %v877
  %1284 = vmatprep.subr.bf16.mxu0 0
  %1285 = vmatpush1.bf16.msra.mxu0 %v878
  %1286 = vmatprep.subr.bf16.mxu0 0
  %1287 = vmatpush1.bf16.msra.mxu0 %v879
  %1288 = vmatprep.subr.bf16.mxu0 0
  %1289 = vmatpush1.bf16.msra.mxu0 %v880
  %1290 = vmatprep.subr.bf16.mxu0 0
  %1291 = vmatpush1.bf16.msra.mxu0 %v881
  %1292 = vmatprep.subr.bf16.mxu0 0
  %1293 = vmatpush1.bf16.msra.mxu0 %v882
  %1294 = vmatprep.subr.bf16.mxu0 0
  %1295 = vmatpush1.bf16.msra.mxu0 %v883
  %1296 = vmatprep.subr.bf16.mxu0 0
  %1297 = vmatpush1.bf16.msra.mxu0 %v884
  %1298 = vmatprep.subr.bf16.mxu0 0
  %1299 = vmatpush1.bf16.msra.mxu0 0
  %1300 = vmatprep.subr.bf16.mxu0 0
  %1301 = vmatpush1.bf16.msra.mxu0 0
  %1302 = vmatprep.subr.bf16.mxu0 0
  %1303 = vmatpush1.bf16.msra.mxu0 0
  %1304 = vmatprep.subr.bf16.mxu0 0
  %1305 = vmatpush1.bf16.msra.mxu0 0
  %1306 = vmatprep.subr.bf16.mxu0 0
  %1307 = vmatpush1.bf16.msra.mxu0 0
  %1308 = vmatprep.subr.bf16.mxu0 0
  %1309 = vmatpush1.bf16.msra.mxu0 0
  %1310 = vmatprep.subr.bf16.mxu0 0
  %1311 = vmatpush1.bf16.msra.mxu0 0
  %1312 = vmatprep.mubr.bf16.mxu0 %v1275
  %1313 = vmatmul.mubr.bf16.gmra.mrb[0].mxu0 %v1268
  %v1314 = vpop.f32.mrb[0].mxu0
  %v1315 = vadd.f32 0.0, %v1314
  %v1316 = vpop.f32.mrb[0].mxu0
  %v1317 = vpop.f32.mrb[0].mxu0
  %v1318 = vadd.f32 0.0, %v1317
  %v1319 = vpop.f32.mrb[0].mxu0
  %1320 = vmatprep.mubr.bf16.mxu0 %v1278
  %1321 = vmatmul.mubr.bf16.gmra.mrb[0].mxu0 %v1270
  %v1322 = vpop.f32.mrb[0].mxu0
  %v1323 = vadd.f32 0.0, %v1322
  %v1324 = vpop.f32.mrb[0].mxu0
  %v1325 = vpop.f32.mrb[0].mxu0
  %v1326 = vadd.f32 0.0, %v1325
  %v1327 = vpop.f32.mrb[0].mxu0
  %1328 = vdwg.mxu0
  %v1329 = vpack.c.bf16 %v1318, %v1315
  %v1330 = vpack.c.bf16 %v1326, %v1323
  %s1331 = scalar_lea.vmem %s5, 32
  %v1332 = vld [vmem:[%s1331] sm:$0xf]
  %v1333 = vld [vmem:[%s1331 + $0x4] sm:$0xf]
  %v1334 = vld [vmem:[%s1331 + $0x8] sm:$0xf]
  %v1335 = vld [vmem:[%s1331 + $0xc] sm:$0xf]
  %v1340 = vunpack.c.l.b16 %v1332
  %v1341 = vunpack.c.l.b16 %v1333
  %v1342 = vunpack.c.l.b16 %v1334
  %v1343 = vunpack.c.l.b16 %v1335
  %v1344 = vpack.c.b16 %v1341, %v1340
  %v1345 = vpack.c.b16 %v1343, %v1342
  %v1349 = vsel %vm599, %v1329, 0
  %v1352 = vsel %vm599, %v1330, 0
  %1354 = vmatprep.subr.bf16.mxu0 0
  %1355 = vmatpush1.bf16.msra.mxu0 %v1344
  %1356 = vmatprep.subr.bf16.mxu0 0
  %1357 = vmatpush1.bf16.msra.mxu0 %v1345
  %1358 = vmatprep.subr.bf16.mxu0 0
  %1359 = vmatpush1.bf16.msra.mxu0 0
  %1360 = vmatprep.subr.bf16.mxu0 0
  %1361 = vmatpush1.bf16.msra.mxu0 0
  %1362 = vmatprep.subr.bf16.mxu0 0
  %1363 = vmatpush1.bf16.msra.mxu0 0
  %1364 = vmatprep.subr.bf16.mxu0 0
  %1365 = vmatpush1.bf16.msra.mxu0 0
  %1366 = vmatprep.subr.bf16.mxu0 0
  %1367 = vmatpush1.bf16.msra.mxu0 0
  %1368 = vmatprep.subr.bf16.mxu0 0
  %1369 = vmatpush1.bf16.msra.mxu0 0
  %1370 = vmatprep.subr.bf16.mxu0 0
  %1371 = vmatpush1.bf16.msra.mxu0 0
  %1372 = vmatprep.subr.bf16.mxu0 0
  %1373 = vmatpush1.bf16.msra.mxu0 0
  %1374 = vmatprep.subr.bf16.mxu0 0
  %1375 = vmatpush1.bf16.msra.mxu0 0
  %1376 = vmatprep.subr.bf16.mxu0 0
  %1377 = vmatpush1.bf16.msra.mxu0 0
  %1378 = vmatprep.subr.bf16.mxu0 0
  %1379 = vmatpush1.bf16.msra.mxu0 0
  %1380 = vmatprep.subr.bf16.mxu0 0
  %1381 = vmatpush1.bf16.msra.mxu0 0
  %1382 = vmatprep.subr.bf16.mxu0 0
  %1383 = vmatpush1.bf16.msra.mxu0 0
  %1384 = vmatprep.subr.bf16.mxu0 0
  %1385 = vmatpush1.bf16.msra.mxu0 0
  %1386 = vmatprep.mubr.bf16.mxu0 0
  %1387 = vmatmul.mubr.bf16.gmra.mrb[0].mxu0 %v1349
  %v1388 = vpop.f32.mrb[0].mxu0
  %v1389 = vadd.f32 0.0, %v1388
  %v1390 = vpop.f32.mrb[0].mxu0
  %v1391 = vpop.f32.mrb[0].mxu0
  %v1392 = vadd.f32 0.0, %v1391
  %v1393 = vpop.f32.mrb[0].mxu0
  %1394 = vmatprep.mubr.bf16.mxu0 0
  %1395 = vmatmul.mubr.bf16.gmra.mrb[0].mxu0 %v1352
  %v1396 = vpop.f32.mrb[0].mxu0
  %v1397 = vadd.f32 0.0, %v1396
  %v1398 = vpop.f32.mrb[0].mxu0
  %v1399 = vpop.f32.mrb[0].mxu0
  %v1400 = vadd.f32 0.0, %v1399
  %v1401 = vpop.f32.mrb[0].mxu0
  %1402 = vdwg.mxu0
  %v1403 = vadd.f32 %v1237, %v1389
  %v1404 = vadd.f32 %v1240, %v1392
  %v1405 = vadd.f32 %v1245, %v1397
  %v1406 = vadd.f32 %v1248, %v1400
  %s1407 = scalar_lea.vmem %s4, 96
  %v1408 = vld [vmem:[%s1407] sm:$0xff]
  %v1409 = vld [vmem:[%s1407 + $0x8] sm:$0xff]
  %v1410 = vld [vmem:[%s1407 + $0x10] sm:$0xff]
  %v1411 = vld [vmem:[%s1407 + $0x18] sm:$0x11]
  %v1416 = vunpack.c.l.b16 %v1408
  %v1417 = vunpack.c.h.b16 %v1408
  %v1418 = vunpack.c.l.b16 %v1409
  %v1419 = vunpack.c.h.b16 %v1409
  %v1420 = vunpack.c.l.b16 %v1410
  %v1421 = vunpack.c.h.b16 %v1410
  %v1422 = vunpack.c.l.b16 %v1411
  %v1423 = vunpack.c.h.b16 %v1411
  %v1424 = vpack.c.b16 %v1418, %v1416
  %v1425 = vpack.c.b16 %v1419, %v1417
  %v1426 = vpack.c.b16 %v1422, %v1420
  %v1427 = vpack.c.b16 %v1423, %v1421
  %v1431 = vsel %vm970, %v1425, 0
  %v1434 = vsel %vm970, %v1427, 0
  %1436 = vmatprep.subr.bf16.mxu0 0
  %1437 = vmatpush1.bf16.msra.mxu0 %v876
  %1438 = vmatprep.subr.bf16.mxu0 0
  %1439 = vmatpush1.bf16.msra.mxu0 %v877
  %1440 = vmatprep.subr.bf16.mxu0 0
  %1441 = vmatpush1.bf16.msra.mxu0 %v878
  %1442 = vmatprep.subr.bf16.mxu0 0
  %1443 = vmatpush1.bf16.msra.mxu0 %v879
  %1444 = vmatprep.subr.bf16.mxu0 0
  %1445 = vmatpush1.bf16.msra.mxu0 %v880
  %1446 = vmatprep.subr.bf16.mxu0 0
  %1447 = vmatpush1.bf16.msra.mxu0 %v881
  %1448 = vmatprep.subr.bf16.mxu0 0
  %1449 = vmatpush1.bf16.msra.mxu0 %v882
  %1450 = vmatprep.subr.bf16.mxu0 0
  %1451 = vmatpush1.bf16.msra.mxu0 %v883
  %1452 = vmatprep.subr.bf16.mxu0 0
  %1453 = vmatpush1.bf16.msra.mxu0 %v884
  %1454 = vmatprep.subr.bf16.mxu0 0
  %1455 = vmatpush1.bf16.msra.mxu0 0
  %1456 = vmatprep.subr.bf16.mxu0 0
  %1457 = vmatpush1.bf16.msra.mxu0 0
  %1458 = vmatprep.subr.bf16.mxu0 0
  %1459 = vmatpush1.bf16.msra.mxu0 0
  %1460 = vmatprep.subr.bf16.mxu0 0
  %1461 = vmatpush1.bf16.msra.mxu0 0
  %1462 = vmatprep.subr.bf16.mxu0 0
  %1463 = vmatpush1.bf16.msra.mxu0 0
  %1464 = vmatprep.subr.bf16.mxu0 0
  %1465 = vmatpush1.bf16.msra.mxu0 0
  %1466 = vmatprep.subr.bf16.mxu0 0
  %1467 = vmatpush1.bf16.msra.mxu0 0
  %1468 = vmatprep.mubr.bf16.mxu0 %v1431
  %1469 = vmatmul.mubr.bf16.gmra.mrb[0].mxu0 %v1424
  %v1470 = vpop.f32.mrb[0].mxu0
  %v1471 = vadd.f32 0.0, %v1470
  %v1472 = vpop.f32.mrb[0].mxu0
  %v1473 = vpop.f32.mrb[0].mxu0
  %v1474 = vadd.f32 0.0, %v1473
  %v1475 = vpop.f32.mrb[0].mxu0
  %1476 = vmatprep.mubr.bf16.mxu0 %v1434
  %1477 = vmatmul.mubr.bf16.gmra.mrb[0].mxu0 %v1426
  %v1478 = vpop.f32.mrb[0].mxu0
  %v1479 = vadd.f32 0.0, %v1478
  %v1480 = vpop.f32.mrb[0].mxu0
  %v1481 = vpop.f32.mrb[0].mxu0
  %v1482 = vadd.f32 0.0, %v1481
  %v1483 = vpop.f32.mrb[0].mxu0
  %1484 = vdwg.mxu0
  %v1485 = vpack.c.bf16 %v1474, %v1471
  %v1486 = vpack.c.bf16 %v1482, %v1479
  %s1487 = scalar_lea.vmem %s5, 48
  %v1488 = vld [vmem:[%s1487] sm:$0xf]
  %v1489 = vld [vmem:[%s1487 + $0x4] sm:$0xf]
  %v1490 = vld [vmem:[%s1487 + $0x8] sm:$0xf]
  %v1491 = vld [vmem:[%s1487 + $0xc] sm:$0xf]
  %v1496 = vunpack.c.l.b16 %v1488
  %v1497 = vunpack.c.l.b16 %v1489
  %v1498 = vunpack.c.l.b16 %v1490
  %v1499 = vunpack.c.l.b16 %v1491
  %v1500 = vpack.c.b16 %v1497, %v1496
  %v1501 = vpack.c.b16 %v1499, %v1498
  %v1505 = vsel %vm599, %v1485, 0
  %v1508 = vsel %vm599, %v1486, 0
  %1510 = vmatprep.subr.bf16.mxu0 0
  %1511 = vmatpush1.bf16.msra.mxu0 %v1500
  %1512 = vmatprep.subr.bf16.mxu0 0
  %1513 = vmatpush1.bf16.msra.mxu0 %v1501
  %1514 = vmatprep.subr.bf16.mxu0 0
  %1515 = vmatpush1.bf16.msra.mxu0 0
  %1516 = vmatprep.subr.bf16.mxu0 0
  %1517 = vmatpush1.bf16.msra.mxu0 0
  %1518 = vmatprep.subr.bf16.mxu0 0
  %1519 = vmatpush1.bf16.msra.mxu0 0
  %1520 = vmatprep.subr.bf16.mxu0 0
  %1521 = vmatpush1.bf16.msra.mxu0 0
  %1522 = vmatprep.subr.bf16.mxu0 0
  %1523 = vmatpush1.bf16.msra.mxu0 0
  %1524 = vmatprep.subr.bf16.mxu0 0
  %1525 = vmatpush1.bf16.msra.mxu0 0
  %1526 = vmatprep.subr.bf16.mxu0 0
  %1527 = vmatpush1.bf16.msra.mxu0 0
  %1528 = vmatprep.subr.bf16.mxu0 0
  %1529 = vmatpush1.bf16.msra.mxu0 0
  %1530 = vmatprep.subr.bf16.mxu0 0
  %1531 = vmatpush1.bf16.msra.mxu0 0
  %1532 = vmatprep.subr.bf16.mxu0 0
  %1533 = vmatpush1.bf16.msra.mxu0 0
  %1534 = vmatprep.subr.bf16.mxu0 0
  %1535 = vmatpush1.bf16.msra.mxu0 0
  %1536 = vmatprep.subr.bf16.mxu0 0
  %1537 = vmatpush1.bf16.msra.mxu0 0
  %1538 = vmatprep.subr.bf16.mxu0 0
  %1539 = vmatpush1.bf16.msra.mxu0 0
  %1540 = vmatprep.subr.bf16.mxu0 0
  %1541 = vmatpush1.bf16.msra.mxu0 0
  %1542 = vmatprep.mubr.bf16.mxu0 0
  %1543 = vmatmul.mubr.bf16.gmra.mrb[0].mxu0 %v1505
  %v1544 = vpop.f32.mrb[0].mxu0
  %v1545 = vadd.f32 0.0, %v1544
  %v1546 = vpop.f32.mrb[0].mxu0
  %v1547 = vpop.f32.mrb[0].mxu0
  %v1548 = vadd.f32 0.0, %v1547
  %v1549 = vpop.f32.mrb[0].mxu0
  %1550 = vmatprep.mubr.bf16.mxu0 0
  %1551 = vmatmul.mubr.bf16.gmra.mrb[0].mxu0 %v1508
  %v1552 = vpop.f32.mrb[0].mxu0
  %v1553 = vadd.f32 0.0, %v1552
  %v1554 = vpop.f32.mrb[0].mxu0
  %v1555 = vpop.f32.mrb[0].mxu0
  %v1556 = vadd.f32 0.0, %v1555
  %v1557 = vpop.f32.mrb[0].mxu0
  %1558 = vdwg.mxu0
  %v1559 = vadd.f32 %v1403, %v1545
  %v1560 = vadd.f32 %v1404, %v1548
  %v1561 = vadd.f32 %v1405, %v1553
  %v1562 = vadd.f32 %v1406, %v1556
  %s1563 = scalar_lea.vmem %s4, 128
  %v1564 = vld [vmem:[%s1563] sm:$0xff]
  %v1565 = vld [vmem:[%s1563 + $0x8] sm:$0xff]
  %v1566 = vld [vmem:[%s1563 + $0x10] sm:$0xff]
  %v1567 = vld [vmem:[%s1563 + $0x18] sm:$0x11]
  %v1572 = vunpack.c.l.b16 %v1564
  %v1573 = vunpack.c.h.b16 %v1564
  %v1574 = vunpack.c.l.b16 %v1565
  %v1575 = vunpack.c.h.b16 %v1565
  %v1576 = vunpack.c.l.b16 %v1566
  %v1577 = vunpack.c.h.b16 %v1566
  %v1578 = vunpack.c.l.b16 %v1567
  %v1579 = vunpack.c.h.b16 %v1567
  %v1580 = vpack.c.b16 %v1574, %v1572
  %v1581 = vpack.c.b16 %v1575, %v1573
  %v1582 = vpack.c.b16 %v1578, %v1576
  %v1583 = vpack.c.b16 %v1579, %v1577
  %v1587 = vsel %vm970, %v1581, 0
  %v1590 = vsel %vm970, %v1583, 0
  %1592 = vmatprep.subr.bf16.mxu0 0
  %1593 = vmatpush1.bf16.msra.mxu0 %v876
  %1594 = vmatprep.subr.bf16.mxu0 0
  %1595 = vmatpush1.bf16.msra.mxu0 %v877
  %1596 = vmatprep.subr.bf16.mxu0 0
  %1597 = vmatpush1.bf16.msra.mxu0 %v878
  %1598 = vmatprep.subr.bf16.mxu0 0
  %1599 = vmatpush1.bf16.msra.mxu0 %v879
  %1600 = vmatprep.subr.bf16.mxu0 0
  %1601 = vmatpush1.bf16.msra.mxu0 %v880
  %1602 = vmatprep.subr.bf16.mxu0 0
  %1603 = vmatpush1.bf16.msra.mxu0 %v881
  %1604 = vmatprep.subr.bf16.mxu0 0
  %1605 = vmatpush1.bf16.msra.mxu0 %v882
  %1606 = vmatprep.subr.bf16.mxu0 0
  %1607 = vmatpush1.bf16.msra.mxu0 %v883
  %1608 = vmatprep.subr.bf16.mxu0 0
  %1609 = vmatpush1.bf16.msra.mxu0 %v884
  %1610 = vmatprep.subr.bf16.mxu0 0
  %1611 = vmatpush1.bf16.msra.mxu0 0
  %1612 = vmatprep.subr.bf16.mxu0 0
  %1613 = vmatpush1.bf16.msra.mxu0 0
  %1614 = vmatprep.subr.bf16.mxu0 0
  %1615 = vmatpush1.bf16.msra.mxu0 0
  %1616 = vmatprep.subr.bf16.mxu0 0
  %1617 = vmatpush1.bf16.msra.mxu0 0
  %1618 = vmatprep.subr.bf16.mxu0 0
  %1619 = vmatpush1.bf16.msra.mxu0 0
  %1620 = vmatprep.subr.bf16.mxu0 0
  %1621 = vmatpush1.bf16.msra.mxu0 0
  %1622 = vmatprep.subr.bf16.mxu0 0
  %1623 = vmatpush1.bf16.msra.mxu0 0
  %1624 = vmatprep.mubr.bf16.mxu0 %v1587
  %1625 = vmatmul.mubr.bf16.gmra.mrb[0].mxu0 %v1580
  %v1626 = vpop.f32.mrb[0].mxu0
  %v1627 = vadd.f32 0.0, %v1626
  %v1628 = vpop.f32.mrb[0].mxu0
  %v1629 = vpop.f32.mrb[0].mxu0
  %v1630 = vadd.f32 0.0, %v1629
  %v1631 = vpop.f32.mrb[0].mxu0
  %1632 = vmatprep.mubr.bf16.mxu0 %v1590
  %1633 = vmatmul.mubr.bf16.gmra.mrb[0].mxu0 %v1582
  %v1634 = vpop.f32.mrb[0].mxu0
  %v1635 = vadd.f32 0.0, %v1634
  %v1636 = vpop.f32.mrb[0].mxu0
  %v1637 = vpop.f32.mrb[0].mxu0
  %v1638 = vadd.f32 0.0, %v1637
  %v1639 = vpop.f32.mrb[0].mxu0
  %1640 = vdwg.mxu0
  %v1641 = vpack.c.bf16 %v1630, %v1627
  %v1642 = vpack.c.bf16 %v1638, %v1635
  %s1643 = scalar_lea.vmem %s5, 64
  %v1644 = vld [vmem:[%s1643] sm:$0xf]
  %v1645 = vld [vmem:[%s1643 + $0x4] sm:$0xf]
  %v1646 = vld [vmem:[%s1643 + $0x8] sm:$0xf]
  %v1647 = vld [vmem:[%s1643 + $0xc] sm:$0xf]
  %v1652 = vunpack.c.l.b16 %v1644
  %v1653 = vunpack.c.l.b16 %v1645
  %v1654 = vunpack.c.l.b16 %v1646
  %v1655 = vunpack.c.l.b16 %v1647
  %v1656 = vpack.c.b16 %v1653, %v1652
  %v1657 = vpack.c.b16 %v1655, %v1654
  %v1661 = vsel %vm599, %v1641, 0
  %v1664 = vsel %vm599, %v1642, 0
  %1666 = vmatprep.subr.bf16.mxu0 0
  %1667 = vmatpush1.bf16.msra.mxu0 %v1656
  %1668 = vmatprep.subr.bf16.mxu0 0
  %1669 = vmatpush1.bf16.msra.mxu0 %v1657
  %1670 = vmatprep.subr.bf16.mxu0 0
  %1671 = vmatpush1.bf16.msra.mxu0 0
  %1672 = vmatprep.subr.bf16.mxu0 0
  %1673 = vmatpush1.bf16.msra.mxu0 0
  %1674 = vmatprep.subr.bf16.mxu0 0
  %1675 = vmatpush1.bf16.msra.mxu0 0
  %1676 = vmatprep.subr.bf16.mxu0 0
  %1677 = vmatpush1.bf16.msra.mxu0 0
  %1678 = vmatprep.subr.bf16.mxu0 0
  %1679 = vmatpush1.bf16.msra.mxu0 0
  %1680 = vmatprep.subr.bf16.mxu0 0
  %1681 = vmatpush1.bf16.msra.mxu0 0
  %1682 = vmatprep.subr.bf16.mxu0 0
  %1683 = vmatpush1.bf16.msra.mxu0 0
  %1684 = vmatprep.subr.bf16.mxu0 0
  %1685 = vmatpush1.bf16.msra.mxu0 0
  %1686 = vmatprep.subr.bf16.mxu0 0
  %1687 = vmatpush1.bf16.msra.mxu0 0
  %1688 = vmatprep.subr.bf16.mxu0 0
  %1689 = vmatpush1.bf16.msra.mxu0 0
  %1690 = vmatprep.subr.bf16.mxu0 0
  %1691 = vmatpush1.bf16.msra.mxu0 0
  %1692 = vmatprep.subr.bf16.mxu0 0
  %1693 = vmatpush1.bf16.msra.mxu0 0
  %1694 = vmatprep.subr.bf16.mxu0 0
  %1695 = vmatpush1.bf16.msra.mxu0 0
  %1696 = vmatprep.subr.bf16.mxu0 0
  %1697 = vmatpush1.bf16.msra.mxu0 0
  %1698 = vmatprep.mubr.bf16.mxu0 0
  %1699 = vmatmul.mubr.bf16.gmra.mrb[0].mxu0 %v1661
  %v1700 = vpop.f32.mrb[0].mxu0
  %v1701 = vadd.f32 0.0, %v1700
  %v1702 = vpop.f32.mrb[0].mxu0
  %v1703 = vpop.f32.mrb[0].mxu0
  %v1704 = vadd.f32 0.0, %v1703
  %v1705 = vpop.f32.mrb[0].mxu0
  %1706 = vmatprep.mubr.bf16.mxu0 0
  %1707 = vmatmul.mubr.bf16.gmra.mrb[0].mxu0 %v1664
  %v1708 = vpop.f32.mrb[0].mxu0
  %v1709 = vadd.f32 0.0, %v1708
  %v1710 = vpop.f32.mrb[0].mxu0
  %v1711 = vpop.f32.mrb[0].mxu0
  %v1712 = vadd.f32 0.0, %v1711
  %v1713 = vpop.f32.mrb[0].mxu0
  %1714 = vdwg.mxu0
  %v1715 = vadd.f32 %v1559, %v1701
  %v1716 = vadd.f32 %v1560, %v1704
  %v1717 = vadd.f32 %v1561, %v1709
  %v1718 = vadd.f32 %v1562, %v1712
  %s1719 = scalar_lea.vmem %s4, 160
  %v1720 = vld [vmem:[%s1719] sm:$0xff]
  %v1721 = vld [vmem:[%s1719 + $0x8] sm:$0xff]
  %v1722 = vld [vmem:[%s1719 + $0x10] sm:$0xff]
  %v1723 = vld [vmem:[%s1719 + $0x18] sm:$0x11]
  %v1728 = vunpack.c.l.b16 %v1720
  %v1729 = vunpack.c.h.b16 %v1720
  %v1730 = vunpack.c.l.b16 %v1721
  %v1731 = vunpack.c.h.b16 %v1721
  %v1732 = vunpack.c.l.b16 %v1722
  %v1733 = vunpack.c.h.b16 %v1722
  %v1734 = vunpack.c.l.b16 %v1723
  %v1735 = vunpack.c.h.b16 %v1723
  %v1736 = vpack.c.b16 %v1730, %v1728
  %v1737 = vpack.c.b16 %v1731, %v1729
  %v1738 = vpack.c.b16 %v1734, %v1732
  %v1739 = vpack.c.b16 %v1735, %v1733
  %v1743 = vsel %vm970, %v1737, 0
  %v1746 = vsel %vm970, %v1739, 0
  %1748 = vmatprep.subr.bf16.mxu0 0
  %1749 = vmatpush1.bf16.msra.mxu0 %v876
  %1750 = vmatprep.subr.bf16.mxu0 0
  %1751 = vmatpush1.bf16.msra.mxu0 %v877
  %1752 = vmatprep.subr.bf16.mxu0 0
  %1753 = vmatpush1.bf16.msra.mxu0 %v878
  %1754 = vmatprep.subr.bf16.mxu0 0
  %1755 = vmatpush1.bf16.msra.mxu0 %v879
  %1756 = vmatprep.subr.bf16.mxu0 0
  %1757 = vmatpush1.bf16.msra.mxu0 %v880
  %1758 = vmatprep.subr.bf16.mxu0 0
  %1759 = vmatpush1.bf16.msra.mxu0 %v881
  %1760 = vmatprep.subr.bf16.mxu0 0
  %1761 = vmatpush1.bf16.msra.mxu0 %v882
  %1762 = vmatprep.subr.bf16.mxu0 0
  %1763 = vmatpush1.bf16.msra.mxu0 %v883
  %1764 = vmatprep.subr.bf16.mxu0 0
  %1765 = vmatpush1.bf16.msra.mxu0 %v884
  %1766 = vmatprep.subr.bf16.mxu0 0
  %1767 = vmatpush1.bf16.msra.mxu0 0
  %1768 = vmatprep.subr.bf16.mxu0 0
  %1769 = vmatpush1.bf16.msra.mxu0 0
  %1770 = vmatprep.subr.bf16.mxu0 0
  %1771 = vmatpush1.bf16.msra.mxu0 0
  %1772 = vmatprep.subr.bf16.mxu0 0
  %1773 = vmatpush1.bf16.msra.mxu0 0
  %1774 = vmatprep.subr.bf16.mxu0 0
  %1775 = vmatpush1.bf16.msra.mxu0 0
  %1776 = vmatprep.subr.bf16.mxu0 0
  %1777 = vmatpush1.bf16.msra.mxu0 0
  %1778 = vmatprep.subr.bf16.mxu0 0
  %1779 = vmatpush1.bf16.msra.mxu0 0
  %1780 = vmatprep.mubr.bf16.mxu0 %v1743
  %1781 = vmatmul.mubr.bf16.gmra.mrb[0].mxu0 %v1736
  %v1782 = vpop.f32.mrb[0].mxu0
  %v1783 = vadd.f32 0.0, %v1782
  %v1784 = vpop.f32.mrb[0].mxu0
  %v1785 = vpop.f32.mrb[0].mxu0
  %v1786 = vadd.f32 0.0, %v1785
  %v1787 = vpop.f32.mrb[0].mxu0
  %1788 = vmatprep.mubr.bf16.mxu0 %v1746
  %1789 = vmatmul.mubr.bf16.gmra.mrb[0].mxu0 %v1738
  %v1790 = vpop.f32.mrb[0].mxu0
  %v1791 = vadd.f32 0.0, %v1790
  %v1792 = vpop.f32.mrb[0].mxu0
  %v1793 = vpop.f32.mrb[0].mxu0
  %v1794 = vadd.f32 0.0, %v1793
  %v1795 = vpop.f32.mrb[0].mxu0
  %1796 = vdwg.mxu0
  %v1797 = vpack.c.bf16 %v1786, %v1783
  %v1798 = vpack.c.bf16 %v1794, %v1791
  %s1799 = scalar_lea.vmem %s5, 80
  %v1800 = vld [vmem:[%s1799] sm:$0xf]
  %v1801 = vld [vmem:[%s1799 + $0x4] sm:$0xf]
  %v1802 = vld [vmem:[%s1799 + $0x8] sm:$0xf]
  %v1803 = vld [vmem:[%s1799 + $0xc] sm:$0xf]
  %v1808 = vunpack.c.l.b16 %v1800
  %v1809 = vunpack.c.l.b16 %v1801
  %v1810 = vunpack.c.l.b16 %v1802
  %v1811 = vunpack.c.l.b16 %v1803
  %v1812 = vpack.c.b16 %v1809, %v1808
  %v1813 = vpack.c.b16 %v1811, %v1810
  %v1817 = vsel %vm599, %v1797, 0
  %v1820 = vsel %vm599, %v1798, 0
  %1822 = vmatprep.subr.bf16.mxu0 0
  %1823 = vmatpush1.bf16.msra.mxu0 %v1812
  %1824 = vmatprep.subr.bf16.mxu0 0
  %1825 = vmatpush1.bf16.msra.mxu0 %v1813
  %1826 = vmatprep.subr.bf16.mxu0 0
  %1827 = vmatpush1.bf16.msra.mxu0 0
  %1828 = vmatprep.subr.bf16.mxu0 0
  %1829 = vmatpush1.bf16.msra.mxu0 0
  %1830 = vmatprep.subr.bf16.mxu0 0
  %1831 = vmatpush1.bf16.msra.mxu0 0
  %1832 = vmatprep.subr.bf16.mxu0 0
  %1833 = vmatpush1.bf16.msra.mxu0 0
  %1834 = vmatprep.subr.bf16.mxu0 0
  %1835 = vmatpush1.bf16.msra.mxu0 0
  %1836 = vmatprep.subr.bf16.mxu0 0
  %1837 = vmatpush1.bf16.msra.mxu0 0
  %1838 = vmatprep.subr.bf16.mxu0 0
  %1839 = vmatpush1.bf16.msra.mxu0 0
  %1840 = vmatprep.subr.bf16.mxu0 0
  %1841 = vmatpush1.bf16.msra.mxu0 0
  %1842 = vmatprep.subr.bf16.mxu0 0
  %1843 = vmatpush1.bf16.msra.mxu0 0
  %1844 = vmatprep.subr.bf16.mxu0 0
  %1845 = vmatpush1.bf16.msra.mxu0 0
  %1846 = vmatprep.subr.bf16.mxu0 0
  %1847 = vmatpush1.bf16.msra.mxu0 0
  %1848 = vmatprep.subr.bf16.mxu0 0
  %1849 = vmatpush1.bf16.msra.mxu0 0
  %1850 = vmatprep.subr.bf16.mxu0 0
  %1851 = vmatpush1.bf16.msra.mxu0 0
  %1852 = vmatprep.subr.bf16.mxu0 0
  %1853 = vmatpush1.bf16.msra.mxu0 0
  %1854 = vmatprep.mubr.bf16.mxu0 0
  %1855 = vmatmul.mubr.bf16.gmra.mrb[0].mxu0 %v1817
  %v1856 = vpop.f32.mrb[0].mxu0
  %v1857 = vadd.f32 0.0, %v1856
  %v1858 = vpop.f32.mrb[0].mxu0
  %v1859 = vpop.f32.mrb[0].mxu0
  %v1860 = vadd.f32 0.0, %v1859
  %v1861 = vpop.f32.mrb[0].mxu0
  %1862 = vmatprep.mubr.bf16.mxu0 0
  %1863 = vmatmul.mubr.bf16.gmra.mrb[0].mxu0 %v1820
  %v1864 = vpop.f32.mrb[0].mxu0
  %v1865 = vadd.f32 0.0, %v1864
  %v1866 = vpop.f32.mrb[0].mxu0
  %v1867 = vpop.f32.mrb[0].mxu0
  %v1868 = vadd.f32 0.0, %v1867
  %v1869 = vpop.f32.mrb[0].mxu0
  %1870 = vdwg.mxu0
  %v1871 = vadd.f32 %v1715, %v1857
  %v1872 = vadd.f32 %v1716, %v1860
  %v1873 = vadd.f32 %v1717, %v1865
  %v1874 = vadd.f32 %v1718, %v1868
  %s1875 = scalar_lea.vmem %s4, 192
  %v1876 = vld [vmem:[%s1875] sm:$0xff]
  %v1877 = vld [vmem:[%s1875 + $0x8] sm:$0xff]
  %v1878 = vld [vmem:[%s1875 + $0x10] sm:$0xff]
  %v1879 = vld [vmem:[%s1875 + $0x18] sm:$0x11]
  %v1884 = vunpack.c.l.b16 %v1876
  %v1885 = vunpack.c.h.b16 %v1876
  %v1886 = vunpack.c.l.b16 %v1877
  %v1887 = vunpack.c.h.b16 %v1877
  %v1888 = vunpack.c.l.b16 %v1878
  %v1889 = vunpack.c.h.b16 %v1878
  %v1890 = vunpack.c.l.b16 %v1879
  %v1891 = vunpack.c.h.b16 %v1879
  %v1892 = vpack.c.b16 %v1886, %v1884
  %v1893 = vpack.c.b16 %v1887, %v1885
  %v1894 = vpack.c.b16 %v1890, %v1888
  %v1895 = vpack.c.b16 %v1891, %v1889
  %v1899 = vsel %vm970, %v1893, 0
  %v1902 = vsel %vm970, %v1895, 0
  %1904 = vmatprep.subr.bf16.mxu0 0
  %1905 = vmatpush1.bf16.msra.mxu0 %v876
  %1906 = vmatprep.subr.bf16.mxu0 0
  %1907 = vmatpush1.bf16.msra.mxu0 %v877
  %1908 = vmatprep.subr.bf16.mxu0 0
  %1909 = vmatpush1.bf16.msra.mxu0 %v878
  %1910 = vmatprep.subr.bf16.mxu0 0
  %1911 = vmatpush1.bf16.msra.mxu0 %v879
  %1912 = vmatprep.subr.bf16.mxu0 0
  %1913 = vmatpush1.bf16.msra.mxu0 %v880
  %1914 = vmatprep.subr.bf16.mxu0 0
  %1915 = vmatpush1.bf16.msra.mxu0 %v881
  %1916 = vmatprep.subr.bf16.mxu0 0
  %1917 = vmatpush1.bf16.msra.mxu0 %v882
  %1918 = vmatprep.subr.bf16.mxu0 0
  %1919 = vmatpush1.bf16.msra.mxu0 %v883
  %1920 = vmatprep.subr.bf16.mxu0 0
  %1921 = vmatpush1.bf16.msra.mxu0 %v884
  %1922 = vmatprep.subr.bf16.mxu0 0
  %1923 = vmatpush1.bf16.msra.mxu0 0
  %1924 = vmatprep.subr.bf16.mxu0 0
  %1925 = vmatpush1.bf16.msra.mxu0 0
  %1926 = vmatprep.subr.bf16.mxu0 0
  %1927 = vmatpush1.bf16.msra.mxu0 0
  %1928 = vmatprep.subr.bf16.mxu0 0
  %1929 = vmatpush1.bf16.msra.mxu0 0
  %1930 = vmatprep.subr.bf16.mxu0 0
  %1931 = vmatpush1.bf16.msra.mxu0 0
  %1932 = vmatprep.subr.bf16.mxu0 0
  %1933 = vmatpush1.bf16.msra.mxu0 0
  %1934 = vmatprep.subr.bf16.mxu0 0
  %1935 = vmatpush1.bf16.msra.mxu0 0
  %1936 = vmatprep.mubr.bf16.mxu0 %v1899
  %1937 = vmatmul.mubr.bf16.gmra.mrb[0].mxu0 %v1892
  %v1938 = vpop.f32.mrb[0].mxu0
  %v1939 = vadd.f32 0.0, %v1938
  %v1940 = vpop.f32.mrb[0].mxu0
  %v1941 = vpop.f32.mrb[0].mxu0
  %v1942 = vadd.f32 0.0, %v1941
  %v1943 = vpop.f32.mrb[0].mxu0
  %1944 = vmatprep.mubr.bf16.mxu0 %v1902
  %1945 = vmatmul.mubr.bf16.gmra.mrb[0].mxu0 %v1894
  %v1946 = vpop.f32.mrb[0].mxu0
  %v1947 = vadd.f32 0.0, %v1946
  %v1948 = vpop.f32.mrb[0].mxu0
  %v1949 = vpop.f32.mrb[0].mxu0
  %v1950 = vadd.f32 0.0, %v1949
  %v1951 = vpop.f32.mrb[0].mxu0
  %1952 = vdwg.mxu0
  %v1953 = vpack.c.bf16 %v1942, %v1939
  %v1954 = vpack.c.bf16 %v1950, %v1947
  %s1955 = scalar_lea.vmem %s5, 96
  %v1956 = vld [vmem:[%s1955] sm:$0xf]
  %v1957 = vld [vmem:[%s1955 + $0x4] sm:$0xf]
  %v1958 = vld [vmem:[%s1955 + $0x8] sm:$0xf]
  %v1959 = vld [vmem:[%s1955 + $0xc] sm:$0xf]
  %v1964 = vunpack.c.l.b16 %v1956
  %v1965 = vunpack.c.l.b16 %v1957
  %v1966 = vunpack.c.l.b16 %v1958
  %v1967 = vunpack.c.l.b16 %v1959
  %v1968 = vpack.c.b16 %v1965, %v1964
  %v1969 = vpack.c.b16 %v1967, %v1966
  %v1973 = vsel %vm599, %v1953, 0
  %v1976 = vsel %vm599, %v1954, 0
  %1978 = vmatprep.subr.bf16.mxu0 0
  %1979 = vmatpush1.bf16.msra.mxu0 %v1968
  %1980 = vmatprep.subr.bf16.mxu0 0
  %1981 = vmatpush1.bf16.msra.mxu0 %v1969
  %1982 = vmatprep.subr.bf16.mxu0 0
  %1983 = vmatpush1.bf16.msra.mxu0 0
  %1984 = vmatprep.subr.bf16.mxu0 0
  %1985 = vmatpush1.bf16.msra.mxu0 0
  %1986 = vmatprep.subr.bf16.mxu0 0
  %1987 = vmatpush1.bf16.msra.mxu0 0
  %1988 = vmatprep.subr.bf16.mxu0 0
  %1989 = vmatpush1.bf16.msra.mxu0 0
  %1990 = vmatprep.subr.bf16.mxu0 0
  %1991 = vmatpush1.bf16.msra.mxu0 0
  %1992 = vmatprep.subr.bf16.mxu0 0
  %1993 = vmatpush1.bf16.msra.mxu0 0
  %1994 = vmatprep.subr.bf16.mxu0 0
  %1995 = vmatpush1.bf16.msra.mxu0 0
  %1996 = vmatprep.subr.bf16.mxu0 0
  %1997 = vmatpush1.bf16.msra.mxu0 0
  %1998 = vmatprep.subr.bf16.mxu0 0
  %1999 = vmatpush1.bf16.msra.mxu0 0
  %2000 = vmatprep.subr.bf16.mxu0 0
  %2001 = vmatpush1.bf16.msra.mxu0 0
  %2002 = vmatprep.subr.bf16.mxu0 0
  %2003 = vmatpush1.bf16.msra.mxu0 0
  %2004 = vmatprep.subr.bf16.mxu0 0
  %2005 = vmatpush1.bf16.msra.mxu0 0
  %2006 = vmatprep.subr.bf16.mxu0 0
  %2007 = vmatpush1.bf16.msra.mxu0 0
  %2008 = vmatprep.subr.bf16.mxu0 0
  %2009 = vmatpush1.bf16.msra.mxu0 0
  %2010 = vmatprep.mubr.bf16.mxu0 0
  %2011 = vmatmul.mubr.bf16.gmra.mrb[0].mxu0 %v1973
  %v2012 = vpop.f32.mrb[0].mxu0
  %v2013 = vadd.f32 0.0, %v2012
  %v2014 = vpop.f32.mrb[0].mxu0
  %v2015 = vpop.f32.mrb[0].mxu0
  %v2016 = vadd.f32 0.0, %v2015
  %v2017 = vpop.f32.mrb[0].mxu0
  %2018 = vmatprep.mubr.bf16.mxu0 0
  %2019 = vmatmul.mubr.bf16.gmra.mrb[0].mxu0 %v1976
  %v2020 = vpop.f32.mrb[0].mxu0
  %v2021 = vadd.f32 0.0, %v2020
  %v2022 = vpop.f32.mrb[0].mxu0
  %v2023 = vpop.f32.mrb[0].mxu0
  %v2024 = vadd.f32 0.0, %v2023
  %v2025 = vpop.f32.mrb[0].mxu0
  %2026 = vdwg.mxu0
  %v2027 = vadd.f32 %v1871, %v2013
  %v2028 = vadd.f32 %v1872, %v2016
  %v2029 = vadd.f32 %v1873, %v2021
  %v2030 = vadd.f32 %v1874, %v2024
  %s2031 = scalar_lea.vmem %s4, 224
  %v2032 = vld [vmem:[%s2031] sm:$0xff]
  %v2033 = vld [vmem:[%s2031 + $0x8] sm:$0xff]
  %v2034 = vld [vmem:[%s2031 + $0x10] sm:$0xff]
  %v2035 = vld [vmem:[%s2031 + $0x18] sm:$0x11]
  %v2040 = vunpack.c.l.b16 %v2032
  %v2041 = vunpack.c.h.b16 %v2032
  %v2042 = vunpack.c.l.b16 %v2033
  %v2043 = vunpack.c.h.b16 %v2033
  %v2044 = vunpack.c.l.b16 %v2034
  %v2045 = vunpack.c.h.b16 %v2034
  %v2046 = vunpack.c.l.b16 %v2035
  %v2047 = vunpack.c.h.b16 %v2035
  %v2048 = vpack.c.b16 %v2042, %v2040
  %v2049 = vpack.c.b16 %v2043, %v2041
  %v2050 = vpack.c.b16 %v2046, %v2044
  %v2051 = vpack.c.b16 %v2047, %v2045
  %v2055 = vsel %vm970, %v2049, 0
  %v2058 = vsel %vm970, %v2051, 0
  %2060 = vmatprep.subr.bf16.mxu0 0
  %2061 = vmatpush1.bf16.msra.mxu0 %v876
  %2062 = vmatprep.subr.bf16.mxu0 0
  %2063 = vmatpush1.bf16.msra.mxu0 %v877
  %2064 = vmatprep.subr.bf16.mxu0 0
  %2065 = vmatpush1.bf16.msra.mxu0 %v878
  %2066 = vmatprep.subr.bf16.mxu0 0
  %2067 = vmatpush1.bf16.msra.mxu0 %v879
  %2068 = vmatprep.subr.bf16.mxu0 0
  %2069 = vmatpush1.bf16.msra.mxu0 %v880
  %2070 = vmatprep.subr.bf16.mxu0 0
  %2071 = vmatpush1.bf16.msra.mxu0 %v881
  %2072 = vmatprep.subr.bf16.mxu0 0
  %2073 = vmatpush1.bf16.msra.mxu0 %v882
  %2074 = vmatprep.subr.bf16.mxu0 0
  %2075 = vmatpush1.bf16.msra.mxu0 %v883
  %2076 = vmatprep.subr.bf16.mxu0 0
  %2077 = vmatpush1.bf16.msra.mxu0 %v884
  %2078 = vmatprep.subr.bf16.mxu0 0
  %2079 = vmatpush1.bf16.msra.mxu0 0
  %2080 = vmatprep.subr.bf16.mxu0 0
  %2081 = vmatpush1.bf16.msra.mxu0 0
  %2082 = vmatprep.subr.bf16.mxu0 0
  %2083 = vmatpush1.bf16.msra.mxu0 0
  %2084 = vmatprep.subr.bf16.mxu0 0
  %2085 = vmatpush1.bf16.msra.mxu0 0
  %2086 = vmatprep.subr.bf16.mxu0 0
  %2087 = vmatpush1.bf16.msra.mxu0 0
  %2088 = vmatprep.subr.bf16.mxu0 0
  %2089 = vmatpush1.bf16.msra.mxu0 0
  %2090 = vmatprep.subr.bf16.mxu0 0
  %2091 = vmatpush1.bf16.msra.mxu0 0
  %2092 = vmatprep.mubr.bf16.mxu0 %v2055
  %2093 = vmatmul.mubr.bf16.gmra.mrb[0].mxu0 %v2048
  %v2094 = vpop.f32.mrb[0].mxu0
  %v2095 = vadd.f32 0.0, %v2094
  %v2096 = vpop.f32.mrb[0].mxu0
  %v2097 = vpop.f32.mrb[0].mxu0
  %v2098 = vadd.f32 0.0, %v2097
  %v2099 = vpop.f32.mrb[0].mxu0
  %2100 = vmatprep.mubr.bf16.mxu0 %v2058
  %2101 = vmatmul.mubr.bf16.gmra.mrb[0].mxu0 %v2050
  %v2102 = vpop.f32.mrb[0].mxu0
  %v2103 = vadd.f32 0.0, %v2102
  %v2104 = vpop.f32.mrb[0].mxu0
  %v2105 = vpop.f32.mrb[0].mxu0
  %v2106 = vadd.f32 0.0, %v2105
  %v2107 = vpop.f32.mrb[0].mxu0
  %2108 = vdwg.mxu0
  %v2109 = vpack.c.bf16 %v2098, %v2095
  %v2110 = vpack.c.bf16 %v2106, %v2103
  %s2111 = scalar_lea.vmem %s5, 112
  %v2112 = vld [vmem:[%s2111] sm:$0xf]
  %v2113 = vld [vmem:[%s2111 + $0x4] sm:$0xf]
  %v2114 = vld [vmem:[%s2111 + $0x8] sm:$0xf]
  %v2115 = vld [vmem:[%s2111 + $0xc] sm:$0xf]
  %v2120 = vunpack.c.l.b16 %v2112
  %v2121 = vunpack.c.l.b16 %v2113
  %v2122 = vunpack.c.l.b16 %v2114
  %v2123 = vunpack.c.l.b16 %v2115
  %v2124 = vpack.c.b16 %v2121, %v2120
  %v2125 = vpack.c.b16 %v2123, %v2122
  %v2129 = vsel %vm599, %v2109, 0
  %v2132 = vsel %vm599, %v2110, 0
  %2134 = vmatprep.subr.bf16.mxu0 0
  %2135 = vmatpush1.bf16.msra.mxu0 %v2124
  %2136 = vmatprep.subr.bf16.mxu0 0
  %2137 = vmatpush1.bf16.msra.mxu0 %v2125
  %2138 = vmatprep.subr.bf16.mxu0 0
  %2139 = vmatpush1.bf16.msra.mxu0 0
  %2140 = vmatprep.subr.bf16.mxu0 0
  %2141 = vmatpush1.bf16.msra.mxu0 0
  %2142 = vmatprep.subr.bf16.mxu0 0
  %2143 = vmatpush1.bf16.msra.mxu0 0
  %2144 = vmatprep.subr.bf16.mxu0 0
  %2145 = vmatpush1.bf16.msra.mxu0 0
  %2146 = vmatprep.subr.bf16.mxu0 0
  %2147 = vmatpush1.bf16.msra.mxu0 0
  %2148 = vmatprep.subr.bf16.mxu0 0
  %2149 = vmatpush1.bf16.msra.mxu0 0
  %2150 = vmatprep.subr.bf16.mxu0 0
  %2151 = vmatpush1.bf16.msra.mxu0 0
  %2152 = vmatprep.subr.bf16.mxu0 0
  %2153 = vmatpush1.bf16.msra.mxu0 0
  %2154 = vmatprep.subr.bf16.mxu0 0
  %2155 = vmatpush1.bf16.msra.mxu0 0
  %2156 = vmatprep.subr.bf16.mxu0 0
  %2157 = vmatpush1.bf16.msra.mxu0 0
  %2158 = vmatprep.subr.bf16.mxu0 0
  %2159 = vmatpush1.bf16.msra.mxu0 0
  %2160 = vmatprep.subr.bf16.mxu0 0
  %2161 = vmatpush1.bf16.msra.mxu0 0
  %2162 = vmatprep.subr.bf16.mxu0 0
  %2163 = vmatpush1.bf16.msra.mxu0 0
  %2164 = vmatprep.subr.bf16.mxu0 0
  %2165 = vmatpush1.bf16.msra.mxu0 0
  %2166 = vmatprep.mubr.bf16.mxu0 0
  %2167 = vmatmul.mubr.bf16.gmra.mrb[0].mxu0 %v2129
  %v2168 = vpop.f32.mrb[0].mxu0
  %v2169 = vadd.f32 0.0, %v2168
  %v2170 = vpop.f32.mrb[0].mxu0
  %v2171 = vpop.f32.mrb[0].mxu0
  %v2172 = vadd.f32 0.0, %v2171
  %v2173 = vpop.f32.mrb[0].mxu0
  %2174 = vmatprep.mubr.bf16.mxu0 0
  %2175 = vmatmul.mubr.bf16.gmra.mrb[0].mxu0 %v2132
  %v2176 = vpop.f32.mrb[0].mxu0
  %v2177 = vadd.f32 0.0, %v2176
  %v2178 = vpop.f32.mrb[0].mxu0
  %v2179 = vpop.f32.mrb[0].mxu0
  %v2180 = vadd.f32 0.0, %v2179
  %v2181 = vpop.f32.mrb[0].mxu0
  %2182 = vdwg.mxu0
  %v2183 = vadd.f32 %v2027, %v2169
  %v2184 = vadd.f32 %v2028, %v2172
  %v2185 = vadd.f32 %v2029, %v2177
  %v2186 = vadd.f32 %v2030, %v2180
  %s2187 = scalar_lea.vmem %s4, 256
  %v2188 = vld [vmem:[%s2187] sm:$0xff]
  %v2189 = vld [vmem:[%s2187 + $0x8] sm:$0xff]
  %v2190 = vld [vmem:[%s2187 + $0x10] sm:$0xff]
  %v2191 = vld [vmem:[%s2187 + $0x18] sm:$0x11]
  %v2196 = vunpack.c.l.b16 %v2188
  %v2197 = vunpack.c.h.b16 %v2188
  %v2198 = vunpack.c.l.b16 %v2189
  %v2199 = vunpack.c.h.b16 %v2189
  %v2200 = vunpack.c.l.b16 %v2190
  %v2201 = vunpack.c.h.b16 %v2190
  %v2202 = vunpack.c.l.b16 %v2191
  %v2203 = vunpack.c.h.b16 %v2191
  %v2204 = vpack.c.b16 %v2198, %v2196
  %v2205 = vpack.c.b16 %v2199, %v2197
  %v2206 = vpack.c.b16 %v2202, %v2200
  %v2207 = vpack.c.b16 %v2203, %v2201
  %v2211 = vsel %vm970, %v2205, 0
  %v2214 = vsel %vm970, %v2207, 0
  %2216 = vmatprep.subr.bf16.mxu0 0
  %2217 = vmatpush1.bf16.msra.mxu0 %v876
  %2218 = vmatprep.subr.bf16.mxu0 0
  %2219 = vmatpush1.bf16.msra.mxu0 %v877
  %2220 = vmatprep.subr.bf16.mxu0 0
  %2221 = vmatpush1.bf16.msra.mxu0 %v878
  %2222 = vmatprep.subr.bf16.mxu0 0
  %2223 = vmatpush1.bf16.msra.mxu0 %v879
  %2224 = vmatprep.subr.bf16.mxu0 0
  %2225 = vmatpush1.bf16.msra.mxu0 %v880
  %2226 = vmatprep.subr.bf16.mxu0 0
  %2227 = vmatpush1.bf16.msra.mxu0 %v881
  %2228 = vmatprep.subr.bf16.mxu0 0
  %2229 = vmatpush1.bf16.msra.mxu0 %v882
  %2230 = vmatprep.subr.bf16.mxu0 0
  %2231 = vmatpush1.bf16.msra.mxu0 %v883
  %2232 = vmatprep.subr.bf16.mxu0 0
  %2233 = vmatpush1.bf16.msra.mxu0 %v884
  %2234 = vmatprep.subr.bf16.mxu0 0
  %2235 = vmatpush1.bf16.msra.mxu0 0
  %2236 = vmatprep.subr.bf16.mxu0 0
  %2237 = vmatpush1.bf16.msra.mxu0 0
  %2238 = vmatprep.subr.bf16.mxu0 0
  %2239 = vmatpush1.bf16.msra.mxu0 0
  %2240 = vmatprep.subr.bf16.mxu0 0
  %2241 = vmatpush1.bf16.msra.mxu0 0
  %2242 = vmatprep.subr.bf16.mxu0 0
  %2243 = vmatpush1.bf16.msra.mxu0 0
  %2244 = vmatprep.subr.bf16.mxu0 0
  %2245 = vmatpush1.bf16.msra.mxu0 0
  %2246 = vmatprep.subr.bf16.mxu0 0
  %2247 = vmatpush1.bf16.msra.mxu0 0
  %2248 = vmatprep.mubr.bf16.mxu0 %v2211
  %2249 = vmatmul.mubr.bf16.gmra.mrb[0].mxu0 %v2204
  %v2250 = vpop.f32.mrb[0].mxu0
  %v2251 = vadd.f32 0.0, %v2250
  %v2252 = vpop.f32.mrb[0].mxu0
  %v2253 = vpop.f32.mrb[0].mxu0
  %v2254 = vadd.f32 0.0, %v2253
  %v2255 = vpop.f32.mrb[0].mxu0
  %2256 = vmatprep.mubr.bf16.mxu0 %v2214
  %2257 = vmatmul.mubr.bf16.gmra.mrb[0].mxu0 %v2206
  %v2258 = vpop.f32.mrb[0].mxu0
  %v2259 = vadd.f32 0.0, %v2258
  %v2260 = vpop.f32.mrb[0].mxu0
  %v2261 = vpop.f32.mrb[0].mxu0
  %v2262 = vadd.f32 0.0, %v2261
  %v2263 = vpop.f32.mrb[0].mxu0
  %2264 = vdwg.mxu0
  %v2265 = vpack.c.bf16 %v2254, %v2251
  %v2266 = vpack.c.bf16 %v2262, %v2259
  %s2267 = scalar_lea.vmem %s5, 128
  %v2268 = vld [vmem:[%s2267] sm:$0xf]
  %v2269 = vld [vmem:[%s2267 + $0x4] sm:$0xf]
  %v2270 = vld [vmem:[%s2267 + $0x8] sm:$0xf]
  %v2271 = vld [vmem:[%s2267 + $0xc] sm:$0xf]
  %v2276 = vunpack.c.l.b16 %v2268
  %v2277 = vunpack.c.l.b16 %v2269
  %v2278 = vunpack.c.l.b16 %v2270
  %v2279 = vunpack.c.l.b16 %v2271
  %v2280 = vpack.c.b16 %v2277, %v2276
  %v2281 = vpack.c.b16 %v2279, %v2278
  %v2285 = vsel %vm599, %v2265, 0
  %v2288 = vsel %vm599, %v2266, 0
  %2290 = vmatprep.subr.bf16.mxu0 0
  %2291 = vmatpush1.bf16.msra.mxu0 %v2280
  %2292 = vmatprep.subr.bf16.mxu0 0
  %2293 = vmatpush1.bf16.msra.mxu0 %v2281
  %2294 = vmatprep.subr.bf16.mxu0 0
  %2295 = vmatpush1.bf16.msra.mxu0 0
  %2296 = vmatprep.subr.bf16.mxu0 0
  %2297 = vmatpush1.bf16.msra.mxu0 0
  %2298 = vmatprep.subr.bf16.mxu0 0
  %2299 = vmatpush1.bf16.msra.mxu0 0
  %2300 = vmatprep.subr.bf16.mxu0 0
  %2301 = vmatpush1.bf16.msra.mxu0 0
  %2302 = vmatprep.subr.bf16.mxu0 0
  %2303 = vmatpush1.bf16.msra.mxu0 0
  %2304 = vmatprep.subr.bf16.mxu0 0
  %2305 = vmatpush1.bf16.msra.mxu0 0
  %2306 = vmatprep.subr.bf16.mxu0 0
  %2307 = vmatpush1.bf16.msra.mxu0 0
  %2308 = vmatprep.subr.bf16.mxu0 0
  %2309 = vmatpush1.bf16.msra.mxu0 0
  %2310 = vmatprep.subr.bf16.mxu0 0
  %2311 = vmatpush1.bf16.msra.mxu0 0
  %2312 = vmatprep.subr.bf16.mxu0 0
  %2313 = vmatpush1.bf16.msra.mxu0 0
  %2314 = vmatprep.subr.bf16.mxu0 0
  %2315 = vmatpush1.bf16.msra.mxu0 0
  %2316 = vmatprep.subr.bf16.mxu0 0
  %2317 = vmatpush1.bf16.msra.mxu0 0
  %2318 = vmatprep.subr.bf16.mxu0 0
  %2319 = vmatpush1.bf16.msra.mxu0 0
  %2320 = vmatprep.subr.bf16.mxu0 0
  %2321 = vmatpush1.bf16.msra.mxu0 0
  %2322 = vmatprep.mubr.bf16.mxu0 0
  %2323 = vmatmul.mubr.bf16.gmra.mrb[0].mxu0 %v2285
  %v2324 = vpop.f32.mrb[0].mxu0
  %v2325 = vadd.f32 0.0, %v2324
  %v2326 = vpop.f32.mrb[0].mxu0
  %v2327 = vpop.f32.mrb[0].mxu0
  %v2328 = vadd.f32 0.0, %v2327
  %v2329 = vpop.f32.mrb[0].mxu0
  %2330 = vmatprep.mubr.bf16.mxu0 0
  %2331 = vmatmul.mubr.bf16.gmra.mrb[0].mxu0 %v2288
  %v2332 = vpop.f32.mrb[0].mxu0
  %v2333 = vadd.f32 0.0, %v2332
  %v2334 = vpop.f32.mrb[0].mxu0
  %v2335 = vpop.f32.mrb[0].mxu0
  %v2336 = vadd.f32 0.0, %v2335
  %v2337 = vpop.f32.mrb[0].mxu0
  %2338 = vdwg.mxu0
  %v2339 = vadd.f32 %v2183, %v2325
  %v2340 = vadd.f32 %v2184, %v2328
  %v2341 = vadd.f32 %v2185, %v2333
  %v2342 = vadd.f32 %v2186, %v2336
  %s2343 = scalar_lea.vmem %s4, 288
  %v2344 = vld [vmem:[%s2343] sm:$0xff]
  %v2345 = vld [vmem:[%s2343 + $0x8] sm:$0xff]
  %v2346 = vld [vmem:[%s2343 + $0x10] sm:$0xff]
  %v2347 = vld [vmem:[%s2343 + $0x18] sm:$0x11]
  %v2352 = vunpack.c.l.b16 %v2344
  %v2353 = vunpack.c.h.b16 %v2344
  %v2354 = vunpack.c.l.b16 %v2345
  %v2355 = vunpack.c.h.b16 %v2345
  %v2356 = vunpack.c.l.b16 %v2346
  %v2357 = vunpack.c.h.b16 %v2346
  %v2358 = vunpack.c.l.b16 %v2347
  %v2359 = vunpack.c.h.b16 %v2347
  %v2360 = vpack.c.b16 %v2354, %v2352
  %v2361 = vpack.c.b16 %v2355, %v2353
  %v2362 = vpack.c.b16 %v2358, %v2356
  %v2363 = vpack.c.b16 %v2359, %v2357
  %v2367 = vsel %vm970, %v2361, 0
  %v2370 = vsel %vm970, %v2363, 0
  %2372 = vmatprep.subr.bf16.mxu0 0
  %2373 = vmatpush1.bf16.msra.mxu0 %v876
  %2374 = vmatprep.subr.bf16.mxu0 0
  %2375 = vmatpush1.bf16.msra.mxu0 %v877
  %2376 = vmatprep.subr.bf16.mxu0 0
  %2377 = vmatpush1.bf16.msra.mxu0 %v878
  %2378 = vmatprep.subr.bf16.mxu0 0
  %2379 = vmatpush1.bf16.msra.mxu0 %v879
  %2380 = vmatprep.subr.bf16.mxu0 0
  %2381 = vmatpush1.bf16.msra.mxu0 %v880
  %2382 = vmatprep.subr.bf16.mxu0 0
  %2383 = vmatpush1.bf16.msra.mxu0 %v881
  %2384 = vmatprep.subr.bf16.mxu0 0
  %2385 = vmatpush1.bf16.msra.mxu0 %v882
  %2386 = vmatprep.subr.bf16.mxu0 0
  %2387 = vmatpush1.bf16.msra.mxu0 %v883
  %2388 = vmatprep.subr.bf16.mxu0 0
  %2389 = vmatpush1.bf16.msra.mxu0 %v884
  %2390 = vmatprep.subr.bf16.mxu0 0
  %2391 = vmatpush1.bf16.msra.mxu0 0
  %2392 = vmatprep.subr.bf16.mxu0 0
  %2393 = vmatpush1.bf16.msra.mxu0 0
  %2394 = vmatprep.subr.bf16.mxu0 0
  %2395 = vmatpush1.bf16.msra.mxu0 0
  %2396 = vmatprep.subr.bf16.mxu0 0
  %2397 = vmatpush1.bf16.msra.mxu0 0
  %2398 = vmatprep.subr.bf16.mxu0 0
  %2399 = vmatpush1.bf16.msra.mxu0 0
  %2400 = vmatprep.subr.bf16.mxu0 0
  %2401 = vmatpush1.bf16.msra.mxu0 0
  %2402 = vmatprep.subr.bf16.mxu0 0
  %2403 = vmatpush1.bf16.msra.mxu0 0
  %2404 = vmatprep.mubr.bf16.mxu0 %v2367
  %2405 = vmatmul.mubr.bf16.gmra.mrb[0].mxu0 %v2360
  %v2406 = vpop.f32.mrb[0].mxu0
  %v2407 = vadd.f32 0.0, %v2406
  %v2408 = vpop.f32.mrb[0].mxu0
  %v2409 = vpop.f32.mrb[0].mxu0
  %v2410 = vadd.f32 0.0, %v2409
  %v2411 = vpop.f32.mrb[0].mxu0
  %2412 = vmatprep.mubr.bf16.mxu0 %v2370
  %2413 = vmatmul.mubr.bf16.gmra.mrb[0].mxu0 %v2362
  %v2414 = vpop.f32.mrb[0].mxu0
  %v2415 = vadd.f32 0.0, %v2414
  %v2416 = vpop.f32.mrb[0].mxu0
  %v2417 = vpop.f32.mrb[0].mxu0
  %v2418 = vadd.f32 0.0, %v2417
  %v2419 = vpop.f32.mrb[0].mxu0
  %2420 = vdwg.mxu0
  %v2421 = vpack.c.bf16 %v2410, %v2407
  %v2422 = vpack.c.bf16 %v2418, %v2415
  %s2423 = scalar_lea.vmem %s5, 144
  %v2424 = vld [vmem:[%s2423] sm:$0xf]
  %v2425 = vld [vmem:[%s2423 + $0x4] sm:$0xf]
  %v2426 = vld [vmem:[%s2423 + $0x8] sm:$0xf]
  %v2427 = vld [vmem:[%s2423 + $0xc] sm:$0xf]
  %v2432 = vunpack.c.l.b16 %v2424
  %v2433 = vunpack.c.l.b16 %v2425
  %v2434 = vunpack.c.l.b16 %v2426
  %v2435 = vunpack.c.l.b16 %v2427
  %v2436 = vpack.c.b16 %v2433, %v2432
  %v2437 = vpack.c.b16 %v2435, %v2434
  %v2441 = vsel %vm599, %v2421, 0
  %v2444 = vsel %vm599, %v2422, 0
  %2446 = vmatprep.subr.bf16.mxu0 0
  %2447 = vmatpush1.bf16.msra.mxu0 %v2436
  %2448 = vmatprep.subr.bf16.mxu0 0
  %2449 = vmatpush1.bf16.msra.mxu0 %v2437
  %2450 = vmatprep.subr.bf16.mxu0 0
  %2451 = vmatpush1.bf16.msra.mxu0 0
  %2452 = vmatprep.subr.bf16.mxu0 0
  %2453 = vmatpush1.bf16.msra.mxu0 0
  %2454 = vmatprep.subr.bf16.mxu0 0
  %2455 = vmatpush1.bf16.msra.mxu0 0
  %2456 = vmatprep.subr.bf16.mxu0 0
  %2457 = vmatpush1.bf16.msra.mxu0 0
  %2458 = vmatprep.subr.bf16.mxu0 0
  %2459 = vmatpush1.bf16.msra.mxu0 0
  %2460 = vmatprep.subr.bf16.mxu0 0
  %2461 = vmatpush1.bf16.msra.mxu0 0
  %2462 = vmatprep.subr.bf16.mxu0 0
  %2463 = vmatpush1.bf16.msra.mxu0 0
  %2464 = vmatprep.subr.bf16.mxu0 0
  %2465 = vmatpush1.bf16.msra.mxu0 0
  %2466 = vmatprep.subr.bf16.mxu0 0
  %2467 = vmatpush1.bf16.msra.mxu0 0
  %2468 = vmatprep.subr.bf16.mxu0 0
  %2469 = vmatpush1.bf16.msra.mxu0 0
  %2470 = vmatprep.subr.bf16.mxu0 0
  %2471 = vmatpush1.bf16.msra.mxu0 0
  %2472 = vmatprep.subr.bf16.mxu0 0
  %2473 = vmatpush1.bf16.msra.mxu0 0
  %2474 = vmatprep.subr.bf16.mxu0 0
  %2475 = vmatpush1.bf16.msra.mxu0 0
  %2476 = vmatprep.subr.bf16.mxu0 0
  %2477 = vmatpush1.bf16.msra.mxu0 0
  %2478 = vmatprep.mubr.bf16.mxu0 0
  %2479 = vmatmul.mubr.bf16.gmra.mrb[0].mxu0 %v2441
  %v2480 = vpop.f32.mrb[0].mxu0
  %v2481 = vadd.f32 0.0, %v2480
  %v2482 = vpop.f32.mrb[0].mxu0
  %v2483 = vpop.f32.mrb[0].mxu0
  %v2484 = vadd.f32 0.0, %v2483
  %v2485 = vpop.f32.mrb[0].mxu0
  %2486 = vmatprep.mubr.bf16.mxu0 0
  %2487 = vmatmul.mubr.bf16.gmra.mrb[0].mxu0 %v2444
  %v2488 = vpop.f32.mrb[0].mxu0
  %v2489 = vadd.f32 0.0, %v2488
  %v2490 = vpop.f32.mrb[0].mxu0
  %v2491 = vpop.f32.mrb[0].mxu0
  %v2492 = vadd.f32 0.0, %v2491
  %v2493 = vpop.f32.mrb[0].mxu0
  %2494 = vdwg.mxu0
  %v2495 = vadd.f32 %v2339, %v2481
  %v2496 = vadd.f32 %v2340, %v2484
  %v2497 = vadd.f32 %v2341, %v2489
  %v2498 = vadd.f32 %v2342, %v2492
  %s2499 = scalar_lea.vmem %s4, 320
  %v2500 = vld [vmem:[%s2499] sm:$0xff]
  %v2501 = vld [vmem:[%s2499 + $0x8] sm:$0xff]
  %v2502 = vld [vmem:[%s2499 + $0x10] sm:$0xff]
  %v2503 = vld [vmem:[%s2499 + $0x18] sm:$0x11]
  %v2508 = vunpack.c.l.b16 %v2500
  %v2509 = vunpack.c.h.b16 %v2500
  %v2510 = vunpack.c.l.b16 %v2501
  %v2511 = vunpack.c.h.b16 %v2501
  %v2512 = vunpack.c.l.b16 %v2502
  %v2513 = vunpack.c.h.b16 %v2502
  %v2514 = vunpack.c.l.b16 %v2503
  %v2515 = vunpack.c.h.b16 %v2503
  %v2516 = vpack.c.b16 %v2510, %v2508
  %v2517 = vpack.c.b16 %v2511, %v2509
  %v2518 = vpack.c.b16 %v2514, %v2512
  %v2519 = vpack.c.b16 %v2515, %v2513
  %v2523 = vsel %vm970, %v2517, 0
  %v2526 = vsel %vm970, %v2519, 0
  %2528 = vmatprep.subr.bf16.mxu0 0
  %2529 = vmatpush1.bf16.msra.mxu0 %v876
  %2530 = vmatprep.subr.bf16.mxu0 0
  %2531 = vmatpush1.bf16.msra.mxu0 %v877
  %2532 = vmatprep.subr.bf16.mxu0 0
  %2533 = vmatpush1.bf16.msra.mxu0 %v878
  %2534 = vmatprep.subr.bf16.mxu0 0
  %2535 = vmatpush1.bf16.msra.mxu0 %v879
  %2536 = vmatprep.subr.bf16.mxu0 0
  %2537 = vmatpush1.bf16.msra.mxu0 %v880
  %2538 = vmatprep.subr.bf16.mxu0 0
  %2539 = vmatpush1.bf16.msra.mxu0 %v881
  %2540 = vmatprep.subr.bf16.mxu0 0
  %2541 = vmatpush1.bf16.msra.mxu0 %v882
  %2542 = vmatprep.subr.bf16.mxu0 0
  %2543 = vmatpush1.bf16.msra.mxu0 %v883
  %2544 = vmatprep.subr.bf16.mxu0 0
  %2545 = vmatpush1.bf16.msra.mxu0 %v884
  %2546 = vmatprep.subr.bf16.mxu0 0
  %2547 = vmatpush1.bf16.msra.mxu0 0
  %2548 = vmatprep.subr.bf16.mxu0 0
  %2549 = vmatpush1.bf16.msra.mxu0 0
  %2550 = vmatprep.subr.bf16.mxu0 0
  %2551 = vmatpush1.bf16.msra.mxu0 0
  %2552 = vmatprep.subr.bf16.mxu0 0
  %2553 = vmatpush1.bf16.msra.mxu0 0
  %2554 = vmatprep.subr.bf16.mxu0 0
  %2555 = vmatpush1.bf16.msra.mxu0 0
  %2556 = vmatprep.subr.bf16.mxu0 0
  %2557 = vmatpush1.bf16.msra.mxu0 0
  %2558 = vmatprep.subr.bf16.mxu0 0
  %2559 = vmatpush1.bf16.msra.mxu0 0
  %2560 = vmatprep.mubr.bf16.mxu0 %v2523
  %2561 = vmatmul.mubr.bf16.gmra.mrb[0].mxu0 %v2516
  %v2562 = vpop.f32.mrb[0].mxu0
  %v2563 = vadd.f32 0.0, %v2562
  %v2564 = vpop.f32.mrb[0].mxu0
  %v2565 = vpop.f32.mrb[0].mxu0
  %v2566 = vadd.f32 0.0, %v2565
  %v2567 = vpop.f32.mrb[0].mxu0
  %2568 = vmatprep.mubr.bf16.mxu0 %v2526
  %2569 = vmatmul.mubr.bf16.gmra.mrb[0].mxu0 %v2518
  %v2570 = vpop.f32.mrb[0].mxu0
  %v2571 = vadd.f32 0.0, %v2570
  %v2572 = vpop.f32.mrb[0].mxu0
  %v2573 = vpop.f32.mrb[0].mxu0
  %v2574 = vadd.f32 0.0, %v2573
  %v2575 = vpop.f32.mrb[0].mxu0
  %2576 = vdwg.mxu0
  %v2577 = vpack.c.bf16 %v2566, %v2563
  %v2578 = vpack.c.bf16 %v2574, %v2571
  %s2579 = scalar_lea.vmem %s5, 160
  %v2580 = vld [vmem:[%s2579] sm:$0xf]
  %v2581 = vld [vmem:[%s2579 + $0x4] sm:$0xf]
  %v2582 = vld [vmem:[%s2579 + $0x8] sm:$0xf]
  %v2583 = vld [vmem:[%s2579 + $0xc] sm:$0xf]
  %v2588 = vunpack.c.l.b16 %v2580
  %v2589 = vunpack.c.l.b16 %v2581
  %v2590 = vunpack.c.l.b16 %v2582
  %v2591 = vunpack.c.l.b16 %v2583
  %v2592 = vpack.c.b16 %v2589, %v2588
  %v2593 = vpack.c.b16 %v2591, %v2590
  %v2597 = vsel %vm599, %v2577, 0
  %v2600 = vsel %vm599, %v2578, 0
  %2602 = vmatprep.subr.bf16.mxu0 0
  %2603 = vmatpush1.bf16.msra.mxu0 %v2592
  %2604 = vmatprep.subr.bf16.mxu0 0
  %2605 = vmatpush1.bf16.msra.mxu0 %v2593
  %2606 = vmatprep.subr.bf16.mxu0 0
  %2607 = vmatpush1.bf16.msra.mxu0 0
  %2608 = vmatprep.subr.bf16.mxu0 0
  %2609 = vmatpush1.bf16.msra.mxu0 0
  %2610 = vmatprep.subr.bf16.mxu0 0
  %2611 = vmatpush1.bf16.msra.mxu0 0
  %2612 = vmatprep.subr.bf16.mxu0 0
  %2613 = vmatpush1.bf16.msra.mxu0 0
  %2614 = vmatprep.subr.bf16.mxu0 0
  %2615 = vmatpush1.bf16.msra.mxu0 0
  %2616 = vmatprep.subr.bf16.mxu0 0
  %2617 = vmatpush1.bf16.msra.mxu0 0
  %2618 = vmatprep.subr.bf16.mxu0 0
  %2619 = vmatpush1.bf16.msra.mxu0 0
  %2620 = vmatprep.subr.bf16.mxu0 0
  %2621 = vmatpush1.bf16.msra.mxu0 0
  %2622 = vmatprep.subr.bf16.mxu0 0
  %2623 = vmatpush1.bf16.msra.mxu0 0
  %2624 = vmatprep.subr.bf16.mxu0 0
  %2625 = vmatpush1.bf16.msra.mxu0 0
  %2626 = vmatprep.subr.bf16.mxu0 0
  %2627 = vmatpush1.bf16.msra.mxu0 0
  %2628 = vmatprep.subr.bf16.mxu0 0
  %2629 = vmatpush1.bf16.msra.mxu0 0
  %2630 = vmatprep.subr.bf16.mxu0 0
  %2631 = vmatpush1.bf16.msra.mxu0 0
  %2632 = vmatprep.subr.bf16.mxu0 0
  %2633 = vmatpush1.bf16.msra.mxu0 0
  %2634 = vmatprep.mubr.bf16.mxu0 0
  %2635 = vmatmul.mubr.bf16.gmra.mrb[0].mxu0 %v2597
  %v2636 = vpop.f32.mrb[0].mxu0
  %v2637 = vadd.f32 0.0, %v2636
  %v2638 = vpop.f32.mrb[0].mxu0
  %v2639 = vpop.f32.mrb[0].mxu0
  %v2640 = vadd.f32 0.0, %v2639
  %v2641 = vpop.f32.mrb[0].mxu0
  %2642 = vmatprep.mubr.bf16.mxu0 0
  %2643 = vmatmul.mubr.bf16.gmra.mrb[0].mxu0 %v2600
  %v2644 = vpop.f32.mrb[0].mxu0
  %v2645 = vadd.f32 0.0, %v2644
  %v2646 = vpop.f32.mrb[0].mxu0
  %v2647 = vpop.f32.mrb[0].mxu0
  %v2648 = vadd.f32 0.0, %v2647
  %v2649 = vpop.f32.mrb[0].mxu0
  %2650 = vdwg.mxu0
  %v2651 = vadd.f32 %v2495, %v2637
  %v2652 = vadd.f32 %v2496, %v2640
  %v2653 = vadd.f32 %v2497, %v2645
  %v2654 = vadd.f32 %v2498, %v2648
  %s2655 = scalar_lea.vmem %s4, 352
  %v2656 = vld [vmem:[%s2655] sm:$0xff]
  %v2657 = vld [vmem:[%s2655 + $0x8] sm:$0xff]
  %v2658 = vld [vmem:[%s2655 + $0x10] sm:$0xff]
  %v2659 = vld [vmem:[%s2655 + $0x18] sm:$0x11]
  %v2664 = vunpack.c.l.b16 %v2656
  %v2665 = vunpack.c.h.b16 %v2656
  %v2666 = vunpack.c.l.b16 %v2657
  %v2667 = vunpack.c.h.b16 %v2657
  %v2668 = vunpack.c.l.b16 %v2658
  %v2669 = vunpack.c.h.b16 %v2658
  %v2670 = vunpack.c.l.b16 %v2659
  %v2671 = vunpack.c.h.b16 %v2659
  %v2672 = vpack.c.b16 %v2666, %v2664
  %v2673 = vpack.c.b16 %v2667, %v2665
  %v2674 = vpack.c.b16 %v2670, %v2668
  %v2675 = vpack.c.b16 %v2671, %v2669
  %v2679 = vsel %vm970, %v2673, 0
  %v2682 = vsel %vm970, %v2675, 0
  %2684 = vmatprep.subr.bf16.mxu0 0
  %2685 = vmatpush1.bf16.msra.mxu0 %v876
  %2686 = vmatprep.subr.bf16.mxu0 0
  %2687 = vmatpush1.bf16.msra.mxu0 %v877
  %2688 = vmatprep.subr.bf16.mxu0 0
  %2689 = vmatpush1.bf16.msra.mxu0 %v878
  %2690 = vmatprep.subr.bf16.mxu0 0
  %2691 = vmatpush1.bf16.msra.mxu0 %v879
  %2692 = vmatprep.subr.bf16.mxu0 0
  %2693 = vmatpush1.bf16.msra.mxu0 %v880
  %2694 = vmatprep.subr.bf16.mxu0 0
  %2695 = vmatpush1.bf16.msra.mxu0 %v881
  %2696 = vmatprep.subr.bf16.mxu0 0
  %2697 = vmatpush1.bf16.msra.mxu0 %v882
  %2698 = vmatprep.subr.bf16.mxu0 0
  %2699 = vmatpush1.bf16.msra.mxu0 %v883
  %2700 = vmatprep.subr.bf16.mxu0 0
  %2701 = vmatpush1.bf16.msra.mxu0 %v884
  %2702 = vmatprep.subr.bf16.mxu0 0
  %2703 = vmatpush1.bf16.msra.mxu0 0
  %2704 = vmatprep.subr.bf16.mxu0 0
  %2705 = vmatpush1.bf16.msra.mxu0 0
  %2706 = vmatprep.subr.bf16.mxu0 0
  %2707 = vmatpush1.bf16.msra.mxu0 0
  %2708 = vmatprep.subr.bf16.mxu0 0
  %2709 = vmatpush1.bf16.msra.mxu0 0
  %2710 = vmatprep.subr.bf16.mxu0 0
  %2711 = vmatpush1.bf16.msra.mxu0 0
  %2712 = vmatprep.subr.bf16.mxu0 0
  %2713 = vmatpush1.bf16.msra.mxu0 0
  %2714 = vmatprep.subr.bf16.mxu0 0
  %2715 = vmatpush1.bf16.msra.mxu0 0
  %2716 = vmatprep.mubr.bf16.mxu0 %v2679
  %2717 = vmatmul.mubr.bf16.gmra.mrb[0].mxu0 %v2672
  %v2718 = vpop.f32.mrb[0].mxu0
  %v2719 = vadd.f32 0.0, %v2718
  %v2720 = vpop.f32.mrb[0].mxu0
  %v2721 = vpop.f32.mrb[0].mxu0
  %v2722 = vadd.f32 0.0, %v2721
  %v2723 = vpop.f32.mrb[0].mxu0
  %2724 = vmatprep.mubr.bf16.mxu0 %v2682
  %2725 = vmatmul.mubr.bf16.gmra.mrb[0].mxu0 %v2674
  %v2726 = vpop.f32.mrb[0].mxu0
  %v2727 = vadd.f32 0.0, %v2726
  %v2728 = vpop.f32.mrb[0].mxu0
  %v2729 = vpop.f32.mrb[0].mxu0
  %v2730 = vadd.f32 0.0, %v2729
  %v2731 = vpop.f32.mrb[0].mxu0
  %2732 = vdwg.mxu0
  %v2733 = vpack.c.bf16 %v2722, %v2719
  %v2734 = vpack.c.bf16 %v2730, %v2727
  %s2735 = scalar_lea.vmem %s5, 176
  %v2736 = vld [vmem:[%s2735] sm:$0xf]
  %v2737 = vld [vmem:[%s2735 + $0x4] sm:$0xf]
  %v2738 = vld [vmem:[%s2735 + $0x8] sm:$0xf]
  %v2739 = vld [vmem:[%s2735 + $0xc] sm:$0xf]
  %v2744 = vunpack.c.l.b16 %v2736
  %v2745 = vunpack.c.l.b16 %v2737
  %v2746 = vunpack.c.l.b16 %v2738
  %v2747 = vunpack.c.l.b16 %v2739
  %v2748 = vpack.c.b16 %v2745, %v2744
  %v2749 = vpack.c.b16 %v2747, %v2746
  %v2753 = vsel %vm599, %v2733, 0
  %v2756 = vsel %vm599, %v2734, 0
  %2758 = vmatprep.subr.bf16.mxu0 0
  %2759 = vmatpush1.bf16.msra.mxu0 %v2748
  %2760 = vmatprep.subr.bf16.mxu0 0
  %2761 = vmatpush1.bf16.msra.mxu0 %v2749
  %2762 = vmatprep.subr.bf16.mxu0 0
  %2763 = vmatpush1.bf16.msra.mxu0 0
  %2764 = vmatprep.subr.bf16.mxu0 0
  %2765 = vmatpush1.bf16.msra.mxu0 0
  %2766 = vmatprep.subr.bf16.mxu0 0
  %2767 = vmatpush1.bf16.msra.mxu0 0
  %2768 = vmatprep.subr.bf16.mxu0 0
  %2769 = vmatpush1.bf16.msra.mxu0 0
  %2770 = vmatprep.subr.bf16.mxu0 0
  %2771 = vmatpush1.bf16.msra.mxu0 0
  %2772 = vmatprep.subr.bf16.mxu0 0
  %2773 = vmatpush1.bf16.msra.mxu0 0
  %2774 = vmatprep.subr.bf16.mxu0 0
  %2775 = vmatpush1.bf16.msra.mxu0 0
  %2776 = vmatprep.subr.bf16.mxu0 0
  %2777 = vmatpush1.bf16.msra.mxu0 0
  %2778 = vmatprep.subr.bf16.mxu0 0
  %2779 = vmatpush1.bf16.msra.mxu0 0
  %2780 = vmatprep.subr.bf16.mxu0 0
  %2781 = vmatpush1.bf16.msra.mxu0 0
  %2782 = vmatprep.subr.bf16.mxu0 0
  %2783 = vmatpush1.bf16.msra.mxu0 0
  %2784 = vmatprep.subr.bf16.mxu0 0
  %2785 = vmatpush1.bf16.msra.mxu0 0
  %2786 = vmatprep.subr.bf16.mxu0 0
  %2787 = vmatpush1.bf16.msra.mxu0 0
  %2788 = vmatprep.subr.bf16.mxu0 0
  %2789 = vmatpush1.bf16.msra.mxu0 0
  %2790 = vmatprep.mubr.bf16.mxu0 0
  %2791 = vmatmul.mubr.bf16.gmra.mrb[0].mxu0 %v2753
  %v2792 = vpop.f32.mrb[0].mxu0
  %v2793 = vadd.f32 0.0, %v2792
  %v2794 = vpop.f32.mrb[0].mxu0
  %v2795 = vpop.f32.mrb[0].mxu0
  %v2796 = vadd.f32 0.0, %v2795
  %v2797 = vpop.f32.mrb[0].mxu0
  %2798 = vmatprep.mubr.bf16.mxu0 0
  %2799 = vmatmul.mubr.bf16.gmra.mrb[0].mxu0 %v2756
  %v2800 = vpop.f32.mrb[0].mxu0
  %v2801 = vadd.f32 0.0, %v2800
  %v2802 = vpop.f32.mrb[0].mxu0
  %v2803 = vpop.f32.mrb[0].mxu0
  %v2804 = vadd.f32 0.0, %v2803
  %v2805 = vpop.f32.mrb[0].mxu0
  %2806 = vdwg.mxu0
  %v2807 = vadd.f32 %v2651, %v2793
  %v2808 = vadd.f32 %v2652, %v2796
  %v2809 = vadd.f32 %v2653, %v2801
  %v2810 = vadd.f32 %v2654, %v2804
  %s2811 = scalar_lea.vmem %s4, 384
  %v2812 = vld [vmem:[%s2811] sm:$0xff]
  %v2813 = vld [vmem:[%s2811 + $0x8] sm:$0xff]
  %v2814 = vld [vmem:[%s2811 + $0x10] sm:$0xff]
  %v2815 = vld [vmem:[%s2811 + $0x18] sm:$0x11]
  %v2820 = vunpack.c.l.b16 %v2812
  %v2821 = vunpack.c.h.b16 %v2812
  %v2822 = vunpack.c.l.b16 %v2813
  %v2823 = vunpack.c.h.b16 %v2813
  %v2824 = vunpack.c.l.b16 %v2814
  %v2825 = vunpack.c.h.b16 %v2814
  %v2826 = vunpack.c.l.b16 %v2815
  %v2827 = vunpack.c.h.b16 %v2815
  %v2828 = vpack.c.b16 %v2822, %v2820
  %v2829 = vpack.c.b16 %v2823, %v2821
  %v2830 = vpack.c.b16 %v2826, %v2824
  %v2831 = vpack.c.b16 %v2827, %v2825
  %v2835 = vsel %vm970, %v2829, 0
  %v2838 = vsel %vm970, %v2831, 0
  %2840 = vmatprep.subr.bf16.mxu0 0
  %2841 = vmatpush1.bf16.msra.mxu0 %v876
  %2842 = vmatprep.subr.bf16.mxu0 0
  %2843 = vmatpush1.bf16.msra.mxu0 %v877
  %2844 = vmatprep.subr.bf16.mxu0 0
  %2845 = vmatpush1.bf16.msra.mxu0 %v878
  %2846 = vmatprep.subr.bf16.mxu0 0
  %2847 = vmatpush1.bf16.msra.mxu0 %v879
  %2848 = vmatprep.subr.bf16.mxu0 0
  %2849 = vmatpush1.bf16.msra.mxu0 %v880
  %2850 = vmatprep.subr.bf16.mxu0 0
  %2851 = vmatpush1.bf16.msra.mxu0 %v881
  %2852 = vmatprep.subr.bf16.mxu0 0
  %2853 = vmatpush1.bf16.msra.mxu0 %v882
  %2854 = vmatprep.subr.bf16.mxu0 0
  %2855 = vmatpush1.bf16.msra.mxu0 %v883
  %2856 = vmatprep.subr.bf16.mxu0 0
  %2857 = vmatpush1.bf16.msra.mxu0 %v884
  %2858 = vmatprep.subr.bf16.mxu0 0
  %2859 = vmatpush1.bf16.msra.mxu0 0
  %2860 = vmatprep.subr.bf16.mxu0 0
  %2861 = vmatpush1.bf16.msra.mxu0 0
  %2862 = vmatprep.subr.bf16.mxu0 0
  %2863 = vmatpush1.bf16.msra.mxu0 0
  %2864 = vmatprep.subr.bf16.mxu0 0
  %2865 = vmatpush1.bf16.msra.mxu0 0
  %2866 = vmatprep.subr.bf16.mxu0 0
  %2867 = vmatpush1.bf16.msra.mxu0 0
  %2868 = vmatprep.subr.bf16.mxu0 0
  %2869 = vmatpush1.bf16.msra.mxu0 0
  %2870 = vmatprep.subr.bf16.mxu0 0
  %2871 = vmatpush1.bf16.msra.mxu0 0
  %2872 = vmatprep.mubr.bf16.mxu0 %v2835
  %2873 = vmatmul.mubr.bf16.gmra.mrb[0].mxu0 %v2828
  %v2874 = vpop.f32.mrb[0].mxu0
  %v2875 = vadd.f32 0.0, %v2874
  %v2876 = vpop.f32.mrb[0].mxu0
  %v2877 = vpop.f32.mrb[0].mxu0
  %v2878 = vadd.f32 0.0, %v2877
  %v2879 = vpop.f32.mrb[0].mxu0
  %2880 = vmatprep.mubr.bf16.mxu0 %v2838
  %2881 = vmatmul.mubr.bf16.gmra.mrb[0].mxu0 %v2830
  %v2882 = vpop.f32.mrb[0].mxu0
  %v2883 = vadd.f32 0.0, %v2882
  %v2884 = vpop.f32.mrb[0].mxu0
  %v2885 = vpop.f32.mrb[0].mxu0
  %v2886 = vadd.f32 0.0, %v2885
  %v2887 = vpop.f32.mrb[0].mxu0
  %2888 = vdwg.mxu0
  %v2889 = vpack.c.bf16 %v2878, %v2875
  %v2890 = vpack.c.bf16 %v2886, %v2883
  %s2891 = scalar_lea.vmem %s5, 192
  %v2892 = vld [vmem:[%s2891] sm:$0xf]
  %v2893 = vld [vmem:[%s2891 + $0x4] sm:$0xf]
  %v2894 = vld [vmem:[%s2891 + $0x8] sm:$0xf]
  %v2895 = vld [vmem:[%s2891 + $0xc] sm:$0xf]
  %v2900 = vunpack.c.l.b16 %v2892
  %v2901 = vunpack.c.l.b16 %v2893
  %v2902 = vunpack.c.l.b16 %v2894
  %v2903 = vunpack.c.l.b16 %v2895
  %v2904 = vpack.c.b16 %v2901, %v2900
  %v2905 = vpack.c.b16 %v2903, %v2902
  %v2909 = vsel %vm599, %v2889, 0
  %v2912 = vsel %vm599, %v2890, 0
  %2914 = vmatprep.subr.bf16.mxu0 0
  %2915 = vmatpush1.bf16.msra.mxu0 %v2904
  %2916 = vmatprep.subr.bf16.mxu0 0
  %2917 = vmatpush1.bf16.msra.mxu0 %v2905
  %2918 = vmatprep.subr.bf16.mxu0 0
  %2919 = vmatpush1.bf16.msra.mxu0 0
  %2920 = vmatprep.subr.bf16.mxu0 0
  %2921 = vmatpush1.bf16.msra.mxu0 0
  %2922 = vmatprep.subr.bf16.mxu0 0
  %2923 = vmatpush1.bf16.msra.mxu0 0
  %2924 = vmatprep.subr.bf16.mxu0 0
  %2925 = vmatpush1.bf16.msra.mxu0 0
  %2926 = vmatprep.subr.bf16.mxu0 0
  %2927 = vmatpush1.bf16.msra.mxu0 0
  %2928 = vmatprep.subr.bf16.mxu0 0
  %2929 = vmatpush1.bf16.msra.mxu0 0
  %2930 = vmatprep.subr.bf16.mxu0 0
  %2931 = vmatpush1.bf16.msra.mxu0 0
  %2932 = vmatprep.subr.bf16.mxu0 0
  %2933 = vmatpush1.bf16.msra.mxu0 0
  %2934 = vmatprep.subr.bf16.mxu0 0
  %2935 = vmatpush1.bf16.msra.mxu0 0
  %2936 = vmatprep.subr.bf16.mxu0 0
  %2937 = vmatpush1.bf16.msra.mxu0 0
  %2938 = vmatprep.subr.bf16.mxu0 0
  %2939 = vmatpush1.bf16.msra.mxu0 0
  %2940 = vmatprep.subr.bf16.mxu0 0
  %2941 = vmatpush1.bf16.msra.mxu0 0
  %2942 = vmatprep.subr.bf16.mxu0 0
  %2943 = vmatpush1.bf16.msra.mxu0 0
  %2944 = vmatprep.subr.bf16.mxu0 0
  %2945 = vmatpush1.bf16.msra.mxu0 0
  %2946 = vmatprep.mubr.bf16.mxu0 0
  %2947 = vmatmul.mubr.bf16.gmra.mrb[0].mxu0 %v2909
  %v2948 = vpop.f32.mrb[0].mxu0
  %v2949 = vadd.f32 0.0, %v2948
  %v2950 = vpop.f32.mrb[0].mxu0
  %v2951 = vpop.f32.mrb[0].mxu0
  %v2952 = vadd.f32 0.0, %v2951
  %v2953 = vpop.f32.mrb[0].mxu0
  %2954 = vmatprep.mubr.bf16.mxu0 0
  %2955 = vmatmul.mubr.bf16.gmra.mrb[0].mxu0 %v2912
  %v2956 = vpop.f32.mrb[0].mxu0
  %v2957 = vadd.f32 0.0, %v2956
  %v2958 = vpop.f32.mrb[0].mxu0
  %v2959 = vpop.f32.mrb[0].mxu0
  %v2960 = vadd.f32 0.0, %v2959
  %v2961 = vpop.f32.mrb[0].mxu0
  %2962 = vdwg.mxu0
  %v2963 = vadd.f32 %v2807, %v2949
  %v2964 = vadd.f32 %v2808, %v2952
  %v2965 = vadd.f32 %v2809, %v2957
  %v2966 = vadd.f32 %v2810, %v2960
  %s2967 = scalar_lea.vmem %s4, 416
  %v2968 = vld [vmem:[%s2967] sm:$0xff]
  %v2969 = vld [vmem:[%s2967 + $0x8] sm:$0xff]
  %v2970 = vld [vmem:[%s2967 + $0x10] sm:$0xff]
  %v2971 = vld [vmem:[%s2967 + $0x18] sm:$0x11]
  %v2976 = vunpack.c.l.b16 %v2968
  %v2977 = vunpack.c.h.b16 %v2968
  %v2978 = vunpack.c.l.b16 %v2969
  %v2979 = vunpack.c.h.b16 %v2969
  %v2980 = vunpack.c.l.b16 %v2970
  %v2981 = vunpack.c.h.b16 %v2970
  %v2982 = vunpack.c.l.b16 %v2971
  %v2983 = vunpack.c.h.b16 %v2971
  %v2984 = vpack.c.b16 %v2978, %v2976
  %v2985 = vpack.c.b16 %v2979, %v2977
  %v2986 = vpack.c.b16 %v2982, %v2980
  %v2987 = vpack.c.b16 %v2983, %v2981
  %v2991 = vsel %vm970, %v2985, 0
  %v2994 = vsel %vm970, %v2987, 0
  %2996 = vmatprep.subr.bf16.mxu0 0
  %2997 = vmatpush1.bf16.msra.mxu0 %v876
  %2998 = vmatprep.subr.bf16.mxu0 0
  %2999 = vmatpush1.bf16.msra.mxu0 %v877
  %3000 = vmatprep.subr.bf16.mxu0 0
  %3001 = vmatpush1.bf16.msra.mxu0 %v878
  %3002 = vmatprep.subr.bf16.mxu0 0
  %3003 = vmatpush1.bf16.msra.mxu0 %v879
  %3004 = vmatprep.subr.bf16.mxu0 0
  %3005 = vmatpush1.bf16.msra.mxu0 %v880
  %3006 = vmatprep.subr.bf16.mxu0 0
  %3007 = vmatpush1.bf16.msra.mxu0 %v881
  %3008 = vmatprep.subr.bf16.mxu0 0
  %3009 = vmatpush1.bf16.msra.mxu0 %v882
  %3010 = vmatprep.subr.bf16.mxu0 0
  %3011 = vmatpush1.bf16.msra.mxu0 %v883
  %3012 = vmatprep.subr.bf16.mxu0 0
  %3013 = vmatpush1.bf16.msra.mxu0 %v884
  %3014 = vmatprep.subr.bf16.mxu0 0
  %3015 = vmatpush1.bf16.msra.mxu0 0
  %3016 = vmatprep.subr.bf16.mxu0 0
  %3017 = vmatpush1.bf16.msra.mxu0 0
  %3018 = vmatprep.subr.bf16.mxu0 0
  %3019 = vmatpush1.bf16.msra.mxu0 0
  %3020 = vmatprep.subr.bf16.mxu0 0
  %3021 = vmatpush1.bf16.msra.mxu0 0
  %3022 = vmatprep.subr.bf16.mxu0 0
  %3023 = vmatpush1.bf16.msra.mxu0 0
  %3024 = vmatprep.subr.bf16.mxu0 0
  %3025 = vmatpush1.bf16.msra.mxu0 0
  %3026 = vmatprep.subr.bf16.mxu0 0
  %3027 = vmatpush1.bf16.msra.mxu0 0
  %3028 = vmatprep.mubr.bf16.mxu0 %v2991
  %3029 = vmatmul.mubr.bf16.gmra.mrb[0].mxu0 %v2984
  %v3030 = vpop.f32.mrb[0].mxu0
  %v3031 = vadd.f32 0.0, %v3030
  %v3032 = vpop.f32.mrb[0].mxu0
  %v3033 = vpop.f32.mrb[0].mxu0
  %v3034 = vadd.f32 0.0, %v3033
  %v3035 = vpop.f32.mrb[0].mxu0
  %3036 = vmatprep.mubr.bf16.mxu0 %v2994
  %3037 = vmatmul.mubr.bf16.gmra.mrb[0].mxu0 %v2986
  %v3038 = vpop.f32.mrb[0].mxu0
  %v3039 = vadd.f32 0.0, %v3038
  %v3040 = vpop.f32.mrb[0].mxu0
  %v3041 = vpop.f32.mrb[0].mxu0
  %v3042 = vadd.f32 0.0, %v3041
  %v3043 = vpop.f32.mrb[0].mxu0
  %3044 = vdwg.mxu0
  %v3045 = vpack.c.bf16 %v3034, %v3031
  %v3046 = vpack.c.bf16 %v3042, %v3039
  %s3047 = scalar_lea.vmem %s5, 208
  %v3048 = vld [vmem:[%s3047] sm:$0xf]
  %v3049 = vld [vmem:[%s3047 + $0x4] sm:$0xf]
  %v3050 = vld [vmem:[%s3047 + $0x8] sm:$0xf]
  %v3051 = vld [vmem:[%s3047 + $0xc] sm:$0xf]
  %v3056 = vunpack.c.l.b16 %v3048
  %v3057 = vunpack.c.l.b16 %v3049
  %v3058 = vunpack.c.l.b16 %v3050
  %v3059 = vunpack.c.l.b16 %v3051
  %v3060 = vpack.c.b16 %v3057, %v3056
  %v3061 = vpack.c.b16 %v3059, %v3058
  %v3065 = vsel %vm599, %v3045, 0
  %v3068 = vsel %vm599, %v3046, 0
  %3070 = vmatprep.subr.bf16.mxu0 0
  %3071 = vmatpush1.bf16.msra.mxu0 %v3060
  %3072 = vmatprep.subr.bf16.mxu0 0
  %3073 = vmatpush1.bf16.msra.mxu0 %v3061
  %3074 = vmatprep.subr.bf16.mxu0 0
  %3075 = vmatpush1.bf16.msra.mxu0 0
  %3076 = vmatprep.subr.bf16.mxu0 0
  %3077 = vmatpush1.bf16.msra.mxu0 0
  %3078 = vmatprep.subr.bf16.mxu0 0
  %3079 = vmatpush1.bf16.msra.mxu0 0
  %3080 = vmatprep.subr.bf16.mxu0 0
  %3081 = vmatpush1.bf16.msra.mxu0 0
  %3082 = vmatprep.subr.bf16.mxu0 0
  %3083 = vmatpush1.bf16.msra.mxu0 0
  %3084 = vmatprep.subr.bf16.mxu0 0
  %3085 = vmatpush1.bf16.msra.mxu0 0
  %3086 = vmatprep.subr.bf16.mxu0 0
  %3087 = vmatpush1.bf16.msra.mxu0 0
  %3088 = vmatprep.subr.bf16.mxu0 0
  %3089 = vmatpush1.bf16.msra.mxu0 0
  %3090 = vmatprep.subr.bf16.mxu0 0
  %3091 = vmatpush1.bf16.msra.mxu0 0
  %3092 = vmatprep.subr.bf16.mxu0 0
  %3093 = vmatpush1.bf16.msra.mxu0 0
  %3094 = vmatprep.subr.bf16.mxu0 0
  %3095 = vmatpush1.bf16.msra.mxu0 0
  %3096 = vmatprep.subr.bf16.mxu0 0
  %3097 = vmatpush1.bf16.msra.mxu0 0
  %3098 = vmatprep.subr.bf16.mxu0 0
  %3099 = vmatpush1.bf16.msra.mxu0 0
  %3100 = vmatprep.subr.bf16.mxu0 0
  %3101 = vmatpush1.bf16.msra.mxu0 0
  %3102 = vmatprep.mubr.bf16.mxu0 0
  %3103 = vmatmul.mubr.bf16.gmra.mrb[0].mxu0 %v3065
  %v3104 = vpop.f32.mrb[0].mxu0
  %v3105 = vadd.f32 0.0, %v3104
  %v3106 = vpop.f32.mrb[0].mxu0
  %v3107 = vpop.f32.mrb[0].mxu0
  %v3108 = vadd.f32 0.0, %v3107
  %v3109 = vpop.f32.mrb[0].mxu0
  %3110 = vmatprep.mubr.bf16.mxu0 0
  %3111 = vmatmul.mubr.bf16.gmra.mrb[0].mxu0 %v3068
  %v3112 = vpop.f32.mrb[0].mxu0
  %v3113 = vadd.f32 0.0, %v3112
  %v3114 = vpop.f32.mrb[0].mxu0
  %v3115 = vpop.f32.mrb[0].mxu0
  %v3116 = vadd.f32 0.0, %v3115
  %v3117 = vpop.f32.mrb[0].mxu0
  %3118 = vdwg.mxu0
  %v3119 = vadd.f32 %v2963, %v3105
  %v3120 = vadd.f32 %v2964, %v3108
  %v3121 = vadd.f32 %v2965, %v3113
  %v3122 = vadd.f32 %v2966, %v3116
  %s3123 = scalar_lea.vmem %s4, 448
  %v3124 = vld [vmem:[%s3123] sm:$0xff]
  %v3125 = vld [vmem:[%s3123 + $0x8] sm:$0xff]
  %v3126 = vld [vmem:[%s3123 + $0x10] sm:$0xff]
  %v3127 = vld [vmem:[%s3123 + $0x18] sm:$0x11]
  %v3132 = vunpack.c.l.b16 %v3124
  %v3133 = vunpack.c.h.b16 %v3124
  %v3134 = vunpack.c.l.b16 %v3125
  %v3135 = vunpack.c.h.b16 %v3125
  %v3136 = vunpack.c.l.b16 %v3126
  %v3137 = vunpack.c.h.b16 %v3126
  %v3138 = vunpack.c.l.b16 %v3127
  %v3139 = vunpack.c.h.b16 %v3127
  %v3140 = vpack.c.b16 %v3134, %v3132
  %v3141 = vpack.c.b16 %v3135, %v3133
  %v3142 = vpack.c.b16 %v3138, %v3136
  %v3143 = vpack.c.b16 %v3139, %v3137
  %v3147 = vsel %vm970, %v3141, 0
  %v3150 = vsel %vm970, %v3143, 0
  %3152 = vmatprep.subr.bf16.mxu0 0
  %3153 = vmatpush1.bf16.msra.mxu0 %v876
  %3154 = vmatprep.subr.bf16.mxu0 0
  %3155 = vmatpush1.bf16.msra.mxu0 %v877
  %3156 = vmatprep.subr.bf16.mxu0 0
  %3157 = vmatpush1.bf16.msra.mxu0 %v878
  %3158 = vmatprep.subr.bf16.mxu0 0
  %3159 = vmatpush1.bf16.msra.mxu0 %v879
  %3160 = vmatprep.subr.bf16.mxu0 0
  %3161 = vmatpush1.bf16.msra.mxu0 %v880
  %3162 = vmatprep.subr.bf16.mxu0 0
  %3163 = vmatpush1.bf16.msra.mxu0 %v881
  %3164 = vmatprep.subr.bf16.mxu0 0
  %3165 = vmatpush1.bf16.msra.mxu0 %v882
  %3166 = vmatprep.subr.bf16.mxu0 0
  %3167 = vmatpush1.bf16.msra.mxu0 %v883
  %3168 = vmatprep.subr.bf16.mxu0 0
  %3169 = vmatpush1.bf16.msra.mxu0 %v884
  %3170 = vmatprep.subr.bf16.mxu0 0
  %3171 = vmatpush1.bf16.msra.mxu0 0
  %3172 = vmatprep.subr.bf16.mxu0 0
  %3173 = vmatpush1.bf16.msra.mxu0 0
  %3174 = vmatprep.subr.bf16.mxu0 0
  %3175 = vmatpush1.bf16.msra.mxu0 0
  %3176 = vmatprep.subr.bf16.mxu0 0
  %3177 = vmatpush1.bf16.msra.mxu0 0
  %3178 = vmatprep.subr.bf16.mxu0 0
  %3179 = vmatpush1.bf16.msra.mxu0 0
  %3180 = vmatprep.subr.bf16.mxu0 0
  %3181 = vmatpush1.bf16.msra.mxu0 0
  %3182 = vmatprep.subr.bf16.mxu0 0
  %3183 = vmatpush1.bf16.msra.mxu0 0
  %3184 = vmatprep.mubr.bf16.mxu0 %v3147
  %3185 = vmatmul.mubr.bf16.gmra.mrb[0].mxu0 %v3140
  %v3186 = vpop.f32.mrb[0].mxu0
  %v3187 = vadd.f32 0.0, %v3186
  %v3188 = vpop.f32.mrb[0].mxu0
  %v3189 = vpop.f32.mrb[0].mxu0
  %v3190 = vadd.f32 0.0, %v3189
  %v3191 = vpop.f32.mrb[0].mxu0
  %3192 = vmatprep.mubr.bf16.mxu0 %v3150
  %3193 = vmatmul.mubr.bf16.gmra.mrb[0].mxu0 %v3142
  %v3194 = vpop.f32.mrb[0].mxu0
  %v3195 = vadd.f32 0.0, %v3194
  %v3196 = vpop.f32.mrb[0].mxu0
  %v3197 = vpop.f32.mrb[0].mxu0
  %v3198 = vadd.f32 0.0, %v3197
  %v3199 = vpop.f32.mrb[0].mxu0
  %3200 = vdwg.mxu0
  %v3201 = vpack.c.bf16 %v3190, %v3187
  %v3202 = vpack.c.bf16 %v3198, %v3195
  %s3203 = scalar_lea.vmem %s5, 224
  %v3204 = vld [vmem:[%s3203] sm:$0xf]
  %v3205 = vld [vmem:[%s3203 + $0x4] sm:$0xf]
  %v3206 = vld [vmem:[%s3203 + $0x8] sm:$0xf]
  %v3207 = vld [vmem:[%s3203 + $0xc] sm:$0xf]
  %v3212 = vunpack.c.l.b16 %v3204
  %v3213 = vunpack.c.l.b16 %v3205
  %v3214 = vunpack.c.l.b16 %v3206
  %v3215 = vunpack.c.l.b16 %v3207
  %v3216 = vpack.c.b16 %v3213, %v3212
  %v3217 = vpack.c.b16 %v3215, %v3214
  %v3221 = vsel %vm599, %v3201, 0
  %v3224 = vsel %vm599, %v3202, 0
  %3226 = vmatprep.subr.bf16.mxu0 0
  %3227 = vmatpush1.bf16.msra.mxu0 %v3216
  %3228 = vmatprep.subr.bf16.mxu0 0
  %3229 = vmatpush1.bf16.msra.mxu0 %v3217
  %3230 = vmatprep.subr.bf16.mxu0 0
  %3231 = vmatpush1.bf16.msra.mxu0 0
  %3232 = vmatprep.subr.bf16.mxu0 0
  %3233 = vmatpush1.bf16.msra.mxu0 0
  %3234 = vmatprep.subr.bf16.mxu0 0
  %3235 = vmatpush1.bf16.msra.mxu0 0
  %3236 = vmatprep.subr.bf16.mxu0 0
  %3237 = vmatpush1.bf16.msra.mxu0 0
  %3238 = vmatprep.subr.bf16.mxu0 0
  %3239 = vmatpush1.bf16.msra.mxu0 0
  %3240 = vmatprep.subr.bf16.mxu0 0
  %3241 = vmatpush1.bf16.msra.mxu0 0
  %3242 = vmatprep.subr.bf16.mxu0 0
  %3243 = vmatpush1.bf16.msra.mxu0 0
  %3244 = vmatprep.subr.bf16.mxu0 0
  %3245 = vmatpush1.bf16.msra.mxu0 0
  %3246 = vmatprep.subr.bf16.mxu0 0
  %3247 = vmatpush1.bf16.msra.mxu0 0
  %3248 = vmatprep.subr.bf16.mxu0 0
  %3249 = vmatpush1.bf16.msra.mxu0 0
  %3250 = vmatprep.subr.bf16.mxu0 0
  %3251 = vmatpush1.bf16.msra.mxu0 0
  %3252 = vmatprep.subr.bf16.mxu0 0
  %3253 = vmatpush1.bf16.msra.mxu0 0
  %3254 = vmatprep.subr.bf16.mxu0 0
  %3255 = vmatpush1.bf16.msra.mxu0 0
  %3256 = vmatprep.subr.bf16.mxu0 0
  %3257 = vmatpush1.bf16.msra.mxu0 0
  %3258 = vmatprep.mubr.bf16.mxu0 0
  %3259 = vmatmul.mubr.bf16.gmra.mrb[0].mxu0 %v3221
  %v3260 = vpop.f32.mrb[0].mxu0
  %v3261 = vadd.f32 0.0, %v3260
  %v3262 = vpop.f32.mrb[0].mxu0
  %v3263 = vpop.f32.mrb[0].mxu0
  %v3264 = vadd.f32 0.0, %v3263
  %v3265 = vpop.f32.mrb[0].mxu0
  %3266 = vmatprep.mubr.bf16.mxu0 0
  %3267 = vmatmul.mubr.bf16.gmra.mrb[0].mxu0 %v3224
  %v3268 = vpop.f32.mrb[0].mxu0
  %v3269 = vadd.f32 0.0, %v3268
  %v3270 = vpop.f32.mrb[0].mxu0
  %v3271 = vpop.f32.mrb[0].mxu0
  %v3272 = vadd.f32 0.0, %v3271
  %v3273 = vpop.f32.mrb[0].mxu0
  %3274 = vdwg.mxu0
  %v3275 = vadd.f32 %v3119, %v3261
  %v3276 = vadd.f32 %v3120, %v3264
  %v3277 = vadd.f32 %v3121, %v3269
  %v3278 = vadd.f32 %v3122, %v3272
  %s3279 = scalar_lea.vmem %s4, 480
  %v3280 = vld [vmem:[%s3279] sm:$0xff]
  %v3281 = vld [vmem:[%s3279 + $0x8] sm:$0xff]
  %v3282 = vld [vmem:[%s3279 + $0x10] sm:$0xff]
  %v3283 = vld [vmem:[%s3279 + $0x18] sm:$0x11]
  %v3288 = vunpack.c.l.b16 %v3280
  %v3289 = vunpack.c.h.b16 %v3280
  %v3290 = vunpack.c.l.b16 %v3281
  %v3291 = vunpack.c.h.b16 %v3281
  %v3292 = vunpack.c.l.b16 %v3282
  %v3293 = vunpack.c.h.b16 %v3282
  %v3294 = vunpack.c.l.b16 %v3283
  %v3295 = vunpack.c.h.b16 %v3283
  %v3296 = vpack.c.b16 %v3290, %v3288
  %v3297 = vpack.c.b16 %v3291, %v3289
  %v3298 = vpack.c.b16 %v3294, %v3292
  %v3299 = vpack.c.b16 %v3295, %v3293
  %v3303 = vsel %vm970, %v3297, 0
  %v3306 = vsel %vm970, %v3299, 0
  %3308 = vmatprep.subr.bf16.mxu0 0
  %3309 = vmatpush1.bf16.msra.mxu0 %v876
  %3310 = vmatprep.subr.bf16.mxu0 0
  %3311 = vmatpush1.bf16.msra.mxu0 %v877
  %3312 = vmatprep.subr.bf16.mxu0 0
  %3313 = vmatpush1.bf16.msra.mxu0 %v878
  %3314 = vmatprep.subr.bf16.mxu0 0
  %3315 = vmatpush1.bf16.msra.mxu0 %v879
  %3316 = vmatprep.subr.bf16.mxu0 0
  %3317 = vmatpush1.bf16.msra.mxu0 %v880
  %3318 = vmatprep.subr.bf16.mxu0 0
  %3319 = vmatpush1.bf16.msra.mxu0 %v881
  %3320 = vmatprep.subr.bf16.mxu0 0
  %3321 = vmatpush1.bf16.msra.mxu0 %v882
  %3322 = vmatprep.subr.bf16.mxu0 0
  %3323 = vmatpush1.bf16.msra.mxu0 %v883
  %3324 = vmatprep.subr.bf16.mxu0 0
  %3325 = vmatpush1.bf16.msra.mxu0 %v884
  %3326 = vmatprep.subr.bf16.mxu0 0
  %3327 = vmatpush1.bf16.msra.mxu0 0
  %3328 = vmatprep.subr.bf16.mxu0 0
  %3329 = vmatpush1.bf16.msra.mxu0 0
  %3330 = vmatprep.subr.bf16.mxu0 0
  %3331 = vmatpush1.bf16.msra.mxu0 0
  %3332 = vmatprep.subr.bf16.mxu0 0
  %3333 = vmatpush1.bf16.msra.mxu0 0
  %3334 = vmatprep.subr.bf16.mxu0 0
  %3335 = vmatpush1.bf16.msra.mxu0 0
  %3336 = vmatprep.subr.bf16.mxu0 0
  %3337 = vmatpush1.bf16.msra.mxu0 0
  %3338 = vmatprep.subr.bf16.mxu0 0
  %3339 = vmatpush1.bf16.msra.mxu0 0
  %3340 = vmatprep.mubr.bf16.mxu0 %v3303
  %3341 = vmatmul.mubr.bf16.gmra.mrb[0].mxu0 %v3296
  %v3342 = vpop.f32.mrb[0].mxu0
  %v3343 = vadd.f32 0.0, %v3342
  %v3344 = vpop.f32.mrb[0].mxu0
  %v3345 = vpop.f32.mrb[0].mxu0
  %v3346 = vadd.f32 0.0, %v3345
  %v3347 = vpop.f32.mrb[0].mxu0
  %3348 = vmatprep.mubr.bf16.mxu0 %v3306
  %3349 = vmatmul.mubr.bf16.gmra.mrb[0].mxu0 %v3298
  %v3350 = vpop.f32.mrb[0].mxu0
  %v3351 = vadd.f32 0.0, %v3350
  %v3352 = vpop.f32.mrb[0].mxu0
  %v3353 = vpop.f32.mrb[0].mxu0
  %v3354 = vadd.f32 0.0, %v3353
  %v3355 = vpop.f32.mrb[0].mxu0
  %3356 = vdwg.mxu0
  %v3357 = vpack.c.bf16 %v3346, %v3343
  %v3358 = vpack.c.bf16 %v3354, %v3351
  %s3359 = scalar_lea.vmem %s5, 240
  %v3360 = vld [vmem:[%s3359] sm:$0xf]
  %v3361 = vld [vmem:[%s3359 + $0x4] sm:$0xf]
  %v3362 = vld [vmem:[%s3359 + $0x8] sm:$0xf]
  %v3363 = vld [vmem:[%s3359 + $0xc] sm:$0xf]
  %v3368 = vunpack.c.l.b16 %v3360
  %v3369 = vunpack.c.l.b16 %v3361
  %v3370 = vunpack.c.l.b16 %v3362
  %v3371 = vunpack.c.l.b16 %v3363
  %v3372 = vpack.c.b16 %v3369, %v3368
  %v3373 = vpack.c.b16 %v3371, %v3370
  %v3377 = vsel %vm599, %v3357, 0
  %v3380 = vsel %vm599, %v3358, 0
  %3382 = vmatprep.subr.bf16.mxu0 0
  %3383 = vmatpush1.bf16.msra.mxu0 %v3372
  %3384 = vmatprep.subr.bf16.mxu0 0
  %3385 = vmatpush1.bf16.msra.mxu0 %v3373
  %3386 = vmatprep.subr.bf16.mxu0 0
  %3387 = vmatpush1.bf16.msra.mxu0 0
  %3388 = vmatprep.subr.bf16.mxu0 0
  %3389 = vmatpush1.bf16.msra.mxu0 0
  %3390 = vmatprep.subr.bf16.mxu0 0
  %3391 = vmatpush1.bf16.msra.mxu0 0
  %3392 = vmatprep.subr.bf16.mxu0 0
  %3393 = vmatpush1.bf16.msra.mxu0 0
  %3394 = vmatprep.subr.bf16.mxu0 0
  %3395 = vmatpush1.bf16.msra.mxu0 0
  %3396 = vmatprep.subr.bf16.mxu0 0
  %3397 = vmatpush1.bf16.msra.mxu0 0
  %3398 = vmatprep.subr.bf16.mxu0 0
  %3399 = vmatpush1.bf16.msra.mxu0 0
  %3400 = vmatprep.subr.bf16.mxu0 0
  %3401 = vmatpush1.bf16.msra.mxu0 0
  %3402 = vmatprep.subr.bf16.mxu0 0
  %3403 = vmatpush1.bf16.msra.mxu0 0
  %3404 = vmatprep.subr.bf16.mxu0 0
  %3405 = vmatpush1.bf16.msra.mxu0 0
  %3406 = vmatprep.subr.bf16.mxu0 0
  %3407 = vmatpush1.bf16.msra.mxu0 0
  %3408 = vmatprep.subr.bf16.mxu0 0
  %3409 = vmatpush1.bf16.msra.mxu0 0
  %3410 = vmatprep.subr.bf16.mxu0 0
  %3411 = vmatpush1.bf16.msra.mxu0 0
  %3412 = vmatprep.subr.bf16.mxu0 0
  %3413 = vmatpush1.bf16.msra.mxu0 0
  %3414 = vmatprep.mubr.bf16.mxu0 0
  %3415 = vmatmul.mubr.bf16.gmra.mrb[0].mxu0 %v3377
  %v3416 = vpop.f32.mrb[0].mxu0
  %v3417 = vadd.f32 0.0, %v3416
  %v3418 = vpop.f32.mrb[0].mxu0
  %v3419 = vpop.f32.mrb[0].mxu0
  %v3420 = vadd.f32 0.0, %v3419
  %v3421 = vpop.f32.mrb[0].mxu0
  %3422 = vmatprep.mubr.bf16.mxu0 0
  %3423 = vmatmul.mubr.bf16.gmra.mrb[0].mxu0 %v3380
  %v3424 = vpop.f32.mrb[0].mxu0
  %v3425 = vadd.f32 0.0, %v3424
  %v3426 = vpop.f32.mrb[0].mxu0
  %v3427 = vpop.f32.mrb[0].mxu0
  %v3428 = vadd.f32 0.0, %v3427
  %v3429 = vpop.f32.mrb[0].mxu0
  %3430 = vdwg.mxu0
  %v3431 = vadd.f32 %v3275, %v3417
  %v3432 = vadd.f32 %v3276, %v3420
  %v3433 = vadd.f32 %v3277, %v3425
  %v3434 = vadd.f32 %v3278, %v3428
  %3435 = vmatprep.subr.bf16.mxu0 0
  %3436 = vmatpush1.bf16.msra.mxu0 %v939
  %3437 = vmatprep.subr.bf16.mxu0 0
  %3438 = vmatpush1.bf16.msra.mxu0 %v940
  %3439 = vmatprep.subr.bf16.mxu0 0
  %3440 = vmatpush1.bf16.msra.mxu0 %v941
  %3441 = vmatprep.subr.bf16.mxu0 0
  %3442 = vmatpush1.bf16.msra.mxu0 %v942
  %3443 = vmatprep.subr.bf16.mxu0 0
  %3444 = vmatpush1.bf16.msra.mxu0 %v943
  %3445 = vmatprep.subr.bf16.mxu0 0
  %3446 = vmatpush1.bf16.msra.mxu0 %v944
  %3447 = vmatprep.subr.bf16.mxu0 0
  %3448 = vmatpush1.bf16.msra.mxu0 %v945
  %3449 = vmatprep.subr.bf16.mxu0 0
  %3450 = vmatpush1.bf16.msra.mxu0 %v946
  %3451 = vmatprep.subr.bf16.mxu0 0
  %3452 = vmatpush1.bf16.msra.mxu0 %v947
  %3453 = vmatprep.subr.bf16.mxu0 0
  %3454 = vmatpush1.bf16.msra.mxu0 0
  %3455 = vmatprep.subr.bf16.mxu0 0
  %3456 = vmatpush1.bf16.msra.mxu0 0
  %3457 = vmatprep.subr.bf16.mxu0 0
  %3458 = vmatpush1.bf16.msra.mxu0 0
  %3459 = vmatprep.subr.bf16.mxu0 0
  %3460 = vmatpush1.bf16.msra.mxu0 0
  %3461 = vmatprep.subr.bf16.mxu0 0
  %3462 = vmatpush1.bf16.msra.mxu0 0
  %3463 = vmatprep.subr.bf16.mxu0 0
  %3464 = vmatpush1.bf16.msra.mxu0 0
  %3465 = vmatprep.subr.bf16.mxu0 0
  %3466 = vmatpush1.bf16.msra.mxu0 0
  %3467 = vmatprep.mubr.bf16.mxu0 %v972
  %3468 = vmatmul.mubr.bf16.gmra.mrb[0].mxu0 %v964
  %v3469 = vpop.f32.mrb[0].mxu0
  %v3470 = vadd.f32 0.0, %v3469
  %v3471 = vpop.f32.mrb[0].mxu0
  %v3472 = vpop.f32.mrb[0].mxu0
  %v3473 = vadd.f32 0.0, %v3472
  %v3474 = vpop.f32.mrb[0].mxu0
  %3475 = vmatprep.mubr.bf16.mxu0 %v975
  %3476 = vmatmul.mubr.bf16.gmra.mrb[0].mxu0 %v966
  %v3477 = vpop.f32.mrb[0].mxu0
  %v3478 = vadd.f32 0.0, %v3477
  %v3479 = vpop.f32.mrb[0].mxu0
  %v3480 = vpop.f32.mrb[0].mxu0
  %v3481 = vadd.f32 0.0, %v3480
  %v3482 = vpop.f32.mrb[0].mxu0
  %3483 = vdwg.mxu0
  %v3484 = vpack.c.bf16 %v3473, %v3470
  %v3485 = vpack.c.bf16 %v3481, %v3478
  %3486 = vmatprep.subr.bf16.mxu0 0
  %3487 = vmatpush1.bf16.msra.mxu0 %v939
  %3488 = vmatprep.subr.bf16.mxu0 0
  %3489 = vmatpush1.bf16.msra.mxu0 %v940
  %3490 = vmatprep.subr.bf16.mxu0 0
  %3491 = vmatpush1.bf16.msra.mxu0 %v941
  %3492 = vmatprep.subr.bf16.mxu0 0
  %3493 = vmatpush1.bf16.msra.mxu0 %v942
  %3494 = vmatprep.subr.bf16.mxu0 0
  %3495 = vmatpush1.bf16.msra.mxu0 %v943
  %3496 = vmatprep.subr.bf16.mxu0 0
  %3497 = vmatpush1.bf16.msra.mxu0 %v944
  %3498 = vmatprep.subr.bf16.mxu0 0
  %3499 = vmatpush1.bf16.msra.mxu0 %v945
  %3500 = vmatprep.subr.bf16.mxu0 0
  %3501 = vmatpush1.bf16.msra.mxu0 %v946
  %3502 = vmatprep.subr.bf16.mxu0 0
  %3503 = vmatpush1.bf16.msra.mxu0 %v947
  %3504 = vmatprep.subr.bf16.mxu0 0
  %3505 = vmatpush1.bf16.msra.mxu0 0
  %3506 = vmatprep.subr.bf16.mxu0 0
  %3507 = vmatpush1.bf16.msra.mxu0 0
  %3508 = vmatprep.subr.bf16.mxu0 0
  %3509 = vmatpush1.bf16.msra.mxu0 0
  %3510 = vmatprep.subr.bf16.mxu0 0
  %3511 = vmatpush1.bf16.msra.mxu0 0
  %3512 = vmatprep.subr.bf16.mxu0 0
  %3513 = vmatpush1.bf16.msra.mxu0 0
  %3514 = vmatprep.subr.bf16.mxu0 0
  %3515 = vmatpush1.bf16.msra.mxu0 0
  %3516 = vmatprep.subr.bf16.mxu0 0
  %3517 = vmatpush1.bf16.msra.mxu0 0
  %3518 = vmatprep.mubr.bf16.mxu0 %v1056
  %3519 = vmatmul.mubr.bf16.gmra.mrb[0].mxu0 %v1049
  %v3520 = vpop.f32.mrb[0].mxu0
  %v3521 = vadd.f32 0.0, %v3520
  %v3522 = vpop.f32.mrb[0].mxu0
  %v3523 = vpop.f32.mrb[0].mxu0
  %v3524 = vadd.f32 0.0, %v3523
  %v3525 = vpop.f32.mrb[0].mxu0
  %3526 = vmatprep.mubr.bf16.mxu0 %v1059
  %3527 = vmatmul.mubr.bf16.gmra.mrb[0].mxu0 %v1051
  %v3528 = vpop.f32.mrb[0].mxu0
  %v3529 = vadd.f32 0.0, %v3528
  %v3530 = vpop.f32.mrb[0].mxu0
  %v3531 = vpop.f32.mrb[0].mxu0
  %v3532 = vadd.f32 0.0, %v3531
  %v3533 = vpop.f32.mrb[0].mxu0
  %3534 = vdwg.mxu0
  %v3535 = vpack.c.bf16 %v3524, %v3521
  %v3536 = vpack.c.bf16 %v3532, %v3529
  %v3538 = vsel %vm599, %v3535, 0
  %v3541 = vsel %vm599, %v3536, 0
  %3543 = vmatprep.subr.bf16.mxu0 0
  %3544 = vmatpush1.bf16.msra.mxu0 %v1125
  %3545 = vmatprep.subr.bf16.mxu0 0
  %3546 = vmatpush1.bf16.msra.mxu0 %v1126
  %3547 = vmatprep.subr.bf16.mxu0 0
  %3548 = vmatpush1.bf16.msra.mxu0 0
  %3549 = vmatprep.subr.bf16.mxu0 0
  %3550 = vmatpush1.bf16.msra.mxu0 0
  %3551 = vmatprep.subr.bf16.mxu0 0
  %3552 = vmatpush1.bf16.msra.mxu0 0
  %3553 = vmatprep.subr.bf16.mxu0 0
  %3554 = vmatpush1.bf16.msra.mxu0 0
  %3555 = vmatprep.subr.bf16.mxu0 0
  %3556 = vmatpush1.bf16.msra.mxu0 0
  %3557 = vmatprep.subr.bf16.mxu0 0
  %3558 = vmatpush1.bf16.msra.mxu0 0
  %3559 = vmatprep.subr.bf16.mxu0 0
  %3560 = vmatpush1.bf16.msra.mxu0 0
  %3561 = vmatprep.subr.bf16.mxu0 0
  %3562 = vmatpush1.bf16.msra.mxu0 0
  %3563 = vmatprep.subr.bf16.mxu0 0
  %3564 = vmatpush1.bf16.msra.mxu0 0
  %3565 = vmatprep.subr.bf16.mxu0 0
  %3566 = vmatpush1.bf16.msra.mxu0 0
  %3567 = vmatprep.subr.bf16.mxu0 0
  %3568 = vmatpush1.bf16.msra.mxu0 0
  %3569 = vmatprep.subr.bf16.mxu0 0
  %3570 = vmatpush1.bf16.msra.mxu0 0
  %3571 = vmatprep.subr.bf16.mxu0 0
  %3572 = vmatpush1.bf16.msra.mxu0 0
  %3573 = vmatprep.subr.bf16.mxu0 0
  %3574 = vmatpush1.bf16.msra.mxu0 0
  %3575 = vmatprep.mubr.bf16.mxu0 0
  %3576 = vmatmul.mubr.bf16.gmra.mrb[0].mxu0 %v3538
  %v3577 = vpop.f32.mrb[0].mxu0
  %v3578 = vadd.f32 0.0, %v3577
  %v3579 = vpop.f32.mrb[0].mxu0
  %v3580 = vpop.f32.mrb[0].mxu0
  %v3581 = vadd.f32 0.0, %v3580
  %v3582 = vpop.f32.mrb[0].mxu0
  %3583 = vmatprep.mubr.bf16.mxu0 0
  %3584 = vmatmul.mubr.bf16.gmra.mrb[0].mxu0 %v3541
  %v3585 = vpop.f32.mrb[0].mxu0
  %v3586 = vadd.f32 0.0, %v3585
  %v3587 = vpop.f32.mrb[0].mxu0
  %v3588 = vpop.f32.mrb[0].mxu0
  %v3589 = vadd.f32 0.0, %v3588
  %v3590 = vpop.f32.mrb[0].mxu0
  %3591 = vdwg.mxu0
  %v3593 = vsel %vm599, %v3484, 0
  %v3596 = vsel %vm599, %v3485, 0
  %3598 = vmatprep.subr.bf16.mxu0 0
  %3599 = vmatpush1.bf16.msra.mxu0 %v1192
  %3600 = vmatprep.subr.bf16.mxu0 0
  %3601 = vmatpush1.bf16.msra.mxu0 %v1193
  %3602 = vmatprep.subr.bf16.mxu0 0
  %3603 = vmatpush1.bf16.msra.mxu0 0
  %3604 = vmatprep.subr.bf16.mxu0 0
  %3605 = vmatpush1.bf16.msra.mxu0 0
  %3606 = vmatprep.subr.bf16.mxu0 0
  %3607 = vmatpush1.bf16.msra.mxu0 0
  %3608 = vmatprep.subr.bf16.mxu0 0
  %3609 = vmatpush1.bf16.msra.mxu0 0
  %3610 = vmatprep.subr.bf16.mxu0 0
  %3611 = vmatpush1.bf16.msra.mxu0 0
  %3612 = vmatprep.subr.bf16.mxu0 0
  %3613 = vmatpush1.bf16.msra.mxu0 0
  %3614 = vmatprep.subr.bf16.mxu0 0
  %3615 = vmatpush1.bf16.msra.mxu0 0
  %3616 = vmatprep.subr.bf16.mxu0 0
  %3617 = vmatpush1.bf16.msra.mxu0 0
  %3618 = vmatprep.subr.bf16.mxu0 0
  %3619 = vmatpush1.bf16.msra.mxu0 0
  %3620 = vmatprep.subr.bf16.mxu0 0
  %3621 = vmatpush1.bf16.msra.mxu0 0
  %3622 = vmatprep.subr.bf16.mxu0 0
  %3623 = vmatpush1.bf16.msra.mxu0 0
  %3624 = vmatprep.subr.bf16.mxu0 0
  %3625 = vmatpush1.bf16.msra.mxu0 0
  %3626 = vmatprep.subr.bf16.mxu0 0
  %3627 = vmatpush1.bf16.msra.mxu0 0
  %3628 = vmatprep.subr.bf16.mxu0 0
  %3629 = vmatpush1.bf16.msra.mxu0 0
  %3630 = vmatprep.mubr.bf16.mxu0 0
  %3631 = vmatmul.mubr.bf16.gmra.mrb[0].mxu0 %v3593
  %v3632 = vpop.f32.mrb[0].mxu0
  %v3633 = vadd.f32 %v3578, %v3632
  %v3634 = vpop.f32.mrb[0].mxu0
  %v3635 = vpop.f32.mrb[0].mxu0
  %v3636 = vadd.f32 %v3581, %v3635
  %v3637 = vpop.f32.mrb[0].mxu0
  %3638 = vmatprep.mubr.bf16.mxu0 0
  %3639 = vmatmul.mubr.bf16.gmra.mrb[0].mxu0 %v3596
  %v3640 = vpop.f32.mrb[0].mxu0
  %v3641 = vadd.f32 %v3586, %v3640
  %v3642 = vpop.f32.mrb[0].mxu0
  %v3643 = vpop.f32.mrb[0].mxu0
  %v3644 = vadd.f32 %v3589, %v3643
  %v3645 = vpop.f32.mrb[0].mxu0
  %3646 = vdwg.mxu0
  %3647 = vmatprep.subr.bf16.mxu0 0
  %3648 = vmatpush1.bf16.msra.mxu0 %v939
  %3649 = vmatprep.subr.bf16.mxu0 0
  %3650 = vmatpush1.bf16.msra.mxu0 %v940
  %3651 = vmatprep.subr.bf16.mxu0 0
  %3652 = vmatpush1.bf16.msra.mxu0 %v941
  %3653 = vmatprep.subr.bf16.mxu0 0
  %3654 = vmatpush1.bf16.msra.mxu0 %v942
  %3655 = vmatprep.subr.bf16.mxu0 0
  %3656 = vmatpush1.bf16.msra.mxu0 %v943
  %3657 = vmatprep.subr.bf16.mxu0 0
  %3658 = vmatpush1.bf16.msra.mxu0 %v944
  %3659 = vmatprep.subr.bf16.mxu0 0
  %3660 = vmatpush1.bf16.msra.mxu0 %v945
  %3661 = vmatprep.subr.bf16.mxu0 0
  %3662 = vmatpush1.bf16.msra.mxu0 %v946
  %3663 = vmatprep.subr.bf16.mxu0 0
  %3664 = vmatpush1.bf16.msra.mxu0 %v947
  %3665 = vmatprep.subr.bf16.mxu0 0
  %3666 = vmatpush1.bf16.msra.mxu0 0
  %3667 = vmatprep.subr.bf16.mxu0 0
  %3668 = vmatpush1.bf16.msra.mxu0 0
  %3669 = vmatprep.subr.bf16.mxu0 0
  %3670 = vmatpush1.bf16.msra.mxu0 0
  %3671 = vmatprep.subr.bf16.mxu0 0
  %3672 = vmatpush1.bf16.msra.mxu0 0
  %3673 = vmatprep.subr.bf16.mxu0 0
  %3674 = vmatpush1.bf16.msra.mxu0 0
  %3675 = vmatprep.subr.bf16.mxu0 0
  %3676 = vmatpush1.bf16.msra.mxu0 0
  %3677 = vmatprep.subr.bf16.mxu0 0
  %3678 = vmatpush1.bf16.msra.mxu0 0
  %3679 = vmatprep.mubr.bf16.mxu0 %v1275
  %3680 = vmatmul.mubr.bf16.gmra.mrb[0].mxu0 %v1268
  %v3681 = vpop.f32.mrb[0].mxu0
  %v3682 = vadd.f32 0.0, %v3681
  %v3683 = vpop.f32.mrb[0].mxu0
  %v3684 = vpop.f32.mrb[0].mxu0
  %v3685 = vadd.f32 0.0, %v3684
  %v3686 = vpop.f32.mrb[0].mxu0
  %3687 = vmatprep.mubr.bf16.mxu0 %v1278
  %3688 = vmatmul.mubr.bf16.gmra.mrb[0].mxu0 %v1270
  %v3689 = vpop.f32.mrb[0].mxu0
  %v3690 = vadd.f32 0.0, %v3689
  %v3691 = vpop.f32.mrb[0].mxu0
  %v3692 = vpop.f32.mrb[0].mxu0
  %v3693 = vadd.f32 0.0, %v3692
  %v3694 = vpop.f32.mrb[0].mxu0
  %3695 = vdwg.mxu0
  %v3696 = vpack.c.bf16 %v3685, %v3682
  %v3697 = vpack.c.bf16 %v3693, %v3690
  %v3699 = vsel %vm599, %v3696, 0
  %v3702 = vsel %vm599, %v3697, 0
  %3704 = vmatprep.subr.bf16.mxu0 0
  %3705 = vmatpush1.bf16.msra.mxu0 %v1344
  %3706 = vmatprep.subr.bf16.mxu0 0
  %3707 = vmatpush1.bf16.msra.mxu0 %v1345
  %3708 = vmatprep.subr.bf16.mxu0 0
  %3709 = vmatpush1.bf16.msra.mxu0 0
  %3710 = vmatprep.subr.bf16.mxu0 0
  %3711 = vmatpush1.bf16.msra.mxu0 0
  %3712 = vmatprep.subr.bf16.mxu0 0
  %3713 = vmatpush1.bf16.msra.mxu0 0
  %3714 = vmatprep.subr.bf16.mxu0 0
  %3715 = vmatpush1.bf16.msra.mxu0 0
  %3716 = vmatprep.subr.bf16.mxu0 0
  %3717 = vmatpush1.bf16.msra.mxu0 0
  %3718 = vmatprep.subr.bf16.mxu0 0
  %3719 = vmatpush1.bf16.msra.mxu0 0
  %3720 = vmatprep.subr.bf16.mxu0 0
  %3721 = vmatpush1.bf16.msra.mxu0 0
  %3722 = vmatprep.subr.bf16.mxu0 0
  %3723 = vmatpush1.bf16.msra.mxu0 0
  %3724 = vmatprep.subr.bf16.mxu0 0
  %3725 = vmatpush1.bf16.msra.mxu0 0
  %3726 = vmatprep.subr.bf16.mxu0 0
  %3727 = vmatpush1.bf16.msra.mxu0 0
  %3728 = vmatprep.subr.bf16.mxu0 0
  %3729 = vmatpush1.bf16.msra.mxu0 0
  %3730 = vmatprep.subr.bf16.mxu0 0
  %3731 = vmatpush1.bf16.msra.mxu0 0
  %3732 = vmatprep.subr.bf16.mxu0 0
  %3733 = vmatpush1.bf16.msra.mxu0 0
  %3734 = vmatprep.subr.bf16.mxu0 0
  %3735 = vmatpush1.bf16.msra.mxu0 0
  %3736 = vmatprep.mubr.bf16.mxu0 0
  %3737 = vmatmul.mubr.bf16.gmra.mrb[0].mxu0 %v3699
  %v3738 = vpop.f32.mrb[0].mxu0
  %v3739 = vadd.f32 0.0, %v3738
  %v3740 = vpop.f32.mrb[0].mxu0
  %v3741 = vpop.f32.mrb[0].mxu0
  %v3742 = vadd.f32 0.0, %v3741
  %v3743 = vpop.f32.mrb[0].mxu0
  %3744 = vmatprep.mubr.bf16.mxu0 0
  %3745 = vmatmul.mubr.bf16.gmra.mrb[0].mxu0 %v3702
  %v3746 = vpop.f32.mrb[0].mxu0
  %v3747 = vadd.f32 0.0, %v3746
  %v3748 = vpop.f32.mrb[0].mxu0
  %v3749 = vpop.f32.mrb[0].mxu0
  %v3750 = vadd.f32 0.0, %v3749
  %v3751 = vpop.f32.mrb[0].mxu0
  %3752 = vdwg.mxu0
  %v3753 = vadd.f32 %v3633, %v3739
  %v3754 = vadd.f32 %v3636, %v3742
  %v3755 = vadd.f32 %v3641, %v3747
  %v3756 = vadd.f32 %v3644, %v3750
  %3757 = vmatprep.subr.bf16.mxu0 0
  %3758 = vmatpush1.bf16.msra.mxu0 %v939
  %3759 = vmatprep.subr.bf16.mxu0 0
  %3760 = vmatpush1.bf16.msra.mxu0 %v940
  %3761 = vmatprep.subr.bf16.mxu0 0
  %3762 = vmatpush1.bf16.msra.mxu0 %v941
  %3763 = vmatprep.subr.bf16.mxu0 0
  %3764 = vmatpush1.bf16.msra.mxu0 %v942
  %3765 = vmatprep.subr.bf16.mxu0 0
  %3766 = vmatpush1.bf16.msra.mxu0 %v943
  %3767 = vmatprep.subr.bf16.mxu0 0
  %3768 = vmatpush1.bf16.msra.mxu0 %v944
  %3769 = vmatprep.subr.bf16.mxu0 0
  %3770 = vmatpush1.bf16.msra.mxu0 %v945
  %3771 = vmatprep.subr.bf16.mxu0 0
  %3772 = vmatpush1.bf16.msra.mxu0 %v946
  %3773 = vmatprep.subr.bf16.mxu0 0
  %3774 = vmatpush1.bf16.msra.mxu0 %v947
  %3775 = vmatprep.subr.bf16.mxu0 0
  %3776 = vmatpush1.bf16.msra.mxu0 0
  %3777 = vmatprep.subr.bf16.mxu0 0
  %3778 = vmatpush1.bf16.msra.mxu0 0
  %3779 = vmatprep.subr.bf16.mxu0 0
  %3780 = vmatpush1.bf16.msra.mxu0 0
  %3781 = vmatprep.subr.bf16.mxu0 0
  %3782 = vmatpush1.bf16.msra.mxu0 0
  %3783 = vmatprep.subr.bf16.mxu0 0
  %3784 = vmatpush1.bf16.msra.mxu0 0
  %3785 = vmatprep.subr.bf16.mxu0 0
  %3786 = vmatpush1.bf16.msra.mxu0 0
  %3787 = vmatprep.subr.bf16.mxu0 0
  %3788 = vmatpush1.bf16.msra.mxu0 0
  %3789 = vmatprep.mubr.bf16.mxu0 %v1431
  %3790 = vmatmul.mubr.bf16.gmra.mrb[0].mxu0 %v1424
  %v3791 = vpop.f32.mrb[0].mxu0
  %v3792 = vadd.f32 0.0, %v3791
  %v3793 = vpop.f32.mrb[0].mxu0
  %v3794 = vpop.f32.mrb[0].mxu0
  %v3795 = vadd.f32 0.0, %v3794
  %v3796 = vpop.f32.mrb[0].mxu0
  %3797 = vmatprep.mubr.bf16.mxu0 %v1434
  %3798 = vmatmul.mubr.bf16.gmra.mrb[0].mxu0 %v1426
  %v3799 = vpop.f32.mrb[0].mxu0
  %v3800 = vadd.f32 0.0, %v3799
  %v3801 = vpop.f32.mrb[0].mxu0
  %v3802 = vpop.f32.mrb[0].mxu0
  %v3803 = vadd.f32 0.0, %v3802
  %v3804 = vpop.f32.mrb[0].mxu0
  %3805 = vdwg.mxu0
  %v3806 = vpack.c.bf16 %v3795, %v3792
  %v3807 = vpack.c.bf16 %v3803, %v3800
  %v3809 = vsel %vm599, %v3806, 0
  %v3812 = vsel %vm599, %v3807, 0
  %3814 = vmatprep.subr.bf16.mxu0 0
  %3815 = vmatpush1.bf16.msra.mxu0 %v1500
  %3816 = vmatprep.subr.bf16.mxu0 0
  %3817 = vmatpush1.bf16.msra.mxu0 %v1501
  %3818 = vmatprep.subr.bf16.mxu0 0
  %3819 = vmatpush1.bf16.msra.mxu0 0
  %3820 = vmatprep.subr.bf16.mxu0 0
  %3821 = vmatpush1.bf16.msra.mxu0 0
  %3822 = vmatprep.subr.bf16.mxu0 0
  %3823 = vmatpush1.bf16.msra.mxu0 0
  %3824 = vmatprep.subr.bf16.mxu0 0
  %3825 = vmatpush1.bf16.msra.mxu0 0
  %3826 = vmatprep.subr.bf16.mxu0 0
  %3827 = vmatpush1.bf16.msra.mxu0 0
  %3828 = vmatprep.subr.bf16.mxu0 0
  %3829 = vmatpush1.bf16.msra.mxu0 0
  %3830 = vmatprep.subr.bf16.mxu0 0
  %3831 = vmatpush1.bf16.msra.mxu0 0
  %3832 = vmatprep.subr.bf16.mxu0 0
  %3833 = vmatpush1.bf16.msra.mxu0 0
  %3834 = vmatprep.subr.bf16.mxu0 0
  %3835 = vmatpush1.bf16.msra.mxu0 0
  %3836 = vmatprep.subr.bf16.mxu0 0
  %3837 = vmatpush1.bf16.msra.mxu0 0
  %3838 = vmatprep.subr.bf16.mxu0 0
  %3839 = vmatpush1.bf16.msra.mxu0 0
  %3840 = vmatprep.subr.bf16.mxu0 0
  %3841 = vmatpush1.bf16.msra.mxu0 0
  %3842 = vmatprep.subr.bf16.mxu0 0
  %3843 = vmatpush1.bf16.msra.mxu0 0
  %3844 = vmatprep.subr.bf16.mxu0 0
  %3845 = vmatpush1.bf16.msra.mxu0 0
  %3846 = vmatprep.mubr.bf16.mxu0 0
  %3847 = vmatmul.mubr.bf16.gmra.mrb[0].mxu0 %v3809
  %v3848 = vpop.f32.mrb[0].mxu0
  %v3849 = vadd.f32 0.0, %v3848
  %v3850 = vpop.f32.mrb[0].mxu0
  %v3851 = vpop.f32.mrb[0].mxu0
  %v3852 = vadd.f32 0.0, %v3851
  %v3853 = vpop.f32.mrb[0].mxu0
  %3854 = vmatprep.mubr.bf16.mxu0 0
  %3855 = vmatmul.mubr.bf16.gmra.mrb[0].mxu0 %v3812
  %v3856 = vpop.f32.mrb[0].mxu0
  %v3857 = vadd.f32 0.0, %v3856
  %v3858 = vpop.f32.mrb[0].mxu0
  %v3859 = vpop.f32.mrb[0].mxu0
  %v3860 = vadd.f32 0.0, %v3859
  %v3861 = vpop.f32.mrb[0].mxu0
  %3862 = vdwg.mxu0
  %v3863 = vadd.f32 %v3753, %v3849
  %v3864 = vadd.f32 %v3754, %v3852
  %v3865 = vadd.f32 %v3755, %v3857
  %v3866 = vadd.f32 %v3756, %v3860
  %3867 = vmatprep.subr.bf16.mxu0 0
  %3868 = vmatpush1.bf16.msra.mxu0 %v939
  %3869 = vmatprep.subr.bf16.mxu0 0
  %3870 = vmatpush1.bf16.msra.mxu0 %v940
  %3871 = vmatprep.subr.bf16.mxu0 0
  %3872 = vmatpush1.bf16.msra.mxu0 %v941
  %3873 = vmatprep.subr.bf16.mxu0 0
  %3874 = vmatpush1.bf16.msra.mxu0 %v942
  %3875 = vmatprep.subr.bf16.mxu0 0
  %3876 = vmatpush1.bf16.msra.mxu0 %v943
  %3877 = vmatprep.subr.bf16.mxu0 0
  %3878 = vmatpush1.bf16.msra.mxu0 %v944
  %3879 = vmatprep.subr.bf16.mxu0 0
  %3880 = vmatpush1.bf16.msra.mxu0 %v945
  %3881 = vmatprep.subr.bf16.mxu0 0
  %3882 = vmatpush1.bf16.msra.mxu0 %v946
  %3883 = vmatprep.subr.bf16.mxu0 0
  %3884 = vmatpush1.bf16.msra.mxu0 %v947
  %3885 = vmatprep.subr.bf16.mxu0 0
  %3886 = vmatpush1.bf16.msra.mxu0 0
  %3887 = vmatprep.subr.bf16.mxu0 0
  %3888 = vmatpush1.bf16.msra.mxu0 0
  %3889 = vmatprep.subr.bf16.mxu0 0
  %3890 = vmatpush1.bf16.msra.mxu0 0
  %3891 = vmatprep.subr.bf16.mxu0 0
  %3892 = vmatpush1.bf16.msra.mxu0 0
  %3893 = vmatprep.subr.bf16.mxu0 0
  %3894 = vmatpush1.bf16.msra.mxu0 0
  %3895 = vmatprep.subr.bf16.mxu0 0
  %3896 = vmatpush1.bf16.msra.mxu0 0
  %3897 = vmatprep.subr.bf16.mxu0 0
  %3898 = vmatpush1.bf16.msra.mxu0 0
  %3899 = vmatprep.mubr.bf16.mxu0 %v1587
  %3900 = vmatmul.mubr.bf16.gmra.mrb[0].mxu0 %v1580
  %v3901 = vpop.f32.mrb[0].mxu0
  %v3902 = vadd.f32 0.0, %v3901
  %v3903 = vpop.f32.mrb[0].mxu0
  %v3904 = vpop.f32.mrb[0].mxu0
  %v3905 = vadd.f32 0.0, %v3904
  %v3906 = vpop.f32.mrb[0].mxu0
  %3907 = vmatprep.mubr.bf16.mxu0 %v1590
  %3908 = vmatmul.mubr.bf16.gmra.mrb[0].mxu0 %v1582
  %v3909 = vpop.f32.mrb[0].mxu0
  %v3910 = vadd.f32 0.0, %v3909
  %v3911 = vpop.f32.mrb[0].mxu0
  %v3912 = vpop.f32.mrb[0].mxu0
  %v3913 = vadd.f32 0.0, %v3912
  %v3914 = vpop.f32.mrb[0].mxu0
  %3915 = vdwg.mxu0
  %v3916 = vpack.c.bf16 %v3905, %v3902
  %v3917 = vpack.c.bf16 %v3913, %v3910
  %v3919 = vsel %vm599, %v3916, 0
  %v3922 = vsel %vm599, %v3917, 0
  %3924 = vmatprep.subr.bf16.mxu0 0
  %3925 = vmatpush1.bf16.msra.mxu0 %v1656
  %3926 = vmatprep.subr.bf16.mxu0 0
  %3927 = vmatpush1.bf16.msra.mxu0 %v1657
  %3928 = vmatprep.subr.bf16.mxu0 0
  %3929 = vmatpush1.bf16.msra.mxu0 0
  %3930 = vmatprep.subr.bf16.mxu0 0
  %3931 = vmatpush1.bf16.msra.mxu0 0
  %3932 = vmatprep.subr.bf16.mxu0 0
  %3933 = vmatpush1.bf16.msra.mxu0 0
  %3934 = vmatprep.subr.bf16.mxu0 0
  %3935 = vmatpush1.bf16.msra.mxu0 0
  %3936 = vmatprep.subr.bf16.mxu0 0
  %3937 = vmatpush1.bf16.msra.mxu0 0
  %3938 = vmatprep.subr.bf16.mxu0 0
  %3939 = vmatpush1.bf16.msra.mxu0 0
  %3940 = vmatprep.subr.bf16.mxu0 0
  %3941 = vmatpush1.bf16.msra.mxu0 0
  %3942 = vmatprep.subr.bf16.mxu0 0
  %3943 = vmatpush1.bf16.msra.mxu0 0
  %3944 = vmatprep.subr.bf16.mxu0 0
  %3945 = vmatpush1.bf16.msra.mxu0 0
  %3946 = vmatprep.subr.bf16.mxu0 0
  %3947 = vmatpush1.bf16.msra.mxu0 0
  %3948 = vmatprep.subr.bf16.mxu0 0
  %3949 = vmatpush1.bf16.msra.mxu0 0
  %3950 = vmatprep.subr.bf16.mxu0 0
  %3951 = vmatpush1.bf16.msra.mxu0 0
  %3952 = vmatprep.subr.bf16.mxu0 0
  %3953 = vmatpush1.bf16.msra.mxu0 0
  %3954 = vmatprep.subr.bf16.mxu0 0
  %3955 = vmatpush1.bf16.msra.mxu0 0
  %3956 = vmatprep.mubr.bf16.mxu0 0
  %3957 = vmatmul.mubr.bf16.gmra.mrb[0].mxu0 %v3919
  %v3958 = vpop.f32.mrb[0].mxu0
  %v3959 = vadd.f32 0.0, %v3958
  %v3960 = vpop.f32.mrb[0].mxu0
  %v3961 = vpop.f32.mrb[0].mxu0
  %v3962 = vadd.f32 0.0, %v3961
  %v3963 = vpop.f32.mrb[0].mxu0
  %3964 = vmatprep.mubr.bf16.mxu0 0
  %3965 = vmatmul.mubr.bf16.gmra.mrb[0].mxu0 %v3922
  %v3966 = vpop.f32.mrb[0].mxu0
  %v3967 = vadd.f32 0.0, %v3966
  %v3968 = vpop.f32.mrb[0].mxu0
  %v3969 = vpop.f32.mrb[0].mxu0
  %v3970 = vadd.f32 0.0, %v3969
  %v3971 = vpop.f32.mrb[0].mxu0
  %3972 = vdwg.mxu0
  %v3973 = vadd.f32 %v3863, %v3959
  %v3974 = vadd.f32 %v3864, %v3962
  %v3975 = vadd.f32 %v3865, %v3967
  %v3976 = vadd.f32 %v3866, %v3970
  %3977 = vmatprep.subr.bf16.mxu0 0
  %3978 = vmatpush1.bf16.msra.mxu0 %v939
  %3979 = vmatprep.subr.bf16.mxu0 0
  %3980 = vmatpush1.bf16.msra.mxu0 %v940
  %3981 = vmatprep.subr.bf16.mxu0 0
  %3982 = vmatpush1.bf16.msra.mxu0 %v941
  %3983 = vmatprep.subr.bf16.mxu0 0
  %3984 = vmatpush1.bf16.msra.mxu0 %v942
  %3985 = vmatprep.subr.bf16.mxu0 0
  %3986 = vmatpush1.bf16.msra.mxu0 %v943
  %3987 = vmatprep.subr.bf16.mxu0 0
  %3988 = vmatpush1.bf16.msra.mxu0 %v944
  %3989 = vmatprep.subr.bf16.mxu0 0
  %3990 = vmatpush1.bf16.msra.mxu0 %v945
  %3991 = vmatprep.subr.bf16.mxu0 0
  %3992 = vmatpush1.bf16.msra.mxu0 %v946
  %3993 = vmatprep.subr.bf16.mxu0 0
  %3994 = vmatpush1.bf16.msra.mxu0 %v947
  %3995 = vmatprep.subr.bf16.mxu0 0
  %3996 = vmatpush1.bf16.msra.mxu0 0
  %3997 = vmatprep.subr.bf16.mxu0 0
  %3998 = vmatpush1.bf16.msra.mxu0 0
  %3999 = vmatprep.subr.bf16.mxu0 0
  %4000 = vmatpush1.bf16.msra.mxu0 0
  %4001 = vmatprep.subr.bf16.mxu0 0
  %4002 = vmatpush1.bf16.msra.mxu0 0
  %4003 = vmatprep.subr.bf16.mxu0 0
  %4004 = vmatpush1.bf16.msra.mxu0 0
  %4005 = vmatprep.subr.bf16.mxu0 0
  %4006 = vmatpush1.bf16.msra.mxu0 0
  %4007 = vmatprep.subr.bf16.mxu0 0
  %4008 = vmatpush1.bf16.msra.mxu0 0
  %4009 = vmatprep.mubr.bf16.mxu0 %v1743
  %4010 = vmatmul.mubr.bf16.gmra.mrb[0].mxu0 %v1736
  %v4011 = vpop.f32.mrb[0].mxu0
  %v4012 = vadd.f32 0.0, %v4011
  %v4013 = vpop.f32.mrb[0].mxu0
  %v4014 = vpop.f32.mrb[0].mxu0
  %v4015 = vadd.f32 0.0, %v4014
  %v4016 = vpop.f32.mrb[0].mxu0
  %4017 = vmatprep.mubr.bf16.mxu0 %v1746
  %4018 = vmatmul.mubr.bf16.gmra.mrb[0].mxu0 %v1738
  %v4019 = vpop.f32.mrb[0].mxu0
  %v4020 = vadd.f32 0.0, %v4019
  %v4021 = vpop.f32.mrb[0].mxu0
  %v4022 = vpop.f32.mrb[0].mxu0
  %v4023 = vadd.f32 0.0, %v4022
  %v4024 = vpop.f32.mrb[0].mxu0
  %4025 = vdwg.mxu0
  %v4026 = vpack.c.bf16 %v4015, %v4012
  %v4027 = vpack.c.bf16 %v4023, %v4020
  %v4029 = vsel %vm599, %v4026, 0
  %v4032 = vsel %vm599, %v4027, 0
  %4034 = vmatprep.subr.bf16.mxu0 0
  %4035 = vmatpush1.bf16.msra.mxu0 %v1812
  %4036 = vmatprep.subr.bf16.mxu0 0
  %4037 = vmatpush1.bf16.msra.mxu0 %v1813
  %4038 = vmatprep.subr.bf16.mxu0 0
  %4039 = vmatpush1.bf16.msra.mxu0 0
  %4040 = vmatprep.subr.bf16.mxu0 0
  %4041 = vmatpush1.bf16.msra.mxu0 0
  %4042 = vmatprep.subr.bf16.mxu0 0
  %4043 = vmatpush1.bf16.msra.mxu0 0
  %4044 = vmatprep.subr.bf16.mxu0 0
  %4045 = vmatpush1.bf16.msra.mxu0 0
  %4046 = vmatprep.subr.bf16.mxu0 0
  %4047 = vmatpush1.bf16.msra.mxu0 0
  %4048 = vmatprep.subr.bf16.mxu0 0
  %4049 = vmatpush1.bf16.msra.mxu0 0
  %4050 = vmatprep.subr.bf16.mxu0 0
  %4051 = vmatpush1.bf16.msra.mxu0 0
  %4052 = vmatprep.subr.bf16.mxu0 0
  %4053 = vmatpush1.bf16.msra.mxu0 0
  %4054 = vmatprep.subr.bf16.mxu0 0
  %4055 = vmatpush1.bf16.msra.mxu0 0
  %4056 = vmatprep.subr.bf16.mxu0 0
  %4057 = vmatpush1.bf16.msra.mxu0 0
  %4058 = vmatprep.subr.bf16.mxu0 0
  %4059 = vmatpush1.bf16.msra.mxu0 0
  %4060 = vmatprep.subr.bf16.mxu0 0
  %4061 = vmatpush1.bf16.msra.mxu0 0
  %4062 = vmatprep.subr.bf16.mxu0 0
  %4063 = vmatpush1.bf16.msra.mxu0 0
  %4064 = vmatprep.subr.bf16.mxu0 0
  %4065 = vmatpush1.bf16.msra.mxu0 0
  %4066 = vmatprep.mubr.bf16.mxu0 0
  %4067 = vmatmul.mubr.bf16.gmra.mrb[0].mxu0 %v4029
  %v4068 = vpop.f32.mrb[0].mxu0
  %v4069 = vadd.f32 0.0, %v4068
  %v4070 = vpop.f32.mrb[0].mxu0
  %v4071 = vpop.f32.mrb[0].mxu0
  %v4072 = vadd.f32 0.0, %v4071
  %v4073 = vpop.f32.mrb[0].mxu0
  %4074 = vmatprep.mubr.bf16.mxu0 0
  %4075 = vmatmul.mubr.bf16.gmra.mrb[0].mxu0 %v4032
  %v4076 = vpop.f32.mrb[0].mxu0
  %v4077 = vadd.f32 0.0, %v4076
  %v4078 = vpop.f32.mrb[0].mxu0
  %v4079 = vpop.f32.mrb[0].mxu0
  %v4080 = vadd.f32 0.0, %v4079
  %v4081 = vpop.f32.mrb[0].mxu0
  %4082 = vdwg.mxu0
  %v4083 = vadd.f32 %v3973, %v4069
  %v4084 = vadd.f32 %v3974, %v4072
  %v4085 = vadd.f32 %v3975, %v4077
  %v4086 = vadd.f32 %v3976, %v4080
  %4087 = vmatprep.subr.bf16.mxu0 0
  %4088 = vmatpush1.bf16.msra.mxu0 %v939
  %4089 = vmatprep.subr.bf16.mxu0 0
  %4090 = vmatpush1.bf16.msra.mxu0 %v940
  %4091 = vmatprep.subr.bf16.mxu0 0
  %4092 = vmatpush1.bf16.msra.mxu0 %v941
  %4093 = vmatprep.subr.bf16.mxu0 0
  %4094 = vmatpush1.bf16.msra.mxu0 %v942
  %4095 = vmatprep.subr.bf16.mxu0 0
  %4096 = vmatpush1.bf16.msra.mxu0 %v943
  %4097 = vmatprep.subr.bf16.mxu0 0
  %4098 = vmatpush1.bf16.msra.mxu0 %v944
  %4099 = vmatprep.subr.bf16.mxu0 0
  %4100 = vmatpush1.bf16.msra.mxu0 %v945
  %4101 = vmatprep.subr.bf16.mxu0 0
  %4102 = vmatpush1.bf16.msra.mxu0 %v946
  %4103 = vmatprep.subr.bf16.mxu0 0
  %4104 = vmatpush1.bf16.msra.mxu0 %v947
  %4105 = vmatprep.subr.bf16.mxu0 0
  %4106 = vmatpush1.bf16.msra.mxu0 0
  %4107 = vmatprep.subr.bf16.mxu0 0
  %4108 = vmatpush1.bf16.msra.mxu0 0
  %4109 = vmatprep.subr.bf16.mxu0 0
  %4110 = vmatpush1.bf16.msra.mxu0 0
  %4111 = vmatprep.subr.bf16.mxu0 0
  %4112 = vmatpush1.bf16.msra.mxu0 0
  %4113 = vmatprep.subr.bf16.mxu0 0
  %4114 = vmatpush1.bf16.msra.mxu0 0
  %4115 = vmatprep.subr.bf16.mxu0 0
  %4116 = vmatpush1.bf16.msra.mxu0 0
  %4117 = vmatprep.subr.bf16.mxu0 0
  %4118 = vmatpush1.bf16.msra.mxu0 0
  %4119 = vmatprep.mubr.bf16.mxu0 %v1899
  %4120 = vmatmul.mubr.bf16.gmra.mrb[0].mxu0 %v1892
  %v4121 = vpop.f32.mrb[0].mxu0
  %v4122 = vadd.f32 0.0, %v4121
  %v4123 = vpop.f32.mrb[0].mxu0
  %v4124 = vpop.f32.mrb[0].mxu0
  %v4125 = vadd.f32 0.0, %v4124
  %v4126 = vpop.f32.mrb[0].mxu0
  %4127 = vmatprep.mubr.bf16.mxu0 %v1902
  %4128 = vmatmul.mubr.bf16.gmra.mrb[0].mxu0 %v1894
  %v4129 = vpop.f32.mrb[0].mxu0
  %v4130 = vadd.f32 0.0, %v4129
  %v4131 = vpop.f32.mrb[0].mxu0
  %v4132 = vpop.f32.mrb[0].mxu0
  %v4133 = vadd.f32 0.0, %v4132
  %v4134 = vpop.f32.mrb[0].mxu0
  %4135 = vdwg.mxu0
  %v4136 = vpack.c.bf16 %v4125, %v4122
  %v4137 = vpack.c.bf16 %v4133, %v4130
  %v4139 = vsel %vm599, %v4136, 0
  %v4142 = vsel %vm599, %v4137, 0
  %4144 = vmatprep.subr.bf16.mxu0 0
  %4145 = vmatpush1.bf16.msra.mxu0 %v1968
  %4146 = vmatprep.subr.bf16.mxu0 0
  %4147 = vmatpush1.bf16.msra.mxu0 %v1969
  %4148 = vmatprep.subr.bf16.mxu0 0
  %4149 = vmatpush1.bf16.msra.mxu0 0
  %4150 = vmatprep.subr.bf16.mxu0 0
  %4151 = vmatpush1.bf16.msra.mxu0 0
  %4152 = vmatprep.subr.bf16.mxu0 0
  %4153 = vmatpush1.bf16.msra.mxu0 0
  %4154 = vmatprep.subr.bf16.mxu0 0
  %4155 = vmatpush1.bf16.msra.mxu0 0
  %4156 = vmatprep.subr.bf16.mxu0 0
  %4157 = vmatpush1.bf16.msra.mxu0 0
  %4158 = vmatprep.subr.bf16.mxu0 0
  %4159 = vmatpush1.bf16.msra.mxu0 0
  %4160 = vmatprep.subr.bf16.mxu0 0
  %4161 = vmatpush1.bf16.msra.mxu0 0
  %4162 = vmatprep.subr.bf16.mxu0 0
  %4163 = vmatpush1.bf16.msra.mxu0 0
  %4164 = vmatprep.subr.bf16.mxu0 0
  %4165 = vmatpush1.bf16.msra.mxu0 0
  %4166 = vmatprep.subr.bf16.mxu0 0
  %4167 = vmatpush1.bf16.msra.mxu0 0
  %4168 = vmatprep.subr.bf16.mxu0 0
  %4169 = vmatpush1.bf16.msra.mxu0 0
  %4170 = vmatprep.subr.bf16.mxu0 0
  %4171 = vmatpush1.bf16.msra.mxu0 0
  %4172 = vmatprep.subr.bf16.mxu0 0
  %4173 = vmatpush1.bf16.msra.mxu0 0
  %4174 = vmatprep.subr.bf16.mxu0 0
  %4175 = vmatpush1.bf16.msra.mxu0 0
  %4176 = vmatprep.mubr.bf16.mxu0 0
  %4177 = vmatmul.mubr.bf16.gmra.mrb[0].mxu0 %v4139
  %v4178 = vpop.f32.mrb[0].mxu0
  %v4179 = vadd.f32 0.0, %v4178
  %v4180 = vpop.f32.mrb[0].mxu0
  %v4181 = vpop.f32.mrb[0].mxu0
  %v4182 = vadd.f32 0.0, %v4181
  %v4183 = vpop.f32.mrb[0].mxu0
  %4184 = vmatprep.mubr.bf16.mxu0 0
  %4185 = vmatmul.mubr.bf16.gmra.mrb[0].mxu0 %v4142
  %v4186 = vpop.f32.mrb[0].mxu0
  %v4187 = vadd.f32 0.0, %v4186
  %v4188 = vpop.f32.mrb[0].mxu0
  %v4189 = vpop.f32.mrb[0].mxu0
  %v4190 = vadd.f32 0.0, %v4189
  %v4191 = vpop.f32.mrb[0].mxu0
  %4192 = vdwg.mxu0
  %v4193 = vadd.f32 %v4083, %v4179
  %v4194 = vadd.f32 %v4084, %v4182
  %v4195 = vadd.f32 %v4085, %v4187
  %v4196 = vadd.f32 %v4086, %v4190
  %4197 = vmatprep.subr.bf16.mxu0 0
  %4198 = vmatpush1.bf16.msra.mxu0 %v939
  %4199 = vmatprep.subr.bf16.mxu0 0
  %4200 = vmatpush1.bf16.msra.mxu0 %v940
  %4201 = vmatprep.subr.bf16.mxu0 0
  %4202 = vmatpush1.bf16.msra.mxu0 %v941
  %4203 = vmatprep.subr.bf16.mxu0 0
  %4204 = vmatpush1.bf16.msra.mxu0 %v942
  %4205 = vmatprep.subr.bf16.mxu0 0
  %4206 = vmatpush1.bf16.msra.mxu0 %v943
  %4207 = vmatprep.subr.bf16.mxu0 0
  %4208 = vmatpush1.bf16.msra.mxu0 %v944
  %4209 = vmatprep.subr.bf16.mxu0 0
  %4210 = vmatpush1.bf16.msra.mxu0 %v945
  %4211 = vmatprep.subr.bf16.mxu0 0
  %4212 = vmatpush1.bf16.msra.mxu0 %v946
  %4213 = vmatprep.subr.bf16.mxu0 0
  %4214 = vmatpush1.bf16.msra.mxu0 %v947
  %4215 = vmatprep.subr.bf16.mxu0 0
  %4216 = vmatpush1.bf16.msra.mxu0 0
  %4217 = vmatprep.subr.bf16.mxu0 0
  %4218 = vmatpush1.bf16.msra.mxu0 0
  %4219 = vmatprep.subr.bf16.mxu0 0
  %4220 = vmatpush1.bf16.msra.mxu0 0
  %4221 = vmatprep.subr.bf16.mxu0 0
  %4222 = vmatpush1.bf16.msra.mxu0 0
  %4223 = vmatprep.subr.bf16.mxu0 0
  %4224 = vmatpush1.bf16.msra.mxu0 0
  %4225 = vmatprep.subr.bf16.mxu0 0
  %4226 = vmatpush1.bf16.msra.mxu0 0
  %4227 = vmatprep.subr.bf16.mxu0 0
  %4228 = vmatpush1.bf16.msra.mxu0 0
  %4229 = vmatprep.mubr.bf16.mxu0 %v2055
  %4230 = vmatmul.mubr.bf16.gmra.mrb[0].mxu0 %v2048
  %v4231 = vpop.f32.mrb[0].mxu0
  %v4232 = vadd.f32 0.0, %v4231
  %v4233 = vpop.f32.mrb[0].mxu0
  %v4234 = vpop.f32.mrb[0].mxu0
  %v4235 = vadd.f32 0.0, %v4234
  %v4236 = vpop.f32.mrb[0].mxu0
  %4237 = vmatprep.mubr.bf16.mxu0 %v2058
  %4238 = vmatmul.mubr.bf16.gmra.mrb[0].mxu0 %v2050
  %v4239 = vpop.f32.mrb[0].mxu0
  %v4240 = vadd.f32 0.0, %v4239
  %v4241 = vpop.f32.mrb[0].mxu0
  %v4242 = vpop.f32.mrb[0].mxu0
  %v4243 = vadd.f32 0.0, %v4242
  %v4244 = vpop.f32.mrb[0].mxu0
  %4245 = vdwg.mxu0
  %v4246 = vpack.c.bf16 %v4235, %v4232
  %v4247 = vpack.c.bf16 %v4243, %v4240
  %v4249 = vsel %vm599, %v4246, 0
  %v4252 = vsel %vm599, %v4247, 0
  %4254 = vmatprep.subr.bf16.mxu0 0
  %4255 = vmatpush1.bf16.msra.mxu0 %v2124
  %4256 = vmatprep.subr.bf16.mxu0 0
  %4257 = vmatpush1.bf16.msra.mxu0 %v2125
  %4258 = vmatprep.subr.bf16.mxu0 0
  %4259 = vmatpush1.bf16.msra.mxu0 0
  %4260 = vmatprep.subr.bf16.mxu0 0
  %4261 = vmatpush1.bf16.msra.mxu0 0
  %4262 = vmatprep.subr.bf16.mxu0 0
  %4263 = vmatpush1.bf16.msra.mxu0 0
  %4264 = vmatprep.subr.bf16.mxu0 0
  %4265 = vmatpush1.bf16.msra.mxu0 0
  %4266 = vmatprep.subr.bf16.mxu0 0
  %4267 = vmatpush1.bf16.msra.mxu0 0
  %4268 = vmatprep.subr.bf16.mxu0 0
  %4269 = vmatpush1.bf16.msra.mxu0 0
  %4270 = vmatprep.subr.bf16.mxu0 0
  %4271 = vmatpush1.bf16.msra.mxu0 0
  %4272 = vmatprep.subr.bf16.mxu0 0
  %4273 = vmatpush1.bf16.msra.mxu0 0
  %4274 = vmatprep.subr.bf16.mxu0 0
  %4275 = vmatpush1.bf16.msra.mxu0 0
  %4276 = vmatprep.subr.bf16.mxu0 0
  %4277 = vmatpush1.bf16.msra.mxu0 0
  %4278 = vmatprep.subr.bf16.mxu0 0
  %4279 = vmatpush1.bf16.msra.mxu0 0
  %4280 = vmatprep.subr.bf16.mxu0 0
  %4281 = vmatpush1.bf16.msra.mxu0 0
  %4282 = vmatprep.subr.bf16.mxu0 0
  %4283 = vmatpush1.bf16.msra.mxu0 0
  %4284 = vmatprep.subr.bf16.mxu0 0
  %4285 = vmatpush1.bf16.msra.mxu0 0
  %4286 = vmatprep.mubr.bf16.mxu0 0
  %4287 = vmatmul.mubr.bf16.gmra.mrb[0].mxu0 %v4249
  %v4288 = vpop.f32.mrb[0].mxu0
  %v4289 = vadd.f32 0.0, %v4288
  %v4290 = vpop.f32.mrb[0].mxu0
  %v4291 = vpop.f32.mrb[0].mxu0
  %v4292 = vadd.f32 0.0, %v4291
  %v4293 = vpop.f32.mrb[0].mxu0
  %4294 = vmatprep.mubr.bf16.mxu0 0
  %4295 = vmatmul.mubr.bf16.gmra.mrb[0].mxu0 %v4252
  %v4296 = vpop.f32.mrb[0].mxu0
  %v4297 = vadd.f32 0.0, %v4296
  %v4298 = vpop.f32.mrb[0].mxu0
  %v4299 = vpop.f32.mrb[0].mxu0
  %v4300 = vadd.f32 0.0, %v4299
  %v4301 = vpop.f32.mrb[0].mxu0
  %4302 = vdwg.mxu0
  %v4303 = vadd.f32 %v4193, %v4289
  %v4304 = vadd.f32 %v4194, %v4292
  %v4305 = vadd.f32 %v4195, %v4297
  %v4306 = vadd.f32 %v4196, %v4300
  %4307 = vmatprep.subr.bf16.mxu0 0
  %4308 = vmatpush1.bf16.msra.mxu0 %v939
  %4309 = vmatprep.subr.bf16.mxu0 0
  %4310 = vmatpush1.bf16.msra.mxu0 %v940
  %4311 = vmatprep.subr.bf16.mxu0 0
  %4312 = vmatpush1.bf16.msra.mxu0 %v941
  %4313 = vmatprep.subr.bf16.mxu0 0
  %4314 = vmatpush1.bf16.msra.mxu0 %v942
  %4315 = vmatprep.subr.bf16.mxu0 0
  %4316 = vmatpush1.bf16.msra.mxu0 %v943
  %4317 = vmatprep.subr.bf16.mxu0 0
  %4318 = vmatpush1.bf16.msra.mxu0 %v944
  %4319 = vmatprep.subr.bf16.mxu0 0
  %4320 = vmatpush1.bf16.msra.mxu0 %v945
  %4321 = vmatprep.subr.bf16.mxu0 0
  %4322 = vmatpush1.bf16.msra.mxu0 %v946
  %4323 = vmatprep.subr.bf16.mxu0 0
  %4324 = vmatpush1.bf16.msra.mxu0 %v947
  %4325 = vmatprep.subr.bf16.mxu0 0
  %4326 = vmatpush1.bf16.msra.mxu0 0
  %4327 = vmatprep.subr.bf16.mxu0 0
  %4328 = vmatpush1.bf16.msra.mxu0 0
  %4329 = vmatprep.subr.bf16.mxu0 0
  %4330 = vmatpush1.bf16.msra.mxu0 0
  %4331 = vmatprep.subr.bf16.mxu0 0
  %4332 = vmatpush1.bf16.msra.mxu0 0
  %4333 = vmatprep.subr.bf16.mxu0 0
  %4334 = vmatpush1.bf16.msra.mxu0 0
  %4335 = vmatprep.subr.bf16.mxu0 0
  %4336 = vmatpush1.bf16.msra.mxu0 0
  %4337 = vmatprep.subr.bf16.mxu0 0
  %4338 = vmatpush1.bf16.msra.mxu0 0
  %4339 = vmatprep.mubr.bf16.mxu0 %v2211
  %4340 = vmatmul.mubr.bf16.gmra.mrb[0].mxu0 %v2204
  %v4341 = vpop.f32.mrb[0].mxu0
  %v4342 = vadd.f32 0.0, %v4341
  %v4343 = vpop.f32.mrb[0].mxu0
  %v4344 = vpop.f32.mrb[0].mxu0
  %v4345 = vadd.f32 0.0, %v4344
  %v4346 = vpop.f32.mrb[0].mxu0
  %4347 = vmatprep.mubr.bf16.mxu0 %v2214
  %4348 = vmatmul.mubr.bf16.gmra.mrb[0].mxu0 %v2206
  %v4349 = vpop.f32.mrb[0].mxu0
  %v4350 = vadd.f32 0.0, %v4349
  %v4351 = vpop.f32.mrb[0].mxu0
  %v4352 = vpop.f32.mrb[0].mxu0
  %v4353 = vadd.f32 0.0, %v4352
  %v4354 = vpop.f32.mrb[0].mxu0
  %4355 = vdwg.mxu0
  %v4356 = vpack.c.bf16 %v4345, %v4342
  %v4357 = vpack.c.bf16 %v4353, %v4350
  %v4359 = vsel %vm599, %v4356, 0
  %v4362 = vsel %vm599, %v4357, 0
  %4364 = vmatprep.subr.bf16.mxu0 0
  %4365 = vmatpush1.bf16.msra.mxu0 %v2280
  %4366 = vmatprep.subr.bf16.mxu0 0
  %4367 = vmatpush1.bf16.msra.mxu0 %v2281
  %4368 = vmatprep.subr.bf16.mxu0 0
  %4369 = vmatpush1.bf16.msra.mxu0 0
  %4370 = vmatprep.subr.bf16.mxu0 0
  %4371 = vmatpush1.bf16.msra.mxu0 0
  %4372 = vmatprep.subr.bf16.mxu0 0
  %4373 = vmatpush1.bf16.msra.mxu0 0
  %4374 = vmatprep.subr.bf16.mxu0 0
  %4375 = vmatpush1.bf16.msra.mxu0 0
  %4376 = vmatprep.subr.bf16.mxu0 0
  %4377 = vmatpush1.bf16.msra.mxu0 0
  %4378 = vmatprep.subr.bf16.mxu0 0
  %4379 = vmatpush1.bf16.msra.mxu0 0
  %4380 = vmatprep.subr.bf16.mxu0 0
  %4381 = vmatpush1.bf16.msra.mxu0 0
  %4382 = vmatprep.subr.bf16.mxu0 0
  %4383 = vmatpush1.bf16.msra.mxu0 0
  %4384 = vmatprep.subr.bf16.mxu0 0
  %4385 = vmatpush1.bf16.msra.mxu0 0
  %4386 = vmatprep.subr.bf16.mxu0 0
  %4387 = vmatpush1.bf16.msra.mxu0 0
  %4388 = vmatprep.subr.bf16.mxu0 0
  %4389 = vmatpush1.bf16.msra.mxu0 0
  %4390 = vmatprep.subr.bf16.mxu0 0
  %4391 = vmatpush1.bf16.msra.mxu0 0
  %4392 = vmatprep.subr.bf16.mxu0 0
  %4393 = vmatpush1.bf16.msra.mxu0 0
  %4394 = vmatprep.subr.bf16.mxu0 0
  %4395 = vmatpush1.bf16.msra.mxu0 0
  %4396 = vmatprep.mubr.bf16.mxu0 0
  %4397 = vmatmul.mubr.bf16.gmra.mrb[0].mxu0 %v4359
  %v4398 = vpop.f32.mrb[0].mxu0
  %v4399 = vadd.f32 0.0, %v4398
  %v4400 = vpop.f32.mrb[0].mxu0
  %v4401 = vpop.f32.mrb[0].mxu0
  %v4402 = vadd.f32 0.0, %v4401
  %v4403 = vpop.f32.mrb[0].mxu0
  %4404 = vmatprep.mubr.bf16.mxu0 0
  %4405 = vmatmul.mubr.bf16.gmra.mrb[0].mxu0 %v4362
  %v4406 = vpop.f32.mrb[0].mxu0
  %v4407 = vadd.f32 0.0, %v4406
  %v4408 = vpop.f32.mrb[0].mxu0
  %v4409 = vpop.f32.mrb[0].mxu0
  %v4410 = vadd.f32 0.0, %v4409
  %v4411 = vpop.f32.mrb[0].mxu0
  %4412 = vdwg.mxu0
  %v4413 = vadd.f32 %v4303, %v4399
  %v4414 = vadd.f32 %v4304, %v4402
  %v4415 = vadd.f32 %v4305, %v4407
  %v4416 = vadd.f32 %v4306, %v4410
  %4417 = vmatprep.subr.bf16.mxu0 0
  %4418 = vmatpush1.bf16.msra.mxu0 %v939
  %4419 = vmatprep.subr.bf16.mxu0 0
  %4420 = vmatpush1.bf16.msra.mxu0 %v940
  %4421 = vmatprep.subr.bf16.mxu0 0
  %4422 = vmatpush1.bf16.msra.mxu0 %v941
  %4423 = vmatprep.subr.bf16.mxu0 0
  %4424 = vmatpush1.bf16.msra.mxu0 %v942
  %4425 = vmatprep.subr.bf16.mxu0 0
  %4426 = vmatpush1.bf16.msra.mxu0 %v943
  %4427 = vmatprep.subr.bf16.mxu0 0
  %4428 = vmatpush1.bf16.msra.mxu0 %v944
  %4429 = vmatprep.subr.bf16.mxu0 0
  %4430 = vmatpush1.bf16.msra.mxu0 %v945
  %4431 = vmatprep.subr.bf16.mxu0 0
  %4432 = vmatpush1.bf16.msra.mxu0 %v946
  %4433 = vmatprep.subr.bf16.mxu0 0
  %4434 = vmatpush1.bf16.msra.mxu0 %v947
  %4435 = vmatprep.subr.bf16.mxu0 0
  %4436 = vmatpush1.bf16.msra.mxu0 0
  %4437 = vmatprep.subr.bf16.mxu0 0
  %4438 = vmatpush1.bf16.msra.mxu0 0
  %4439 = vmatprep.subr.bf16.mxu0 0
  %4440 = vmatpush1.bf16.msra.mxu0 0
  %4441 = vmatprep.subr.bf16.mxu0 0
  %4442 = vmatpush1.bf16.msra.mxu0 0
  %4443 = vmatprep.subr.bf16.mxu0 0
  %4444 = vmatpush1.bf16.msra.mxu0 0
  %4445 = vmatprep.subr.bf16.mxu0 0
  %4446 = vmatpush1.bf16.msra.mxu0 0
  %4447 = vmatprep.subr.bf16.mxu0 0
  %4448 = vmatpush1.bf16.msra.mxu0 0
  %4449 = vmatprep.mubr.bf16.mxu0 %v2367
  %4450 = vmatmul.mubr.bf16.gmra.mrb[0].mxu0 %v2360
  %v4451 = vpop.f32.mrb[0].mxu0
  %v4452 = vadd.f32 0.0, %v4451
  %v4453 = vpop.f32.mrb[0].mxu0
  %v4454 = vpop.f32.mrb[0].mxu0
  %v4455 = vadd.f32 0.0, %v4454
  %v4456 = vpop.f32.mrb[0].mxu0
  %4457 = vmatprep.mubr.bf16.mxu0 %v2370
  %4458 = vmatmul.mubr.bf16.gmra.mrb[0].mxu0 %v2362
  %v4459 = vpop.f32.mrb[0].mxu0
  %v4460 = vadd.f32 0.0, %v4459
  %v4461 = vpop.f32.mrb[0].mxu0
  %v4462 = vpop.f32.mrb[0].mxu0
  %v4463 = vadd.f32 0.0, %v4462
  %v4464 = vpop.f32.mrb[0].mxu0
  %4465 = vdwg.mxu0
  %v4466 = vpack.c.bf16 %v4455, %v4452
  %v4467 = vpack.c.bf16 %v4463, %v4460
  %v4469 = vsel %vm599, %v4466, 0
  %v4472 = vsel %vm599, %v4467, 0
  %4474 = vmatprep.subr.bf16.mxu0 0
  %4475 = vmatpush1.bf16.msra.mxu0 %v2436
  %4476 = vmatprep.subr.bf16.mxu0 0
  %4477 = vmatpush1.bf16.msra.mxu0 %v2437
  %4478 = vmatprep.subr.bf16.mxu0 0
  %4479 = vmatpush1.bf16.msra.mxu0 0
  %4480 = vmatprep.subr.bf16.mxu0 0
  %4481 = vmatpush1.bf16.msra.mxu0 0
  %4482 = vmatprep.subr.bf16.mxu0 0
  %4483 = vmatpush1.bf16.msra.mxu0 0
  %4484 = vmatprep.subr.bf16.mxu0 0
  %4485 = vmatpush1.bf16.msra.mxu0 0
  %4486 = vmatprep.subr.bf16.mxu0 0
  %4487 = vmatpush1.bf16.msra.mxu0 0
  %4488 = vmatprep.subr.bf16.mxu0 0
  %4489 = vmatpush1.bf16.msra.mxu0 0
  %4490 = vmatprep.subr.bf16.mxu0 0
  %4491 = vmatpush1.bf16.msra.mxu0 0
  %4492 = vmatprep.subr.bf16.mxu0 0
  %4493 = vmatpush1.bf16.msra.mxu0 0
  %4494 = vmatprep.subr.bf16.mxu0 0
  %4495 = vmatpush1.bf16.msra.mxu0 0
  %4496 = vmatprep.subr.bf16.mxu0 0
  %4497 = vmatpush1.bf16.msra.mxu0 0
  %4498 = vmatprep.subr.bf16.mxu0 0
  %4499 = vmatpush1.bf16.msra.mxu0 0
  %4500 = vmatprep.subr.bf16.mxu0 0
  %4501 = vmatpush1.bf16.msra.mxu0 0
  %4502 = vmatprep.subr.bf16.mxu0 0
  %4503 = vmatpush1.bf16.msra.mxu0 0
  %4504 = vmatprep.subr.bf16.mxu0 0
  %4505 = vmatpush1.bf16.msra.mxu0 0
  %4506 = vmatprep.mubr.bf16.mxu0 0
  %4507 = vmatmul.mubr.bf16.gmra.mrb[0].mxu0 %v4469
  %v4508 = vpop.f32.mrb[0].mxu0
  %v4509 = vadd.f32 0.0, %v4508
  %v4510 = vpop.f32.mrb[0].mxu0
  %v4511 = vpop.f32.mrb[0].mxu0
  %v4512 = vadd.f32 0.0, %v4511
  %v4513 = vpop.f32.mrb[0].mxu0
  %4514 = vmatprep.mubr.bf16.mxu0 0
  %4515 = vmatmul.mubr.bf16.gmra.mrb[0].mxu0 %v4472
  %v4516 = vpop.f32.mrb[0].mxu0
  %v4517 = vadd.f32 0.0, %v4516
  %v4518 = vpop.f32.mrb[0].mxu0
  %v4519 = vpop.f32.mrb[0].mxu0
  %v4520 = vadd.f32 0.0, %v4519
  %v4521 = vpop.f32.mrb[0].mxu0
  %4522 = vdwg.mxu0
  %v4523 = vadd.f32 %v4413, %v4509
  %v4524 = vadd.f32 %v4414, %v4512
  %v4525 = vadd.f32 %v4415, %v4517
  %v4526 = vadd.f32 %v4416, %v4520
  %4527 = vmatprep.subr.bf16.mxu0 0
  %4528 = vmatpush1.bf16.msra.mxu0 %v939
  %4529 = vmatprep.subr.bf16.mxu0 0
  %4530 = vmatpush1.bf16.msra.mxu0 %v940
  %4531 = vmatprep.subr.bf16.mxu0 0
  %4532 = vmatpush1.bf16.msra.mxu0 %v941
  %4533 = vmatprep.subr.bf16.mxu0 0
  %4534 = vmatpush1.bf16.msra.mxu0 %v942
  %4535 = vmatprep.subr.bf16.mxu0 0
  %4536 = vmatpush1.bf16.msra.mxu0 %v943
  %4537 = vmatprep.subr.bf16.mxu0 0
  %4538 = vmatpush1.bf16.msra.mxu0 %v944
  %4539 = vmatprep.subr.bf16.mxu0 0
  %4540 = vmatpush1.bf16.msra.mxu0 %v945
  %4541 = vmatprep.subr.bf16.mxu0 0
  %4542 = vmatpush1.bf16.msra.mxu0 %v946
  %4543 = vmatprep.subr.bf16.mxu0 0
  %4544 = vmatpush1.bf16.msra.mxu0 %v947
  %4545 = vmatprep.subr.bf16.mxu0 0
  %4546 = vmatpush1.bf16.msra.mxu0 0
  %4547 = vmatprep.subr.bf16.mxu0 0
  %4548 = vmatpush1.bf16.msra.mxu0 0
  %4549 = vmatprep.subr.bf16.mxu0 0
  %4550 = vmatpush1.bf16.msra.mxu0 0
  %4551 = vmatprep.subr.bf16.mxu0 0
  %4552 = vmatpush1.bf16.msra.mxu0 0
  %4553 = vmatprep.subr.bf16.mxu0 0
  %4554 = vmatpush1.bf16.msra.mxu0 0
  %4555 = vmatprep.subr.bf16.mxu0 0
  %4556 = vmatpush1.bf16.msra.mxu0 0
  %4557 = vmatprep.subr.bf16.mxu0 0
  %4558 = vmatpush1.bf16.msra.mxu0 0
  %4559 = vmatprep.mubr.bf16.mxu0 %v2523
  %4560 = vmatmul.mubr.bf16.gmra.mrb[0].mxu0 %v2516
  %v4561 = vpop.f32.mrb[0].mxu0
  %v4562 = vadd.f32 0.0, %v4561
  %v4563 = vpop.f32.mrb[0].mxu0
  %v4564 = vpop.f32.mrb[0].mxu0
  %v4565 = vadd.f32 0.0, %v4564
  %v4566 = vpop.f32.mrb[0].mxu0
  %4567 = vmatprep.mubr.bf16.mxu0 %v2526
  %4568 = vmatmul.mubr.bf16.gmra.mrb[0].mxu0 %v2518
  %v4569 = vpop.f32.mrb[0].mxu0
  %v4570 = vadd.f32 0.0, %v4569
  %v4571 = vpop.f32.mrb[0].mxu0
  %v4572 = vpop.f32.mrb[0].mxu0
  %v4573 = vadd.f32 0.0, %v4572
  %v4574 = vpop.f32.mrb[0].mxu0
  %4575 = vdwg.mxu0
  %v4576 = vpack.c.bf16 %v4565, %v4562
  %v4577 = vpack.c.bf16 %v4573, %v4570
  %v4579 = vsel %vm599, %v4576, 0
  %v4582 = vsel %vm599, %v4577, 0
  %4584 = vmatprep.subr.bf16.mxu0 0
  %4585 = vmatpush1.bf16.msra.mxu0 %v2592
  %4586 = vmatprep.subr.bf16.mxu0 0
  %4587 = vmatpush1.bf16.msra.mxu0 %v2593
  %4588 = vmatprep.subr.bf16.mxu0 0
  %4589 = vmatpush1.bf16.msra.mxu0 0
  %4590 = vmatprep.subr.bf16.mxu0 0
  %4591 = vmatpush1.bf16.msra.mxu0 0
  %4592 = vmatprep.subr.bf16.mxu0 0
  %4593 = vmatpush1.bf16.msra.mxu0 0
  %4594 = vmatprep.subr.bf16.mxu0 0
  %4595 = vmatpush1.bf16.msra.mxu0 0
  %4596 = vmatprep.subr.bf16.mxu0 0
  %4597 = vmatpush1.bf16.msra.mxu0 0
  %4598 = vmatprep.subr.bf16.mxu0 0
  %4599 = vmatpush1.bf16.msra.mxu0 0
  %4600 = vmatprep.subr.bf16.mxu0 0
  %4601 = vmatpush1.bf16.msra.mxu0 0
  %4602 = vmatprep.subr.bf16.mxu0 0
  %4603 = vmatpush1.bf16.msra.mxu0 0
  %4604 = vmatprep.subr.bf16.mxu0 0
  %4605 = vmatpush1.bf16.msra.mxu0 0
  %4606 = vmatprep.subr.bf16.mxu0 0
  %4607 = vmatpush1.bf16.msra.mxu0 0
  %4608 = vmatprep.subr.bf16.mxu0 0
  %4609 = vmatpush1.bf16.msra.mxu0 0
  %4610 = vmatprep.subr.bf16.mxu0 0
  %4611 = vmatpush1.bf16.msra.mxu0 0
  %4612 = vmatprep.subr.bf16.mxu0 0
  %4613 = vmatpush1.bf16.msra.mxu0 0
  %4614 = vmatprep.subr.bf16.mxu0 0
  %4615 = vmatpush1.bf16.msra.mxu0 0
  %4616 = vmatprep.mubr.bf16.mxu0 0
  %4617 = vmatmul.mubr.bf16.gmra.mrb[0].mxu0 %v4579
  %v4618 = vpop.f32.mrb[0].mxu0
  %v4619 = vadd.f32 0.0, %v4618
  %v4620 = vpop.f32.mrb[0].mxu0
  %v4621 = vpop.f32.mrb[0].mxu0
  %v4622 = vadd.f32 0.0, %v4621
  %v4623 = vpop.f32.mrb[0].mxu0
  %4624 = vmatprep.mubr.bf16.mxu0 0
  %4625 = vmatmul.mubr.bf16.gmra.mrb[0].mxu0 %v4582
  %v4626 = vpop.f32.mrb[0].mxu0
  %v4627 = vadd.f32 0.0, %v4626
  %v4628 = vpop.f32.mrb[0].mxu0
  %v4629 = vpop.f32.mrb[0].mxu0
  %v4630 = vadd.f32 0.0, %v4629
  %v4631 = vpop.f32.mrb[0].mxu0
  %4632 = vdwg.mxu0
  %v4633 = vadd.f32 %v4523, %v4619
  %v4634 = vadd.f32 %v4524, %v4622
  %v4635 = vadd.f32 %v4525, %v4627
  %v4636 = vadd.f32 %v4526, %v4630
  %4637 = vmatprep.subr.bf16.mxu0 0
  %4638 = vmatpush1.bf16.msra.mxu0 %v939
  %4639 = vmatprep.subr.bf16.mxu0 0
  %4640 = vmatpush1.bf16.msra.mxu0 %v940
  %4641 = vmatprep.subr.bf16.mxu0 0
  %4642 = vmatpush1.bf16.msra.mxu0 %v941
  %4643 = vmatprep.subr.bf16.mxu0 0
  %4644 = vmatpush1.bf16.msra.mxu0 %v942
  %4645 = vmatprep.subr.bf16.mxu0 0
  %4646 = vmatpush1.bf16.msra.mxu0 %v943
  %4647 = vmatprep.subr.bf16.mxu0 0
  %4648 = vmatpush1.bf16.msra.mxu0 %v944
  %4649 = vmatprep.subr.bf16.mxu0 0
  %4650 = vmatpush1.bf16.msra.mxu0 %v945
  %4651 = vmatprep.subr.bf16.mxu0 0
  %4652 = vmatpush1.bf16.msra.mxu0 %v946
  %4653 = vmatprep.subr.bf16.mxu0 0
  %4654 = vmatpush1.bf16.msra.mxu0 %v947
  %4655 = vmatprep.subr.bf16.mxu0 0
  %4656 = vmatpush1.bf16.msra.mxu0 0
  %4657 = vmatprep.subr.bf16.mxu0 0
  %4658 = vmatpush1.bf16.msra.mxu0 0
  %4659 = vmatprep.subr.bf16.mxu0 0
  %4660 = vmatpush1.bf16.msra.mxu0 0
  %4661 = vmatprep.subr.bf16.mxu0 0
  %4662 = vmatpush1.bf16.msra.mxu0 0
  %4663 = vmatprep.subr.bf16.mxu0 0
  %4664 = vmatpush1.bf16.msra.mxu0 0
  %4665 = vmatprep.subr.bf16.mxu0 0
  %4666 = vmatpush1.bf16.msra.mxu0 0
  %4667 = vmatprep.subr.bf16.mxu0 0
  %4668 = vmatpush1.bf16.msra.mxu0 0
  %4669 = vmatprep.mubr.bf16.mxu0 %v2679
  %4670 = vmatmul.mubr.bf16.gmra.mrb[0].mxu0 %v2672
  %v4671 = vpop.f32.mrb[0].mxu0
  %v4672 = vadd.f32 0.0, %v4671
  %v4673 = vpop.f32.mrb[0].mxu0
  %v4674 = vpop.f32.mrb[0].mxu0
  %v4675 = vadd.f32 0.0, %v4674
  %v4676 = vpop.f32.mrb[0].mxu0
  %4677 = vmatprep.mubr.bf16.mxu0 %v2682
  %4678 = vmatmul.mubr.bf16.gmra.mrb[0].mxu0 %v2674
  %v4679 = vpop.f32.mrb[0].mxu0
  %v4680 = vadd.f32 0.0, %v4679
  %v4681 = vpop.f32.mrb[0].mxu0
  %v4682 = vpop.f32.mrb[0].mxu0
  %v4683 = vadd.f32 0.0, %v4682
  %v4684 = vpop.f32.mrb[0].mxu0
  %4685 = vdwg.mxu0
  %v4686 = vpack.c.bf16 %v4675, %v4672
  %v4687 = vpack.c.bf16 %v4683, %v4680
  %v4689 = vsel %vm599, %v4686, 0
  %v4692 = vsel %vm599, %v4687, 0
  %4694 = vmatprep.subr.bf16.mxu0 0
  %4695 = vmatpush1.bf16.msra.mxu0 %v2748
  %4696 = vmatprep.subr.bf16.mxu0 0
  %4697 = vmatpush1.bf16.msra.mxu0 %v2749
  %4698 = vmatprep.subr.bf16.mxu0 0
  %4699 = vmatpush1.bf16.msra.mxu0 0
  %4700 = vmatprep.subr.bf16.mxu0 0
  %4701 = vmatpush1.bf16.msra.mxu0 0
  %4702 = vmatprep.subr.bf16.mxu0 0
  %4703 = vmatpush1.bf16.msra.mxu0 0
  %4704 = vmatprep.subr.bf16.mxu0 0
  %4705 = vmatpush1.bf16.msra.mxu0 0
  %4706 = vmatprep.subr.bf16.mxu0 0
  %4707 = vmatpush1.bf16.msra.mxu0 0
  %4708 = vmatprep.subr.bf16.mxu0 0
  %4709 = vmatpush1.bf16.msra.mxu0 0
  %4710 = vmatprep.subr.bf16.mxu0 0
  %4711 = vmatpush1.bf16.msra.mxu0 0
  %4712 = vmatprep.subr.bf16.mxu0 0
  %4713 = vmatpush1.bf16.msra.mxu0 0
  %4714 = vmatprep.subr.bf16.mxu0 0
  %4715 = vmatpush1.bf16.msra.mxu0 0
  %4716 = vmatprep.subr.bf16.mxu0 0
  %4717 = vmatpush1.bf16.msra.mxu0 0
  %4718 = vmatprep.subr.bf16.mxu0 0
  %4719 = vmatpush1.bf16.msra.mxu0 0
  %4720 = vmatprep.subr.bf16.mxu0 0
  %4721 = vmatpush1.bf16.msra.mxu0 0
  %4722 = vmatprep.subr.bf16.mxu0 0
  %4723 = vmatpush1.bf16.msra.mxu0 0
  %4724 = vmatprep.subr.bf16.mxu0 0
  %4725 = vmatpush1.bf16.msra.mxu0 0
  %4726 = vmatprep.mubr.bf16.mxu0 0
  %4727 = vmatmul.mubr.bf16.gmra.mrb[0].mxu0 %v4689
  %v4728 = vpop.f32.mrb[0].mxu0
  %v4729 = vadd.f32 0.0, %v4728
  %v4730 = vpop.f32.mrb[0].mxu0
  %v4731 = vpop.f32.mrb[0].mxu0
  %v4732 = vadd.f32 0.0, %v4731
  %v4733 = vpop.f32.mrb[0].mxu0
  %4734 = vmatprep.mubr.bf16.mxu0 0
  %4735 = vmatmul.mubr.bf16.gmra.mrb[0].mxu0 %v4692
  %v4736 = vpop.f32.mrb[0].mxu0
  %v4737 = vadd.f32 0.0, %v4736
  %v4738 = vpop.f32.mrb[0].mxu0
  %v4739 = vpop.f32.mrb[0].mxu0
  %v4740 = vadd.f32 0.0, %v4739
  %v4741 = vpop.f32.mrb[0].mxu0
  %4742 = vdwg.mxu0
  %v4743 = vadd.f32 %v4633, %v4729
  %v4744 = vadd.f32 %v4634, %v4732
  %v4745 = vadd.f32 %v4635, %v4737
  %v4746 = vadd.f32 %v4636, %v4740
  %4747 = vmatprep.subr.bf16.mxu0 0
  %4748 = vmatpush1.bf16.msra.mxu0 %v939
  %4749 = vmatprep.subr.bf16.mxu0 0
  %4750 = vmatpush1.bf16.msra.mxu0 %v940
  %4751 = vmatprep.subr.bf16.mxu0 0
  %4752 = vmatpush1.bf16.msra.mxu0 %v941
  %4753 = vmatprep.subr.bf16.mxu0 0
  %4754 = vmatpush1.bf16.msra.mxu0 %v942
  %4755 = vmatprep.subr.bf16.mxu0 0
  %4756 = vmatpush1.bf16.msra.mxu0 %v943
  %4757 = vmatprep.subr.bf16.mxu0 0
  %4758 = vmatpush1.bf16.msra.mxu0 %v944
  %4759 = vmatprep.subr.bf16.mxu0 0
  %4760 = vmatpush1.bf16.msra.mxu0 %v945
  %4761 = vmatprep.subr.bf16.mxu0 0
  %4762 = vmatpush1.bf16.msra.mxu0 %v946
  %4763 = vmatprep.subr.bf16.mxu0 0
  %4764 = vmatpush1.bf16.msra.mxu0 %v947
  %4765 = vmatprep.subr.bf16.mxu0 0
  %4766 = vmatpush1.bf16.msra.mxu0 0
  %4767 = vmatprep.subr.bf16.mxu0 0
  %4768 = vmatpush1.bf16.msra.mxu0 0
  %4769 = vmatprep.subr.bf16.mxu0 0
  %4770 = vmatpush1.bf16.msra.mxu0 0
  %4771 = vmatprep.subr.bf16.mxu0 0
  %4772 = vmatpush1.bf16.msra.mxu0 0
  %4773 = vmatprep.subr.bf16.mxu0 0
  %4774 = vmatpush1.bf16.msra.mxu0 0
  %4775 = vmatprep.subr.bf16.mxu0 0
  %4776 = vmatpush1.bf16.msra.mxu0 0
  %4777 = vmatprep.subr.bf16.mxu0 0
  %4778 = vmatpush1.bf16.msra.mxu0 0
  %4779 = vmatprep.mubr.bf16.mxu0 %v2835
  %4780 = vmatmul.mubr.bf16.gmra.mrb[0].mxu0 %v2828
  %v4781 = vpop.f32.mrb[0].mxu0
  %v4782 = vadd.f32 0.0, %v4781
  %v4783 = vpop.f32.mrb[0].mxu0
  %v4784 = vpop.f32.mrb[0].mxu0
  %v4785 = vadd.f32 0.0, %v4784
  %v4786 = vpop.f32.mrb[0].mxu0
  %4787 = vmatprep.mubr.bf16.mxu0 %v2838
  %4788 = vmatmul.mubr.bf16.gmra.mrb[0].mxu0 %v2830
  %v4789 = vpop.f32.mrb[0].mxu0
  %v4790 = vadd.f32 0.0, %v4789
  %v4791 = vpop.f32.mrb[0].mxu0
  %v4792 = vpop.f32.mrb[0].mxu0
  %v4793 = vadd.f32 0.0, %v4792
  %v4794 = vpop.f32.mrb[0].mxu0
  %4795 = vdwg.mxu0
  %v4796 = vpack.c.bf16 %v4785, %v4782
  %v4797 = vpack.c.bf16 %v4793, %v4790
  %v4799 = vsel %vm599, %v4796, 0
  %v4802 = vsel %vm599, %v4797, 0
  %4804 = vmatprep.subr.bf16.mxu0 0
  %4805 = vmatpush1.bf16.msra.mxu0 %v2904
  %4806 = vmatprep.subr.bf16.mxu0 0
  %4807 = vmatpush1.bf16.msra.mxu0 %v2905
  %4808 = vmatprep.subr.bf16.mxu0 0
  %4809 = vmatpush1.bf16.msra.mxu0 0
  %4810 = vmatprep.subr.bf16.mxu0 0
  %4811 = vmatpush1.bf16.msra.mxu0 0
  %4812 = vmatprep.subr.bf16.mxu0 0
  %4813 = vmatpush1.bf16.msra.mxu0 0
  %4814 = vmatprep.subr.bf16.mxu0 0
  %4815 = vmatpush1.bf16.msra.mxu0 0
  %4816 = vmatprep.subr.bf16.mxu0 0
  %4817 = vmatpush1.bf16.msra.mxu0 0
  %4818 = vmatprep.subr.bf16.mxu0 0
  %4819 = vmatpush1.bf16.msra.mxu0 0
  %4820 = vmatprep.subr.bf16.mxu0 0
  %4821 = vmatpush1.bf16.msra.mxu0 0
  %4822 = vmatprep.subr.bf16.mxu0 0
  %4823 = vmatpush1.bf16.msra.mxu0 0
  %4824 = vmatprep.subr.bf16.mxu0 0
  %4825 = vmatpush1.bf16.msra.mxu0 0
  %4826 = vmatprep.subr.bf16.mxu0 0
  %4827 = vmatpush1.bf16.msra.mxu0 0
  %4828 = vmatprep.subr.bf16.mxu0 0
  %4829 = vmatpush1.bf16.msra.mxu0 0
  %4830 = vmatprep.subr.bf16.mxu0 0
  %4831 = vmatpush1.bf16.msra.mxu0 0
  %4832 = vmatprep.subr.bf16.mxu0 0
  %4833 = vmatpush1.bf16.msra.mxu0 0
  %4834 = vmatprep.subr.bf16.mxu0 0
  %4835 = vmatpush1.bf16.msra.mxu0 0
  %4836 = vmatprep.mubr.bf16.mxu0 0
  %4837 = vmatmul.mubr.bf16.gmra.mrb[0].mxu0 %v4799
  %v4838 = vpop.f32.mrb[0].mxu0
  %v4839 = vadd.f32 0.0, %v4838
  %v4840 = vpop.f32.mrb[0].mxu0
  %v4841 = vpop.f32.mrb[0].mxu0
  %v4842 = vadd.f32 0.0, %v4841
  %v4843 = vpop.f32.mrb[0].mxu0
  %4844 = vmatprep.mubr.bf16.mxu0 0
  %4845 = vmatmul.mubr.bf16.gmra.mrb[0].mxu0 %v4802
  %v4846 = vpop.f32.mrb[0].mxu0
  %v4847 = vadd.f32 0.0, %v4846
  %v4848 = vpop.f32.mrb[0].mxu0
  %v4849 = vpop.f32.mrb[0].mxu0
  %v4850 = vadd.f32 0.0, %v4849
  %v4851 = vpop.f32.mrb[0].mxu0
  %4852 = vdwg.mxu0
  %v4853 = vadd.f32 %v4743, %v4839
  %v4854 = vadd.f32 %v4744, %v4842
  %v4855 = vadd.f32 %v4745, %v4847
  %v4856 = vadd.f32 %v4746, %v4850
  %4857 = vmatprep.subr.bf16.mxu0 0
  %4858 = vmatpush1.bf16.msra.mxu0 %v939
  %4859 = vmatprep.subr.bf16.mxu0 0
  %4860 = vmatpush1.bf16.msra.mxu0 %v940
  %4861 = vmatprep.subr.bf16.mxu0 0
  %4862 = vmatpush1.bf16.msra.mxu0 %v941
  %4863 = vmatprep.subr.bf16.mxu0 0
  %4864 = vmatpush1.bf16.msra.mxu0 %v942
  %4865 = vmatprep.subr.bf16.mxu0 0
  %4866 = vmatpush1.bf16.msra.mxu0 %v943
  %4867 = vmatprep.subr.bf16.mxu0 0
  %4868 = vmatpush1.bf16.msra.mxu0 %v944
  %4869 = vmatprep.subr.bf16.mxu0 0
  %4870 = vmatpush1.bf16.msra.mxu0 %v945
  %4871 = vmatprep.subr.bf16.mxu0 0
  %4872 = vmatpush1.bf16.msra.mxu0 %v946
  %4873 = vmatprep.subr.bf16.mxu0 0
  %4874 = vmatpush1.bf16.msra.mxu0 %v947
  %4875 = vmatprep.subr.bf16.mxu0 0
  %4876 = vmatpush1.bf16.msra.mxu0 0
  %4877 = vmatprep.subr.bf16.mxu0 0
  %4878 = vmatpush1.bf16.msra.mxu0 0
  %4879 = vmatprep.subr.bf16.mxu0 0
  %4880 = vmatpush1.bf16.msra.mxu0 0
  %4881 = vmatprep.subr.bf16.mxu0 0
  %4882 = vmatpush1.bf16.msra.mxu0 0
  %4883 = vmatprep.subr.bf16.mxu0 0
  %4884 = vmatpush1.bf16.msra.mxu0 0
  %4885 = vmatprep.subr.bf16.mxu0 0
  %4886 = vmatpush1.bf16.msra.mxu0 0
  %4887 = vmatprep.subr.bf16.mxu0 0
  %4888 = vmatpush1.bf16.msra.mxu0 0
  %4889 = vmatprep.mubr.bf16.mxu0 %v2991
  %4890 = vmatmul.mubr.bf16.gmra.mrb[0].mxu0 %v2984
  %v4891 = vpop.f32.mrb[0].mxu0
  %v4892 = vadd.f32 0.0, %v4891
  %v4893 = vpop.f32.mrb[0].mxu0
  %v4894 = vpop.f32.mrb[0].mxu0
  %v4895 = vadd.f32 0.0, %v4894
  %v4896 = vpop.f32.mrb[0].mxu0
  %4897 = vmatprep.mubr.bf16.mxu0 %v2994
  %4898 = vmatmul.mubr.bf16.gmra.mrb[0].mxu0 %v2986
  %v4899 = vpop.f32.mrb[0].mxu0
  %v4900 = vadd.f32 0.0, %v4899
  %v4901 = vpop.f32.mrb[0].mxu0
  %v4902 = vpop.f32.mrb[0].mxu0
  %v4903 = vadd.f32 0.0, %v4902
  %v4904 = vpop.f32.mrb[0].mxu0
  %4905 = vdwg.mxu0
  %v4906 = vpack.c.bf16 %v4895, %v4892
  %v4907 = vpack.c.bf16 %v4903, %v4900
  %v4909 = vsel %vm599, %v4906, 0
  %v4912 = vsel %vm599, %v4907, 0
  %4914 = vmatprep.subr.bf16.mxu0 0
  %4915 = vmatpush1.bf16.msra.mxu0 %v3060
  %4916 = vmatprep.subr.bf16.mxu0 0
  %4917 = vmatpush1.bf16.msra.mxu0 %v3061
  %4918 = vmatprep.subr.bf16.mxu0 0
  %4919 = vmatpush1.bf16.msra.mxu0 0
  %4920 = vmatprep.subr.bf16.mxu0 0
  %4921 = vmatpush1.bf16.msra.mxu0 0
  %4922 = vmatprep.subr.bf16.mxu0 0
  %4923 = vmatpush1.bf16.msra.mxu0 0
  %4924 = vmatprep.subr.bf16.mxu0 0
  %4925 = vmatpush1.bf16.msra.mxu0 0
  %4926 = vmatprep.subr.bf16.mxu0 0
  %4927 = vmatpush1.bf16.msra.mxu0 0
  %4928 = vmatprep.subr.bf16.mxu0 0
  %4929 = vmatpush1.bf16.msra.mxu0 0
  %4930 = vmatprep.subr.bf16.mxu0 0
  %4931 = vmatpush1.bf16.msra.mxu0 0
  %4932 = vmatprep.subr.bf16.mxu0 0
  %4933 = vmatpush1.bf16.msra.mxu0 0
  %4934 = vmatprep.subr.bf16.mxu0 0
  %4935 = vmatpush1.bf16.msra.mxu0 0
  %4936 = vmatprep.subr.bf16.mxu0 0
  %4937 = vmatpush1.bf16.msra.mxu0 0
  %4938 = vmatprep.subr.bf16.mxu0 0
  %4939 = vmatpush1.bf16.msra.mxu0 0
  %4940 = vmatprep.subr.bf16.mxu0 0
  %4941 = vmatpush1.bf16.msra.mxu0 0
  %4942 = vmatprep.subr.bf16.mxu0 0
  %4943 = vmatpush1.bf16.msra.mxu0 0
  %4944 = vmatprep.subr.bf16.mxu0 0
  %4945 = vmatpush1.bf16.msra.mxu0 0
  %4946 = vmatprep.mubr.bf16.mxu0 0
  %4947 = vmatmul.mubr.bf16.gmra.mrb[0].mxu0 %v4909
  %v4948 = vpop.f32.mrb[0].mxu0
  %v4949 = vadd.f32 0.0, %v4948
  %v4950 = vpop.f32.mrb[0].mxu0
  %v4951 = vpop.f32.mrb[0].mxu0
  %v4952 = vadd.f32 0.0, %v4951
  %v4953 = vpop.f32.mrb[0].mxu0
  %4954 = vmatprep.mubr.bf16.mxu0 0
  %4955 = vmatmul.mubr.bf16.gmra.mrb[0].mxu0 %v4912
  %v4956 = vpop.f32.mrb[0].mxu0
  %v4957 = vadd.f32 0.0, %v4956
  %v4958 = vpop.f32.mrb[0].mxu0
  %v4959 = vpop.f32.mrb[0].mxu0
  %v4960 = vadd.f32 0.0, %v4959
  %v4961 = vpop.f32.mrb[0].mxu0
  %4962 = vdwg.mxu0
  %v4963 = vadd.f32 %v4853, %v4949
  %v4964 = vadd.f32 %v4854, %v4952
  %v4965 = vadd.f32 %v4855, %v4957
  %v4966 = vadd.f32 %v4856, %v4960
  %4967 = vmatprep.subr.bf16.mxu0 0
  %4968 = vmatpush1.bf16.msra.mxu0 %v939
  %4969 = vmatprep.subr.bf16.mxu0 0
  %4970 = vmatpush1.bf16.msra.mxu0 %v940
  %4971 = vmatprep.subr.bf16.mxu0 0
  %4972 = vmatpush1.bf16.msra.mxu0 %v941
  %4973 = vmatprep.subr.bf16.mxu0 0
  %4974 = vmatpush1.bf16.msra.mxu0 %v942
  %4975 = vmatprep.subr.bf16.mxu0 0
  %4976 = vmatpush1.bf16.msra.mxu0 %v943
  %4977 = vmatprep.subr.bf16.mxu0 0
  %4978 = vmatpush1.bf16.msra.mxu0 %v944
  %4979 = vmatprep.subr.bf16.mxu0 0
  %4980 = vmatpush1.bf16.msra.mxu0 %v945
  %4981 = vmatprep.subr.bf16.mxu0 0
  %4982 = vmatpush1.bf16.msra.mxu0 %v946
  %4983 = vmatprep.subr.bf16.mxu0 0
  %4984 = vmatpush1.bf16.msra.mxu0 %v947
  %4985 = vmatprep.subr.bf16.mxu0 0
  %4986 = vmatpush1.bf16.msra.mxu0 0
  %4987 = vmatprep.subr.bf16.mxu0 0
  %4988 = vmatpush1.bf16.msra.mxu0 0
  %4989 = vmatprep.subr.bf16.mxu0 0
  %4990 = vmatpush1.bf16.msra.mxu0 0
  %4991 = vmatprep.subr.bf16.mxu0 0
  %4992 = vmatpush1.bf16.msra.mxu0 0
  %4993 = vmatprep.subr.bf16.mxu0 0
  %4994 = vmatpush1.bf16.msra.mxu0 0
  %4995 = vmatprep.subr.bf16.mxu0 0
  %4996 = vmatpush1.bf16.msra.mxu0 0
  %4997 = vmatprep.subr.bf16.mxu0 0
  %4998 = vmatpush1.bf16.msra.mxu0 0
  %4999 = vmatprep.mubr.bf16.mxu0 %v3147
  %5000 = vmatmul.mubr.bf16.gmra.mrb[0].mxu0 %v3140
  %v5001 = vpop.f32.mrb[0].mxu0
  %v5002 = vadd.f32 0.0, %v5001
  %v5003 = vpop.f32.mrb[0].mxu0
  %v5004 = vpop.f32.mrb[0].mxu0
  %v5005 = vadd.f32 0.0, %v5004
  %v5006 = vpop.f32.mrb[0].mxu0
  %5007 = vmatprep.mubr.bf16.mxu0 %v3150
  %5008 = vmatmul.mubr.bf16.gmra.mrb[0].mxu0 %v3142
  %v5009 = vpop.f32.mrb[0].mxu0
  %v5010 = vadd.f32 0.0, %v5009
  %v5011 = vpop.f32.mrb[0].mxu0
  %v5012 = vpop.f32.mrb[0].mxu0
  %v5013 = vadd.f32 0.0, %v5012
  %v5014 = vpop.f32.mrb[0].mxu0
  %5015 = vdwg.mxu0
  %v5016 = vpack.c.bf16 %v5005, %v5002
  %v5017 = vpack.c.bf16 %v5013, %v5010
  %v5019 = vsel %vm599, %v5016, 0
  %v5022 = vsel %vm599, %v5017, 0
  %5024 = vmatprep.subr.bf16.mxu0 0
  %5025 = vmatpush1.bf16.msra.mxu0 %v3216
  %5026 = vmatprep.subr.bf16.mxu0 0
  %5027 = vmatpush1.bf16.msra.mxu0 %v3217
  %5028 = vmatprep.subr.bf16.mxu0 0
  %5029 = vmatpush1.bf16.msra.mxu0 0
  %5030 = vmatprep.subr.bf16.mxu0 0
  %5031 = vmatpush1.bf16.msra.mxu0 0
  %5032 = vmatprep.subr.bf16.mxu0 0
  %5033 = vmatpush1.bf16.msra.mxu0 0
  %5034 = vmatprep.subr.bf16.mxu0 0
  %5035 = vmatpush1.bf16.msra.mxu0 0
  %5036 = vmatprep.subr.bf16.mxu0 0
  %5037 = vmatpush1.bf16.msra.mxu0 0
  %5038 = vmatprep.subr.bf16.mxu0 0
  %5039 = vmatpush1.bf16.msra.mxu0 0
  %5040 = vmatprep.subr.bf16.mxu0 0
  %5041 = vmatpush1.bf16.msra.mxu0 0
  %5042 = vmatprep.subr.bf16.mxu0 0
  %5043 = vmatpush1.bf16.msra.mxu0 0
  %5044 = vmatprep.subr.bf16.mxu0 0
  %5045 = vmatpush1.bf16.msra.mxu0 0
  %5046 = vmatprep.subr.bf16.mxu0 0
  %5047 = vmatpush1.bf16.msra.mxu0 0
  %5048 = vmatprep.subr.bf16.mxu0 0
  %5049 = vmatpush1.bf16.msra.mxu0 0
  %5050 = vmatprep.subr.bf16.mxu0 0
  %5051 = vmatpush1.bf16.msra.mxu0 0
  %5052 = vmatprep.subr.bf16.mxu0 0
  %5053 = vmatpush1.bf16.msra.mxu0 0
  %5054 = vmatprep.subr.bf16.mxu0 0
  %5055 = vmatpush1.bf16.msra.mxu0 0
  %5056 = vmatprep.mubr.bf16.mxu0 0
  %5057 = vmatmul.mubr.bf16.gmra.mrb[0].mxu0 %v5019
  %v5058 = vpop.f32.mrb[0].mxu0
  %v5059 = vadd.f32 0.0, %v5058
  %v5060 = vpop.f32.mrb[0].mxu0
  %v5061 = vpop.f32.mrb[0].mxu0
  %v5062 = vadd.f32 0.0, %v5061
  %v5063 = vpop.f32.mrb[0].mxu0
  %5064 = vmatprep.mubr.bf16.mxu0 0
  %5065 = vmatmul.mubr.bf16.gmra.mrb[0].mxu0 %v5022
  %v5066 = vpop.f32.mrb[0].mxu0
  %v5067 = vadd.f32 0.0, %v5066
  %v5068 = vpop.f32.mrb[0].mxu0
  %v5069 = vpop.f32.mrb[0].mxu0
  %v5070 = vadd.f32 0.0, %v5069
  %v5071 = vpop.f32.mrb[0].mxu0
  %5072 = vdwg.mxu0
  %v5073 = vadd.f32 %v4963, %v5059
  %v5074 = vadd.f32 %v4964, %v5062
  %v5075 = vadd.f32 %v4965, %v5067
  %v5076 = vadd.f32 %v4966, %v5070
  %5077 = vmatprep.subr.bf16.mxu0 0
  %5078 = vmatpush1.bf16.msra.mxu0 %v939
  %5079 = vmatprep.subr.bf16.mxu0 0
  %5080 = vmatpush1.bf16.msra.mxu0 %v940
  %5081 = vmatprep.subr.bf16.mxu0 0
  %5082 = vmatpush1.bf16.msra.mxu0 %v941
  %5083 = vmatprep.subr.bf16.mxu0 0
  %5084 = vmatpush1.bf16.msra.mxu0 %v942
  %5085 = vmatprep.subr.bf16.mxu0 0
  %5086 = vmatpush1.bf16.msra.mxu0 %v943
  %5087 = vmatprep.subr.bf16.mxu0 0
  %5088 = vmatpush1.bf16.msra.mxu0 %v944
  %5089 = vmatprep.subr.bf16.mxu0 0
  %5090 = vmatpush1.bf16.msra.mxu0 %v945
  %5091 = vmatprep.subr.bf16.mxu0 0
  %5092 = vmatpush1.bf16.msra.mxu0 %v946
  %5093 = vmatprep.subr.bf16.mxu0 0
  %5094 = vmatpush1.bf16.msra.mxu0 %v947
  %5095 = vmatprep.subr.bf16.mxu0 0
  %5096 = vmatpush1.bf16.msra.mxu0 0
  %5097 = vmatprep.subr.bf16.mxu0 0
  %5098 = vmatpush1.bf16.msra.mxu0 0
  %5099 = vmatprep.subr.bf16.mxu0 0
  %5100 = vmatpush1.bf16.msra.mxu0 0
  %5101 = vmatprep.subr.bf16.mxu0 0
  %5102 = vmatpush1.bf16.msra.mxu0 0
  %5103 = vmatprep.subr.bf16.mxu0 0
  %5104 = vmatpush1.bf16.msra.mxu0 0
  %5105 = vmatprep.subr.bf16.mxu0 0
  %5106 = vmatpush1.bf16.msra.mxu0 0
  %5107 = vmatprep.subr.bf16.mxu0 0
  %5108 = vmatpush1.bf16.msra.mxu0 0
  %5109 = vmatprep.mubr.bf16.mxu0 %v3303
  %5110 = vmatmul.mubr.bf16.gmra.mrb[0].mxu0 %v3296
  %v5111 = vpop.f32.mrb[0].mxu0
  %v5112 = vadd.f32 0.0, %v5111
  %v5113 = vpop.f32.mrb[0].mxu0
  %v5114 = vpop.f32.mrb[0].mxu0
  %v5115 = vadd.f32 0.0, %v5114
  %v5116 = vpop.f32.mrb[0].mxu0
  %5117 = vmatprep.mubr.bf16.mxu0 %v3306
  %5118 = vmatmul.mubr.bf16.gmra.mrb[0].mxu0 %v3298
  %v5119 = vpop.f32.mrb[0].mxu0
  %v5120 = vadd.f32 0.0, %v5119
  %v5121 = vpop.f32.mrb[0].mxu0
  %v5122 = vpop.f32.mrb[0].mxu0
  %v5123 = vadd.f32 0.0, %v5122
  %v5124 = vpop.f32.mrb[0].mxu0
  %5125 = vdwg.mxu0
  %v5126 = vpack.c.bf16 %v5115, %v5112
  %v5127 = vpack.c.bf16 %v5123, %v5120
  %v5129 = vsel %vm599, %v5126, 0
  %v5132 = vsel %vm599, %v5127, 0
  %5134 = vmatprep.subr.bf16.mxu0 0
  %5135 = vmatpush1.bf16.msra.mxu0 %v3372
  %5136 = vmatprep.subr.bf16.mxu0 0
  %5137 = vmatpush1.bf16.msra.mxu0 %v3373
  %5138 = vmatprep.subr.bf16.mxu0 0
  %5139 = vmatpush1.bf16.msra.mxu0 0
  %5140 = vmatprep.subr.bf16.mxu0 0
  %5141 = vmatpush1.bf16.msra.mxu0 0
  %5142 = vmatprep.subr.bf16.mxu0 0
  %5143 = vmatpush1.bf16.msra.mxu0 0
  %5144 = vmatprep.subr.bf16.mxu0 0
  %5145 = vmatpush1.bf16.msra.mxu0 0
  %5146 = vmatprep.subr.bf16.mxu0 0
  %5147 = vmatpush1.bf16.msra.mxu0 0
  %5148 = vmatprep.subr.bf16.mxu0 0
  %5149 = vmatpush1.bf16.msra.mxu0 0
  %5150 = vmatprep.subr.bf16.mxu0 0
  %5151 = vmatpush1.bf16.msra.mxu0 0
  %5152 = vmatprep.subr.bf16.mxu0 0
  %5153 = vmatpush1.bf16.msra.mxu0 0
  %5154 = vmatprep.subr.bf16.mxu0 0
  %5155 = vmatpush1.bf16.msra.mxu0 0
  %5156 = vmatprep.subr.bf16.mxu0 0
  %5157 = vmatpush1.bf16.msra.mxu0 0
  %5158 = vmatprep.subr.bf16.mxu0 0
  %5159 = vmatpush1.bf16.msra.mxu0 0
  %5160 = vmatprep.subr.bf16.mxu0 0
  %5161 = vmatpush1.bf16.msra.mxu0 0
  %5162 = vmatprep.subr.bf16.mxu0 0
  %5163 = vmatpush1.bf16.msra.mxu0 0
  %5164 = vmatprep.subr.bf16.mxu0 0
  %5165 = vmatpush1.bf16.msra.mxu0 0
  %5166 = vmatprep.mubr.bf16.mxu0 0
  %5167 = vmatmul.mubr.bf16.gmra.mrb[0].mxu0 %v5129
  %v5168 = vpop.f32.mrb[0].mxu0
  %v5169 = vadd.f32 0.0, %v5168
  %v5170 = vpop.f32.mrb[0].mxu0
  %v5171 = vpop.f32.mrb[0].mxu0
  %v5172 = vadd.f32 0.0, %v5171
  %v5173 = vpop.f32.mrb[0].mxu0
  %5174 = vmatprep.mubr.bf16.mxu0 0
  %5175 = vmatmul.mubr.bf16.gmra.mrb[0].mxu0 %v5132
  %v5176 = vpop.f32.mrb[0].mxu0
  %v5177 = vadd.f32 0.0, %v5176
  %v5178 = vpop.f32.mrb[0].mxu0
  %v5179 = vpop.f32.mrb[0].mxu0
  %v5180 = vadd.f32 0.0, %v5179
  %v5181 = vpop.f32.mrb[0].mxu0
  %5182 = vdwg.mxu0
  %v5183 = vadd.f32 %v5073, %v5169
  %v5184 = vadd.f32 %v5074, %v5172
  %v5185 = vadd.f32 %v5075, %v5177
  %v5186 = vadd.f32 %v5076, %v5180
  %v5187 = vld [vmem:[%s6] sm:$0x1]
  %v5188 = vld [vmem:[%s7] sm:$0x1]
  %vm5189 = vcmask 523264
  %v5190 = vsel %vm5189, %v3431, 0.0
  %v5191 = vsel %vm5189, %v3432, 0.0
  %v5192 = vadd.f32 %v5190, %v5191
  %v5193 = vsel %vm5189, %v3433, 0.0
  %v5194 = vadd.f32 %v5192, %v5193
  %vm5195 = vcmask 516096
  %v5196 = vsel %vm5195, %v3434, 0.0
  %v5197 = vadd.f32 %v5194, %v5196
  %v5198 = vrot.slane %v5197, 4
  %v5199 = vadd.f32 %v5197, %v5198
  %v5200 = vrot.slane %v5199, 2
  %v5201 = vadd.f32 %v5199, %v5200
  %v5202 = vrot.slane %v5201, 1
  %v5203 = vadd.f32 %v5201, %v5202
  %v5204 = vmul.f32 %v3431, %v3431
  %v5205 = vmul.f32 %v3432, %v3432
  %v5206 = vmul.f32 %v3433, %v3433
  %v5207 = vmul.f32 %v3434, %v3434
  %v5208 = vsel %vm5189, %v5204, 0.0
  %v5209 = vsel %vm5189, %v5205, 0.0
  %v5210 = vadd.f32 %v5208, %v5209
  %v5211 = vsel %vm5189, %v5206, 0.0
  %v5212 = vadd.f32 %v5210, %v5211
  %v5213 = vsel %vm5195, %v5207, 0.0
  %v5214 = vadd.f32 %v5212, %v5213
  %v5215 = vrot.slane %v5214, 4
  %v5216 = vadd.f32 %v5214, %v5215
  %v5217 = vrot.slane %v5216, 2
  %v5218 = vadd.f32 %v5216, %v5217
  %v5219 = vrot.slane %v5218, 1
  %v5220 = vadd.f32 %v5218, %v5219
  %v5221 = vsel %vm5189, %v5183, 0.0
  %v5222 = vsel %vm5189, %v5184, 0.0
  %v5223 = vadd.f32 %v5221, %v5222
  %v5224 = vsel %vm5189, %v5185, 0.0
  %v5225 = vadd.f32 %v5223, %v5224
  %v5226 = vsel %vm5195, %v5186, 0.0
  %v5227 = vadd.f32 %v5225, %v5226
  %v5228 = vrot.slane %v5227, 4
  %v5229 = vadd.f32 %v5227, %v5228
  %v5230 = vrot.slane %v5229, 2
  %v5231 = vadd.f32 %v5229, %v5230
  %v5232 = vrot.slane %v5231, 1
  %v5233 = vadd.f32 %v5231, %v5232
  %v5234 = vadd.f32 %v5203, %v5233
  %v5235 = vmul.f32 %v5183, %v5183
  %v5236 = vmul.f32 %v5184, %v5184
  %v5237 = vmul.f32 %v5185, %v5185
  %v5238 = vmul.f32 %v5186, %v5186
  %v5239 = vsel %vm5189, %v5235, 0.0
  %v5240 = vsel %vm5189, %v5236, 0.0
  %v5241 = vadd.f32 %v5239, %v5240
  %v5242 = vsel %vm5189, %v5237, 0.0
  %v5243 = vadd.f32 %v5241, %v5242
  %v5244 = vsel %vm5195, %v5238, 0.0
  %v5245 = vadd.f32 %v5243, %v5244
  %v5246 = vrot.slane %v5245, 4
  %v5247 = vadd.f32 %v5245, %v5246
  %v5248 = vrot.slane %v5247, 2
  %v5249 = vadd.f32 %v5247, %v5248
  %v5250 = vrot.slane %v5249, 1
  %v5251 = vadd.f32 %v5249, %v5250
  %v5252 = vadd.f32 %v5220, %v5251
  %v5253 = vmul.f32 %v5234, 0.02
  %v5254 = vmul.f32 %v5252, 0.02
  %v5255 = vmul.f32 %v5253, %v5253
  %v5256 = vsub.f32 %v5254, %v5255
  %v5257 = vmax.f32 %v5256, 0.0
  %v5258 = vadd.f32 %v5257, 1e-05
  %v5259 = vrsqrt.pop %v5258
  %v5260 = vmul.f32 %v5259, %v5187
  %v5261 = vmul.f32 %v5253, %v5260
  %v5262 = vsub.f32 %v5188, %v5261
  %v5263 = vlaneseq
  %v5264 = vshrl.u32 %v5263, 7
  %v5265 = vsub.s32 0, %v5264
  %v5266 = vrot.slane %v5260, %v5265
  %v5267 = vmul.f32 %v3431, %v5266
  %v5268 = vmul.f32 %v3432, %v5266
  %v5269 = vmul.f32 %v3433, %v5266
  %v5270 = vmul.f32 %v3434, %v5266
  %v5272 = vlaneseq
  %v5273 = vshrl.u32 %v5272, 7
  %v5274 = vsub.s32 0, %v5273
  %v5275 = vrot.slane %v5262, %v5274
  %v5277 = vadd.f32 %v5267, %v5275
  %v5278 = vadd.f32 %v5268, %v5275
  %v5279 = vadd.f32 %v5269, %v5275
  %v5280 = vadd.f32 %v5270, %v5275
  %v5281 = vmax.f32 %v5277, 0.0
  %v5282 = vmax.f32 %v5278, 0.0
  %v5283 = vmax.f32 %v5279, 0.0
  %v5284 = vmax.f32 %v5280, 0.0
  %v5285 = vpack.c.bf16 %v5282, %v5281
  %v5286 = vpack.c.bf16 %v5284, %v5283
  %v5287 = vmul.f32 %v5183, %v5266
  %v5288 = vmul.f32 %v5184, %v5266
  %v5289 = vmul.f32 %v5185, %v5266
  %v5290 = vmul.f32 %v5186, %v5266
  %v5291 = vadd.f32 %v5287, %v5275
  %v5292 = vadd.f32 %v5288, %v5275
  %v5293 = vadd.f32 %v5289, %v5275
  %v5294 = vadd.f32 %v5290, %v5275
  %v5295 = vmax.f32 %v5291, 0.0
  %v5296 = vmax.f32 %v5292, 0.0
  %v5297 = vmax.f32 %v5293, 0.0
  %v5298 = vmax.f32 %v5294, 0.0
  %v5299 = vpack.c.bf16 %v5296, %v5295
  %v5300 = vpack.c.bf16 %v5298, %v5297
  %v5301 = vld [vmem:[%s8] sm:$0xf]
  %v5302 = vld [vmem:[%s8 + $0x4] sm:$0x1]
  %v5305 = vunpack.c.l.b16 %v5301
  %v5306 = vunpack.c.l.b16 %v5302
  %v5307 = vpack.c.b16 %v5306, %v5305
  %vm5308 = vcmask 203776
  %v5310 = vsel %vm5308, %v5307, 0
  %vm5312 = vcmask 1043456
  %vm5313 = vcmask 1044480
  %v5314 = vsel %vm5312, 4294967295, 65535
  %v5315 = vsel %vm5313, %v5314, 0
  %v5317 = vand.u32 %v5286, %v5315
  %5319 = vmatprep.subr.bf16.mxu0 0
  %5320 = vmatpush1.bf16.msra.mxu0 %v5285
  %5321 = vmatprep.subr.bf16.mxu0 0
  %5322 = vmatpush1.bf16.msra.mxu0 %v5317
  %5323 = vmatprep.subr.bf16.mxu0 0
  %5324 = vmatpush1.bf16.msra.mxu0 0
  %5325 = vmatprep.subr.bf16.mxu0 0
  %5326 = vmatpush1.bf16.msra.mxu0 0
  %5327 = vmatprep.subr.bf16.mxu0 0
  %5328 = vmatpush1.bf16.msra.mxu0 0
  %5329 = vmatprep.subr.bf16.mxu0 0
  %5330 = vmatpush1.bf16.msra.mxu0 0
  %5331 = vmatprep.subr.bf16.mxu0 0
  %5332 = vmatpush1.bf16.msra.mxu0 0
  %5333 = vmatprep.subr.bf16.mxu0 0
  %5334 = vmatpush1.bf16.msra.mxu0 0
  %5335 = vmatprep.subr.bf16.mxu0 0
  %5336 = vmatpush1.bf16.msra.mxu0 0
  %5337 = vmatprep.subr.bf16.mxu0 0
  %5338 = vmatpush1.bf16.msra.mxu0 0
  %5339 = vmatprep.subr.bf16.mxu0 0
  %5340 = vmatpush1.bf16.msra.mxu0 0
  %5341 = vmatprep.subr.bf16.mxu0 0
  %5342 = vmatpush1.bf16.msra.mxu0 0
  %5343 = vmatprep.subr.bf16.mxu0 0
  %5344 = vmatpush1.bf16.msra.mxu0 0
  %5345 = vmatprep.subr.bf16.mxu0 0
  %5346 = vmatpush1.bf16.msra.mxu0 0
  %5347 = vmatprep.subr.bf16.mxu0 0
  %5348 = vmatpush1.bf16.msra.mxu0 0
  %5349 = vmatprep.subr.bf16.mxu0 0
  %5350 = vmatpush1.bf16.msra.mxu0 0
  %5351 = vmatprep.mubr.bf16.mxu0 0
  %5352 = vmatmul.mubr.bf16.gmra.mrb[0].mxu0 %v5310
  %v5353 = vpop.f32.mrb[0].mxu0
  %v5354 = vadd.f32 0.0, %v5353
  %v5355 = vpop.f32.mrb[0].mxu0
  %v5356 = vpop.f32.mrb[0].mxu0
  %v5357 = vadd.f32 0.0, %v5356
  %v5358 = vpop.f32.mrb[0].mxu0
  %5359 = vdwg.mxu0
  %v5360 = vpack.c.bf16 %v5357, %v5354
  %v5361 = vld [vmem:[%s9] sm:$0xf]
  %v5362 = vld [vmem:[%s9 + $0x4] sm:$0xf]
  %v5363 = vld [vmem:[%s9 + $0x8] sm:$0xf]
  %v5364 = vld [vmem:[%s9 + $0xc] sm:$0xf]
  %v5365 = vld [vmem:[%s9 + $0x10] sm:$0xf]
  %v5366 = vld [vmem:[%s9 + $0x14] sm:$0xf]
  %v5367 = vld [vmem:[%s9 + $0x18] sm:$0xf]
  %v5368 = vld [vmem:[%s9 + $0x1c] sm:$0xf]
  %s5369 = scalar_lea.vmem %s8, 8
  %v5370 = vld [vmem:[%s5369] sm:$0xf]
  %v5371 = vld [vmem:[%s5369 + $0x4] sm:$0x1]
  %v5374 = vunpack.c.l.b16 %v5370
  %v5375 = vunpack.c.l.b16 %v5371
  %v5376 = vpack.c.b16 %v5375, %v5374
  %v5378 = vsel %vm5308, %v5376, 0
  %5380 = vmatprep.subr.bf16.mxu0 0
  %5381 = vmatpush1.bf16.msra.mxu0 %v5285
  %5382 = vmatprep.subr.bf16.mxu0 0
  %5383 = vmatpush1.bf16.msra.mxu0 %v5317
  %5384 = vmatprep.subr.bf16.mxu0 0
  %5385 = vmatpush1.bf16.msra.mxu0 0
  %5386 = vmatprep.subr.bf16.mxu0 0
  %5387 = vmatpush1.bf16.msra.mxu0 0
  %5388 = vmatprep.subr.bf16.mxu0 0
  %5389 = vmatpush1.bf16.msra.mxu0 0
  %5390 = vmatprep.subr.bf16.mxu0 0
  %5391 = vmatpush1.bf16.msra.mxu0 0
  %5392 = vmatprep.subr.bf16.mxu0 0
  %5393 = vmatpush1.bf16.msra.mxu0 0
  %5394 = vmatprep.subr.bf16.mxu0 0
  %5395 = vmatpush1.bf16.msra.mxu0 0
  %5396 = vmatprep.subr.bf16.mxu0 0
  %5397 = vmatpush1.bf16.msra.mxu0 0
  %5398 = vmatprep.subr.bf16.mxu0 0
  %5399 = vmatpush1.bf16.msra.mxu0 0
  %5400 = vmatprep.subr.bf16.mxu0 0
  %5401 = vmatpush1.bf16.msra.mxu0 0
  %5402 = vmatprep.subr.bf16.mxu0 0
  %5403 = vmatpush1.bf16.msra.mxu0 0
  %5404 = vmatprep.subr.bf16.mxu0 0
  %5405 = vmatpush1.bf16.msra.mxu0 0
  %5406 = vmatprep.subr.bf16.mxu0 0
  %5407 = vmatpush1.bf16.msra.mxu0 0
  %5408 = vmatprep.subr.bf16.mxu0 0
  %5409 = vmatpush1.bf16.msra.mxu0 0
  %5410 = vmatprep.subr.bf16.mxu0 0
  %5411 = vmatpush1.bf16.msra.mxu0 0
  %5412 = vmatprep.mubr.bf16.mxu0 0
  %5413 = vmatmul.mubr.bf16.gmra.mrb[0].mxu0 %v5378
  %v5414 = vpop.f32.mrb[0].mxu0
  %v5415 = vadd.f32 0.0, %v5414
  %v5416 = vpop.f32.mrb[0].mxu0
  %v5417 = vpop.f32.mrb[0].mxu0
  %v5418 = vadd.f32 0.0, %v5417
  %v5419 = vpop.f32.mrb[0].mxu0
  %5420 = vdwg.mxu0
  %v5421 = vpack.c.bf16 %v5418, %v5415
  %s5422 = scalar_lea.vmem %s9, 32
  %v5423 = vld [vmem:[%s5422] sm:$0xf]
  %v5424 = vld [vmem:[%s5422 + $0x4] sm:$0xf]
  %v5425 = vld [vmem:[%s5422 + $0x8] sm:$0xf]
  %v5426 = vld [vmem:[%s5422 + $0xc] sm:$0xf]
  %v5427 = vld [vmem:[%s5422 + $0x10] sm:$0xf]
  %v5428 = vld [vmem:[%s5422 + $0x14] sm:$0xf]
  %v5429 = vld [vmem:[%s5422 + $0x18] sm:$0xf]
  %v5430 = vld [vmem:[%s5422 + $0x1c] sm:$0xf]
  %v5439 = vunpack.c.l.b16 %v5423
  %v5440 = vunpack.c.l.b16 %v5424
  %v5441 = vunpack.c.l.b16 %v5425
  %v5442 = vunpack.c.l.b16 %v5426
  %v5443 = vunpack.c.l.b16 %v5427
  %v5444 = vunpack.c.l.b16 %v5428
  %v5445 = vunpack.c.l.b16 %v5429
  %v5446 = vunpack.c.l.b16 %v5430
  %v5447 = vpack.c.b16 %v5440, %v5439
  %v5448 = vpack.c.b16 %v5442, %v5441
  %v5449 = vpack.c.b16 %v5444, %v5443
  %v5450 = vpack.c.b16 %v5446, %v5445
  %v5456 = vsel %vm5189, %v5421, 0
  %5458 = vmatprep.subr.bf16.mxu0 0
  %5459 = vmatpush1.bf16.msra.mxu0 %v5447
  %5460 = vmatprep.subr.bf16.mxu0 0
  %5461 = vmatpush1.bf16.msra.mxu0 %v5448
  %5462 = vmatprep.subr.bf16.mxu0 0
  %5463 = vmatpush1.bf16.msra.mxu0 %v5449
  %5464 = vmatprep.subr.bf16.mxu0 0
  %5465 = vmatpush1.bf16.msra.mxu0 %v5450
  %5466 = vmatprep.subr.bf16.mxu0 0
  %5467 = vmatpush1.bf16.msra.mxu0 0
  %5468 = vmatprep.subr.bf16.mxu0 0
  %5469 = vmatpush1.bf16.msra.mxu0 0
  %5470 = vmatprep.subr.bf16.mxu0 0
  %5471 = vmatpush1.bf16.msra.mxu0 0
  %5472 = vmatprep.subr.bf16.mxu0 0
  %5473 = vmatpush1.bf16.msra.mxu0 0
  %5474 = vmatprep.subr.bf16.mxu0 0
  %5475 = vmatpush1.bf16.msra.mxu0 0
  %5476 = vmatprep.subr.bf16.mxu0 0
  %5477 = vmatpush1.bf16.msra.mxu0 0
  %5478 = vmatprep.subr.bf16.mxu0 0
  %5479 = vmatpush1.bf16.msra.mxu0 0
  %5480 = vmatprep.subr.bf16.mxu0 0
  %5481 = vmatpush1.bf16.msra.mxu0 0
  %5482 = vmatprep.subr.bf16.mxu0 0
  %5483 = vmatpush1.bf16.msra.mxu0 0
  %5484 = vmatprep.subr.bf16.mxu0 0
  %5485 = vmatpush1.bf16.msra.mxu0 0
  %5486 = vmatprep.subr.bf16.mxu0 0
  %5487 = vmatpush1.bf16.msra.mxu0 0
  %5488 = vmatprep.subr.bf16.mxu0 0
  %5489 = vmatpush1.bf16.msra.mxu0 0
  %5490 = vmatprep.mubr.bf16.mxu0 0
  %5491 = vmatmul.mubr.bf16.gmra.mrb[0].mxu0 %v5456
  %v5492 = vpop.f32.mrb[0].mxu0
  %v5493 = vadd.f32 0.0, %v5492
  %v5494 = vpop.f32.mrb[0].mxu0
  %v5495 = vpop.f32.mrb[0].mxu0
  %v5496 = vadd.f32 0.0, %v5495
  %v5497 = vpop.f32.mrb[0].mxu0
  %5498 = vdwg.mxu0
  %v5507 = vunpack.c.l.b16 %v5361
  %v5508 = vunpack.c.l.b16 %v5362
  %v5509 = vunpack.c.l.b16 %v5363
  %v5510 = vunpack.c.l.b16 %v5364
  %v5511 = vunpack.c.l.b16 %v5365
  %v5512 = vunpack.c.l.b16 %v5366
  %v5513 = vunpack.c.l.b16 %v5367
  %v5514 = vunpack.c.l.b16 %v5368
  %v5515 = vpack.c.b16 %v5508, %v5507
  %v5516 = vpack.c.b16 %v5510, %v5509
  %v5517 = vpack.c.b16 %v5512, %v5511
  %v5518 = vpack.c.b16 %v5514, %v5513
  %v5524 = vsel %vm5189, %v5360, 0
  %5526 = vmatprep.subr.bf16.mxu0 0
  %5527 = vmatpush1.bf16.msra.mxu0 %v5515
  %5528 = vmatprep.subr.bf16.mxu0 0
  %5529 = vmatpush1.bf16.msra.mxu0 %v5516
  %5530 = vmatprep.subr.bf16.mxu0 0
  %5531 = vmatpush1.bf16.msra.mxu0 %v5517
  %5532 = vmatprep.subr.bf16.mxu0 0
  %5533 = vmatpush1.bf16.msra.mxu0 %v5518
  %5534 = vmatprep.subr.bf16.mxu0 0
  %5535 = vmatpush1.bf16.msra.mxu0 0
  %5536 = vmatprep.subr.bf16.mxu0 0
  %5537 = vmatpush1.bf16.msra.mxu0 0
  %5538 = vmatprep.subr.bf16.mxu0 0
  %5539 = vmatpush1.bf16.msra.mxu0 0
  %5540 = vmatprep.subr.bf16.mxu0 0
  %5541 = vmatpush1.bf16.msra.mxu0 0
  %5542 = vmatprep.subr.bf16.mxu0 0
  %5543 = vmatpush1.bf16.msra.mxu0 0
  %5544 = vmatprep.subr.bf16.mxu0 0
  %5545 = vmatpush1.bf16.msra.mxu0 0
  %5546 = vmatprep.subr.bf16.mxu0 0
  %5547 = vmatpush1.bf16.msra.mxu0 0
  %5548 = vmatprep.subr.bf16.mxu0 0
  %5549 = vmatpush1.bf16.msra.mxu0 0
  %5550 = vmatprep.subr.bf16.mxu0 0
  %5551 = vmatpush1.bf16.msra.mxu0 0
  %5552 = vmatprep.subr.bf16.mxu0 0
  %5553 = vmatpush1.bf16.msra.mxu0 0
  %5554 = vmatprep.subr.bf16.mxu0 0
  %5555 = vmatpush1.bf16.msra.mxu0 0
  %5556 = vmatprep.subr.bf16.mxu0 0
  %5557 = vmatpush1.bf16.msra.mxu0 0
  %5558 = vmatprep.mubr.bf16.mxu0 0
  %5559 = vmatmul.mubr.bf16.gmra.mrb[0].mxu0 %v5524
  %v5560 = vpop.f32.mrb[0].mxu0
  %v5561 = vadd.f32 %v5493, %v5560
  %v5562 = vpop.f32.mrb[0].mxu0
  %v5563 = vpop.f32.mrb[0].mxu0
  %v5564 = vadd.f32 %v5496, %v5563
  %v5565 = vpop.f32.mrb[0].mxu0
  %5566 = vdwg.mxu0
  %s5567 = scalar_lea.vmem %s8, 16
  %v5568 = vld [vmem:[%s5567] sm:$0xf]
  %v5569 = vld [vmem:[%s5567 + $0x4] sm:$0x1]
  %v5572 = vunpack.c.l.b16 %v5568
  %v5573 = vunpack.c.l.b16 %v5569
  %v5574 = vpack.c.b16 %v5573, %v5572
  %v5576 = vsel %vm5308, %v5574, 0
  %5578 = vmatprep.subr.bf16.mxu0 0
  %5579 = vmatpush1.bf16.msra.mxu0 %v5285
  %5580 = vmatprep.subr.bf16.mxu0 0
  %5581 = vmatpush1.bf16.msra.mxu0 %v5317
  %5582 = vmatprep.subr.bf16.mxu0 0
  %5583 = vmatpush1.bf16.msra.mxu0 0
  %5584 = vmatprep.subr.bf16.mxu0 0
  %5585 = vmatpush1.bf16.msra.mxu0 0
  %5586 = vmatprep.subr.bf16.mxu0 0
  %5587 = vmatpush1.bf16.msra.mxu0 0
  %5588 = vmatprep.subr.bf16.mxu0 0
  %5589 = vmatpush1.bf16.msra.mxu0 0
  %5590 = vmatprep.subr.bf16.mxu0 0
  %5591 = vmatpush1.bf16.msra.mxu0 0
  %5592 = vmatprep.subr.bf16.mxu0 0
  %5593 = vmatpush1.bf16.msra.mxu0 0
  %5594 = vmatprep.subr.bf16.mxu0 0
  %5595 = vmatpush1.bf16.msra.mxu0 0
  %5596 = vmatprep.subr.bf16.mxu0 0
  %5597 = vmatpush1.bf16.msra.mxu0 0
  %5598 = vmatprep.subr.bf16.mxu0 0
  %5599 = vmatpush1.bf16.msra.mxu0 0
  %5600 = vmatprep.subr.bf16.mxu0 0
  %5601 = vmatpush1.bf16.msra.mxu0 0
  %5602 = vmatprep.subr.bf16.mxu0 0
  %5603 = vmatpush1.bf16.msra.mxu0 0
  %5604 = vmatprep.subr.bf16.mxu0 0
  %5605 = vmatpush1.bf16.msra.mxu0 0
  %5606 = vmatprep.subr.bf16.mxu0 0
  %5607 = vmatpush1.bf16.msra.mxu0 0
  %5608 = vmatprep.subr.bf16.mxu0 0
  %5609 = vmatpush1.bf16.msra.mxu0 0
  %5610 = vmatprep.mubr.bf16.mxu0 0
  %5611 = vmatmul.mubr.bf16.gmra.mrb[0].mxu0 %v5576
  %v5612 = vpop.f32.mrb[0].mxu0
  %v5613 = vadd.f32 0.0, %v5612
  %v5614 = vpop.f32.mrb[0].mxu0
  %v5615 = vpop.f32.mrb[0].mxu0
  %v5616 = vadd.f32 0.0, %v5615
  %v5617 = vpop.f32.mrb[0].mxu0
  %5618 = vdwg.mxu0
  %v5619 = vpack.c.bf16 %v5616, %v5613
  %s5620 = scalar_lea.vmem %s9, 64
  %v5621 = vld [vmem:[%s5620] sm:$0xf]
  %v5622 = vld [vmem:[%s5620 + $0x4] sm:$0xf]
  %v5623 = vld [vmem:[%s5620 + $0x8] sm:$0xf]
  %v5624 = vld [vmem:[%s5620 + $0xc] sm:$0xf]
  %v5625 = vld [vmem:[%s5620 + $0x10] sm:$0xf]
  %v5626 = vld [vmem:[%s5620 + $0x14] sm:$0xf]
  %v5627 = vld [vmem:[%s5620 + $0x18] sm:$0xf]
  %v5628 = vld [vmem:[%s5620 + $0x1c] sm:$0xf]
  %v5637 = vunpack.c.l.b16 %v5621
  %v5638 = vunpack.c.l.b16 %v5622
  %v5639 = vunpack.c.l.b16 %v5623
  %v5640 = vunpack.c.l.b16 %v5624
  %v5641 = vunpack.c.l.b16 %v5625
  %v5642 = vunpack.c.l.b16 %v5626
  %v5643 = vunpack.c.l.b16 %v5627
  %v5644 = vunpack.c.l.b16 %v5628
  %v5645 = vpack.c.b16 %v5638, %v5637
  %v5646 = vpack.c.b16 %v5640, %v5639
  %v5647 = vpack.c.b16 %v5642, %v5641
  %v5648 = vpack.c.b16 %v5644, %v5643
  %v5654 = vsel %vm5189, %v5619, 0
  %5656 = vmatprep.subr.bf16.mxu0 0
  %5657 = vmatpush1.bf16.msra.mxu0 %v5645
  %5658 = vmatprep.subr.bf16.mxu0 0
  %5659 = vmatpush1.bf16.msra.mxu0 %v5646
  %5660 = vmatprep.subr.bf16.mxu0 0
  %5661 = vmatpush1.bf16.msra.mxu0 %v5647
  %5662 = vmatprep.subr.bf16.mxu0 0
  %5663 = vmatpush1.bf16.msra.mxu0 %v5648
  %5664 = vmatprep.subr.bf16.mxu0 0
  %5665 = vmatpush1.bf16.msra.mxu0 0
  %5666 = vmatprep.subr.bf16.mxu0 0
  %5667 = vmatpush1.bf16.msra.mxu0 0
  %5668 = vmatprep.subr.bf16.mxu0 0
  %5669 = vmatpush1.bf16.msra.mxu0 0
  %5670 = vmatprep.subr.bf16.mxu0 0
  %5671 = vmatpush1.bf16.msra.mxu0 0
  %5672 = vmatprep.subr.bf16.mxu0 0
  %5673 = vmatpush1.bf16.msra.mxu0 0
  %5674 = vmatprep.subr.bf16.mxu0 0
  %5675 = vmatpush1.bf16.msra.mxu0 0
  %5676 = vmatprep.subr.bf16.mxu0 0
  %5677 = vmatpush1.bf16.msra.mxu0 0
  %5678 = vmatprep.subr.bf16.mxu0 0
  %5679 = vmatpush1.bf16.msra.mxu0 0
  %5680 = vmatprep.subr.bf16.mxu0 0
  %5681 = vmatpush1.bf16.msra.mxu0 0
  %5682 = vmatprep.subr.bf16.mxu0 0
  %5683 = vmatpush1.bf16.msra.mxu0 0
  %5684 = vmatprep.subr.bf16.mxu0 0
  %5685 = vmatpush1.bf16.msra.mxu0 0
  %5686 = vmatprep.subr.bf16.mxu0 0
  %5687 = vmatpush1.bf16.msra.mxu0 0
  %5688 = vmatprep.mubr.bf16.mxu0 0
  %5689 = vmatmul.mubr.bf16.gmra.mrb[0].mxu0 %v5654
  %v5690 = vpop.f32.mrb[0].mxu0
  %v5691 = vadd.f32 0.0, %v5690
  %v5692 = vpop.f32.mrb[0].mxu0
  %v5693 = vpop.f32.mrb[0].mxu0
  %v5694 = vadd.f32 0.0, %v5693
  %v5695 = vpop.f32.mrb[0].mxu0
  %5696 = vdwg.mxu0
  %v5697 = vadd.f32 %v5561, %v5691
  %v5698 = vadd.f32 %v5564, %v5694
  %s5699 = scalar_lea.vmem %s8, 24
  %v5700 = vld [vmem:[%s5699] sm:$0xf]
  %v5701 = vld [vmem:[%s5699 + $0x4] sm:$0x1]
  %v5704 = vunpack.c.l.b16 %v5700
  %v5705 = vunpack.c.l.b16 %v5701
  %v5706 = vpack.c.b16 %v5705, %v5704
  %v5708 = vsel %vm5308, %v5706, 0
  %5710 = vmatprep.subr.bf16.mxu0 0
  %5711 = vmatpush1.bf16.msra.mxu0 %v5285
  %5712 = vmatprep.subr.bf16.mxu0 0
  %5713 = vmatpush1.bf16.msra.mxu0 %v5317
  %5714 = vmatprep.subr.bf16.mxu0 0
  %5715 = vmatpush1.bf16.msra.mxu0 0
  %5716 = vmatprep.subr.bf16.mxu0 0
  %5717 = vmatpush1.bf16.msra.mxu0 0
  %5718 = vmatprep.subr.bf16.mxu0 0
  %5719 = vmatpush1.bf16.msra.mxu0 0
  %5720 = vmatprep.subr.bf16.mxu0 0
  %5721 = vmatpush1.bf16.msra.mxu0 0
  %5722 = vmatprep.subr.bf16.mxu0 0
  %5723 = vmatpush1.bf16.msra.mxu0 0
  %5724 = vmatprep.subr.bf16.mxu0 0
  %5725 = vmatpush1.bf16.msra.mxu0 0
  %5726 = vmatprep.subr.bf16.mxu0 0
  %5727 = vmatpush1.bf16.msra.mxu0 0
  %5728 = vmatprep.subr.bf16.mxu0 0
  %5729 = vmatpush1.bf16.msra.mxu0 0
  %5730 = vmatprep.subr.bf16.mxu0 0
  %5731 = vmatpush1.bf16.msra.mxu0 0
  %5732 = vmatprep.subr.bf16.mxu0 0
  %5733 = vmatpush1.bf16.msra.mxu0 0
  %5734 = vmatprep.subr.bf16.mxu0 0
  %5735 = vmatpush1.bf16.msra.mxu0 0
  %5736 = vmatprep.subr.bf16.mxu0 0
  %5737 = vmatpush1.bf16.msra.mxu0 0
  %5738 = vmatprep.subr.bf16.mxu0 0
  %5739 = vmatpush1.bf16.msra.mxu0 0
  %5740 = vmatprep.subr.bf16.mxu0 0
  %5741 = vmatpush1.bf16.msra.mxu0 0
  %5742 = vmatprep.mubr.bf16.mxu0 0
  %5743 = vmatmul.mubr.bf16.gmra.mrb[0].mxu0 %v5708
  %v5744 = vpop.f32.mrb[0].mxu0
  %v5745 = vadd.f32 0.0, %v5744
  %v5746 = vpop.f32.mrb[0].mxu0
  %v5747 = vpop.f32.mrb[0].mxu0
  %v5748 = vadd.f32 0.0, %v5747
  %v5749 = vpop.f32.mrb[0].mxu0
  %5750 = vdwg.mxu0
  %v5751 = vpack.c.bf16 %v5748, %v5745
  %s5752 = scalar_lea.vmem %s9, 96
  %v5753 = vld [vmem:[%s5752] sm:$0xf]
  %v5754 = vld [vmem:[%s5752 + $0x4] sm:$0xf]
  %v5755 = vld [vmem:[%s5752 + $0x8] sm:$0xf]
  %v5756 = vld [vmem:[%s5752 + $0xc] sm:$0xf]
  %v5757 = vld [vmem:[%s5752 + $0x10] sm:$0xf]
  %v5758 = vld [vmem:[%s5752 + $0x14] sm:$0xf]
  %v5759 = vld [vmem:[%s5752 + $0x18] sm:$0xf]
  %v5760 = vld [vmem:[%s5752 + $0x1c] sm:$0xf]
  %v5769 = vunpack.c.l.b16 %v5753
  %v5770 = vunpack.c.l.b16 %v5754
  %v5771 = vunpack.c.l.b16 %v5755
  %v5772 = vunpack.c.l.b16 %v5756
  %v5773 = vunpack.c.l.b16 %v5757
  %v5774 = vunpack.c.l.b16 %v5758
  %v5775 = vunpack.c.l.b16 %v5759
  %v5776 = vunpack.c.l.b16 %v5760
  %v5777 = vpack.c.b16 %v5770, %v5769
  %v5778 = vpack.c.b16 %v5772, %v5771
  %v5779 = vpack.c.b16 %v5774, %v5773
  %v5780 = vpack.c.b16 %v5776, %v5775
  %v5786 = vsel %vm5189, %v5751, 0
  %5788 = vmatprep.subr.bf16.mxu0 0
  %5789 = vmatpush1.bf16.msra.mxu0 %v5777
  %5790 = vmatprep.subr.bf16.mxu0 0
  %5791 = vmatpush1.bf16.msra.mxu0 %v5778
  %5792 = vmatprep.subr.bf16.mxu0 0
  %5793 = vmatpush1.bf16.msra.mxu0 %v5779
  %5794 = vmatprep.subr.bf16.mxu0 0
  %5795 = vmatpush1.bf16.msra.mxu0 %v5780
  %5796 = vmatprep.subr.bf16.mxu0 0
  %5797 = vmatpush1.bf16.msra.mxu0 0
  %5798 = vmatprep.subr.bf16.mxu0 0
  %5799 = vmatpush1.bf16.msra.mxu0 0
  %5800 = vmatprep.subr.bf16.mxu0 0
  %5801 = vmatpush1.bf16.msra.mxu0 0
  %5802 = vmatprep.subr.bf16.mxu0 0
  %5803 = vmatpush1.bf16.msra.mxu0 0
  %5804 = vmatprep.subr.bf16.mxu0 0
  %5805 = vmatpush1.bf16.msra.mxu0 0
  %5806 = vmatprep.subr.bf16.mxu0 0
  %5807 = vmatpush1.bf16.msra.mxu0 0
  %5808 = vmatprep.subr.bf16.mxu0 0
  %5809 = vmatpush1.bf16.msra.mxu0 0
  %5810 = vmatprep.subr.bf16.mxu0 0
  %5811 = vmatpush1.bf16.msra.mxu0 0
  %5812 = vmatprep.subr.bf16.mxu0 0
  %5813 = vmatpush1.bf16.msra.mxu0 0
  %5814 = vmatprep.subr.bf16.mxu0 0
  %5815 = vmatpush1.bf16.msra.mxu0 0
  %5816 = vmatprep.subr.bf16.mxu0 0
  %5817 = vmatpush1.bf16.msra.mxu0 0
  %5818 = vmatprep.subr.bf16.mxu0 0
  %5819 = vmatpush1.bf16.msra.mxu0 0
  %5820 = vmatprep.mubr.bf16.mxu0 0
  %5821 = vmatmul.mubr.bf16.gmra.mrb[0].mxu0 %v5786
  %v5822 = vpop.f32.mrb[0].mxu0
  %v5823 = vadd.f32 0.0, %v5822
  %v5824 = vpop.f32.mrb[0].mxu0
  %v5825 = vpop.f32.mrb[0].mxu0
  %v5826 = vadd.f32 0.0, %v5825
  %v5827 = vpop.f32.mrb[0].mxu0
  %5828 = vdwg.mxu0
  %v5829 = vadd.f32 %v5697, %v5823
  %v5830 = vadd.f32 %v5698, %v5826
  %s5831 = scalar_lea.vmem %s8, 32
  %v5832 = vld [vmem:[%s5831] sm:$0xf]
  %v5833 = vld [vmem:[%s5831 + $0x4] sm:$0x1]
  %v5836 = vunpack.c.l.b16 %v5832
  %v5837 = vunpack.c.l.b16 %v5833
  %v5838 = vpack.c.b16 %v5837, %v5836
  %v5840 = vsel %vm5308, %v5838, 0
  %5842 = vmatprep.subr.bf16.mxu0 0
  %5843 = vmatpush1.bf16.msra.mxu0 %v5285
  %5844 = vmatprep.subr.bf16.mxu0 0
  %5845 = vmatpush1.bf16.msra.mxu0 %v5317
  %5846 = vmatprep.subr.bf16.mxu0 0
  %5847 = vmatpush1.bf16.msra.mxu0 0
  %5848 = vmatprep.subr.bf16.mxu0 0
  %5849 = vmatpush1.bf16.msra.mxu0 0
  %5850 = vmatprep.subr.bf16.mxu0 0
  %5851 = vmatpush1.bf16.msra.mxu0 0
  %5852 = vmatprep.subr.bf16.mxu0 0
  %5853 = vmatpush1.bf16.msra.mxu0 0
  %5854 = vmatprep.subr.bf16.mxu0 0
  %5855 = vmatpush1.bf16.msra.mxu0 0
  %5856 = vmatprep.subr.bf16.mxu0 0
  %5857 = vmatpush1.bf16.msra.mxu0 0
  %5858 = vmatprep.subr.bf16.mxu0 0
  %5859 = vmatpush1.bf16.msra.mxu0 0
  %5860 = vmatprep.subr.bf16.mxu0 0
  %5861 = vmatpush1.bf16.msra.mxu0 0
  %5862 = vmatprep.subr.bf16.mxu0 0
  %5863 = vmatpush1.bf16.msra.mxu0 0
  %5864 = vmatprep.subr.bf16.mxu0 0
  %5865 = vmatpush1.bf16.msra.mxu0 0
  %5866 = vmatprep.subr.bf16.mxu0 0
  %5867 = vmatpush1.bf16.msra.mxu0 0
  %5868 = vmatprep.subr.bf16.mxu0 0
  %5869 = vmatpush1.bf16.msra.mxu0 0
  %5870 = vmatprep.subr.bf16.mxu0 0
  %5871 = vmatpush1.bf16.msra.mxu0 0
  %5872 = vmatprep.subr.bf16.mxu0 0
  %5873 = vmatpush1.bf16.msra.mxu0 0
  %5874 = vmatprep.mubr.bf16.mxu0 0
  %5875 = vmatmul.mubr.bf16.gmra.mrb[0].mxu0 %v5840
  %v5876 = vpop.f32.mrb[0].mxu0
  %v5877 = vadd.f32 0.0, %v5876
  %v5878 = vpop.f32.mrb[0].mxu0
  %v5879 = vpop.f32.mrb[0].mxu0
  %v5880 = vadd.f32 0.0, %v5879
  %v5881 = vpop.f32.mrb[0].mxu0
  %5882 = vdwg.mxu0
  %v5883 = vpack.c.bf16 %v5880, %v5877
  %s5884 = scalar_lea.vmem %s9, 128
  %v5885 = vld [vmem:[%s5884] sm:$0xf]
  %v5886 = vld [vmem:[%s5884 + $0x4] sm:$0xf]
  %v5887 = vld [vmem:[%s5884 + $0x8] sm:$0xf]
  %v5888 = vld [vmem:[%s5884 + $0xc] sm:$0xf]
  %v5889 = vld [vmem:[%s5884 + $0x10] sm:$0xf]
  %v5890 = vld [vmem:[%s5884 + $0x14] sm:$0xf]
  %v5891 = vld [vmem:[%s5884 + $0x18] sm:$0xf]
  %v5892 = vld [vmem:[%s5884 + $0x1c] sm:$0xf]
  %v5901 = vunpack.c.l.b16 %v5885
  %v5902 = vunpack.c.l.b16 %v5886
  %v5903 = vunpack.c.l.b16 %v5887
  %v5904 = vunpack.c.l.b16 %v5888
  %v5905 = vunpack.c.l.b16 %v5889
  %v5906 = vunpack.c.l.b16 %v5890
  %v5907 = vunpack.c.l.b16 %v5891
  %v5908 = vunpack.c.l.b16 %v5892
  %v5909 = vpack.c.b16 %v5902, %v5901
  %v5910 = vpack.c.b16 %v5904, %v5903
  %v5911 = vpack.c.b16 %v5906, %v5905
  %v5912 = vpack.c.b16 %v5908, %v5907
  %v5918 = vsel %vm5189, %v5883, 0
  %5920 = vmatprep.subr.bf16.mxu0 0
  %5921 = vmatpush1.bf16.msra.mxu0 %v5909
  %5922 = vmatprep.subr.bf16.mxu0 0
  %5923 = vmatpush1.bf16.msra.mxu0 %v5910
  %5924 = vmatprep.subr.bf16.mxu0 0
  %5925 = vmatpush1.bf16.msra.mxu0 %v5911
  %5926 = vmatprep.subr.bf16.mxu0 0
  %5927 = vmatpush1.bf16.msra.mxu0 %v5912
  %5928 = vmatprep.subr.bf16.mxu0 0
  %5929 = vmatpush1.bf16.msra.mxu0 0
  %5930 = vmatprep.subr.bf16.mxu0 0
  %5931 = vmatpush1.bf16.msra.mxu0 0
  %5932 = vmatprep.subr.bf16.mxu0 0
  %5933 = vmatpush1.bf16.msra.mxu0 0
  %5934 = vmatprep.subr.bf16.mxu0 0
  %5935 = vmatpush1.bf16.msra.mxu0 0
  %5936 = vmatprep.subr.bf16.mxu0 0
  %5937 = vmatpush1.bf16.msra.mxu0 0
  %5938 = vmatprep.subr.bf16.mxu0 0
  %5939 = vmatpush1.bf16.msra.mxu0 0
  %5940 = vmatprep.subr.bf16.mxu0 0
  %5941 = vmatpush1.bf16.msra.mxu0 0
  %5942 = vmatprep.subr.bf16.mxu0 0
  %5943 = vmatpush1.bf16.msra.mxu0 0
  %5944 = vmatprep.subr.bf16.mxu0 0
  %5945 = vmatpush1.bf16.msra.mxu0 0
  %5946 = vmatprep.subr.bf16.mxu0 0
  %5947 = vmatpush1.bf16.msra.mxu0 0
  %5948 = vmatprep.subr.bf16.mxu0 0
  %5949 = vmatpush1.bf16.msra.mxu0 0
  %5950 = vmatprep.subr.bf16.mxu0 0
  %5951 = vmatpush1.bf16.msra.mxu0 0
  %5952 = vmatprep.mubr.bf16.mxu0 0
  %5953 = vmatmul.mubr.bf16.gmra.mrb[0].mxu0 %v5918
  %v5954 = vpop.f32.mrb[0].mxu0
  %v5955 = vadd.f32 0.0, %v5954
  %v5956 = vpop.f32.mrb[0].mxu0
  %v5957 = vpop.f32.mrb[0].mxu0
  %v5958 = vadd.f32 0.0, %v5957
  %v5959 = vpop.f32.mrb[0].mxu0
  %5960 = vdwg.mxu0
  %v5961 = vadd.f32 %v5829, %v5955
  %v5962 = vadd.f32 %v5830, %v5958
  %s5963 = scalar_lea.vmem %s8, 40
  %v5964 = vld [vmem:[%s5963] sm:$0xf]
  %v5965 = vld [vmem:[%s5963 + $0x4] sm:$0x1]
  %v5968 = vunpack.c.l.b16 %v5964
  %v5969 = vunpack.c.l.b16 %v5965
  %v5970 = vpack.c.b16 %v5969, %v5968
  %v5972 = vsel %vm5308, %v5970, 0
  %5974 = vmatprep.subr.bf16.mxu0 0
  %5975 = vmatpush1.bf16.msra.mxu0 %v5285
  %5976 = vmatprep.subr.bf16.mxu0 0
  %5977 = vmatpush1.bf16.msra.mxu0 %v5317
  %5978 = vmatprep.subr.bf16.mxu0 0
  %5979 = vmatpush1.bf16.msra.mxu0 0
  %5980 = vmatprep.subr.bf16.mxu0 0
  %5981 = vmatpush1.bf16.msra.mxu0 0
  %5982 = vmatprep.subr.bf16.mxu0 0
  %5983 = vmatpush1.bf16.msra.mxu0 0
  %5984 = vmatprep.subr.bf16.mxu0 0
  %5985 = vmatpush1.bf16.msra.mxu0 0
  %5986 = vmatprep.subr.bf16.mxu0 0
  %5987 = vmatpush1.bf16.msra.mxu0 0
  %5988 = vmatprep.subr.bf16.mxu0 0
  %5989 = vmatpush1.bf16.msra.mxu0 0
  %5990 = vmatprep.subr.bf16.mxu0 0
  %5991 = vmatpush1.bf16.msra.mxu0 0
  %5992 = vmatprep.subr.bf16.mxu0 0
  %5993 = vmatpush1.bf16.msra.mxu0 0
  %5994 = vmatprep.subr.bf16.mxu0 0
  %5995 = vmatpush1.bf16.msra.mxu0 0
  %5996 = vmatprep.subr.bf16.mxu0 0
  %5997 = vmatpush1.bf16.msra.mxu0 0
  %5998 = vmatprep.subr.bf16.mxu0 0
  %5999 = vmatpush1.bf16.msra.mxu0 0
  %6000 = vmatprep.subr.bf16.mxu0 0
  %6001 = vmatpush1.bf16.msra.mxu0 0
  %6002 = vmatprep.subr.bf16.mxu0 0
  %6003 = vmatpush1.bf16.msra.mxu0 0
  %6004 = vmatprep.subr.bf16.mxu0 0
  %6005 = vmatpush1.bf16.msra.mxu0 0
  %6006 = vmatprep.mubr.bf16.mxu0 0
  %6007 = vmatmul.mubr.bf16.gmra.mrb[0].mxu0 %v5972
  %v6008 = vpop.f32.mrb[0].mxu0
  %v6009 = vadd.f32 0.0, %v6008
  %v6010 = vpop.f32.mrb[0].mxu0
  %v6011 = vpop.f32.mrb[0].mxu0
  %v6012 = vadd.f32 0.0, %v6011
  %v6013 = vpop.f32.mrb[0].mxu0
  %6014 = vdwg.mxu0
  %v6015 = vpack.c.bf16 %v6012, %v6009
  %s6016 = scalar_lea.vmem %s9, 160
  %v6017 = vld [vmem:[%s6016] sm:$0xf]
  %v6018 = vld [vmem:[%s6016 + $0x4] sm:$0xf]
  %v6019 = vld [vmem:[%s6016 + $0x8] sm:$0xf]
  %v6020 = vld [vmem:[%s6016 + $0xc] sm:$0xf]
  %v6021 = vld [vmem:[%s6016 + $0x10] sm:$0xf]
  %v6022 = vld [vmem:[%s6016 + $0x14] sm:$0xf]
  %v6023 = vld [vmem:[%s6016 + $0x18] sm:$0xf]
  %v6024 = vld [vmem:[%s6016 + $0x1c] sm:$0xf]
  %v6033 = vunpack.c.l.b16 %v6017
  %v6034 = vunpack.c.l.b16 %v6018
  %v6035 = vunpack.c.l.b16 %v6019
  %v6036 = vunpack.c.l.b16 %v6020
  %v6037 = vunpack.c.l.b16 %v6021
  %v6038 = vunpack.c.l.b16 %v6022
  %v6039 = vunpack.c.l.b16 %v6023
  %v6040 = vunpack.c.l.b16 %v6024
  %v6041 = vpack.c.b16 %v6034, %v6033
  %v6042 = vpack.c.b16 %v6036, %v6035
  %v6043 = vpack.c.b16 %v6038, %v6037
  %v6044 = vpack.c.b16 %v6040, %v6039
  %v6050 = vsel %vm5189, %v6015, 0
  %6052 = vmatprep.subr.bf16.mxu0 0
  %6053 = vmatpush1.bf16.msra.mxu0 %v6041
  %6054 = vmatprep.subr.bf16.mxu0 0
  %6055 = vmatpush1.bf16.msra.mxu0 %v6042
  %6056 = vmatprep.subr.bf16.mxu0 0
  %6057 = vmatpush1.bf16.msra.mxu0 %v6043
  %6058 = vmatprep.subr.bf16.mxu0 0
  %6059 = vmatpush1.bf16.msra.mxu0 %v6044
  %6060 = vmatprep.subr.bf16.mxu0 0
  %6061 = vmatpush1.bf16.msra.mxu0 0
  %6062 = vmatprep.subr.bf16.mxu0 0
  %6063 = vmatpush1.bf16.msra.mxu0 0
  %6064 = vmatprep.subr.bf16.mxu0 0
  %6065 = vmatpush1.bf16.msra.mxu0 0
  %6066 = vmatprep.subr.bf16.mxu0 0
  %6067 = vmatpush1.bf16.msra.mxu0 0
  %6068 = vmatprep.subr.bf16.mxu0 0
  %6069 = vmatpush1.bf16.msra.mxu0 0
  %6070 = vmatprep.subr.bf16.mxu0 0
  %6071 = vmatpush1.bf16.msra.mxu0 0
  %6072 = vmatprep.subr.bf16.mxu0 0
  %6073 = vmatpush1.bf16.msra.mxu0 0
  %6074 = vmatprep.subr.bf16.mxu0 0
  %6075 = vmatpush1.bf16.msra.mxu0 0
  %6076 = vmatprep.subr.bf16.mxu0 0
  %6077 = vmatpush1.bf16.msra.mxu0 0
  %6078 = vmatprep.subr.bf16.mxu0 0
  %6079 = vmatpush1.bf16.msra.mxu0 0
  %6080 = vmatprep.subr.bf16.mxu0 0
  %6081 = vmatpush1.bf16.msra.mxu0 0
  %6082 = vmatprep.subr.bf16.mxu0 0
  %6083 = vmatpush1.bf16.msra.mxu0 0
  %6084 = vmatprep.mubr.bf16.mxu0 0
  %6085 = vmatmul.mubr.bf16.gmra.mrb[0].mxu0 %v6050
  %v6086 = vpop.f32.mrb[0].mxu0
  %v6087 = vadd.f32 0.0, %v6086
  %v6088 = vpop.f32.mrb[0].mxu0
  %v6089 = vpop.f32.mrb[0].mxu0
  %v6090 = vadd.f32 0.0, %v6089
  %v6091 = vpop.f32.mrb[0].mxu0
  %6092 = vdwg.mxu0
  %v6093 = vadd.f32 %v5961, %v6087
  %v6094 = vadd.f32 %v5962, %v6090
  %s6095 = scalar_lea.vmem %s8, 48
  %v6096 = vld [vmem:[%s6095] sm:$0xf]
  %v6097 = vld [vmem:[%s6095 + $0x4] sm:$0x1]
  %v6100 = vunpack.c.l.b16 %v6096
  %v6101 = vunpack.c.l.b16 %v6097
  %v6102 = vpack.c.b16 %v6101, %v6100
  %v6104 = vsel %vm5308, %v6102, 0
  %6106 = vmatprep.subr.bf16.mxu0 0
  %6107 = vmatpush1.bf16.msra.mxu0 %v5285
  %6108 = vmatprep.subr.bf16.mxu0 0
  %6109 = vmatpush1.bf16.msra.mxu0 %v5317
  %6110 = vmatprep.subr.bf16.mxu0 0
  %6111 = vmatpush1.bf16.msra.mxu0 0
  %6112 = vmatprep.subr.bf16.mxu0 0
  %6113 = vmatpush1.bf16.msra.mxu0 0
  %6114 = vmatprep.subr.bf16.mxu0 0
  %6115 = vmatpush1.bf16.msra.mxu0 0
  %6116 = vmatprep.subr.bf16.mxu0 0
  %6117 = vmatpush1.bf16.msra.mxu0 0
  %6118 = vmatprep.subr.bf16.mxu0 0
  %6119 = vmatpush1.bf16.msra.mxu0 0
  %6120 = vmatprep.subr.bf16.mxu0 0
  %6121 = vmatpush1.bf16.msra.mxu0 0
  %6122 = vmatprep.subr.bf16.mxu0 0
  %6123 = vmatpush1.bf16.msra.mxu0 0
  %6124 = vmatprep.subr.bf16.mxu0 0
  %6125 = vmatpush1.bf16.msra.mxu0 0
  %6126 = vmatprep.subr.bf16.mxu0 0
  %6127 = vmatpush1.bf16.msra.mxu0 0
  %6128 = vmatprep.subr.bf16.mxu0 0
  %6129 = vmatpush1.bf16.msra.mxu0 0
  %6130 = vmatprep.subr.bf16.mxu0 0
  %6131 = vmatpush1.bf16.msra.mxu0 0
  %6132 = vmatprep.subr.bf16.mxu0 0
  %6133 = vmatpush1.bf16.msra.mxu0 0
  %6134 = vmatprep.subr.bf16.mxu0 0
  %6135 = vmatpush1.bf16.msra.mxu0 0
  %6136 = vmatprep.subr.bf16.mxu0 0
  %6137 = vmatpush1.bf16.msra.mxu0 0
  %6138 = vmatprep.mubr.bf16.mxu0 0
  %6139 = vmatmul.mubr.bf16.gmra.mrb[0].mxu0 %v6104
  %v6140 = vpop.f32.mrb[0].mxu0
  %v6141 = vadd.f32 0.0, %v6140
  %v6142 = vpop.f32.mrb[0].mxu0
  %v6143 = vpop.f32.mrb[0].mxu0
  %v6144 = vadd.f32 0.0, %v6143
  %v6145 = vpop.f32.mrb[0].mxu0
  %6146 = vdwg.mxu0
  %v6147 = vpack.c.bf16 %v6144, %v6141
  %s6148 = scalar_lea.vmem %s9, 192
  %v6149 = vld [vmem:[%s6148] sm:$0xf]
  %v6150 = vld [vmem:[%s6148 + $0x4] sm:$0xf]
  %v6151 = vld [vmem:[%s6148 + $0x8] sm:$0xf]
  %v6152 = vld [vmem:[%s6148 + $0xc] sm:$0xf]
  %v6153 = vld [vmem:[%s6148 + $0x10] sm:$0xf]
  %v6154 = vld [vmem:[%s6148 + $0x14] sm:$0xf]
  %v6155 = vld [vmem:[%s6148 + $0x18] sm:$0xf]
  %v6156 = vld [vmem:[%s6148 + $0x1c] sm:$0xf]
  %v6165 = vunpack.c.l.b16 %v6149
  %v6166 = vunpack.c.l.b16 %v6150
  %v6167 = vunpack.c.l.b16 %v6151
  %v6168 = vunpack.c.l.b16 %v6152
  %v6169 = vunpack.c.l.b16 %v6153
  %v6170 = vunpack.c.l.b16 %v6154
  %v6171 = vunpack.c.l.b16 %v6155
  %v6172 = vunpack.c.l.b16 %v6156
  %v6173 = vpack.c.b16 %v6166, %v6165
  %v6174 = vpack.c.b16 %v6168, %v6167
  %v6175 = vpack.c.b16 %v6170, %v6169
  %v6176 = vpack.c.b16 %v6172, %v6171
  %v6182 = vsel %vm5189, %v6147, 0
  %6184 = vmatprep.subr.bf16.mxu0 0
  %6185 = vmatpush1.bf16.msra.mxu0 %v6173
  %6186 = vmatprep.subr.bf16.mxu0 0
  %6187 = vmatpush1.bf16.msra.mxu0 %v6174
  %6188 = vmatprep.subr.bf16.mxu0 0
  %6189 = vmatpush1.bf16.msra.mxu0 %v6175
  %6190 = vmatprep.subr.bf16.mxu0 0
  %6191 = vmatpush1.bf16.msra.mxu0 %v6176
  %6192 = vmatprep.subr.bf16.mxu0 0
  %6193 = vmatpush1.bf16.msra.mxu0 0
  %6194 = vmatprep.subr.bf16.mxu0 0
  %6195 = vmatpush1.bf16.msra.mxu0 0
  %6196 = vmatprep.subr.bf16.mxu0 0
  %6197 = vmatpush1.bf16.msra.mxu0 0
  %6198 = vmatprep.subr.bf16.mxu0 0
  %6199 = vmatpush1.bf16.msra.mxu0 0
  %6200 = vmatprep.subr.bf16.mxu0 0
  %6201 = vmatpush1.bf16.msra.mxu0 0
  %6202 = vmatprep.subr.bf16.mxu0 0
  %6203 = vmatpush1.bf16.msra.mxu0 0
  %6204 = vmatprep.subr.bf16.mxu0 0
  %6205 = vmatpush1.bf16.msra.mxu0 0
  %6206 = vmatprep.subr.bf16.mxu0 0
  %6207 = vmatpush1.bf16.msra.mxu0 0
  %6208 = vmatprep.subr.bf16.mxu0 0
  %6209 = vmatpush1.bf16.msra.mxu0 0
  %6210 = vmatprep.subr.bf16.mxu0 0
  %6211 = vmatpush1.bf16.msra.mxu0 0
  %6212 = vmatprep.subr.bf16.mxu0 0
  %6213 = vmatpush1.bf16.msra.mxu0 0
  %6214 = vmatprep.subr.bf16.mxu0 0
  %6215 = vmatpush1.bf16.msra.mxu0 0
  %6216 = vmatprep.mubr.bf16.mxu0 0
  %6217 = vmatmul.mubr.bf16.gmra.mrb[0].mxu0 %v6182
  %v6218 = vpop.f32.mrb[0].mxu0
  %v6219 = vadd.f32 0.0, %v6218
  %v6220 = vpop.f32.mrb[0].mxu0
  %v6221 = vpop.f32.mrb[0].mxu0
  %v6222 = vadd.f32 0.0, %v6221
  %v6223 = vpop.f32.mrb[0].mxu0
  %6224 = vdwg.mxu0
  %v6225 = vadd.f32 %v6093, %v6219
  %v6226 = vadd.f32 %v6094, %v6222
  %s6227 = scalar_lea.vmem %s8, 56
  %v6228 = vld [vmem:[%s6227] sm:$0xf]
  %v6229 = vld [vmem:[%s6227 + $0x4] sm:$0x1]
  %v6232 = vunpack.c.l.b16 %v6228
  %v6233 = vunpack.c.l.b16 %v6229
  %v6234 = vpack.c.b16 %v6233, %v6232
  %v6236 = vsel %vm5308, %v6234, 0
  %6238 = vmatprep.subr.bf16.mxu0 0
  %6239 = vmatpush1.bf16.msra.mxu0 %v5285
  %6240 = vmatprep.subr.bf16.mxu0 0
  %6241 = vmatpush1.bf16.msra.mxu0 %v5317
  %6242 = vmatprep.subr.bf16.mxu0 0
  %6243 = vmatpush1.bf16.msra.mxu0 0
  %6244 = vmatprep.subr.bf16.mxu0 0
  %6245 = vmatpush1.bf16.msra.mxu0 0
  %6246 = vmatprep.subr.bf16.mxu0 0
  %6247 = vmatpush1.bf16.msra.mxu0 0
  %6248 = vmatprep.subr.bf16.mxu0 0
  %6249 = vmatpush1.bf16.msra.mxu0 0
  %6250 = vmatprep.subr.bf16.mxu0 0
  %6251 = vmatpush1.bf16.msra.mxu0 0
  %6252 = vmatprep.subr.bf16.mxu0 0
  %6253 = vmatpush1.bf16.msra.mxu0 0
  %6254 = vmatprep.subr.bf16.mxu0 0
  %6255 = vmatpush1.bf16.msra.mxu0 0
  %6256 = vmatprep.subr.bf16.mxu0 0
  %6257 = vmatpush1.bf16.msra.mxu0 0
  %6258 = vmatprep.subr.bf16.mxu0 0
  %6259 = vmatpush1.bf16.msra.mxu0 0
  %6260 = vmatprep.subr.bf16.mxu0 0
  %6261 = vmatpush1.bf16.msra.mxu0 0
  %6262 = vmatprep.subr.bf16.mxu0 0
  %6263 = vmatpush1.bf16.msra.mxu0 0
  %6264 = vmatprep.subr.bf16.mxu0 0
  %6265 = vmatpush1.bf16.msra.mxu0 0
  %6266 = vmatprep.subr.bf16.mxu0 0
  %6267 = vmatpush1.bf16.msra.mxu0 0
  %6268 = vmatprep.subr.bf16.mxu0 0
  %6269 = vmatpush1.bf16.msra.mxu0 0
  %6270 = vmatprep.mubr.bf16.mxu0 0
  %6271 = vmatmul.mubr.bf16.gmra.mrb[0].mxu0 %v6236
  %v6272 = vpop.f32.mrb[0].mxu0
  %v6273 = vadd.f32 0.0, %v6272
  %v6274 = vpop.f32.mrb[0].mxu0
  %v6275 = vpop.f32.mrb[0].mxu0
  %v6276 = vadd.f32 0.0, %v6275
  %v6277 = vpop.f32.mrb[0].mxu0
  %6278 = vdwg.mxu0
  %v6279 = vpack.c.bf16 %v6276, %v6273
  %s6280 = scalar_lea.vmem %s9, 224
  %v6281 = vld [vmem:[%s6280] sm:$0xf]
  %v6282 = vld [vmem:[%s6280 + $0x4] sm:$0xf]
  %v6283 = vld [vmem:[%s6280 + $0x8] sm:$0xf]
  %v6284 = vld [vmem:[%s6280 + $0xc] sm:$0xf]
  %v6285 = vld [vmem:[%s6280 + $0x10] sm:$0xf]
  %v6286 = vld [vmem:[%s6280 + $0x14] sm:$0xf]
  %v6287 = vld [vmem:[%s6280 + $0x18] sm:$0xf]
  %v6288 = vld [vmem:[%s6280 + $0x1c] sm:$0xf]
  %v6297 = vunpack.c.l.b16 %v6281
  %v6298 = vunpack.c.l.b16 %v6282
  %v6299 = vunpack.c.l.b16 %v6283
  %v6300 = vunpack.c.l.b16 %v6284
  %v6301 = vunpack.c.l.b16 %v6285
  %v6302 = vunpack.c.l.b16 %v6286
  %v6303 = vunpack.c.l.b16 %v6287
  %v6304 = vunpack.c.l.b16 %v6288
  %v6305 = vpack.c.b16 %v6298, %v6297
  %v6306 = vpack.c.b16 %v6300, %v6299
  %v6307 = vpack.c.b16 %v6302, %v6301
  %v6308 = vpack.c.b16 %v6304, %v6303
  %v6314 = vsel %vm5189, %v6279, 0
  %6316 = vmatprep.subr.bf16.mxu0 0
  %6317 = vmatpush1.bf16.msra.mxu0 %v6305
  %6318 = vmatprep.subr.bf16.mxu0 0
  %6319 = vmatpush1.bf16.msra.mxu0 %v6306
  %6320 = vmatprep.subr.bf16.mxu0 0
  %6321 = vmatpush1.bf16.msra.mxu0 %v6307
  %6322 = vmatprep.subr.bf16.mxu0 0
  %6323 = vmatpush1.bf16.msra.mxu0 %v6308
  %6324 = vmatprep.subr.bf16.mxu0 0
  %6325 = vmatpush1.bf16.msra.mxu0 0
  %6326 = vmatprep.subr.bf16.mxu0 0
  %6327 = vmatpush1.bf16.msra.mxu0 0
  %6328 = vmatprep.subr.bf16.mxu0 0
  %6329 = vmatpush1.bf16.msra.mxu0 0
  %6330 = vmatprep.subr.bf16.mxu0 0
  %6331 = vmatpush1.bf16.msra.mxu0 0
  %6332 = vmatprep.subr.bf16.mxu0 0
  %6333 = vmatpush1.bf16.msra.mxu0 0
  %6334 = vmatprep.subr.bf16.mxu0 0
  %6335 = vmatpush1.bf16.msra.mxu0 0
  %6336 = vmatprep.subr.bf16.mxu0 0
  %6337 = vmatpush1.bf16.msra.mxu0 0
  %6338 = vmatprep.subr.bf16.mxu0 0
  %6339 = vmatpush1.bf16.msra.mxu0 0
  %6340 = vmatprep.subr.bf16.mxu0 0
  %6341 = vmatpush1.bf16.msra.mxu0 0
  %6342 = vmatprep.subr.bf16.mxu0 0
  %6343 = vmatpush1.bf16.msra.mxu0 0
  %6344 = vmatprep.subr.bf16.mxu0 0
  %6345 = vmatpush1.bf16.msra.mxu0 0
  %6346 = vmatprep.subr.bf16.mxu0 0
  %6347 = vmatpush1.bf16.msra.mxu0 0
  %6348 = vmatprep.mubr.bf16.mxu0 0
  %6349 = vmatmul.mubr.bf16.gmra.mrb[0].mxu0 %v6314
  %v6350 = vpop.f32.mrb[0].mxu0
  %v6351 = vadd.f32 0.0, %v6350
  %v6352 = vpop.f32.mrb[0].mxu0
  %v6353 = vpop.f32.mrb[0].mxu0
  %v6354 = vadd.f32 0.0, %v6353
  %v6355 = vpop.f32.mrb[0].mxu0
  %6356 = vdwg.mxu0
  %v6357 = vadd.f32 %v6225, %v6351
  %v6358 = vadd.f32 %v6226, %v6354
  %s6359 = scalar_lea.vmem %s8, 64
  %v6360 = vld [vmem:[%s6359] sm:$0xf]
  %v6361 = vld [vmem:[%s6359 + $0x4] sm:$0x1]
  %v6364 = vunpack.c.l.b16 %v6360
  %v6365 = vunpack.c.l.b16 %v6361
  %v6366 = vpack.c.b16 %v6365, %v6364
  %v6368 = vsel %vm5308, %v6366, 0
  %6370 = vmatprep.subr.bf16.mxu0 0
  %6371 = vmatpush1.bf16.msra.mxu0 %v5285
  %6372 = vmatprep.subr.bf16.mxu0 0
  %6373 = vmatpush1.bf16.msra.mxu0 %v5317
  %6374 = vmatprep.subr.bf16.mxu0 0
  %6375 = vmatpush1.bf16.msra.mxu0 0
  %6376 = vmatprep.subr.bf16.mxu0 0
  %6377 = vmatpush1.bf16.msra.mxu0 0
  %6378 = vmatprep.subr.bf16.mxu0 0
  %6379 = vmatpush1.bf16.msra.mxu0 0
  %6380 = vmatprep.subr.bf16.mxu0 0
  %6381 = vmatpush1.bf16.msra.mxu0 0
  %6382 = vmatprep.subr.bf16.mxu0 0
  %6383 = vmatpush1.bf16.msra.mxu0 0
  %6384 = vmatprep.subr.bf16.mxu0 0
  %6385 = vmatpush1.bf16.msra.mxu0 0
  %6386 = vmatprep.subr.bf16.mxu0 0
  %6387 = vmatpush1.bf16.msra.mxu0 0
  %6388 = vmatprep.subr.bf16.mxu0 0
  %6389 = vmatpush1.bf16.msra.mxu0 0
  %6390 = vmatprep.subr.bf16.mxu0 0
  %6391 = vmatpush1.bf16.msra.mxu0 0
  %6392 = vmatprep.subr.bf16.mxu0 0
  %6393 = vmatpush1.bf16.msra.mxu0 0
  %6394 = vmatprep.subr.bf16.mxu0 0
  %6395 = vmatpush1.bf16.msra.mxu0 0
  %6396 = vmatprep.subr.bf16.mxu0 0
  %6397 = vmatpush1.bf16.msra.mxu0 0
  %6398 = vmatprep.subr.bf16.mxu0 0
  %6399 = vmatpush1.bf16.msra.mxu0 0
  %6400 = vmatprep.subr.bf16.mxu0 0
  %6401 = vmatpush1.bf16.msra.mxu0 0
  %6402 = vmatprep.mubr.bf16.mxu0 0
  %6403 = vmatmul.mubr.bf16.gmra.mrb[0].mxu0 %v6368
  %v6404 = vpop.f32.mrb[0].mxu0
  %v6405 = vadd.f32 0.0, %v6404
  %v6406 = vpop.f32.mrb[0].mxu0
  %v6407 = vpop.f32.mrb[0].mxu0
  %v6408 = vadd.f32 0.0, %v6407
  %v6409 = vpop.f32.mrb[0].mxu0
  %6410 = vdwg.mxu0
  %v6411 = vpack.c.bf16 %v6408, %v6405
  %s6412 = scalar_lea.vmem %s9, 256
  %v6413 = vld [vmem:[%s6412] sm:$0xf]
  %v6414 = vld [vmem:[%s6412 + $0x4] sm:$0xf]
  %v6415 = vld [vmem:[%s6412 + $0x8] sm:$0xf]
  %v6416 = vld [vmem:[%s6412 + $0xc] sm:$0xf]
  %v6417 = vld [vmem:[%s6412 + $0x10] sm:$0xf]
  %v6418 = vld [vmem:[%s6412 + $0x14] sm:$0xf]
  %v6419 = vld [vmem:[%s6412 + $0x18] sm:$0xf]
  %v6420 = vld [vmem:[%s6412 + $0x1c] sm:$0xf]
  %v6429 = vunpack.c.l.b16 %v6413
  %v6430 = vunpack.c.l.b16 %v6414
  %v6431 = vunpack.c.l.b16 %v6415
  %v6432 = vunpack.c.l.b16 %v6416
  %v6433 = vunpack.c.l.b16 %v6417
  %v6434 = vunpack.c.l.b16 %v6418
  %v6435 = vunpack.c.l.b16 %v6419
  %v6436 = vunpack.c.l.b16 %v6420
  %v6437 = vpack.c.b16 %v6430, %v6429
  %v6438 = vpack.c.b16 %v6432, %v6431
  %v6439 = vpack.c.b16 %v6434, %v6433
  %v6440 = vpack.c.b16 %v6436, %v6435
  %v6446 = vsel %vm5189, %v6411, 0
  %6448 = vmatprep.subr.bf16.mxu0 0
  %6449 = vmatpush1.bf16.msra.mxu0 %v6437
  %6450 = vmatprep.subr.bf16.mxu0 0
  %6451 = vmatpush1.bf16.msra.mxu0 %v6438
  %6452 = vmatprep.subr.bf16.mxu0 0
  %6453 = vmatpush1.bf16.msra.mxu0 %v6439
  %6454 = vmatprep.subr.bf16.mxu0 0
  %6455 = vmatpush1.bf16.msra.mxu0 %v6440
  %6456 = vmatprep.subr.bf16.mxu0 0
  %6457 = vmatpush1.bf16.msra.mxu0 0
  %6458 = vmatprep.subr.bf16.mxu0 0
  %6459 = vmatpush1.bf16.msra.mxu0 0
  %6460 = vmatprep.subr.bf16.mxu0 0
  %6461 = vmatpush1.bf16.msra.mxu0 0
  %6462 = vmatprep.subr.bf16.mxu0 0
  %6463 = vmatpush1.bf16.msra.mxu0 0
  %6464 = vmatprep.subr.bf16.mxu0 0
  %6465 = vmatpush1.bf16.msra.mxu0 0
  %6466 = vmatprep.subr.bf16.mxu0 0
  %6467 = vmatpush1.bf16.msra.mxu0 0
  %6468 = vmatprep.subr.bf16.mxu0 0
  %6469 = vmatpush1.bf16.msra.mxu0 0
  %6470 = vmatprep.subr.bf16.mxu0 0
  %6471 = vmatpush1.bf16.msra.mxu0 0
  %6472 = vmatprep.subr.bf16.mxu0 0
  %6473 = vmatpush1.bf16.msra.mxu0 0
  %6474 = vmatprep.subr.bf16.mxu0 0
  %6475 = vmatpush1.bf16.msra.mxu0 0
  %6476 = vmatprep.subr.bf16.mxu0 0
  %6477 = vmatpush1.bf16.msra.mxu0 0
  %6478 = vmatprep.subr.bf16.mxu0 0
  %6479 = vmatpush1.bf16.msra.mxu0 0
  %6480 = vmatprep.mubr.bf16.mxu0 0
  %6481 = vmatmul.mubr.bf16.gmra.mrb[0].mxu0 %v6446
  %v6482 = vpop.f32.mrb[0].mxu0
  %v6483 = vadd.f32 0.0, %v6482
  %v6484 = vpop.f32.mrb[0].mxu0
  %v6485 = vpop.f32.mrb[0].mxu0
  %v6486 = vadd.f32 0.0, %v6485
  %v6487 = vpop.f32.mrb[0].mxu0
  %6488 = vdwg.mxu0
  %v6489 = vadd.f32 %v6357, %v6483
  %v6490 = vadd.f32 %v6358, %v6486
  %v6492 = vand.u32 %v5300, %v5315
  %6494 = vmatprep.subr.bf16.mxu0 0
  %6495 = vmatpush1.bf16.msra.mxu0 %v5299
  %6496 = vmatprep.subr.bf16.mxu0 0
  %6497 = vmatpush1.bf16.msra.mxu0 %v6492
  %6498 = vmatprep.subr.bf16.mxu0 0
  %6499 = vmatpush1.bf16.msra.mxu0 0
  %6500 = vmatprep.subr.bf16.mxu0 0
  %6501 = vmatpush1.bf16.msra.mxu0 0
  %6502 = vmatprep.subr.bf16.mxu0 0
  %6503 = vmatpush1.bf16.msra.mxu0 0
  %6504 = vmatprep.subr.bf16.mxu0 0
  %6505 = vmatpush1.bf16.msra.mxu0 0
  %6506 = vmatprep.subr.bf16.mxu0 0
  %6507 = vmatpush1.bf16.msra.mxu0 0
  %6508 = vmatprep.subr.bf16.mxu0 0
  %6509 = vmatpush1.bf16.msra.mxu0 0
  %6510 = vmatprep.subr.bf16.mxu0 0
  %6511 = vmatpush1.bf16.msra.mxu0 0
  %6512 = vmatprep.subr.bf16.mxu0 0
  %6513 = vmatpush1.bf16.msra.mxu0 0
  %6514 = vmatprep.subr.bf16.mxu0 0
  %6515 = vmatpush1.bf16.msra.mxu0 0
  %6516 = vmatprep.subr.bf16.mxu0 0
  %6517 = vmatpush1.bf16.msra.mxu0 0
  %6518 = vmatprep.subr.bf16.mxu0 0
  %6519 = vmatpush1.bf16.msra.mxu0 0
  %6520 = vmatprep.subr.bf16.mxu0 0
  %6521 = vmatpush1.bf16.msra.mxu0 0
  %6522 = vmatprep.subr.bf16.mxu0 0
  %6523 = vmatpush1.bf16.msra.mxu0 0
  %6524 = vmatprep.subr.bf16.mxu0 0
  %6525 = vmatpush1.bf16.msra.mxu0 0
  %6526 = vmatprep.mubr.bf16.mxu0 0
  %6527 = vmatmul.mubr.bf16.gmra.mrb[0].mxu0 %v5310
  %v6528 = vpop.f32.mrb[0].mxu0
  %v6529 = vadd.f32 0.0, %v6528
  %v6530 = vpop.f32.mrb[0].mxu0
  %v6531 = vpop.f32.mrb[0].mxu0
  %v6532 = vadd.f32 0.0, %v6531
  %v6533 = vpop.f32.mrb[0].mxu0
  %6534 = vdwg.mxu0
  %v6535 = vpack.c.bf16 %v6532, %v6529
  %6536 = vmatprep.subr.bf16.mxu0 0
  %6537 = vmatpush1.bf16.msra.mxu0 %v5299
  %6538 = vmatprep.subr.bf16.mxu0 0
  %6539 = vmatpush1.bf16.msra.mxu0 %v6492
  %6540 = vmatprep.subr.bf16.mxu0 0
  %6541 = vmatpush1.bf16.msra.mxu0 0
  %6542 = vmatprep.subr.bf16.mxu0 0
  %6543 = vmatpush1.bf16.msra.mxu0 0
  %6544 = vmatprep.subr.bf16.mxu0 0
  %6545 = vmatpush1.bf16.msra.mxu0 0
  %6546 = vmatprep.subr.bf16.mxu0 0
  %6547 = vmatpush1.bf16.msra.mxu0 0
  %6548 = vmatprep.subr.bf16.mxu0 0
  %6549 = vmatpush1.bf16.msra.mxu0 0
  %6550 = vmatprep.subr.bf16.mxu0 0
  %6551 = vmatpush1.bf16.msra.mxu0 0
  %6552 = vmatprep.subr.bf16.mxu0 0
  %6553 = vmatpush1.bf16.msra.mxu0 0
  %6554 = vmatprep.subr.bf16.mxu0 0
  %6555 = vmatpush1.bf16.msra.mxu0 0
  %6556 = vmatprep.subr.bf16.mxu0 0
  %6557 = vmatpush1.bf16.msra.mxu0 0
  %6558 = vmatprep.subr.bf16.mxu0 0
  %6559 = vmatpush1.bf16.msra.mxu0 0
  %6560 = vmatprep.subr.bf16.mxu0 0
  %6561 = vmatpush1.bf16.msra.mxu0 0
  %6562 = vmatprep.subr.bf16.mxu0 0
  %6563 = vmatpush1.bf16.msra.mxu0 0
  %6564 = vmatprep.subr.bf16.mxu0 0
  %6565 = vmatpush1.bf16.msra.mxu0 0
  %6566 = vmatprep.subr.bf16.mxu0 0
  %6567 = vmatpush1.bf16.msra.mxu0 0
  %6568 = vmatprep.mubr.bf16.mxu0 0
  %6569 = vmatmul.mubr.bf16.gmra.mrb[0].mxu0 %v5378
  %v6570 = vpop.f32.mrb[0].mxu0
  %v6571 = vadd.f32 0.0, %v6570
  %v6572 = vpop.f32.mrb[0].mxu0
  %v6573 = vpop.f32.mrb[0].mxu0
  %v6574 = vadd.f32 0.0, %v6573
  %v6575 = vpop.f32.mrb[0].mxu0
  %6576 = vdwg.mxu0
  %v6577 = vpack.c.bf16 %v6574, %v6571
  %v6579 = vsel %vm5189, %v6577, 0
  %6581 = vmatprep.subr.bf16.mxu0 0
  %6582 = vmatpush1.bf16.msra.mxu0 %v5447
  %6583 = vmatprep.subr.bf16.mxu0 0
  %6584 = vmatpush1.bf16.msra.mxu0 %v5448
  %6585 = vmatprep.subr.bf16.mxu0 0
  %6586 = vmatpush1.bf16.msra.mxu0 %v5449
  %6587 = vmatprep.subr.bf16.mxu0 0
  %6588 = vmatpush1.bf16.msra.mxu0 %v5450
  %6589 = vmatprep.subr.bf16.mxu0 0
  %6590 = vmatpush1.bf16.msra.mxu0 0
  %6591 = vmatprep.subr.bf16.mxu0 0
  %6592 = vmatpush1.bf16.msra.mxu0 0
  %6593 = vmatprep.subr.bf16.mxu0 0
  %6594 = vmatpush1.bf16.msra.mxu0 0
  %6595 = vmatprep.subr.bf16.mxu0 0
  %6596 = vmatpush1.bf16.msra.mxu0 0
  %6597 = vmatprep.subr.bf16.mxu0 0
  %6598 = vmatpush1.bf16.msra.mxu0 0
  %6599 = vmatprep.subr.bf16.mxu0 0
  %6600 = vmatpush1.bf16.msra.mxu0 0
  %6601 = vmatprep.subr.bf16.mxu0 0
  %6602 = vmatpush1.bf16.msra.mxu0 0
  %6603 = vmatprep.subr.bf16.mxu0 0
  %6604 = vmatpush1.bf16.msra.mxu0 0
  %6605 = vmatprep.subr.bf16.mxu0 0
  %6606 = vmatpush1.bf16.msra.mxu0 0
  %6607 = vmatprep.subr.bf16.mxu0 0
  %6608 = vmatpush1.bf16.msra.mxu0 0
  %6609 = vmatprep.subr.bf16.mxu0 0
  %6610 = vmatpush1.bf16.msra.mxu0 0
  %6611 = vmatprep.subr.bf16.mxu0 0
  %6612 = vmatpush1.bf16.msra.mxu0 0
  %6613 = vmatprep.mubr.bf16.mxu0 0
  %6614 = vmatmul.mubr.bf16.gmra.mrb[0].mxu0 %v6579
  %v6615 = vpop.f32.mrb[0].mxu0
  %v6616 = vadd.f32 0.0, %v6615
  %v6617 = vpop.f32.mrb[0].mxu0
  %v6618 = vpop.f32.mrb[0].mxu0
  %v6619 = vadd.f32 0.0, %v6618
  %v6620 = vpop.f32.mrb[0].mxu0
  %6621 = vdwg.mxu0
  %v6623 = vsel %vm5189, %v6535, 0
  %6625 = vmatprep.subr.bf16.mxu0 0
  %6626 = vmatpush1.bf16.msra.mxu0 %v5515
  %6627 = vmatprep.subr.bf16.mxu0 0
  %6628 = vmatpush1.bf16.msra.mxu0 %v5516
  %6629 = vmatprep.subr.bf16.mxu0 0
  %6630 = vmatpush1.bf16.msra.mxu0 %v5517
  %6631 = vmatprep.subr.bf16.mxu0 0
  %6632 = vmatpush1.bf16.msra.mxu0 %v5518
  %6633 = vmatprep.subr.bf16.mxu0 0
  %6634 = vmatpush1.bf16.msra.mxu0 0
  %6635 = vmatprep.subr.bf16.mxu0 0
  %6636 = vmatpush1.bf16.msra.mxu0 0
  %6637 = vmatprep.subr.bf16.mxu0 0
  %6638 = vmatpush1.bf16.msra.mxu0 0
  %6639 = vmatprep.subr.bf16.mxu0 0
  %6640 = vmatpush1.bf16.msra.mxu0 0
  %6641 = vmatprep.subr.bf16.mxu0 0
  %6642 = vmatpush1.bf16.msra.mxu0 0
  %6643 = vmatprep.subr.bf16.mxu0 0
  %6644 = vmatpush1.bf16.msra.mxu0 0
  %6645 = vmatprep.subr.bf16.mxu0 0
  %6646 = vmatpush1.bf16.msra.mxu0 0
  %6647 = vmatprep.subr.bf16.mxu0 0
  %6648 = vmatpush1.bf16.msra.mxu0 0
  %6649 = vmatprep.subr.bf16.mxu0 0
  %6650 = vmatpush1.bf16.msra.mxu0 0
  %6651 = vmatprep.subr.bf16.mxu0 0
  %6652 = vmatpush1.bf16.msra.mxu0 0
  %6653 = vmatprep.subr.bf16.mxu0 0
  %6654 = vmatpush1.bf16.msra.mxu0 0
  %6655 = vmatprep.subr.bf16.mxu0 0
  %6656 = vmatpush1.bf16.msra.mxu0 0
  %6657 = vmatprep.mubr.bf16.mxu0 0
  %6658 = vmatmul.mubr.bf16.gmra.mrb[0].mxu0 %v6623
  %v6659 = vpop.f32.mrb[0].mxu0
  %v6660 = vadd.f32 %v6616, %v6659
  %v6661 = vpop.f32.mrb[0].mxu0
  %v6662 = vpop.f32.mrb[0].mxu0
  %v6663 = vadd.f32 %v6619, %v6662
  %v6664 = vpop.f32.mrb[0].mxu0
  %6665 = vdwg.mxu0
  %6666 = vmatprep.subr.bf16.mxu0 0
  %6667 = vmatpush1.bf16.msra.mxu0 %v5299
  %6668 = vmatprep.subr.bf16.mxu0 0
  %6669 = vmatpush1.bf16.msra.mxu0 %v6492
  %6670 = vmatprep.subr.bf16.mxu0 0
  %6671 = vmatpush1.bf16.msra.mxu0 0
  %6672 = vmatprep.subr.bf16.mxu0 0
  %6673 = vmatpush1.bf16.msra.mxu0 0
  %6674 = vmatprep.subr.bf16.mxu0 0
  %6675 = vmatpush1.bf16.msra.mxu0 0
  %6676 = vmatprep.subr.bf16.mxu0 0
  %6677 = vmatpush1.bf16.msra.mxu0 0
  %6678 = vmatprep.subr.bf16.mxu0 0
  %6679 = vmatpush1.bf16.msra.mxu0 0
  %6680 = vmatprep.subr.bf16.mxu0 0
  %6681 = vmatpush1.bf16.msra.mxu0 0
  %6682 = vmatprep.subr.bf16.mxu0 0
  %6683 = vmatpush1.bf16.msra.mxu0 0
  %6684 = vmatprep.subr.bf16.mxu0 0
  %6685 = vmatpush1.bf16.msra.mxu0 0
  %6686 = vmatprep.subr.bf16.mxu0 0
  %6687 = vmatpush1.bf16.msra.mxu0 0
  %6688 = vmatprep.subr.bf16.mxu0 0
  %6689 = vmatpush1.bf16.msra.mxu0 0
  %6690 = vmatprep.subr.bf16.mxu0 0
  %6691 = vmatpush1.bf16.msra.mxu0 0
  %6692 = vmatprep.subr.bf16.mxu0 0
  %6693 = vmatpush1.bf16.msra.mxu0 0
  %6694 = vmatprep.subr.bf16.mxu0 0
  %6695 = vmatpush1.bf16.msra.mxu0 0
  %6696 = vmatprep.subr.bf16.mxu0 0
  %6697 = vmatpush1.bf16.msra.mxu0 0
  %6698 = vmatprep.mubr.bf16.mxu0 0
  %6699 = vmatmul.mubr.bf16.gmra.mrb[0].mxu0 %v5576
  %v6700 = vpop.f32.mrb[0].mxu0
  %v6701 = vadd.f32 0.0, %v6700
  %v6702 = vpop.f32.mrb[0].mxu0
  %v6703 = vpop.f32.mrb[0].mxu0
  %v6704 = vadd.f32 0.0, %v6703
  %v6705 = vpop.f32.mrb[0].mxu0
  %6706 = vdwg.mxu0
  %v6707 = vpack.c.bf16 %v6704, %v6701
  %v6709 = vsel %vm5189, %v6707, 0
  %6711 = vmatprep.subr.bf16.mxu0 0
  %6712 = vmatpush1.bf16.msra.mxu0 %v5645
  %6713 = vmatprep.subr.bf16.mxu0 0
  %6714 = vmatpush1.bf16.msra.mxu0 %v5646
  %6715 = vmatprep.subr.bf16.mxu0 0
  %6716 = vmatpush1.bf16.msra.mxu0 %v5647
  %6717 = vmatprep.subr.bf16.mxu0 0
  %6718 = vmatpush1.bf16.msra.mxu0 %v5648
  %6719 = vmatprep.subr.bf16.mxu0 0
  %6720 = vmatpush1.bf16.msra.mxu0 0
  %6721 = vmatprep.subr.bf16.mxu0 0
  %6722 = vmatpush1.bf16.msra.mxu0 0
  %6723 = vmatprep.subr.bf16.mxu0 0
  %6724 = vmatpush1.bf16.msra.mxu0 0
  %6725 = vmatprep.subr.bf16.mxu0 0
  %6726 = vmatpush1.bf16.msra.mxu0 0
  %6727 = vmatprep.subr.bf16.mxu0 0
  %6728 = vmatpush1.bf16.msra.mxu0 0
  %6729 = vmatprep.subr.bf16.mxu0 0
  %6730 = vmatpush1.bf16.msra.mxu0 0
  %6731 = vmatprep.subr.bf16.mxu0 0
  %6732 = vmatpush1.bf16.msra.mxu0 0
  %6733 = vmatprep.subr.bf16.mxu0 0
  %6734 = vmatpush1.bf16.msra.mxu0 0
  %6735 = vmatprep.subr.bf16.mxu0 0
  %6736 = vmatpush1.bf16.msra.mxu0 0
  %6737 = vmatprep.subr.bf16.mxu0 0
  %6738 = vmatpush1.bf16.msra.mxu0 0
  %6739 = vmatprep.subr.bf16.mxu0 0
  %6740 = vmatpush1.bf16.msra.mxu0 0
  %6741 = vmatprep.subr.bf16.mxu0 0
  %6742 = vmatpush1.bf16.msra.mxu0 0
  %6743 = vmatprep.mubr.bf16.mxu0 0
  %6744 = vmatmul.mubr.bf16.gmra.mrb[0].mxu0 %v6709
  %v6745 = vpop.f32.mrb[0].mxu0
  %v6746 = vadd.f32 0.0, %v6745
  %v6747 = vpop.f32.mrb[0].mxu0
  %v6748 = vpop.f32.mrb[0].mxu0
  %v6749 = vadd.f32 0.0, %v6748
  %v6750 = vpop.f32.mrb[0].mxu0
  %6751 = vdwg.mxu0
  %v6752 = vadd.f32 %v6660, %v6746
  %v6753 = vadd.f32 %v6663, %v6749
  %6754 = vmatprep.subr.bf16.mxu0 0
  %6755 = vmatpush1.bf16.msra.mxu0 %v5299
  %6756 = vmatprep.subr.bf16.mxu0 0
  %6757 = vmatpush1.bf16.msra.mxu0 %v6492
  %6758 = vmatprep.subr.bf16.mxu0 0
  %6759 = vmatpush1.bf16.msra.mxu0 0
  %6760 = vmatprep.subr.bf16.mxu0 0
  %6761 = vmatpush1.bf16.msra.mxu0 0
  %6762 = vmatprep.subr.bf16.mxu0 0
  %6763 = vmatpush1.bf16.msra.mxu0 0
  %6764 = vmatprep.subr.bf16.mxu0 0
  %6765 = vmatpush1.bf16.msra.mxu0 0
  %6766 = vmatprep.subr.bf16.mxu0 0
  %6767 = vmatpush1.bf16.msra.mxu0 0
  %6768 = vmatprep.subr.bf16.mxu0 0
  %6769 = vmatpush1.bf16.msra.mxu0 0
  %6770 = vmatprep.subr.bf16.mxu0 0
  %6771 = vmatpush1.bf16.msra.mxu0 0
  %6772 = vmatprep.subr.bf16.mxu0 0
  %6773 = vmatpush1.bf16.msra.mxu0 0
  %6774 = vmatprep.subr.bf16.mxu0 0
  %6775 = vmatpush1.bf16.msra.mxu0 0
  %6776 = vmatprep.subr.bf16.mxu0 0
  %6777 = vmatpush1.bf16.msra.mxu0 0
  %6778 = vmatprep.subr.bf16.mxu0 0
  %6779 = vmatpush1.bf16.msra.mxu0 0
  %6780 = vmatprep.subr.bf16.mxu0 0
  %6781 = vmatpush1.bf16.msra.mxu0 0
  %6782 = vmatprep.subr.bf16.mxu0 0
  %6783 = vmatpush1.bf16.msra.mxu0 0
  %6784 = vmatprep.subr.bf16.mxu0 0
  %6785 = vmatpush1.bf16.msra.mxu0 0
  %6786 = vmatprep.mubr.bf16.mxu0 0
  %6787 = vmatmul.mubr.bf16.gmra.mrb[0].mxu0 %v5708
  %v6788 = vpop.f32.mrb[0].mxu0
  %v6789 = vadd.f32 0.0, %v6788
  %v6790 = vpop.f32.mrb[0].mxu0
  %v6791 = vpop.f32.mrb[0].mxu0
  %v6792 = vadd.f32 0.0, %v6791
  %v6793 = vpop.f32.mrb[0].mxu0
  %6794 = vdwg.mxu0
  %v6795 = vpack.c.bf16 %v6792, %v6789
  %v6797 = vsel %vm5189, %v6795, 0
  %6799 = vmatprep.subr.bf16.mxu0 0
  %6800 = vmatpush1.bf16.msra.mxu0 %v5777
  %6801 = vmatprep.subr.bf16.mxu0 0
  %6802 = vmatpush1.bf16.msra.mxu0 %v5778
  %6803 = vmatprep.subr.bf16.mxu0 0
  %6804 = vmatpush1.bf16.msra.mxu0 %v5779
  %6805 = vmatprep.subr.bf16.mxu0 0
  %6806 = vmatpush1.bf16.msra.mxu0 %v5780
  %6807 = vmatprep.subr.bf16.mxu0 0
  %6808 = vmatpush1.bf16.msra.mxu0 0
  %6809 = vmatprep.subr.bf16.mxu0 0
  %6810 = vmatpush1.bf16.msra.mxu0 0
  %6811 = vmatprep.subr.bf16.mxu0 0
  %6812 = vmatpush1.bf16.msra.mxu0 0
  %6813 = vmatprep.subr.bf16.mxu0 0
  %6814 = vmatpush1.bf16.msra.mxu0 0
  %6815 = vmatprep.subr.bf16.mxu0 0
  %6816 = vmatpush1.bf16.msra.mxu0 0
  %6817 = vmatprep.subr.bf16.mxu0 0
  %6818 = vmatpush1.bf16.msra.mxu0 0
  %6819 = vmatprep.subr.bf16.mxu0 0
  %6820 = vmatpush1.bf16.msra.mxu0 0
  %6821 = vmatprep.subr.bf16.mxu0 0
  %6822 = vmatpush1.bf16.msra.mxu0 0
  %6823 = vmatprep.subr.bf16.mxu0 0
  %6824 = vmatpush1.bf16.msra.mxu0 0
  %6825 = vmatprep.subr.bf16.mxu0 0
  %6826 = vmatpush1.bf16.msra.mxu0 0
  %6827 = vmatprep.subr.bf16.mxu0 0
  %6828 = vmatpush1.bf16.msra.mxu0 0
  %6829 = vmatprep.subr.bf16.mxu0 0
  %6830 = vmatpush1.bf16.msra.mxu0 0
  %6831 = vmatprep.mubr.bf16.mxu0 0
  %6832 = vmatmul.mubr.bf16.gmra.mrb[0].mxu0 %v6797
  %v6833 = vpop.f32.mrb[0].mxu0
  %v6834 = vadd.f32 0.0, %v6833
  %v6835 = vpop.f32.mrb[0].mxu0
  %v6836 = vpop.f32.mrb[0].mxu0
  %v6837 = vadd.f32 0.0, %v6836
  %v6838 = vpop.f32.mrb[0].mxu0
  %6839 = vdwg.mxu0
  %v6840 = vadd.f32 %v6752, %v6834
  %v6841 = vadd.f32 %v6753, %v6837
  %6842 = vmatprep.subr.bf16.mxu0 0
  %6843 = vmatpush1.bf16.msra.mxu0 %v5299
  %6844 = vmatprep.subr.bf16.mxu0 0
  %6845 = vmatpush1.bf16.msra.mxu0 %v6492
  %6846 = vmatprep.subr.bf16.mxu0 0
  %6847 = vmatpush1.bf16.msra.mxu0 0
  %6848 = vmatprep.subr.bf16.mxu0 0
  %6849 = vmatpush1.bf16.msra.mxu0 0
  %6850 = vmatprep.subr.bf16.mxu0 0
  %6851 = vmatpush1.bf16.msra.mxu0 0
  %6852 = vmatprep.subr.bf16.mxu0 0
  %6853 = vmatpush1.bf16.msra.mxu0 0
  %6854 = vmatprep.subr.bf16.mxu0 0
  %6855 = vmatpush1.bf16.msra.mxu0 0
  %6856 = vmatprep.subr.bf16.mxu0 0
  %6857 = vmatpush1.bf16.msra.mxu0 0
  %6858 = vmatprep.subr.bf16.mxu0 0
  %6859 = vmatpush1.bf16.msra.mxu0 0
  %6860 = vmatprep.subr.bf16.mxu0 0
  %6861 = vmatpush1.bf16.msra.mxu0 0
  %6862 = vmatprep.subr.bf16.mxu0 0
  %6863 = vmatpush1.bf16.msra.mxu0 0
  %6864 = vmatprep.subr.bf16.mxu0 0
  %6865 = vmatpush1.bf16.msra.mxu0 0
  %6866 = vmatprep.subr.bf16.mxu0 0
  %6867 = vmatpush1.bf16.msra.mxu0 0
  %6868 = vmatprep.subr.bf16.mxu0 0
  %6869 = vmatpush1.bf16.msra.mxu0 0
  %6870 = vmatprep.subr.bf16.mxu0 0
  %6871 = vmatpush1.bf16.msra.mxu0 0
  %6872 = vmatprep.subr.bf16.mxu0 0
  %6873 = vmatpush1.bf16.msra.mxu0 0
  %6874 = vmatprep.mubr.bf16.mxu0 0
  %6875 = vmatmul.mubr.bf16.gmra.mrb[0].mxu0 %v5840
  %v6876 = vpop.f32.mrb[0].mxu0
  %v6877 = vadd.f32 0.0, %v6876
  %v6878 = vpop.f32.mrb[0].mxu0
  %v6879 = vpop.f32.mrb[0].mxu0
  %v6880 = vadd.f32 0.0, %v6879
  %v6881 = vpop.f32.mrb[0].mxu0
  %6882 = vdwg.mxu0
  %v6883 = vpack.c.bf16 %v6880, %v6877
  %v6885 = vsel %vm5189, %v6883, 0
  %6887 = vmatprep.subr.bf16.mxu0 0
  %6888 = vmatpush1.bf16.msra.mxu0 %v5909
  %6889 = vmatprep.subr.bf16.mxu0 0
  %6890 = vmatpush1.bf16.msra.mxu0 %v5910
  %6891 = vmatprep.subr.bf16.mxu0 0
  %6892 = vmatpush1.bf16.msra.mxu0 %v5911
  %6893 = vmatprep.subr.bf16.mxu0 0
  %6894 = vmatpush1.bf16.msra.mxu0 %v5912
  %6895 = vmatprep.subr.bf16.mxu0 0
  %6896 = vmatpush1.bf16.msra.mxu0 0
  %6897 = vmatprep.subr.bf16.mxu0 0
  %6898 = vmatpush1.bf16.msra.mxu0 0
  %6899 = vmatprep.subr.bf16.mxu0 0
  %6900 = vmatpush1.bf16.msra.mxu0 0
  %6901 = vmatprep.subr.bf16.mxu0 0
  %6902 = vmatpush1.bf16.msra.mxu0 0
  %6903 = vmatprep.subr.bf16.mxu0 0
  %6904 = vmatpush1.bf16.msra.mxu0 0
  %6905 = vmatprep.subr.bf16.mxu0 0
  %6906 = vmatpush1.bf16.msra.mxu0 0
  %6907 = vmatprep.subr.bf16.mxu0 0
  %6908 = vmatpush1.bf16.msra.mxu0 0
  %6909 = vmatprep.subr.bf16.mxu0 0
  %6910 = vmatpush1.bf16.msra.mxu0 0
  %6911 = vmatprep.subr.bf16.mxu0 0
  %6912 = vmatpush1.bf16.msra.mxu0 0
  %6913 = vmatprep.subr.bf16.mxu0 0
  %6914 = vmatpush1.bf16.msra.mxu0 0
  %6915 = vmatprep.subr.bf16.mxu0 0
  %6916 = vmatpush1.bf16.msra.mxu0 0
  %6917 = vmatprep.subr.bf16.mxu0 0
  %6918 = vmatpush1.bf16.msra.mxu0 0
  %6919 = vmatprep.mubr.bf16.mxu0 0
  %6920 = vmatmul.mubr.bf16.gmra.mrb[0].mxu0 %v6885
  %v6921 = vpop.f32.mrb[0].mxu0
  %v6922 = vadd.f32 0.0, %v6921
  %v6923 = vpop.f32.mrb[0].mxu0
  %v6924 = vpop.f32.mrb[0].mxu0
  %v6925 = vadd.f32 0.0, %v6924
  %v6926 = vpop.f32.mrb[0].mxu0
  %6927 = vdwg.mxu0
  %v6928 = vadd.f32 %v6840, %v6922
  %v6929 = vadd.f32 %v6841, %v6925
  %6930 = vmatprep.subr.bf16.mxu0 0
  %6931 = vmatpush1.bf16.msra.mxu0 %v5299
  %6932 = vmatprep.subr.bf16.mxu0 0
  %6933 = vmatpush1.bf16.msra.mxu0 %v6492
  %6934 = vmatprep.subr.bf16.mxu0 0
  %6935 = vmatpush1.bf16.msra.mxu0 0
  %6936 = vmatprep.subr.bf16.mxu0 0
  %6937 = vmatpush1.bf16.msra.mxu0 0
  %6938 = vmatprep.subr.bf16.mxu0 0
  %6939 = vmatpush1.bf16.msra.mxu0 0
  %6940 = vmatprep.subr.bf16.mxu0 0
  %6941 = vmatpush1.bf16.msra.mxu0 0
  %6942 = vmatprep.subr.bf16.mxu0 0
  %6943 = vmatpush1.bf16.msra.mxu0 0
  %6944 = vmatprep.subr.bf16.mxu0 0
  %6945 = vmatpush1.bf16.msra.mxu0 0
  %6946 = vmatprep.subr.bf16.mxu0 0
  %6947 = vmatpush1.bf16.msra.mxu0 0
  %6948 = vmatprep.subr.bf16.mxu0 0
  %6949 = vmatpush1.bf16.msra.mxu0 0
  %6950 = vmatprep.subr.bf16.mxu0 0
  %6951 = vmatpush1.bf16.msra.mxu0 0
  %6952 = vmatprep.subr.bf16.mxu0 0
  %6953 = vmatpush1.bf16.msra.mxu0 0
  %6954 = vmatprep.subr.bf16.mxu0 0
  %6955 = vmatpush1.bf16.msra.mxu0 0
  %6956 = vmatprep.subr.bf16.mxu0 0
  %6957 = vmatpush1.bf16.msra.mxu0 0
  %6958 = vmatprep.subr.bf16.mxu0 0
  %6959 = vmatpush1.bf16.msra.mxu0 0
  %6960 = vmatprep.subr.bf16.mxu0 0
  %6961 = vmatpush1.bf16.msra.mxu0 0
  %6962 = vmatprep.mubr.bf16.mxu0 0
  %6963 = vmatmul.mubr.bf16.gmra.mrb[0].mxu0 %v5972
  %v6964 = vpop.f32.mrb[0].mxu0
  %v6965 = vadd.f32 0.0, %v6964
  %v6966 = vpop.f32.mrb[0].mxu0
  %v6967 = vpop.f32.mrb[0].mxu0
  %v6968 = vadd.f32 0.0, %v6967
  %v6969 = vpop.f32.mrb[0].mxu0
  %6970 = vdwg.mxu0
  %v6971 = vpack.c.bf16 %v6968, %v6965
  %v6973 = vsel %vm5189, %v6971, 0
  %6975 = vmatprep.subr.bf16.mxu0 0
  %6976 = vmatpush1.bf16.msra.mxu0 %v6041
  %6977 = vmatprep.subr.bf16.mxu0 0
  %6978 = vmatpush1.bf16.msra.mxu0 %v6042
  %6979 = vmatprep.subr.bf16.mxu0 0
  %6980 = vmatpush1.bf16.msra.mxu0 %v6043
  %6981 = vmatprep.subr.bf16.mxu0 0
  %6982 = vmatpush1.bf16.msra.mxu0 %v6044
  %6983 = vmatprep.subr.bf16.mxu0 0
  %6984 = vmatpush1.bf16.msra.mxu0 0
  %6985 = vmatprep.subr.bf16.mxu0 0
  %6986 = vmatpush1.bf16.msra.mxu0 0
  %6987 = vmatprep.subr.bf16.mxu0 0
  %6988 = vmatpush1.bf16.msra.mxu0 0
  %6989 = vmatprep.subr.bf16.mxu0 0
  %6990 = vmatpush1.bf16.msra.mxu0 0
  %6991 = vmatprep.subr.bf16.mxu0 0
  %6992 = vmatpush1.bf16.msra.mxu0 0
  %6993 = vmatprep.subr.bf16.mxu0 0
  %6994 = vmatpush1.bf16.msra.mxu0 0
  %6995 = vmatprep.subr.bf16.mxu0 0
  %6996 = vmatpush1.bf16.msra.mxu0 0
  %6997 = vmatprep.subr.bf16.mxu0 0
  %6998 = vmatpush1.bf16.msra.mxu0 0
  %6999 = vmatprep.subr.bf16.mxu0 0
  %7000 = vmatpush1.bf16.msra.mxu0 0
  %7001 = vmatprep.subr.bf16.mxu0 0
  %7002 = vmatpush1.bf16.msra.mxu0 0
  %7003 = vmatprep.subr.bf16.mxu0 0
  %7004 = vmatpush1.bf16.msra.mxu0 0
  %7005 = vmatprep.subr.bf16.mxu0 0
  %7006 = vmatpush1.bf16.msra.mxu0 0
  %7007 = vmatprep.mubr.bf16.mxu0 0
  %7008 = vmatmul.mubr.bf16.gmra.mrb[0].mxu0 %v6973
  %v7009 = vpop.f32.mrb[0].mxu0
  %v7010 = vadd.f32 0.0, %v7009
  %v7011 = vpop.f32.mrb[0].mxu0
  %v7012 = vpop.f32.mrb[0].mxu0
  %v7013 = vadd.f32 0.0, %v7012
  %v7014 = vpop.f32.mrb[0].mxu0
  %7015 = vdwg.mxu0
  %v7016 = vadd.f32 %v6928, %v7010
  %v7017 = vadd.f32 %v6929, %v7013
  %7018 = vmatprep.subr.bf16.mxu0 0
  %7019 = vmatpush1.bf16.msra.mxu0 %v5299
  %7020 = vmatprep.subr.bf16.mxu0 0
  %7021 = vmatpush1.bf16.msra.mxu0 %v6492
  %7022 = vmatprep.subr.bf16.mxu0 0
  %7023 = vmatpush1.bf16.msra.mxu0 0
  %7024 = vmatprep.subr.bf16.mxu0 0
  %7025 = vmatpush1.bf16.msra.mxu0 0
  %7026 = vmatprep.subr.bf16.mxu0 0
  %7027 = vmatpush1.bf16.msra.mxu0 0
  %7028 = vmatprep.subr.bf16.mxu0 0
  %7029 = vmatpush1.bf16.msra.mxu0 0
  %7030 = vmatprep.subr.bf16.mxu0 0
  %7031 = vmatpush1.bf16.msra.mxu0 0
  %7032 = vmatprep.subr.bf16.mxu0 0
  %7033 = vmatpush1.bf16.msra.mxu0 0
  %7034 = vmatprep.subr.bf16.mxu0 0
  %7035 = vmatpush1.bf16.msra.mxu0 0
  %7036 = vmatprep.subr.bf16.mxu0 0
  %7037 = vmatpush1.bf16.msra.mxu0 0
  %7038 = vmatprep.subr.bf16.mxu0 0
  %7039 = vmatpush1.bf16.msra.mxu0 0
  %7040 = vmatprep.subr.bf16.mxu0 0
  %7041 = vmatpush1.bf16.msra.mxu0 0
  %7042 = vmatprep.subr.bf16.mxu0 0
  %7043 = vmatpush1.bf16.msra.mxu0 0
  %7044 = vmatprep.subr.bf16.mxu0 0
  %7045 = vmatpush1.bf16.msra.mxu0 0
  %7046 = vmatprep.subr.bf16.mxu0 0
  %7047 = vmatpush1.bf16.msra.mxu0 0
  %7048 = vmatprep.subr.bf16.mxu0 0
  %7049 = vmatpush1.bf16.msra.mxu0 0
  %7050 = vmatprep.mubr.bf16.mxu0 0
  %7051 = vmatmul.mubr.bf16.gmra.mrb[0].mxu0 %v6104
  %v7052 = vpop.f32.mrb[0].mxu0
  %v7053 = vadd.f32 0.0, %v7052
  %v7054 = vpop.f32.mrb[0].mxu0
  %v7055 = vpop.f32.mrb[0].mxu0
  %v7056 = vadd.f32 0.0, %v7055
  %v7057 = vpop.f32.mrb[0].mxu0
  %7058 = vdwg.mxu0
  %v7059 = vpack.c.bf16 %v7056, %v7053
  %v7061 = vsel %vm5189, %v7059, 0
  %7063 = vmatprep.subr.bf16.mxu0 0
  %7064 = vmatpush1.bf16.msra.mxu0 %v6173
  %7065 = vmatprep.subr.bf16.mxu0 0
  %7066 = vmatpush1.bf16.msra.mxu0 %v6174
  %7067 = vmatprep.subr.bf16.mxu0 0
  %7068 = vmatpush1.bf16.msra.mxu0 %v6175
  %7069 = vmatprep.subr.bf16.mxu0 0
  %7070 = vmatpush1.bf16.msra.mxu0 %v6176
  %7071 = vmatprep.subr.bf16.mxu0 0
  %7072 = vmatpush1.bf16.msra.mxu0 0
  %7073 = vmatprep.subr.bf16.mxu0 0
  %7074 = vmatpush1.bf16.msra.mxu0 0
  %7075 = vmatprep.subr.bf16.mxu0 0
  %7076 = vmatpush1.bf16.msra.mxu0 0
  %7077 = vmatprep.subr.bf16.mxu0 0
  %7078 = vmatpush1.bf16.msra.mxu0 0
  %7079 = vmatprep.subr.bf16.mxu0 0
  %7080 = vmatpush1.bf16.msra.mxu0 0
  %7081 = vmatprep.subr.bf16.mxu0 0
  %7082 = vmatpush1.bf16.msra.mxu0 0
  %7083 = vmatprep.subr.bf16.mxu0 0
  %7084 = vmatpush1.bf16.msra.mxu0 0
  %7085 = vmatprep.subr.bf16.mxu0 0
  %7086 = vmatpush1.bf16.msra.mxu0 0
  %7087 = vmatprep.subr.bf16.mxu0 0
  %7088 = vmatpush1.bf16.msra.mxu0 0
  %7089 = vmatprep.subr.bf16.mxu0 0
  %7090 = vmatpush1.bf16.msra.mxu0 0
  %7091 = vmatprep.subr.bf16.mxu0 0
  %7092 = vmatpush1.bf16.msra.mxu0 0
  %7093 = vmatprep.subr.bf16.mxu0 0
  %7094 = vmatpush1.bf16.msra.mxu0 0
  %7095 = vmatprep.mubr.bf16.mxu0 0
  %7096 = vmatmul.mubr.bf16.gmra.mrb[0].mxu0 %v7061
  %v7097 = vpop.f32.mrb[0].mxu0
  %v7098 = vadd.f32 0.0, %v7097
  %v7099 = vpop.f32.mrb[0].mxu0
  %v7100 = vpop.f32.mrb[0].mxu0
  %v7101 = vadd.f32 0.0, %v7100
  %v7102 = vpop.f32.mrb[0].mxu0
  %7103 = vdwg.mxu0
  %v7104 = vadd.f32 %v7016, %v7098
  %v7105 = vadd.f32 %v7017, %v7101
  %7106 = vmatprep.subr.bf16.mxu0 0
  %7107 = vmatpush1.bf16.msra.mxu0 %v5299
  %7108 = vmatprep.subr.bf16.mxu0 0
  %7109 = vmatpush1.bf16.msra.mxu0 %v6492
  %7110 = vmatprep.subr.bf16.mxu0 0
  %7111 = vmatpush1.bf16.msra.mxu0 0
  %7112 = vmatprep.subr.bf16.mxu0 0
  %7113 = vmatpush1.bf16.msra.mxu0 0
  %7114 = vmatprep.subr.bf16.mxu0 0
  %7115 = vmatpush1.bf16.msra.mxu0 0
  %7116 = vmatprep.subr.bf16.mxu0 0
  %7117 = vmatpush1.bf16.msra.mxu0 0
  %7118 = vmatprep.subr.bf16.mxu0 0
  %7119 = vmatpush1.bf16.msra.mxu0 0
  %7120 = vmatprep.subr.bf16.mxu0 0
  %7121 = vmatpush1.bf16.msra.mxu0 0
  %7122 = vmatprep.subr.bf16.mxu0 0
  %7123 = vmatpush1.bf16.msra.mxu0 0
  %7124 = vmatprep.subr.bf16.mxu0 0
  %7125 = vmatpush1.bf16.msra.mxu0 0
  %7126 = vmatprep.subr.bf16.mxu0 0
  %7127 = vmatpush1.bf16.msra.mxu0 0
  %7128 = vmatprep.subr.bf16.mxu0 0
  %7129 = vmatpush1.bf16.msra.mxu0 0
  %7130 = vmatprep.subr.bf16.mxu0 0
  %7131 = vmatpush1.bf16.msra.mxu0 0
  %7132 = vmatprep.subr.bf16.mxu0 0
  %7133 = vmatpush1.bf16.msra.mxu0 0
  %7134 = vmatprep.subr.bf16.mxu0 0
  %7135 = vmatpush1.bf16.msra.mxu0 0
  %7136 = vmatprep.subr.bf16.mxu0 0
  %7137 = vmatpush1.bf16.msra.mxu0 0
  %7138 = vmatprep.mubr.bf16.mxu0 0
  %7139 = vmatmul.mubr.bf16.gmra.mrb[0].mxu0 %v6236
  %v7140 = vpop.f32.mrb[0].mxu0
  %v7141 = vadd.f32 0.0, %v7140
  %v7142 = vpop.f32.mrb[0].mxu0
  %v7143 = vpop.f32.mrb[0].mxu0
  %v7144 = vadd.f32 0.0, %v7143
  %v7145 = vpop.f32.mrb[0].mxu0
  %7146 = vdwg.mxu0
  %v7147 = vpack.c.bf16 %v7144, %v7141
  %v7149 = vsel %vm5189, %v7147, 0
  %7151 = vmatprep.subr.bf16.mxu0 0
  %7152 = vmatpush1.bf16.msra.mxu0 %v6305
  %7153 = vmatprep.subr.bf16.mxu0 0
  %7154 = vmatpush1.bf16.msra.mxu0 %v6306
  %7155 = vmatprep.subr.bf16.mxu0 0
  %7156 = vmatpush1.bf16.msra.mxu0 %v6307
  %7157 = vmatprep.subr.bf16.mxu0 0
  %7158 = vmatpush1.bf16.msra.mxu0 %v6308
  %7159 = vmatprep.subr.bf16.mxu0 0
  %7160 = vmatpush1.bf16.msra.mxu0 0
  %7161 = vmatprep.subr.bf16.mxu0 0
  %7162 = vmatpush1.bf16.msra.mxu0 0
  %7163 = vmatprep.subr.bf16.mxu0 0
  %7164 = vmatpush1.bf16.msra.mxu0 0
  %7165 = vmatprep.subr.bf16.mxu0 0
  %7166 = vmatpush1.bf16.msra.mxu0 0
  %7167 = vmatprep.subr.bf16.mxu0 0
  %7168 = vmatpush1.bf16.msra.mxu0 0
  %7169 = vmatprep.subr.bf16.mxu0 0
  %7170 = vmatpush1.bf16.msra.mxu0 0
  %7171 = vmatprep.subr.bf16.mxu0 0
  %7172 = vmatpush1.bf16.msra.mxu0 0
  %7173 = vmatprep.subr.bf16.mxu0 0
  %7174 = vmatpush1.bf16.msra.mxu0 0
  %7175 = vmatprep.subr.bf16.mxu0 0
  %7176 = vmatpush1.bf16.msra.mxu0 0
  %7177 = vmatprep.subr.bf16.mxu0 0
  %7178 = vmatpush1.bf16.msra.mxu0 0
  %7179 = vmatprep.subr.bf16.mxu0 0
  %7180 = vmatpush1.bf16.msra.mxu0 0
  %7181 = vmatprep.subr.bf16.mxu0 0
  %7182 = vmatpush1.bf16.msra.mxu0 0
  %7183 = vmatprep.mubr.bf16.mxu0 0
  %7184 = vmatmul.mubr.bf16.gmra.mrb[0].mxu0 %v7149
  %v7185 = vpop.f32.mrb[0].mxu0
  %v7186 = vadd.f32 0.0, %v7185
  %v7187 = vpop.f32.mrb[0].mxu0
  %v7188 = vpop.f32.mrb[0].mxu0
  %v7189 = vadd.f32 0.0, %v7188
  %v7190 = vpop.f32.mrb[0].mxu0
  %7191 = vdwg.mxu0
  %v7192 = vadd.f32 %v7104, %v7186
  %v7193 = vadd.f32 %v7105, %v7189
  %7194 = vmatprep.subr.bf16.mxu0 0
  %7195 = vmatpush1.bf16.msra.mxu0 %v5299
  %7196 = vmatprep.subr.bf16.mxu0 0
  %7197 = vmatpush1.bf16.msra.mxu0 %v6492
  %7198 = vmatprep.subr.bf16.mxu0 0
  %7199 = vmatpush1.bf16.msra.mxu0 0
  %7200 = vmatprep.subr.bf16.mxu0 0
  %7201 = vmatpush1.bf16.msra.mxu0 0
  %7202 = vmatprep.subr.bf16.mxu0 0
  %7203 = vmatpush1.bf16.msra.mxu0 0
  %7204 = vmatprep.subr.bf16.mxu0 0
  %7205 = vmatpush1.bf16.msra.mxu0 0
  %7206 = vmatprep.subr.bf16.mxu0 0
  %7207 = vmatpush1.bf16.msra.mxu0 0
  %7208 = vmatprep.subr.bf16.mxu0 0
  %7209 = vmatpush1.bf16.msra.mxu0 0
  %7210 = vmatprep.subr.bf16.mxu0 0
  %7211 = vmatpush1.bf16.msra.mxu0 0
  %7212 = vmatprep.subr.bf16.mxu0 0
  %7213 = vmatpush1.bf16.msra.mxu0 0
  %7214 = vmatprep.subr.bf16.mxu0 0
  %7215 = vmatpush1.bf16.msra.mxu0 0
  %7216 = vmatprep.subr.bf16.mxu0 0
  %7217 = vmatpush1.bf16.msra.mxu0 0
  %7218 = vmatprep.subr.bf16.mxu0 0
  %7219 = vmatpush1.bf16.msra.mxu0 0
  %7220 = vmatprep.subr.bf16.mxu0 0
  %7221 = vmatpush1.bf16.msra.mxu0 0
  %7222 = vmatprep.subr.bf16.mxu0 0
  %7223 = vmatpush1.bf16.msra.mxu0 0
  %7224 = vmatprep.subr.bf16.mxu0 0
  %7225 = vmatpush1.bf16.msra.mxu0 0
  %7226 = vmatprep.mubr.bf16.mxu0 0
  %7227 = vmatmul.mubr.bf16.gmra.mrb[0].mxu0 %v6368
  %v7228 = vpop.f32.mrb[0].mxu0
  %v7229 = vadd.f32 0.0, %v7228
  %v7230 = vpop.f32.mrb[0].mxu0
  %v7231 = vpop.f32.mrb[0].mxu0
  %v7232 = vadd.f32 0.0, %v7231
  %v7233 = vpop.f32.mrb[0].mxu0
  %7234 = vdwg.mxu0
  %v7235 = vpack.c.bf16 %v7232, %v7229
  %v7237 = vsel %vm5189, %v7235, 0
  %7239 = vmatprep.subr.bf16.mxu0 0
  %7240 = vmatpush1.bf16.msra.mxu0 %v6437
  %7241 = vmatprep.subr.bf16.mxu0 0
  %7242 = vmatpush1.bf16.msra.mxu0 %v6438
  %7243 = vmatprep.subr.bf16.mxu0 0
  %7244 = vmatpush1.bf16.msra.mxu0 %v6439
  %7245 = vmatprep.subr.bf16.mxu0 0
  %7246 = vmatpush1.bf16.msra.mxu0 %v6440
  %7247 = vmatprep.subr.bf16.mxu0 0
  %7248 = vmatpush1.bf16.msra.mxu0 0
  %7249 = vmatprep.subr.bf16.mxu0 0
  %7250 = vmatpush1.bf16.msra.mxu0 0
  %7251 = vmatprep.subr.bf16.mxu0 0
  %7252 = vmatpush1.bf16.msra.mxu0 0
  %7253 = vmatprep.subr.bf16.mxu0 0
  %7254 = vmatpush1.bf16.msra.mxu0 0
  %7255 = vmatprep.subr.bf16.mxu0 0
  %7256 = vmatpush1.bf16.msra.mxu0 0
  %7257 = vmatprep.subr.bf16.mxu0 0
  %7258 = vmatpush1.bf16.msra.mxu0 0
  %7259 = vmatprep.subr.bf16.mxu0 0
  %7260 = vmatpush1.bf16.msra.mxu0 0
  %7261 = vmatprep.subr.bf16.mxu0 0
  %7262 = vmatpush1.bf16.msra.mxu0 0
  %7263 = vmatprep.subr.bf16.mxu0 0
  %7264 = vmatpush1.bf16.msra.mxu0 0
  %7265 = vmatprep.subr.bf16.mxu0 0
  %7266 = vmatpush1.bf16.msra.mxu0 0
  %7267 = vmatprep.subr.bf16.mxu0 0
  %7268 = vmatpush1.bf16.msra.mxu0 0
  %7269 = vmatprep.subr.bf16.mxu0 0
  %7270 = vmatpush1.bf16.msra.mxu0 0
  %7271 = vmatprep.mubr.bf16.mxu0 0
  %7272 = vmatmul.mubr.bf16.gmra.mrb[0].mxu0 %v7237
  %v7273 = vpop.f32.mrb[0].mxu0
  %v7274 = vadd.f32 0.0, %v7273
  %v7275 = vpop.f32.mrb[0].mxu0
  %v7276 = vpop.f32.mrb[0].mxu0
  %v7277 = vadd.f32 0.0, %v7276
  %v7278 = vpop.f32.mrb[0].mxu0
  %7279 = vdwg.mxu0
  %v7280 = vadd.f32 %v7192, %v7274
  %v7281 = vadd.f32 %v7193, %v7277
  %v7282 = vld [vmem:[%s10] sm:$0x1]
  %v7283 = vld [vmem:[%s11] sm:$0x1]
  %v7284 = vsel %vm5189, %v6489, 0.0
  %v7285 = vsel %vm5195, %v6490, 0.0
  %v7286 = vadd.f32 %v7284, %v7285
  %v7287 = vrot.slane %v7286, 4
  %v7288 = vadd.f32 %v7286, %v7287
  %v7289 = vrot.slane %v7288, 2
  %v7290 = vadd.f32 %v7288, %v7289
  %v7291 = vrot.slane %v7290, 1
  %v7292 = vadd.f32 %v7290, %v7291
  %v7293 = vmul.f32 %v6489, %v6489
  %v7294 = vmul.f32 %v6490, %v6490
  %v7295 = vsel %vm5189, %v7293, 0.0
  %v7296 = vsel %vm5195, %v7294, 0.0
  %v7297 = vadd.f32 %v7295, %v7296
  %v7298 = vrot.slane %v7297, 4
  %v7299 = vadd.f32 %v7297, %v7298
  %v7300 = vrot.slane %v7299, 2
  %v7301 = vadd.f32 %v7299, %v7300
  %v7302 = vrot.slane %v7301, 1
  %v7303 = vadd.f32 %v7301, %v7302
  %v7304 = vsel %vm5189, %v7280, 0.0
  %v7305 = vsel %vm5195, %v7281, 0.0
  %v7306 = vadd.f32 %v7304, %v7305
  %v7307 = vrot.slane %v7306, 4
  %v7308 = vadd.f32 %v7306, %v7307
  %v7309 = vrot.slane %v7308, 2
  %v7310 = vadd.f32 %v7308, %v7309
  %v7311 = vrot.slane %v7310, 1
  %v7312 = vadd.f32 %v7310, %v7311
  %v7313 = vadd.f32 %v7292, %v7312
  %v7314 = vmul.f32 %v7280, %v7280
  %v7315 = vmul.f32 %v7281, %v7281
  %v7316 = vsel %vm5189, %v7314, 0.0
  %v7317 = vsel %vm5195, %v7315, 0.0
  %v7318 = vadd.f32 %v7316, %v7317
  %v7319 = vrot.slane %v7318, 4
  %v7320 = vadd.f32 %v7318, %v7319
  %v7321 = vrot.slane %v7320, 2
  %v7322 = vadd.f32 %v7320, %v7321
  %v7323 = vrot.slane %v7322, 1
  %v7324 = vadd.f32 %v7322, %v7323
  %v7325 = vadd.f32 %v7303, %v7324
  %v7326 = vmul.f32 %v7313, 0.055555556
  %v7327 = vmul.f32 %v7325, 0.055555556
  %v7328 = vmul.f32 %v7326, %v7326
  %v7329 = vsub.f32 %v7327, %v7328
  %v7330 = vmax.f32 %v7329, 0.0
  %v7331 = vadd.f32 %v7330, 1e-05
  %v7332 = vrsqrt.pop %v7331
  %v7333 = vmul.f32 %v7332, %v7282
  %v7334 = vmul.f32 %v7326, %v7333
  %v7335 = vsub.f32 %v7283, %v7334
  %v7336 = vlaneseq
  %v7337 = vshrl.u32 %v7336, 7
  %v7338 = vsub.s32 0, %v7337
  %v7339 = vrot.slane %v7333, %v7338
  %v7340 = vmul.f32 %v6489, %v7339
  %v7341 = vmul.f32 %v6490, %v7339
  %v7343 = vlaneseq
  %v7344 = vshrl.u32 %v7343, 7
  %v7345 = vsub.s32 0, %v7344
  %v7346 = vrot.slane %v7335, %v7345
  %v7348 = vadd.f32 %v7340, %v7346
  %v7349 = vadd.f32 %v7341, %v7346
  %v7350 = vmax.f32 %v7348, 0.0
  %v7351 = vmax.f32 %v7349, 0.0
  %v7352 = vmul.f32 %v7280, %v7339
  %v7353 = vmul.f32 %v7281, %v7339
  %v7354 = vadd.f32 %v7352, %v7346
  %v7355 = vadd.f32 %v7353, %v7346
  %v7356 = vmax.f32 %v7354, 0.0
  %v7357 = vmax.f32 %v7355, 0.0
  %7358 = vst.msk [vmem:[%s12] sm:$0xff] %vm5189, %v7350
  %7359 = vst.msk [vmem:[%s12 + $0x8] sm:$0x1] %vm5195, %v7351
  %s7360 = scalar_lea.vmem %s12, 16
  %7361 = vst.msk [vmem:[%s7360] sm:$0xff] %vm5189, %v7356
  %7362 = vst.msk [vmem:[%s7360 + $0x8] sm:$0x1] %vm5195, %v7357
  // Predicated region
  $region50: #{convnet_forward.1} parent=0 // pred_check
    _
  $region51: #{convnet_forward.1} parent=0 // pred_check_branch
    %7364 = sbr.rel (0) target = $region53
  $region52: #{convnet_forward.1} parent=0 // pred_region
    _
  $region53: #{convnet_forward.1} parent=0 // pred_fallthru
    _
  // Predicated region
  $region54: #{convnet_forward.1} parent=0 // pred_check
    _
  $region55: #{convnet_forward.1} parent=0 // pred_check_branch
    %7366 = sbr.rel (0) target = $region57
  $region56: #{convnet_forward.1} parent=0 // pred_region
    _
  $region57: #{convnet_forward.1} parent=0 // pred_fallthru
    _

</llo_original>
